<compile_context>
chip_gen: v7x
topology: tpu7x:2x2x1
jax: 0.10.0
libtpu: 0.0.40
codegen_flags: <defaults>
</compile_context>

<pallas_src>
import functools

import numpy as np
import jax
import jax.numpy as jnp
from jax.experimental import pallas as pl
from jax.experimental.pallas import tpu as pltpu


# --------------------------------------------------------------------------- #
# Kernel                                                                      #
# --------------------------------------------------------------------------- #
def _wmsa_kernel(x_ref, wqkv_ref, bqkv_ref, bias_ref, mask_ref, wproj_ref,
                 bproj_ref, o_ref, *, num_heads, head_dim, scale, n_mask):
    """One grid step processes a block of Bt windows.

    x_ref    : (Bt, N, C)        input tokens for Bt windows
    wqkv_ref : (C, 3C)           fused qkv weight (pre-transposed, [q|k|v] cols)
    bqkv_ref : (1, 3C)           fused qkv bias
    bias_ref : (H, N, N)         relative position bias (gathered/permuted)
    mask_ref : (n_mask, N, N)    additive masks; window b uses mask[b % n_mask]
    wproj_ref: (H, hd, C)        output projection weight, split per head
    bproj_ref: (1, C)            output projection bias
    o_ref    : (Bt, N, C)        output
    """
    Bt, N, C = x_ref.shape
    G = Bt // n_mask                                         # windows per mask period

    # ---- fused QKV projection: one (Bt*N, C) x (C, 3C) MXU matmul ----
    x2 = x_ref[...].reshape(Bt * N, C)
    qkv = jnp.dot(x2, wqkv_ref[...], preferred_element_type=jnp.float32)
    qkv = qkv + bqkv_ref[...]                                # (Bt*N, 3C)

    bias = bias_ref[...]                                     # (H, N, N)
    mask = mask_ref[...]                                     # (n_mask, N, N)

    acc = None
    for h in range(num_heads):                               # static, unrolled
        lo = h * head_dim
        q = (qkv[:, lo:lo + head_dim] * scale).reshape(Bt, N, head_dim)
        k = qkv[:, C + lo:C + lo + head_dim].reshape(Bt, N, head_dim)
        v = qkv[:, 2 * C + lo:2 * C + lo + head_dim].reshape(Bt, N, head_dim)

        # batched attention scores over the Bt window axis
        s = jnp.einsum("bqd,bkd->bqk", q, k,
                       preferred_element_type=jnp.float32)   # (Bt, N, N)

        # combined rel-pos bias + window mask: only one add touches the big tensor
        bm = bias[h][None] + mask                            # (n_mask, N, N)
        s = (s.reshape(G, n_mask, N, N) + bm[None]).reshape(Bt, N, N)

        # softmax over keys: exp -> EUP, reciprocal -> EUP, multiply -> VPU
        s = s - jnp.max(s, axis=-1, keepdims=True)
        p = jnp.exp(s)
        inv = pl.reciprocal(jnp.sum(p, axis=-1, keepdims=True), approx=False)
        p = p * inv

        o_h = jnp.einsum("bqk,bkd->bqd", p, v,
                         preferred_element_type=jnp.float32) # (Bt, N, hd)

        # fold head recombination into the output projection (no lane concat)
        term = jnp.dot(o_h.reshape(Bt * N, head_dim), wproj_ref[h],
                       preferred_element_type=jnp.float32)   # (Bt*N, C)
        acc = term if acc is None else acc + term

    y = acc + bproj_ref[...]                                 # (Bt*N, C)
    o_ref[...] = y.reshape(Bt, N, C).astype(o_ref.dtype)


# --------------------------------------------------------------------------- #
# Parameter preparation (one-time, outside the hot path)                      #
# --------------------------------------------------------------------------- #
def _double_step_seq(step1, len1, step2, len2):
    seq1 = jnp.arange(0, step1 * len1, step1)
    seq2 = jnp.arange(0, step2 * len2, step2)
    return (seq1[:, None] + seq2[None, :]).reshape(1, -1)


def _relative_position_index(window_size):
    Wh, Ww = window_size
    rel_index_coords = _double_step_seq(2 * Ww - 1, Wh, 1, Ww)   # (1, Wh*Ww)
    rel_position_index = rel_index_coords + rel_index_coords.T   # (N, N)
    rel_position_index = rel_position_index[:, ::-1]             # .flip(1)
    return rel_position_index


def prepare_wmsa_params(params, *, embed_dim, window_size, head_dim):
    """'order'-mode dynamic slicing + transposes + rel-pos-bias gather, done once."""
    C = embed_dim
    Wh, Ww = window_size
    N = Wh * Ww
    assert C % head_dim == 0
    num_heads = C // head_dim

    qkv_w, qkv_b = params["qkv_w"], params["qkv_b"]        # (3, M, M), (3, M)
    proj_w, proj_b = params["proj_w"], params["proj_b"]    # (M, M), (M,)
    table = params["rel_pos_bias_table"]                   # ((2Wh-1)(2Ww-1), maxH)

    # TODO(synk): only 'order' mode (leading-C channel slices) is implemented;
    # 'random' mode would need an index gather over channels here.
    w_qkv = jnp.concatenate([qkv_w[g, :C, :C] for g in range(3)], axis=0)   # (3C, C)
    w_qkv_t = jnp.transpose(w_qkv).astype(jnp.float32)                       # (C, 3C)
    b_qkv = jnp.concatenate([qkv_b[g, :C] for g in range(3)], axis=0)
    b_qkv = b_qkv.reshape(1, 3 * C).astype(jnp.float32)
    # output projection, split per head: rows of W^T grouped as (H, hd, C)
    w_proj_hdc = jnp.transpose(proj_w[:C, :C]).reshape(num_heads, head_dim, C)
    w_proj_hdc = w_proj_hdc.astype(jnp.float32)
    b_proj = proj_b[:C].reshape(1, C).astype(jnp.float32)

    rel_idx = _relative_position_index(window_size)                          # (N, N)
    bias = table[rel_idx.reshape(-1)].reshape(N, N, -1)                      # (N,N,maxH)
    bias = jnp.transpose(bias, (2, 0, 1))[:num_heads].astype(jnp.float32)    # (H,N,N)

    return {"w_qkv_t": w_qkv_t, "b_qkv": b_qkv, "w_proj_hdc": w_proj_hdc,
            "b_proj": b_proj, "rel_bias": bias}


def _choose_block_windows(B, n_mask, N, C, num_heads,
                          vmem_budget_bytes=24 << 20, max_windows=256):
    """Pick Bt (windows per grid step): divides B, multiple of n_mask, VMEM-safe.

    Budget is conservative (24 MiB) so it fits the default scoped-VMEM limit on
    v5e/v6e and the smaller 64 MiB physical VMEM of v7x without extra flags.
    """
    per_window = 4 * (2 * 2 * N * C        # x + out blocks, double-buffered
                      + 3 * N * C          # qkv activation
                      + 3 * N * N)         # scores / exp / prob temporaries
    fixed = 4 * (3 * C * C + C * C + num_heads * N * N + n_mask * N * N)
    cap = max(1, (vmem_budget_bytes - fixed) // max(per_window, 1))
    cap = int(min(cap, max_windows, B))
    best = n_mask
    for cand in range(n_mask, cap + 1, n_mask):
        if B % cand == 0:
            best = cand
    return best


# --------------------------------------------------------------------------- #
# Forward wrapper                                                             #
# --------------------------------------------------------------------------- #
def dynamic_window_msa(x, prepared, *, window_size, head_dim, mask=None):
    """Pallas implementation of DynamicWindowMSA.forward ('order' mode).

    x:    (B, N, C) with N == Wh*Ww and C % head_dim == 0.
    mask: optional (nW, N, N), B % nW == 0.
    """
    B, N, C = x.shape
    Wh, Ww = window_size
    assert N == Wh * Ww
    assert C % head_dim == 0
    num_heads = C // head_dim
    scale = head_dim ** (-0.5)

    if mask is None:
        n_mask = 1
        mask_arr = jnp.zeros((1, N, N), jnp.float32)
    else:
        n_mask = mask.shape[0]
        assert B % n_mask == 0
        mask_arr = mask.astype(jnp.float32)

    w_qkv_t = prepared["w_qkv_t"]
    b_qkv = prepared["b_qkv"]
    w_proj_hdc = prepared["w_proj_hdc"]
    b_proj = prepared["b_proj"]
    bias = prepared["rel_bias"]

    Bt = _choose_block_windows(B, n_mask, N, C, num_heads)
    nb = B // Bt          # note: on v7x, an even nb keeps both TCs busy

    kernel = functools.partial(_wmsa_kernel, num_heads=num_heads,
                               head_dim=head_dim, scale=scale, n_mask=n_mask)

    flops = 8 * B * N * C * C + 4 * B * N * N * C
    transcendentals = B * num_heads * N * (N + 1)
    bytes_accessed = 4 * (2 * x.size + w_qkv_t.size + b_qkv.size + bias.size
                          + mask_arr.size + w_proj_hdc.size + b_proj.size)

    out = pl.pallas_call(
        kernel,
        out_shape=jax.ShapeDtypeStruct((B, N, C), x.dtype),
        grid_spec=pltpu.PrefetchScalarGridSpec(
            num_scalar_prefetch=0,
            grid=(nb,),
            in_specs=[
                pl.BlockSpec((Bt, N, C), lambda b: (b, 0, 0)),          # x
                pl.BlockSpec((C, 3 * C), lambda b: (0, 0)),             # w_qkv^T
                pl.BlockSpec((1, 3 * C), lambda b: (0, 0)),             # b_qkv
                pl.BlockSpec((num_heads, N, N), lambda b: (0, 0, 0)),   # rel bias
                pl.BlockSpec((n_mask, N, N), lambda b: (0, 0, 0)),      # mask
                pl.BlockSpec((num_heads, head_dim, C), lambda b: (0, 0, 0)),  # w_proj
                pl.BlockSpec((1, C), lambda b: (0, 0)),                 # b_proj
            ],
            out_specs=pl.BlockSpec((Bt, N, C), lambda b: (b, 0, 0)),
        ),
        compiler_params=pltpu.CompilerParams(
            dimension_semantics=("parallel",)),
        cost_estimate=pl.CostEstimate(flops=int(flops),
                                      transcendentals=int(transcendentals),
                                      bytes_accessed=int(bytes_accessed)),
    )(x, w_qkv_t, b_qkv, bias, mask_arr, w_proj_hdc, b_proj)
    return out


# --------------------------------------------------------------------------- #
# Pure-JAX reference (mirrors the PyTorch forward, dropout rates = 0)         #
# --------------------------------------------------------------------------- #
def _reference(x, params, *, window_size, head_dim, mask=None):
    B, N, C = x.shape
    num_heads = C // head_dim
    scale = head_dim ** (-0.5)

    qkv_w, qkv_b = params["qkv_w"], params["qkv_b"]
    proj_w, proj_b = params["proj_w"], params["proj_b"]
    table = params["rel_pos_bias_table"]

    w_qkv = jnp.concatenate([qkv_w[g, :C, :C] for g in range(3)], axis=0)
    b_qkv = jnp.concatenate([qkv_b[g, :C] for g in range(3)], axis=0)
    qkv = jnp.einsum("bnc,oc->bno", x, w_qkv) + b_qkv                        # (B,N,3C)
    qkv = qkv.reshape(B, N, 3, num_heads, head_dim).transpose(2, 0, 3, 1, 4)
    q, k, v = qkv[0], qkv[1], qkv[2]                                         # (B,H,N,hd)
    q = q * scale
    attn = jnp.einsum("bhnd,bhmd->bhnm", q, k)                               # (B,H,N,N)

    rel_idx = _relative_position_index(window_size)
    bias = table[rel_idx.reshape(-1)].reshape(N, N, -1)
    bias = jnp.transpose(bias, (2, 0, 1))[:num_heads]
    attn = attn + bias[None]

    if mask is not None:
        nW = mask.shape[0]
        attn = attn.reshape(B // nW, nW, num_heads, N, N) + mask[None, :, None]
        attn = attn.reshape(B, num_heads, N, N)

    attn = jax.nn.softmax(attn, axis=-1)
    out = jnp.einsum("bhnm,bhmd->bhnd", attn, v)                             # (B,H,N,hd)
    out = out.transpose(0, 2, 1, 3).reshape(B, N, C)
    out = jnp.einsum("bnc,oc->bno", out, proj_w[:C, :C]) + proj_b[:C]
    return out


# --------------------------------------------------------------------------- #
# Self-test                                                                   #
# --------------------------------------------------------------------------- #
if __name__ == "__main__":
    key = jax.random.PRNGKey(0)
    ks = jax.random.split(key, 7)

    window_size = (4, 4)
    Wh, Ww = window_size
    N = Wh * Ww                       # 16 tokens per window
    max_embed_dim = 64
    head_dim = 8
    max_num_head = max_embed_dim // head_dim
    C = 32                            # dynamic embed dim actually used (order mode)
    nW = 4                            # number of distinct window masks
    B = 2 * nW                        # num_windows * batch

    x = jax.random.normal(ks[0], (B, N, C), jnp.float32)

    params = {
        "rel_pos_bias_table": 0.02 * jax.random.normal(
            ks[1], ((2 * Wh - 1) * (2 * Ww - 1), max_num_head), jnp.float32),
        "qkv_w": 0.05 * jax.random.normal(ks[2], (3, max_embed_dim, max_embed_dim), jnp.float32),
        "qkv_b": 0.05 * jax.random.normal(ks[3], (3, max_embed_dim), jnp.float32),
        "proj_w": 0.05 * jax.random.normal(ks[4], (max_embed_dim, max_embed_dim), jnp.float32),
        "proj_b": 0.05 * jax.random.normal(ks[5], (max_embed_dim,), jnp.float32),
    }

    # additive mask in (-inf, 0]: random -100 / 0 pattern per window
    mask = jnp.where(jax.random.uniform(ks[6], (nW, N, N)) > 0.8, -100.0, 0.0)
    mask = mask.astype(jnp.float32)

    # one-time parameter preparation (weight slicing/transpose + bias gather)
    prepared = prepare_wmsa_params(params, embed_dim=C, window_size=window_size,
                                   head_dim=head_dim)
    prepared = jax.tree_util.tree_map(jax.block_until_ready, prepared)

    out = dynamic_window_msa(x, prepared, window_size=window_size,
                             head_dim=head_dim, mask=mask)
    out = jax.block_until_ready(out)

    ref = _reference(x, params, window_size=window_size, head_dim=head_dim, mask=mask)
    np.testing.assert_allclose(np.asarray(out), np.asarray(ref), rtol=1e-5, atol=1e-5)

    # also exercise the mask=None path
    out_nomask = jax.block_until_ready(
        dynamic_window_msa(x, prepared, window_size=window_size,
                           head_dim=head_dim, mask=None))
    ref_nomask = _reference(x, params, window_size=window_size, head_dim=head_dim, mask=None)
    np.testing.assert_allclose(np.asarray(out_nomask), np.asarray(ref_nomask),
                               rtol=1e-5, atol=1e-5)

    print("KERNEL_OK")
</pallas_src>

<mosaic_0001>
module attributes {stable_mosaic.version = 11 : i64} {
  func.func @_wmsa_kernel(%arg0: i32, %arg1: memref<8x16x32xf32, #tpu.memory_space<vmem>>, %arg2: memref<32x96xf32, #tpu.memory_space<vmem>>, %arg3: memref<1x96xf32, #tpu.memory_space<vmem>>, %arg4: memref<4x16x16xf32, #tpu.memory_space<vmem>>, %arg5: memref<4x16x16xf32, #tpu.memory_space<vmem>>, %arg6: memref<4x8x32xf32, #tpu.memory_space<vmem>>, %arg7: memref<1x32xf32, #tpu.memory_space<vmem>>, %arg8: memref<8x16x32xf32, #tpu.memory_space<vmem>>) attributes {dimension_semantics = [#tpu.dimension_semantics<parallel>], iteration_bounds = array<i64: 1>, scalar_prefetch = 0 : i64, scratch_operands = 0 : i64, tpu.core_type = #tpu.core_type<tc>, window_params = [{transform_indices = @transform_0, window_bounds = array<i64: 8, 16, 32>}, {pipeline_mode = #tpu.pipeline_mode<synchronous>, transform_indices = @transform_1, window_bounds = array<i64: 32, 96>}, {pipeline_mode = #tpu.pipeline_mode<synchronous>, transform_indices = @transform_2, window_bounds = array<i64: 1, 96>}, {pipeline_mode = #tpu.pipeline_mode<synchronous>, transform_indices = @transform_3, window_bounds = array<i64: 4, 16, 16>}, {pipeline_mode = #tpu.pipeline_mode<synchronous>, transform_indices = @transform_4, window_bounds = array<i64: 4, 16, 16>}, {pipeline_mode = #tpu.pipeline_mode<synchronous>, transform_indices = @transform_5, window_bounds = array<i64: 4, 8, 32>}, {pipeline_mode = #tpu.pipeline_mode<synchronous>, transform_indices = @transform_6, window_bounds = array<i64: 1, 32>}, {transform_indices = @transform_7, window_bounds = array<i64: 8, 16, 32>}]} {
    %c0 = arith.constant 0 : index
    %c0_0 = arith.constant 0 : index
    %c0_1 = arith.constant 0 : index
    %0 = vector.load %arg1[%c0, %c0_0, %c0_1] : memref<8x16x32xf32, #tpu.memory_space<vmem>>, vector<8x16x32xf32>
    %1 = vector.shape_cast %0 : vector<8x16x32xf32> to vector<128x32xf32>
    %c0_2 = arith.constant 0 : index
    %c0_3 = arith.constant 0 : index
    %2 = vector.load %arg2[%c0_2, %c0_3] : memref<32x96xf32, #tpu.memory_space<vmem>>, vector<32x96xf32>
    %cst = arith.constant dense<0.000000e+00> : vector<128x96xf32>
    %3 = tpu.matmul %1, %2, %cst {dimension_numbers = #tpu.dot_dimension_numbers<[1], [0], [0], [1], [0, 0, 1, 1], [], []>} : vector<128x32xf32>, vector<32x96xf32>, vector<128x96xf32> -> vector<128x96xf32>
    %c0_4 = arith.constant 0 : index
    %c0_5 = arith.constant 0 : index
    %4 = vector.load %arg3[%c0_4, %c0_5] : memref<1x96xf32, #tpu.memory_space<vmem>>, vector<1x96xf32>
    %5 = vector.broadcast %4 : vector<1x96xf32> to vector<128x96xf32>
    %6 = arith.addf %3, %5 : vector<128x96xf32>
    %c0_6 = arith.constant 0 : index
    %c0_7 = arith.constant 0 : index
    %c0_8 = arith.constant 0 : index
    %7 = vector.load %arg4[%c0_6, %c0_7, %c0_8] : memref<4x16x16xf32, #tpu.memory_space<vmem>>, vector<4x16x16xf32>
    %c0_9 = arith.constant 0 : index
    %c0_10 = arith.constant 0 : index
    %c0_11 = arith.constant 0 : index
    %8 = vector.load %arg5[%c0_9, %c0_10, %c0_11] : memref<4x16x16xf32, #tpu.memory_space<vmem>>, vector<4x16x16xf32>
    %9 = vector.extract_strided_slice %6 {offsets = [0, 0], sizes = [128, 8], strides = [1, 1]} : vector<128x96xf32> to vector<128x8xf32>
    %cst_12 = arith.constant 0.353553385 : f32
    %10 = vector.broadcast %cst_12 : f32 to vector<128x8xf32>
    %11 = arith.mulf %9, %10 : vector<128x8xf32>
    %12 = vector.shape_cast %11 : vector<128x8xf32> to vector<8x16x8xf32>
    %13 = vector.extract_strided_slice %6 {offsets = [0, 32], sizes = [128, 8], strides = [1, 1]} : vector<128x96xf32> to vector<128x8xf32>
    %14 = vector.shape_cast %13 : vector<128x8xf32> to vector<8x16x8xf32>
    %15 = vector.extract_strided_slice %6 {offsets = [0, 64], sizes = [128, 8], strides = [1, 1]} : vector<128x96xf32> to vector<128x8xf32>
    %16 = vector.shape_cast %15 : vector<128x8xf32> to vector<8x16x8xf32>
    "tpu.trace_start"() <{level = 10 : i32, message = "bqd,bkd->bqk"}> : () -> ()
    %cst_13 = arith.constant dense<0.000000e+00> : vector<8x16x16xf32>
    %17 = tpu.matmul %12, %14, %cst_13 {dimension_numbers = #tpu.dot_dimension_numbers<[2], [2], [1], [1], [0, 0, 0, 1, 1, 1], [0], [0]>} : vector<8x16x8xf32>, vector<8x16x8xf32>, vector<8x16x16xf32> -> vector<8x16x16xf32>
    "tpu.trace_stop"() : () -> ()
    %18 = vector.extract_strided_slice %7 {offsets = [0, 0, 0], sizes = [1, 16, 16], strides = [1, 1, 1]} : vector<4x16x16xf32> to vector<1x16x16xf32>
    %19 = vector.shape_cast %18 : vector<1x16x16xf32> to vector<16x16xf32>
    %20 = vector.shape_cast %19 : vector<16x16xf32> to vector<1x16x16xf32>
    %21 = vector.broadcast %20 : vector<1x16x16xf32> to vector<4x16x16xf32>
    %22 = arith.addf %21, %8 : vector<4x16x16xf32>
    %23 = vector.shape_cast %17 : vector<8x16x16xf32> to vector<2x4x16x16xf32>
    %24 = vector.shape_cast %22 : vector<4x16x16xf32> to vector<1x4x16x16xf32>
    %25 = vector.broadcast %24 : vector<1x4x16x16xf32> to vector<2x4x16x16xf32>
    %26 = arith.addf %23, %25 : vector<2x4x16x16xf32>
    %27 = vector.shape_cast %26 : vector<2x4x16x16xf32> to vector<8x16x16xf32>
    %cst_14 = arith.constant dense<0xFF800000> : vector<8x16xf32>
    %28 = vector.multi_reduction <maximumf>, %27, %cst_14 [2] : vector<8x16x16xf32> to vector<8x16xf32>
    %29 = vector.shape_cast %28 : vector<8x16xf32> to vector<8x16x1xf32>
    %30 = vector.broadcast %29 : vector<8x16x1xf32> to vector<8x16x16xf32>
    %31 = arith.subf %27, %30 : vector<8x16x16xf32>
    %32 = math.exp %31 : vector<8x16x16xf32>
    %cst_15 = arith.constant dense<0.000000e+00> : vector<8x16xf32>
    %33 = vector.multi_reduction <add>, %32, %cst_15 [2] : vector<8x16x16xf32> to vector<8x16xf32>
    %34 = vector.shape_cast %33 : vector<8x16xf32> to vector<8x16x1xf32>
    %35 = tpu.reciprocal %34 : vector<8x16x1xf32> -> vector<8x16x1xf32>
    %36 = vector.broadcast %35 : vector<8x16x1xf32> to vector<8x16x16xf32>
    %37 = arith.mulf %32, %36 : vector<8x16x16xf32>
    "tpu.trace_start"() <{level = 10 : i32, message = "bqk,bkd->bqd"}> : () -> ()
    %cst_16 = arith.constant dense<0.000000e+00> : vector<8x16x8xf32>
    %38 = tpu.matmul %37, %16, %cst_16 {dimension_numbers = #tpu.dot_dimension_numbers<[2], [1], [1], [2], [0, 0, 0, 1, 1, 2], [0], [0]>} : vector<8x16x16xf32>, vector<8x16x8xf32>, vector<8x16x8xf32> -> vector<8x16x8xf32>
    "tpu.trace_stop"() : () -> ()
    %39 = vector.shape_cast %38 : vector<8x16x8xf32> to vector<128x8xf32>
    %c0_17 = arith.constant 0 : index
    %c0_18 = arith.constant 0 : index
    %c0_19 = arith.constant 0 : index
    %40 = vector.load %arg6[%c0_17, %c0_18, %c0_19] : memref<4x8x32xf32, #tpu.memory_space<vmem>>, vector<1x8x32xf32>
    %41 = vector.shape_cast %40 : vector<1x8x32xf32> to vector<8x32xf32>
    %cst_20 = arith.constant dense<0.000000e+00> : vector<128x32xf32>
    %42 = tpu.matmul %39, %41, %cst_20 {dimension_numbers = #tpu.dot_dimension_numbers<[1], [0], [0], [1], [0, 0, 1, 1], [], []>} : vector<128x8xf32>, vector<8x32xf32>, vector<128x32xf32> -> vector<128x32xf32>
    %43 = vector.extract_strided_slice %6 {offsets = [0, 8], sizes = [128, 8], strides = [1, 1]} : vector<128x96xf32> to vector<128x8xf32>
    %cst_21 = arith.constant 0.353553385 : f32
    %44 = vector.broadcast %cst_21 : f32 to vector<128x8xf32>
    %45 = arith.mulf %43, %44 : vector<128x8xf32>
    %46 = vector.shape_cast %45 : vector<128x8xf32> to vector<8x16x8xf32>
    %47 = vector.extract_strided_slice %6 {offsets = [0, 40], sizes = [128, 8], strides = [1, 1]} : vector<128x96xf32> to vector<128x8xf32>
    %48 = vector.shape_cast %47 : vector<128x8xf32> to vector<8x16x8xf32>
    %49 = vector.extract_strided_slice %6 {offsets = [0, 72], sizes = [128, 8], strides = [1, 1]} : vector<128x96xf32> to vector<128x8xf32>
    %50 = vector.shape_cast %49 : vector<128x8xf32> to vector<8x16x8xf32>
    "tpu.trace_start"() <{level = 10 : i32, message = "bqd,bkd->bqk"}> : () -> ()
    %cst_22 = arith.constant dense<0.000000e+00> : vector<8x16x16xf32>
    %51 = tpu.matmul %46, %48, %cst_22 {dimension_numbers = #tpu.dot_dimension_numbers<[2], [2], [1], [1], [0, 0, 0, 1, 1, 1], [0], [0]>} : vector<8x16x8xf32>, vector<8x16x8xf32>, vector<8x16x16xf32> -> vector<8x16x16xf32>
    "tpu.trace_stop"() : () -> ()
    %52 = vector.extract_strided_slice %7 {offsets = [1, 0, 0], sizes = [1, 16, 16], strides = [1, 1, 1]} : vector<4x16x16xf32> to vector<1x16x16xf32>
    %53 = vector.shape_cast %52 : vector<1x16x16xf32> to vector<16x16xf32>
    %54 = vector.shape_cast %53 : vector<16x16xf32> to vector<1x16x16xf32>
    %55 = vector.broadcast %54 : vector<1x16x16xf32> to vector<4x16x16xf32>
    %56 = arith.addf %55, %8 : vector<4x16x16xf32>
    %57 = vector.shape_cast %51 : vector<8x16x16xf32> to vector<2x4x16x16xf32>
    %58 = vector.shape_cast %56 : vector<4x16x16xf32> to vector<1x4x16x16xf32>
    %59 = vector.broadcast %58 : vector<1x4x16x16xf32> to vector<2x4x16x16xf32>
    %60 = arith.addf %57, %59 : vector<2x4x16x16xf32>
    %61 = vector.shape_cast %60 : vector<2x4x16x16xf32> to vector<8x16x16xf32>
    %cst_23 = arith.constant dense<0xFF800000> : vector<8x16xf32>
    %62 = vector.multi_reduction <maximumf>, %61, %cst_23 [2] : vector<8x16x16xf32> to vector<8x16xf32>
    %63 = vector.shape_cast %62 : vector<8x16xf32> to vector<8x16x1xf32>
    %64 = vector.broadcast %63 : vector<8x16x1xf32> to vector<8x16x16xf32>
    %65 = arith.subf %61, %64 : vector<8x16x16xf32>
    %66 = math.exp %65 : vector<8x16x16xf32>
    %cst_24 = arith.constant dense<0.000000e+00> : vector<8x16xf32>
    %67 = vector.multi_reduction <add>, %66, %cst_24 [2] : vector<8x16x16xf32> to vector<8x16xf32>
    %68 = vector.shape_cast %67 : vector<8x16xf32> to vector<8x16x1xf32>
    %69 = tpu.reciprocal %68 : vector<8x16x1xf32> -> vector<8x16x1xf32>
    %70 = vector.broadcast %69 : vector<8x16x1xf32> to vector<8x16x16xf32>
    %71 = arith.mulf %66, %70 : vector<8x16x16xf32>
    "tpu.trace_start"() <{level = 10 : i32, message = "bqk,bkd->bqd"}> : () -> ()
    %cst_25 = arith.constant dense<0.000000e+00> : vector<8x16x8xf32>
    %72 = tpu.matmul %71, %50, %cst_25 {dimension_numbers = #tpu.dot_dimension_numbers<[2], [1], [1], [2], [0, 0, 0, 1, 1, 2], [0], [0]>} : vector<8x16x16xf32>, vector<8x16x8xf32>, vector<8x16x8xf32> -> vector<8x16x8xf32>
    "tpu.trace_stop"() : () -> ()
    %73 = vector.shape_cast %72 : vector<8x16x8xf32> to vector<128x8xf32>
    %c1 = arith.constant 1 : index
    %c0_26 = arith.constant 0 : index
    %c0_27 = arith.constant 0 : index
    %74 = vector.load %arg6[%c1, %c0_26, %c0_27] : memref<4x8x32xf32, #tpu.memory_space<vmem>>, vector<1x8x32xf32>
    %75 = vector.shape_cast %74 : vector<1x8x32xf32> to vector<8x32xf32>
    %cst_28 = arith.constant dense<0.000000e+00> : vector<128x32xf32>
    %76 = tpu.matmul %73, %75, %cst_28 {dimension_numbers = #tpu.dot_dimension_numbers<[1], [0], [0], [1], [0, 0, 1, 1], [], []>} : vector<128x8xf32>, vector<8x32xf32>, vector<128x32xf32> -> vector<128x32xf32>
    %77 = arith.addf %42, %76 : vector<128x32xf32>
    %78 = vector.extract_strided_slice %6 {offsets = [0, 16], sizes = [128, 8], strides = [1, 1]} : vector<128x96xf32> to vector<128x8xf32>
    %cst_29 = arith.constant 0.353553385 : f32
    %79 = vector.broadcast %cst_29 : f32 to vector<128x8xf32>
    %80 = arith.mulf %78, %79 : vector<128x8xf32>
    %81 = vector.shape_cast %80 : vector<128x8xf32> to vector<8x16x8xf32>
    %82 = vector.extract_strided_slice %6 {offsets = [0, 48], sizes = [128, 8], strides = [1, 1]} : vector<128x96xf32> to vector<128x8xf32>
    %83 = vector.shape_cast %82 : vector<128x8xf32> to vector<8x16x8xf32>
    %84 = vector.extract_strided_slice %6 {offsets = [0, 80], sizes = [128, 8], strides = [1, 1]} : vector<128x96xf32> to vector<128x8xf32>
    %85 = vector.shape_cast %84 : vector<128x8xf32> to vector<8x16x8xf32>
    "tpu.trace_start"() <{level = 10 : i32, message = "bqd,bkd->bqk"}> : () -> ()
    %cst_30 = arith.constant dense<0.000000e+00> : vector<8x16x16xf32>
    %86 = tpu.matmul %81, %83, %cst_30 {dimension_numbers = #tpu.dot_dimension_numbers<[2], [2], [1], [1], [0, 0, 0, 1, 1, 1], [0], [0]>} : vector<8x16x8xf32>, vector<8x16x8xf32>, vector<8x16x16xf32> -> vector<8x16x16xf32>
    "tpu.trace_stop"() : () -> ()
    %87 = vector.extract_strided_slice %7 {offsets = [2, 0, 0], sizes = [1, 16, 16], strides = [1, 1, 1]} : vector<4x16x16xf32> to vector<1x16x16xf32>
    %88 = vector.shape_cast %87 : vector<1x16x16xf32> to vector<16x16xf32>
    %89 = vector.shape_cast %88 : vector<16x16xf32> to vector<1x16x16xf32>
    %90 = vector.broadcast %89 : vector<1x16x16xf32> to vector<4x16x16xf32>
    %91 = arith.addf %90, %8 : vector<4x16x16xf32>
    %92 = vector.shape_cast %86 : vector<8x16x16xf32> to vector<2x4x16x16xf32>
    %93 = vector.shape_cast %91 : vector<4x16x16xf32> to vector<1x4x16x16xf32>
    %94 = vector.broadcast %93 : vector<1x4x16x16xf32> to vector<2x4x16x16xf32>
    %95 = arith.addf %92, %94 : vector<2x4x16x16xf32>
    %96 = vector.shape_cast %95 : vector<2x4x16x16xf32> to vector<8x16x16xf32>
    %cst_31 = arith.constant dense<0xFF800000> : vector<8x16xf32>
    %97 = vector.multi_reduction <maximumf>, %96, %cst_31 [2] : vector<8x16x16xf32> to vector<8x16xf32>
    %98 = vector.shape_cast %97 : vector<8x16xf32> to vector<8x16x1xf32>
    %99 = vector.broadcast %98 : vector<8x16x1xf32> to vector<8x16x16xf32>
    %100 = arith.subf %96, %99 : vector<8x16x16xf32>
    %101 = math.exp %100 : vector<8x16x16xf32>
    %cst_32 = arith.constant dense<0.000000e+00> : vector<8x16xf32>
    %102 = vector.multi_reduction <add>, %101, %cst_32 [2] : vector<8x16x16xf32> to vector<8x16xf32>
    %103 = vector.shape_cast %102 : vector<8x16xf32> to vector<8x16x1xf32>
    %104 = tpu.reciprocal %103 : vector<8x16x1xf32> -> vector<8x16x1xf32>
    %105 = vector.broadcast %104 : vector<8x16x1xf32> to vector<8x16x16xf32>
    %106 = arith.mulf %101, %105 : vector<8x16x16xf32>
    "tpu.trace_start"() <{level = 10 : i32, message = "bqk,bkd->bqd"}> : () -> ()
    %cst_33 = arith.constant dense<0.000000e+00> : vector<8x16x8xf32>
    %107 = tpu.matmul %106, %85, %cst_33 {dimension_numbers = #tpu.dot_dimension_numbers<[2], [1], [1], [2], [0, 0, 0, 1, 1, 2], [0], [0]>} : vector<8x16x16xf32>, vector<8x16x8xf32>, vector<8x16x8xf32> -> vector<8x16x8xf32>
    "tpu.trace_stop"() : () -> ()
    %108 = vector.shape_cast %107 : vector<8x16x8xf32> to vector<128x8xf32>
    %c2 = arith.constant 2 : index
    %c0_34 = arith.constant 0 : index
    %c0_35 = arith.constant 0 : index
    %109 = vector.load %arg6[%c2, %c0_34, %c0_35] : memref<4x8x32xf32, #tpu.memory_space<vmem>>, vector<1x8x32xf32>
    %110 = vector.shape_cast %109 : vector<1x8x32xf32> to vector<8x32xf32>
    %cst_36 = arith.constant dense<0.000000e+00> : vector<128x32xf32>
    %111 = tpu.matmul %108, %110, %cst_36 {dimension_numbers = #tpu.dot_dimension_numbers<[1], [0], [0], [1], [0, 0, 1, 1], [], []>} : vector<128x8xf32>, vector<8x32xf32>, vector<128x32xf32> -> vector<128x32xf32>
    %112 = arith.addf %77, %111 : vector<128x32xf32>
    %113 = vector.extract_strided_slice %6 {offsets = [0, 24], sizes = [128, 8], strides = [1, 1]} : vector<128x96xf32> to vector<128x8xf32>
    %cst_37 = arith.constant 0.353553385 : f32
    %114 = vector.broadcast %cst_37 : f32 to vector<128x8xf32>
    %115 = arith.mulf %113, %114 : vector<128x8xf32>
    %116 = vector.shape_cast %115 : vector<128x8xf32> to vector<8x16x8xf32>
    %117 = vector.extract_strided_slice %6 {offsets = [0, 56], sizes = [128, 8], strides = [1, 1]} : vector<128x96xf32> to vector<128x8xf32>
    %118 = vector.shape_cast %117 : vector<128x8xf32> to vector<8x16x8xf32>
    %119 = vector.extract_strided_slice %6 {offsets = [0, 88], sizes = [128, 8], strides = [1, 1]} : vector<128x96xf32> to vector<128x8xf32>
    %120 = vector.shape_cast %119 : vector<128x8xf32> to vector<8x16x8xf32>
    "tpu.trace_start"() <{level = 10 : i32, message = "bqd,bkd->bqk"}> : () -> ()
    %cst_38 = arith.constant dense<0.000000e+00> : vector<8x16x16xf32>
    %121 = tpu.matmul %116, %118, %cst_38 {dimension_numbers = #tpu.dot_dimension_numbers<[2], [2], [1], [1], [0, 0, 0, 1, 1, 1], [0], [0]>} : vector<8x16x8xf32>, vector<8x16x8xf32>, vector<8x16x16xf32> -> vector<8x16x16xf32>
    "tpu.trace_stop"() : () -> ()
    %122 = vector.extract_strided_slice %7 {offsets = [3, 0, 0], sizes = [1, 16, 16], strides = [1, 1, 1]} : vector<4x16x16xf32> to vector<1x16x16xf32>
    %123 = vector.shape_cast %122 : vector<1x16x16xf32> to vector<16x16xf32>
    %124 = vector.shape_cast %123 : vector<16x16xf32> to vector<1x16x16xf32>
    %125 = vector.broadcast %124 : vector<1x16x16xf32> to vector<4x16x16xf32>
    %126 = arith.addf %125, %8 : vector<4x16x16xf32>
    %127 = vector.shape_cast %121 : vector<8x16x16xf32> to vector<2x4x16x16xf32>
    %128 = vector.shape_cast %126 : vector<4x16x16xf32> to vector<1x4x16x16xf32>
    %129 = vector.broadcast %128 : vector<1x4x16x16xf32> to vector<2x4x16x16xf32>
    %130 = arith.addf %127, %129 : vector<2x4x16x16xf32>
    %131 = vector.shape_cast %130 : vector<2x4x16x16xf32> to vector<8x16x16xf32>
    %cst_39 = arith.constant dense<0xFF800000> : vector<8x16xf32>
    %132 = vector.multi_reduction <maximumf>, %131, %cst_39 [2] : vector<8x16x16xf32> to vector<8x16xf32>
    %133 = vector.shape_cast %132 : vector<8x16xf32> to vector<8x16x1xf32>
    %134 = vector.broadcast %133 : vector<8x16x1xf32> to vector<8x16x16xf32>
    %135 = arith.subf %131, %134 : vector<8x16x16xf32>
    %136 = math.exp %135 : vector<8x16x16xf32>
    %cst_40 = arith.constant dense<0.000000e+00> : vector<8x16xf32>
    %137 = vector.multi_reduction <add>, %136, %cst_40 [2] : vector<8x16x16xf32> to vector<8x16xf32>
    %138 = vector.shape_cast %137 : vector<8x16xf32> to vector<8x16x1xf32>
    %139 = tpu.reciprocal %138 : vector<8x16x1xf32> -> vector<8x16x1xf32>
    %140 = vector.broadcast %139 : vector<8x16x1xf32> to vector<8x16x16xf32>
    %141 = arith.mulf %136, %140 : vector<8x16x16xf32>
    "tpu.trace_start"() <{level = 10 : i32, message = "bqk,bkd->bqd"}> : () -> ()
    %cst_41 = arith.constant dense<0.000000e+00> : vector<8x16x8xf32>
    %142 = tpu.matmul %141, %120, %cst_41 {dimension_numbers = #tpu.dot_dimension_numbers<[2], [1], [1], [2], [0, 0, 0, 1, 1, 2], [0], [0]>} : vector<8x16x16xf32>, vector<8x16x8xf32>, vector<8x16x8xf32> -> vector<8x16x8xf32>
    "tpu.trace_stop"() : () -> ()
    %143 = vector.shape_cast %142 : vector<8x16x8xf32> to vector<128x8xf32>
    %c3 = arith.constant 3 : index
    %c0_42 = arith.constant 0 : index
    %c0_43 = arith.constant 0 : index
    %144 = vector.load %arg6[%c3, %c0_42, %c0_43] : memref<4x8x32xf32, #tpu.memory_space<vmem>>, vector<1x8x32xf32>
    %145 = vector.shape_cast %144 : vector<1x8x32xf32> to vector<8x32xf32>
    %cst_44 = arith.constant dense<0.000000e+00> : vector<128x32xf32>
    %146 = tpu.matmul %143, %145, %cst_44 {dimension_numbers = #tpu.dot_dimension_numbers<[1], [0], [0], [1], [0, 0, 1, 1], [], []>} : vector<128x8xf32>, vector<8x32xf32>, vector<128x32xf32> -> vector<128x32xf32>
    %147 = arith.addf %112, %146 : vector<128x32xf32>
    %c0_45 = arith.constant 0 : index
    %c0_46 = arith.constant 0 : index
    %148 = vector.load %arg7[%c0_45, %c0_46] : memref<1x32xf32, #tpu.memory_space<vmem>>, vector<1x32xf32>
    %149 = vector.broadcast %148 : vector<1x32xf32> to vector<128x32xf32>
    %150 = arith.addf %147, %149 : vector<128x32xf32>
    %151 = vector.shape_cast %150 : vector<128x32xf32> to vector<8x16x32xf32>
    %c0_47 = arith.constant 0 : index
    %c0_48 = arith.constant 0 : index
    %c0_49 = arith.constant 0 : index
    %152 = vector.load %arg8[%c0_47, %c0_48, %c0_49] : memref<8x16x32xf32, #tpu.memory_space<vmem>>, vector<8x16x32xf32>
    tpu.vector_store %arg8[%c0_47, %c0_48, %c0_49], %151 {strides = array<i32>} : memref<8x16x32xf32, #tpu.memory_space<vmem>>, vector<8x16x32xf32>,
    return
  }
  func.func @transform_0(%arg0: i32) -> (i32, i32, i32) {
    %c0_i32 = arith.constant 0 : i32
    %c0_i32_0 = arith.constant 0 : i32
    %c0_i32_1 = arith.constant 0 : i32
    return %arg0, %c0_i32, %c0_i32_0 : i32, i32, i32
  }
  func.func @transform_1(%arg0: i32) -> (i32, i32) {
    %c0_i32 = arith.constant 0 : i32
    %c0_i32_0 = arith.constant 0 : i32
    %c0_i32_1 = arith.constant 0 : i32
    return %c0_i32, %c0_i32_0 : i32, i32
  }
  func.func @transform_2(%arg0: i32) -> (i32, i32) {
    %c0_i32 = arith.constant 0 : i32
    %c0_i32_0 = arith.constant 0 : i32
    %c0_i32_1 = arith.constant 0 : i32
    return %c0_i32, %c0_i32_0 : i32, i32
  }
  func.func @transform_3(%arg0: i32) -> (i32, i32, i32) {
    %c0_i32 = arith.constant 0 : i32
    %c0_i32_0 = arith.constant 0 : i32
    %c0_i32_1 = arith.constant 0 : i32
    %c0_i32_2 = arith.constant 0 : i32
    return %c0_i32, %c0_i32_0, %c0_i32_1 : i32, i32, i32
  }
  func.func @transform_4(%arg0: i32) -> (i32, i32, i32) {
    %c0_i32 = arith.constant 0 : i32
    %c0_i32_0 = arith.constant 0 : i32
    %c0_i32_1 = arith.constant 0 : i32
    %c0_i32_2 = arith.constant 0 : i32
    return %c0_i32, %c0_i32_0, %c0_i32_1 : i32, i32, i32
  }
  func.func @transform_5(%arg0: i32) -> (i32, i32, i32) {
    %c0_i32 = arith.constant 0 : i32
    %c0_i32_0 = arith.constant 0 : i32
    %c0_i32_1 = arith.constant 0 : i32
    %c0_i32_2 = arith.constant 0 : i32
    return %c0_i32, %c0_i32_0, %c0_i32_1 : i32, i32, i32
  }
  func.func @transform_6(%arg0: i32) -> (i32, i32) {
    %c0_i32 = arith.constant 0 : i32
    %c0_i32_0 = arith.constant 0 : i32
    %c0_i32_1 = arith.constant 0 : i32
    return %c0_i32, %c0_i32_0 : i32, i32
  }
  func.func @transform_7(%arg0: i32) -> (i32, i32, i32) {
    %c0_i32 = arith.constant 0 : i32
    %c0_i32_0 = arith.constant 0 : i32
    %c0_i32_1 = arith.constant 0 : i32
    return %arg0, %c0_i32, %c0_i32_0 : i32, i32, i32
  }
}

</mosaic_0001>

<llo_original>
// kernel: tpu_custom_call.1
$region0: #{tpu_custom_call.1}
  #allocation0 [shape = 'u32[]', space=smem, size = 0x4, offset = 0x4, fixed_abs, tag = 'smem constant byte address 0x4 - core index']
  #allocation1 [shape = 'u32[144,128]{1,0:T(1,128)}', space=vmem, size = 0x12000, scoped, tag = 'internal scratch']
  %s0 = inlined_call_operand.hbm [shape: f32[8,16,32], index: 0, kind: input, shape index: {}]
  %s1 = inlined_call_operand.hbm [shape: f32[32,96], index: 1, kind: input, shape index: {}]
  %s2 = inlined_call_operand.vmem [shape: f32[1,96], index: 2, kind: input, shape index: {}]
  %s3 = inlined_call_operand.hbm [shape: f32[4,16,16], index: 3, kind: input, shape index: {}]
  %s4 = inlined_call_operand.hbm [shape: f32[4,16,16], index: 4, kind: input, shape index: {}]
  %s5 = inlined_call_operand.hbm [shape: f32[4,8,32], index: 5, kind: input, shape index: {}]
  %s6 = inlined_call_operand.vmem [shape: f32[1,32], index: 6, kind: input, shape index: {}]
  %s7 = inlined_call_operand.hbm [shape: f32[8,16,32], index: 7, kind: output, shape index: {}]
  %s8 = sld [smem:[#allocation0]]
  $region58: #{tpu_custom_call.1} parent=0
    _
  %s10 = ssub.s32 1, %s8
  %s11 = scalar_select 0, %s10, %s8
  $region1: #{tpu_custom_call.1} parent=0
    #allocation2 [shape = 'u8[65536]{0}', space=vmem, size = 0x10000, scoped, tag = 'input window, operand 0, single buffered']
    #allocation3 [shape = 's32[1]{0}', space=sflag, size = 0x4, scoped, tag = 'scoped memory for tpu_custom_call.1']
    #allocation4 [shape = 's32[1]{0}', space=sflag, size = 0x4, scoped, tag = 'scoped memory for tpu_custom_call.1']
    #allocation5 [shape = 'u8[16384]{0}', space=vmem, size = 0x4000, scoped, tag = 'input window, operand 1, single buffered']
    #allocation6 [shape = 's32[1]{0}', space=sflag, size = 0x4, scoped, tag = 'scoped memory for tpu_custom_call.1']
    #allocation7 [shape = 'u8[32768]{0}', space=vmem, size = 0x8000, scoped, tag = 'input window, operand 3, single buffered']
    #allocation8 [shape = 'u8[32768]{0}', space=vmem, size = 0x8000, scoped, tag = 'input window, operand 4, single buffered']
    #allocation9 [shape = 's32[1]{0}', space=sflag, size = 0x4, scoped, tag = 'scoped memory for tpu_custom_call.1']
    #allocation10 [shape = 'u8[16384]{0}', space=vmem, size = 0x4000, scoped, tag = 'input window, operand 5, single buffered']
    #allocation11 [shape = 'u8[65536]{0}', space=vmem, size = 0x10000, scoped, tag = 'output window, operand 0, single buffered']
    %12 = vsyncpa [#allocation3], 0
    %13 = vsyncpa [#allocation6], 0
    %14 = vsyncpa [#allocation9], 0
    %15 = vsyncpa [#allocation4], 0
    // Predicated region
    $region2: #{tpu_custom_call.1} parent=1 // pred_check
      _
    $region3: #{tpu_custom_call.1} parent=1 // pred_check_branch
      %17 = sbr.rel (0) target = $region5
    $region4: #{tpu_custom_call.1} parent=1 // pred_region
      %s19 = ssub.s32 2048, 2048
      %20 = vsyncadd [#allocation3], %s19
      %s21 = sshll.u32 [#allocation2], 4
      %s22 = int_to_ptr.vmem [resolvable:$true] %s21
      %27 = dma.hbm_to_vmem [thread:$0]  %s0, 2048, %s22, [#allocation3], 128, 128, 8
    $region5: #{tpu_custom_call.1} parent=1 // pred_fallthru
      _
    // Predicated region
    $region6: #{tpu_custom_call.1} parent=1 // pred_check
      _
    $region7: #{tpu_custom_call.1} parent=1 // pred_check_branch
      %29 = sbr.rel (0) target = $region9
    $region8: #{tpu_custom_call.1} parent=1 // pred_region
      %s31 = ssub.s32 512, 512
      %32 = vsyncadd [#allocation6], %s31
      %s33 = sshll.u32 [#allocation5], 4
      %s34 = int_to_ptr.vmem [resolvable:$true] %s33
      %39 = dma.hbm_to_vmem [thread:$0]  %s1, 512, %s34, [#allocation6], 128, 128, 8
    $region9: #{tpu_custom_call.1} parent=1 // pred_fallthru
      _
    // Predicated region
    $region10: #{tpu_custom_call.1} parent=1 // pred_check
      _
    $region11: #{tpu_custom_call.1} parent=1 // pred_check_branch
      %41 = sbr.rel (0) target = $region13
    $region12: #{tpu_custom_call.1} parent=1 // pred_region
      _
    $region13: #{tpu_custom_call.1} parent=1 // pred_fallthru
      _
    // Predicated region
    $region14: #{tpu_custom_call.1} parent=1 // pred_check
      _
    $region15: #{tpu_custom_call.1} parent=1 // pred_check_branch
      %43 = sbr.rel (0) target = $region17
    $region16: #{tpu_custom_call.1} parent=1 // pred_region
      %s45 = ssub.s32 1024, 1024
      %46 = vsyncadd [#allocation6], %s45
      %s47 = sshll.u32 [#allocation7], 4
      %s48 = int_to_ptr.vmem [resolvable:$true] %s47
      %53 = dma.hbm_to_vmem [thread:$0]  %s3, 1024, %s48, [#allocation6], 128, 128, 8
    $region17: #{tpu_custom_call.1} parent=1 // pred_fallthru
      _
    // Predicated region
    $region18: #{tpu_custom_call.1} parent=1 // pred_check
      _
    $region19: #{tpu_custom_call.1} parent=1 // pred_check_branch
      %55 = sbr.rel (0) target = $region21
    $region20: #{tpu_custom_call.1} parent=1 // pred_region
      %s57 = ssub.s32 1024, 1024
      %58 = vsyncadd [#allocation9], %s57
      %s59 = sshll.u32 [#allocation8], 4
      %s60 = int_to_ptr.vmem [resolvable:$true] %s59
      %65 = dma.hbm_to_vmem [thread:$0]  %s4, 1024, %s60, [#allocation9], 128, 128, 8
    $region21: #{tpu_custom_call.1} parent=1 // pred_fallthru
      _
    // Predicated region
    $region22: #{tpu_custom_call.1} parent=1 // pred_check
      _
    $region23: #{tpu_custom_call.1} parent=1 // pred_check_branch
      %67 = sbr.rel (0) target = $region25
    $region24: #{tpu_custom_call.1} parent=1 // pred_region
      %s69 = ssub.s32 512, 512
      %70 = vsyncadd [#allocation9], %s69
      %s71 = sshll.u32 [#allocation10], 4
      %s72 = int_to_ptr.vmem [resolvable:$true] %s71
      %77 = dma.hbm_to_vmem [thread:$0]  %s5, 512, %s72, [#allocation9], 128, 128, 8
    $region25: #{tpu_custom_call.1} parent=1 // pred_fallthru
      _
    // Predicated region
    $region26: #{tpu_custom_call.1} parent=1 // pred_check
      _
    $region27: #{tpu_custom_call.1} parent=1 // pred_check_branch
      %79 = sbr.rel (0) target = $region29
    $region28: #{tpu_custom_call.1} parent=1 // pred_region
      _
    $region29: #{tpu_custom_call.1} parent=1 // pred_fallthru
      _
    // Predicated region
    $region30: #{tpu_custom_call.1} parent=1 // pred_check
      _
    $region31: #{tpu_custom_call.1} parent=1 // pred_check_branch
      %81 = sbr.rel (0) target = $region33
    $region32: #{tpu_custom_call.1} parent=1 // pred_region
      %82 = dma.done [#allocation3], 2048
    $region33: #{tpu_custom_call.1} parent=1 // pred_fallthru
      _
    // Predicated region
    $region34: #{tpu_custom_call.1} parent=1 // pred_check
      _
    $region35: #{tpu_custom_call.1} parent=1 // pred_check_branch
      %84 = sbr.rel (0) target = $region37
    $region36: #{tpu_custom_call.1} parent=1 // pred_region
      %85 = dma.done [#allocation6], 512
    $region37: #{tpu_custom_call.1} parent=1 // pred_fallthru
      _
    // Predicated region
    $region38: #{tpu_custom_call.1} parent=1 // pred_check
      _
    $region39: #{tpu_custom_call.1} parent=1 // pred_check_branch
      %87 = sbr.rel (0) target = $region41
    $region40: #{tpu_custom_call.1} parent=1 // pred_region
      %88 = dma.done [#allocation6], 1024
    $region41: #{tpu_custom_call.1} parent=1 // pred_fallthru
      _
    // Predicated region
    $region42: #{tpu_custom_call.1} parent=1 // pred_check
      _
    $region43: #{tpu_custom_call.1} parent=1 // pred_check_branch
      %90 = sbr.rel (0) target = $region45
    $region44: #{tpu_custom_call.1} parent=1 // pred_region
      %91 = dma.done [#allocation9], 1024
    $region45: #{tpu_custom_call.1} parent=1 // pred_fallthru
      _
    // Predicated region
    $region46: #{tpu_custom_call.1} parent=1 // pred_check
      _
    $region47: #{tpu_custom_call.1} parent=1 // pred_check_branch
      %93 = sbr.rel (0) target = $region49
    $region48: #{tpu_custom_call.1} parent=1 // pred_region
      %94 = dma.done [#allocation9], 512
    $region49: #{tpu_custom_call.1} parent=1 // pred_fallthru
      _
    %v95 = vld [vmem:[#allocation2] sm:$0xff]
    %v96 = vld [vmem:[#allocation2 + $0x8] sm:$0xff]
    %v97 = vld [vmem:[#allocation2 + $0x10] sm:$0xff]
    %v98 = vld [vmem:[#allocation2 + $0x18] sm:$0xff]
    %v99 = vld [vmem:[#allocation2 + $0x20] sm:$0xff]
    %v100 = vld [vmem:[#allocation2 + $0x28] sm:$0xff]
    %v101 = vld [vmem:[#allocation2 + $0x30] sm:$0xff]
    %v102 = vld [vmem:[#allocation2 + $0x38] sm:$0xff]
    %v103 = vld [vmem:[#allocation2 + $0x40] sm:$0xff]
    %v104 = vld [vmem:[#allocation2 + $0x48] sm:$0xff]
    %v105 = vld [vmem:[#allocation2 + $0x50] sm:$0xff]
    %v106 = vld [vmem:[#allocation2 + $0x58] sm:$0xff]
    %v107 = vld [vmem:[#allocation2 + $0x60] sm:$0xff]
    %v108 = vld [vmem:[#allocation2 + $0x68] sm:$0xff]
    %v109 = vld [vmem:[#allocation2 + $0x70] sm:$0xff]
    %v110 = vld [vmem:[#allocation2 + $0x78] sm:$0xff]
    %v111 = vld [vmem:[#allocation5] sm:$0xff]
    %v112 = vld [vmem:[#allocation5 + $0x8] sm:$0xff]
    %v113 = vld [vmem:[#allocation5 + $0x10] sm:$0xff]
    %v114 = vld [vmem:[#allocation5 + $0x18] sm:$0xff]
    %v115 = vld [vmem:[%s2] sm:$0x1]
    %v117 = vlaneseq
    %v118 = vshrl.u32 %v117, 7
    %v119 = vsub.s32 0, %v118
    %v120 = vrot.slane %v115, %v119
    %vm122 = vcmask 261120
    %v124 = vsel %vm122, %v95, 0
    %v127 = vsel %vm122, %v96, 0
    %v130 = vsel %vm122, %v97, 0
    %v133 = vsel %vm122, %v98, 0
    %v136 = vsel %vm122, %v99, 0
    %v139 = vsel %vm122, %v100, 0
    %v142 = vsel %vm122, %v101, 0
    %v145 = vsel %vm122, %v102, 0
    %v148 = vsel %vm122, %v103, 0
    %v151 = vsel %vm122, %v104, 0
    %v154 = vsel %vm122, %v105, 0
    %v157 = vsel %vm122, %v106, 0
    %v160 = vsel %vm122, %v107, 0
    %v163 = vsel %vm122, %v108, 0
    %v166 = vsel %vm122, %v109, 0
    %v169 = vsel %vm122, %v110, 0
    %171 = vmatprep.subr.mxu0 0.0
    %172 = vmatpush1.msra.mxu0 %v111
    %173 = vmatprep.subr.mxu0 0.0
    %174 = vmatpush1.msra.mxu0 %v112
    %175 = vmatprep.subr.mxu0 0.0
    %176 = vmatpush1.msra.mxu0 %v113
    %177 = vmatprep.subr.mxu0 0.0
    %178 = vmatpush1.msra.mxu0 %v114
    %179 = vmatprep.subr.mxu0 0.0
    %180 = vmatpush1.msra.mxu0 0.0
    %181 = vmatprep.subr.mxu0 0.0
    %182 = vmatpush1.msra.mxu0 0.0
    %183 = vmatprep.subr.mxu0 0.0
    %184 = vmatpush1.msra.mxu0 0.0
    %185 = vmatprep.subr.mxu0 0.0
    %186 = vmatpush1.msra.mxu0 0.0
    %187 = vmatprep.subr.mxu0 0.0
    %188 = vmatpush1.msra.mxu0 0.0
    %189 = vmatprep.subr.mxu0 0.0
    %190 = vmatpush1.msra.mxu0 0.0
    %191 = vmatprep.subr.mxu0 0.0
    %192 = vmatpush1.msra.mxu0 0.0
    %193 = vmatprep.subr.mxu0 0.0
    %194 = vmatpush1.msra.mxu0 0.0
    %195 = vmatprep.subr.mxu0 0.0
    %196 = vmatpush1.msra.mxu0 0.0
    %197 = vmatprep.subr.mxu0 0.0
    %198 = vmatpush1.msra.mxu0 0.0
    %199 = vmatprep.subr.mxu0 0.0
    %200 = vmatpush1.msra.mxu0 0.0
    %201 = vmatprep.subr.mxu0 0.0
    %202 = vmatpush1.msra.mxu0 0.0
    %203 = vmatprep.subr.mxu0 0.0
    %204 = vmatpush1.msra.mxu0 0.0
    %205 = vmatprep.subr.mxu0 0.0
    %206 = vmatpush1.msra.mxu0 0.0
    %207 = vmatprep.subr.mxu0 0.0
    %208 = vmatpush1.msra.mxu0 0.0
    %209 = vmatprep.subr.mxu0 0.0
    %210 = vmatpush1.msra.mxu0 0.0
    %211 = vmatprep.subr.mxu0 0.0
    %212 = vmatpush1.msra.mxu0 0.0
    %213 = vmatprep.subr.mxu0 0.0
    %214 = vmatpush1.msra.mxu0 0.0
    %215 = vmatprep.subr.mxu0 0.0
    %216 = vmatpush1.msra.mxu0 0.0
    %217 = vmatprep.subr.mxu0 0.0
    %218 = vmatpush1.msra.mxu0 0.0
    %219 = vmatprep.subr.mxu0 0.0
    %220 = vmatpush1.msra.mxu0 0.0
    %221 = vmatprep.subr.mxu0 0.0
    %222 = vmatpush1.msra.mxu0 0.0
    %223 = vmatprep.subr.mxu0 0.0
    %224 = vmatpush1.msra.mxu0 0.0
    %225 = vmatprep.subr.mxu0 0.0
    %226 = vmatpush1.msra.mxu0 0.0
    %227 = vmatprep.subr.mxu0 0.0
    %228 = vmatpush1.msra.mxu0 0.0
    %229 = vmatprep.subr.mxu0 0.0
    %230 = vmatpush1.msra.mxu0 0.0
    %231 = vmatprep.subr.mxu0 0.0
    %232 = vmatpush1.msra.mxu0 0.0
    %233 = vmatprep.subr.mxu0 0.0
    %234 = vmatpush1.msra.mxu0 0.0
    %235 = vmatprep.mubr.f32.mxu0 0.0
    %236 = vmatmul.mubr.f32.gmra.mrb[0].mxu0 %v124
    %v237 = vpop.f32.mrb[0].mxu0
    %v238 = vadd.f32 %v120, %v237
    %v239 = vpop.f32.mrb[0].mxu0
    %240 = vmatprep.mubr.f32.mxu0 0.0
    %241 = vmatmul.mubr.f32.gmra.mrb[0].mxu0 %v127
    %v242 = vpop.f32.mrb[0].mxu0
    %v243 = vadd.f32 %v120, %v242
    %v244 = vpop.f32.mrb[0].mxu0
    %245 = vmatprep.mubr.f32.mxu0 0.0
    %246 = vmatmul.mubr.f32.gmra.mrb[0].mxu0 %v130
    %v247 = vpop.f32.mrb[0].mxu0
    %v248 = vadd.f32 %v120, %v247
    %v249 = vpop.f32.mrb[0].mxu0
    %250 = vmatprep.mubr.f32.mxu0 0.0
    %251 = vmatmul.mubr.f32.gmra.mrb[0].mxu0 %v133
    %v252 = vpop.f32.mrb[0].mxu0
    %v253 = vadd.f32 %v120, %v252
    %v254 = vpop.f32.mrb[0].mxu0
    %255 = vmatprep.mubr.f32.mxu0 0.0
    %256 = vmatmul.mubr.f32.gmra.mrb[0].mxu0 %v136
    %v257 = vpop.f32.mrb[0].mxu0
    %v258 = vadd.f32 %v120, %v257
    %v259 = vpop.f32.mrb[0].mxu0
    %260 = vmatprep.mubr.f32.mxu0 0.0
    %261 = vmatmul.mubr.f32.gmra.mrb[0].mxu0 %v139
    %v262 = vpop.f32.mrb[0].mxu0
    %v263 = vadd.f32 %v120, %v262
    %v264 = vpop.f32.mrb[0].mxu0
    %265 = vmatprep.mubr.f32.mxu0 0.0
    %266 = vmatmul.mubr.f32.gmra.mrb[0].mxu0 %v142
    %v267 = vpop.f32.mrb[0].mxu0
    %v268 = vadd.f32 %v120, %v267
    %v269 = vpop.f32.mrb[0].mxu0
    %270 = vmatprep.mubr.f32.mxu0 0.0
    %271 = vmatmul.mubr.f32.gmra.mrb[0].mxu0 %v145
    %v272 = vpop.f32.mrb[0].mxu0
    %v273 = vadd.f32 %v120, %v272
    %v274 = vpop.f32.mrb[0].mxu0
    %275 = vmatprep.mubr.f32.mxu0 0.0
    %276 = vmatmul.mubr.f32.gmra.mrb[0].mxu0 %v148
    %v277 = vpop.f32.mrb[0].mxu0
    %v278 = vadd.f32 %v120, %v277
    %v279 = vpop.f32.mrb[0].mxu0
    %280 = vmatprep.mubr.f32.mxu0 0.0
    %281 = vmatmul.mubr.f32.gmra.mrb[0].mxu0 %v151
    %v282 = vpop.f32.mrb[0].mxu0
    %v283 = vadd.f32 %v120, %v282
    %v284 = vpop.f32.mrb[0].mxu0
    %285 = vmatprep.mubr.f32.mxu0 0.0
    %286 = vmatmul.mubr.f32.gmra.mrb[0].mxu0 %v154
    %v287 = vpop.f32.mrb[0].mxu0
    %v288 = vadd.f32 %v120, %v287
    %v289 = vpop.f32.mrb[0].mxu0
    %290 = vmatprep.mubr.f32.mxu0 0.0
    %291 = vmatmul.mubr.f32.gmra.mrb[0].mxu0 %v157
    %v292 = vpop.f32.mrb[0].mxu0
    %v293 = vadd.f32 %v120, %v292
    %v294 = vpop.f32.mrb[0].mxu0
    %295 = vmatprep.mubr.f32.mxu0 0.0
    %296 = vmatmul.mubr.f32.gmra.mrb[0].mxu0 %v160
    %v297 = vpop.f32.mrb[0].mxu0
    %v298 = vadd.f32 %v120, %v297
    %v299 = vpop.f32.mrb[0].mxu0
    %300 = vmatprep.mubr.f32.mxu0 0.0
    %301 = vmatmul.mubr.f32.gmra.mrb[0].mxu0 %v163
    %v302 = vpop.f32.mrb[0].mxu0
    %v303 = vadd.f32 %v120, %v302
    %v304 = vpop.f32.mrb[0].mxu0
    %305 = vmatprep.mubr.f32.mxu0 0.0
    %306 = vmatmul.mubr.f32.gmra.mrb[0].mxu0 %v166
    %v307 = vpop.f32.mrb[0].mxu0
    %v308 = vadd.f32 %v120, %v307
    %v309 = vpop.f32.mrb[0].mxu0
    %310 = vmatprep.mubr.f32.mxu0 0.0
    %311 = vmatmul.mubr.f32.gmra.mrb[0].mxu0 %v169
    %v312 = vpop.f32.mrb[0].mxu0
    %v313 = vadd.f32 %v120, %v312
    %v314 = vpop.f32.mrb[0].mxu0
    %315 = vdwg.mxu0
    %v316 = vld [vmem:[#allocation7] sm:$0xff]
    %v317 = vld [vmem:[#allocation7 + $0x8] sm:$0xff]
    %v318 = vld [vmem:[#allocation7 + $0x10] sm:$0xff]
    %v319 = vld [vmem:[#allocation7 + $0x18] sm:$0xff]
    %v320 = vld [vmem:[#allocation7 + $0x20] sm:$0xff]
    %v321 = vld [vmem:[#allocation7 + $0x28] sm:$0xff]
    %v322 = vld [vmem:[#allocation7 + $0x30] sm:$0xff]
    %v323 = vld [vmem:[#allocation7 + $0x38] sm:$0xff]
    %v324 = vld [vmem:[#allocation8] sm:$0xff]
    %v325 = vld [vmem:[#allocation8 + $0x8] sm:$0xff]
    %v326 = vld [vmem:[#allocation8 + $0x10] sm:$0xff]
    %v327 = vld [vmem:[#allocation8 + $0x18] sm:$0xff]
    %v328 = vld [vmem:[#allocation8 + $0x20] sm:$0xff]
    %v329 = vld [vmem:[#allocation8 + $0x28] sm:$0xff]
    %v330 = vld [vmem:[#allocation8 + $0x30] sm:$0xff]
    %v331 = vld [vmem:[#allocation8 + $0x38] sm:$0xff]
    %v332 = vmul.f32 %v238, 0.35355338
    %v333 = vmul.f32 %v243, 0.35355338
    %v334 = vmul.f32 %v248, 0.35355338
    %v335 = vmul.f32 %v253, 0.35355338
    %v336 = vmul.f32 %v258, 0.35355338
    %v337 = vmul.f32 %v263, 0.35355338
    %v338 = vmul.f32 %v268, 0.35355338
    %v339 = vmul.f32 %v273, 0.35355338
    %v340 = vmul.f32 %v278, 0.35355338
    %v341 = vmul.f32 %v283, 0.35355338
    %v342 = vmul.f32 %v288, 0.35355338
    %v343 = vmul.f32 %v293, 0.35355338
    %v344 = vmul.f32 %v298, 0.35355338
    %v345 = vmul.f32 %v303, 0.35355338
    %v346 = vmul.f32 %v308, 0.35355338
    %v347 = vmul.f32 %v313, 0.35355338
    %350 = vrot.lane.b32.xlu0 %v238, 96
    %v351 = vpop.permute.xlu0 %350
    %352 = vrot.lane.b32.xlu0 %v243, 96
    %v353 = vpop.permute.xlu0 %352
    %vm354 = vcmask 64512
    %v356 = vsel %vm354, %v332, 0
    %v359 = vsel %vm354, %v333, 0
    %v361 = vsel %vm354, %v351, 0
    %v363 = vsel %vm354, %v353, 0
    %365 = vmatprep.subr.mxu0 0.0
    %366 = vmatpush1.xpose.msra.mxu0 %v361
    %367 = vmatprep.subr.mxu0 0.0
    %368 = vmatpush1.xpose.msra.mxu0 %v363
    %369 = vmatprep.subr.mxu0 0.0
    %370 = vmatpush1.xpose.msra.mxu0 0.0
    %371 = vmatprep.subr.mxu0 0.0
    %372 = vmatpush1.xpose.msra.mxu0 0.0
    %373 = vmatprep.subr.mxu0 0.0
    %374 = vmatpush1.xpose.msra.mxu0 0.0
    %375 = vmatprep.subr.mxu0 0.0
    %376 = vmatpush1.xpose.msra.mxu0 0.0
    %377 = vmatprep.subr.mxu0 0.0
    %378 = vmatpush1.xpose.msra.mxu0 0.0
    %379 = vmatprep.subr.mxu0 0.0
    %380 = vmatpush1.xpose.msra.mxu0 0.0
    %381 = vmatprep.subr.mxu0 0.0
    %382 = vmatpush1.xpose.msra.mxu0 0.0
    %383 = vmatprep.subr.mxu0 0.0
    %384 = vmatpush1.xpose.msra.mxu0 0.0
    %385 = vmatprep.subr.mxu0 0.0
    %386 = vmatpush1.xpose.msra.mxu0 0.0
    %387 = vmatprep.subr.mxu0 0.0
    %388 = vmatpush1.xpose.msra.mxu0 0.0
    %389 = vmatprep.subr.mxu0 0.0
    %390 = vmatpush1.xpose.msra.mxu0 0.0
    %391 = vmatprep.subr.mxu0 0.0
    %392 = vmatpush1.xpose.msra.mxu0 0.0
    %393 = vmatprep.subr.mxu0 0.0
    %394 = vmatpush1.xpose.msra.mxu0 0.0
    %395 = vmatprep.subr.mxu0 0.0
    %396 = vmatpush1.xpose.msra.mxu0 0.0
    %397 = vmatprep.subr.mxu0 0.0
    %398 = vmatpush1.xpose.msra.mxu0 0.0
    %399 = vmatprep.subr.mxu0 0.0
    %400 = vmatpush1.xpose.msra.mxu0 0.0
    %401 = vmatprep.subr.mxu0 0.0
    %402 = vmatpush1.xpose.msra.mxu0 0.0
    %403 = vmatprep.subr.mxu0 0.0
    %404 = vmatpush1.xpose.msra.mxu0 0.0
    %405 = vmatprep.subr.mxu0 0.0
    %406 = vmatpush1.xpose.msra.mxu0 0.0
    %407 = vmatprep.subr.mxu0 0.0
    %408 = vmatpush1.xpose.msra.mxu0 0.0
    %409 = vmatprep.subr.mxu0 0.0
    %410 = vmatpush1.xpose.msra.mxu0 0.0
    %411 = vmatprep.subr.mxu0 0.0
    %412 = vmatpush1.xpose.msra.mxu0 0.0
    %413 = vmatprep.subr.mxu0 0.0
    %414 = vmatpush1.xpose.msra.mxu0 0.0
    %415 = vmatprep.subr.mxu0 0.0
    %416 = vmatpush1.xpose.msra.mxu0 0.0
    %417 = vmatprep.subr.mxu0 0.0
    %418 = vmatpush1.xpose.msra.mxu0 0.0
    %419 = vmatprep.subr.mxu0 0.0
    %420 = vmatpush1.xpose.msra.mxu0 0.0
    %421 = vmatprep.subr.mxu0 0.0
    %422 = vmatpush1.xpose.msra.mxu0 0.0
    %423 = vmatprep.subr.mxu0 0.0
    %424 = vmatpush1.xpose.msra.mxu0 0.0
    %425 = vmatprep.subr.mxu0 0.0
    %426 = vmatpush1.xpose.msra.mxu0 0.0
    %427 = vmatprep.subr.mxu0 0.0
    %428 = vmatpush1.xpose.msra.mxu0 0.0
    %429 = vmatprep.mubr.f32.mxu0 0.0
    %430 = vmatmul.mubr.f32.gmra.mrb[0].mxu0 %v356
    %v431 = vpop.f32.mrb[0].mxu0
    %v432 = vadd.f32 0.0, %v431
    %v433 = vpop.f32.mrb[0].mxu0
    %434 = vmatprep.mubr.f32.mxu0 0.0
    %435 = vmatmul.mubr.f32.gmra.mrb[0].mxu0 %v359
    %v436 = vpop.f32.mrb[0].mxu0
    %v437 = vadd.f32 0.0, %v436
    %v438 = vpop.f32.mrb[0].mxu0
    %439 = vdwg.mxu0
    %442 = vrot.lane.b32.xlu0 %v248, 96
    %v443 = vpop.permute.xlu0 %442
    %444 = vrot.lane.b32.xlu0 %v253, 96
    %v445 = vpop.permute.xlu0 %444
    %v447 = vsel %vm354, %v334, 0
    %v450 = vsel %vm354, %v335, 0
    %v452 = vsel %vm354, %v443, 0
    %v454 = vsel %vm354, %v445, 0
    %456 = vmatprep.subr.mxu0 0.0
    %457 = vmatpush1.xpose.msra.mxu0 %v452
    %458 = vmatprep.subr.mxu0 0.0
    %459 = vmatpush1.xpose.msra.mxu0 %v454
    %460 = vmatprep.subr.mxu0 0.0
    %461 = vmatpush1.xpose.msra.mxu0 0.0
    %462 = vmatprep.subr.mxu0 0.0
    %463 = vmatpush1.xpose.msra.mxu0 0.0
    %464 = vmatprep.subr.mxu0 0.0
    %465 = vmatpush1.xpose.msra.mxu0 0.0
    %466 = vmatprep.subr.mxu0 0.0
    %467 = vmatpush1.xpose.msra.mxu0 0.0
    %468 = vmatprep.subr.mxu0 0.0
    %469 = vmatpush1.xpose.msra.mxu0 0.0
    %470 = vmatprep.subr.mxu0 0.0
    %471 = vmatpush1.xpose.msra.mxu0 0.0
    %472 = vmatprep.subr.mxu0 0.0
    %473 = vmatpush1.xpose.msra.mxu0 0.0
    %474 = vmatprep.subr.mxu0 0.0
    %475 = vmatpush1.xpose.msra.mxu0 0.0
    %476 = vmatprep.subr.mxu0 0.0
    %477 = vmatpush1.xpose.msra.mxu0 0.0
    %478 = vmatprep.subr.mxu0 0.0
    %479 = vmatpush1.xpose.msra.mxu0 0.0
    %480 = vmatprep.subr.mxu0 0.0
    %481 = vmatpush1.xpose.msra.mxu0 0.0
    %482 = vmatprep.subr.mxu0 0.0
    %483 = vmatpush1.xpose.msra.mxu0 0.0
    %484 = vmatprep.subr.mxu0 0.0
    %485 = vmatpush1.xpose.msra.mxu0 0.0
    %486 = vmatprep.subr.mxu0 0.0
    %487 = vmatpush1.xpose.msra.mxu0 0.0
    %488 = vmatprep.subr.mxu0 0.0
    %489 = vmatpush1.xpose.msra.mxu0 0.0
    %490 = vmatprep.subr.mxu0 0.0
    %491 = vmatpush1.xpose.msra.mxu0 0.0
    %492 = vmatprep.subr.mxu0 0.0
    %493 = vmatpush1.xpose.msra.mxu0 0.0
    %494 = vmatprep.subr.mxu0 0.0
    %495 = vmatpush1.xpose.msra.mxu0 0.0
    %496 = vmatprep.subr.mxu0 0.0
    %497 = vmatpush1.xpose.msra.mxu0 0.0
    %498 = vmatprep.subr.mxu0 0.0
    %499 = vmatpush1.xpose.msra.mxu0 0.0
    %500 = vmatprep.subr.mxu0 0.0
    %501 = vmatpush1.xpose.msra.mxu0 0.0
    %502 = vmatprep.subr.mxu0 0.0
    %503 = vmatpush1.xpose.msra.mxu0 0.0
    %504 = vmatprep.subr.mxu0 0.0
    %505 = vmatpush1.xpose.msra.mxu0 0.0
    %506 = vmatprep.subr.mxu0 0.0
    %507 = vmatpush1.xpose.msra.mxu0 0.0
    %508 = vmatprep.subr.mxu0 0.0
    %509 = vmatpush1.xpose.msra.mxu0 0.0
    %510 = vmatprep.subr.mxu0 0.0
    %511 = vmatpush1.xpose.msra.mxu0 0.0
    %512 = vmatprep.subr.mxu0 0.0
    %513 = vmatpush1.xpose.msra.mxu0 0.0
    %514 = vmatprep.subr.mxu0 0.0
    %515 = vmatpush1.xpose.msra.mxu0 0.0
    %516 = vmatprep.subr.mxu0 0.0
    %517 = vmatpush1.xpose.msra.mxu0 0.0
    %518 = vmatprep.subr.mxu0 0.0
    %519 = vmatpush1.xpose.msra.mxu0 0.0
    %520 = vmatprep.mubr.f32.mxu0 0.0
    %521 = vmatmul.mubr.f32.gmra.mrb[0].mxu0 %v447
    %v522 = vpop.f32.mrb[0].mxu0
    %v523 = vadd.f32 0.0, %v522
    %v524 = vpop.f32.mrb[0].mxu0
    %525 = vmatprep.mubr.f32.mxu0 0.0
    %526 = vmatmul.mubr.f32.gmra.mrb[0].mxu0 %v450
    %v527 = vpop.f32.mrb[0].mxu0
    %v528 = vadd.f32 0.0, %v527
    %v529 = vpop.f32.mrb[0].mxu0
    %530 = vdwg.mxu0
    %533 = vrot.lane.b32.xlu0 %v258, 96
    %v534 = vpop.permute.xlu0 %533
    %535 = vrot.lane.b32.xlu0 %v263, 96
    %v536 = vpop.permute.xlu0 %535
    %v538 = vsel %vm354, %v336, 0
    %v541 = vsel %vm354, %v337, 0
    %v543 = vsel %vm354, %v534, 0
    %v545 = vsel %vm354, %v536, 0
    %547 = vmatprep.subr.mxu0 0.0
    %548 = vmatpush1.xpose.msra.mxu0 %v543
    %549 = vmatprep.subr.mxu0 0.0
    %550 = vmatpush1.xpose.msra.mxu0 %v545
    %551 = vmatprep.subr.mxu0 0.0
    %552 = vmatpush1.xpose.msra.mxu0 0.0
    %553 = vmatprep.subr.mxu0 0.0
    %554 = vmatpush1.xpose.msra.mxu0 0.0
    %555 = vmatprep.subr.mxu0 0.0
    %556 = vmatpush1.xpose.msra.mxu0 0.0
    %557 = vmatprep.subr.mxu0 0.0
    %558 = vmatpush1.xpose.msra.mxu0 0.0
    %559 = vmatprep.subr.mxu0 0.0
    %560 = vmatpush1.xpose.msra.mxu0 0.0
    %561 = vmatprep.subr.mxu0 0.0
    %562 = vmatpush1.xpose.msra.mxu0 0.0
    %563 = vmatprep.subr.mxu0 0.0
    %564 = vmatpush1.xpose.msra.mxu0 0.0
    %565 = vmatprep.subr.mxu0 0.0
    %566 = vmatpush1.xpose.msra.mxu0 0.0
    %567 = vmatprep.subr.mxu0 0.0
    %568 = vmatpush1.xpose.msra.mxu0 0.0
    %569 = vmatprep.subr.mxu0 0.0
    %570 = vmatpush1.xpose.msra.mxu0 0.0
    %571 = vmatprep.subr.mxu0 0.0
    %572 = vmatpush1.xpose.msra.mxu0 0.0
    %573 = vmatprep.subr.mxu0 0.0
    %574 = vmatpush1.xpose.msra.mxu0 0.0
    %575 = vmatprep.subr.mxu0 0.0
    %576 = vmatpush1.xpose.msra.mxu0 0.0
    %577 = vmatprep.subr.mxu0 0.0
    %578 = vmatpush1.xpose.msra.mxu0 0.0
    %579 = vmatprep.subr.mxu0 0.0
    %580 = vmatpush1.xpose.msra.mxu0 0.0
    %581 = vmatprep.subr.mxu0 0.0
    %582 = vmatpush1.xpose.msra.mxu0 0.0
    %583 = vmatprep.subr.mxu0 0.0
    %584 = vmatpush1.xpose.msra.mxu0 0.0
    %585 = vmatprep.subr.mxu0 0.0
    %586 = vmatpush1.xpose.msra.mxu0 0.0
    %587 = vmatprep.subr.mxu0 0.0
    %588 = vmatpush1.xpose.msra.mxu0 0.0
    %589 = vmatprep.subr.mxu0 0.0
    %590 = vmatpush1.xpose.msra.mxu0 0.0
    %591 = vmatprep.subr.mxu0 0.0
    %592 = vmatpush1.xpose.msra.mxu0 0.0
    %593 = vmatprep.subr.mxu0 0.0
    %594 = vmatpush1.xpose.msra.mxu0 0.0
    %595 = vmatprep.subr.mxu0 0.0
    %596 = vmatpush1.xpose.msra.mxu0 0.0
    %597 = vmatprep.subr.mxu0 0.0
    %598 = vmatpush1.xpose.msra.mxu0 0.0
    %599 = vmatprep.subr.mxu0 0.0
    %600 = vmatpush1.xpose.msra.mxu0 0.0
    %601 = vmatprep.subr.mxu0 0.0
    %602 = vmatpush1.xpose.msra.mxu0 0.0
    %603 = vmatprep.subr.mxu0 0.0
    %604 = vmatpush1.xpose.msra.mxu0 0.0
    %605 = vmatprep.subr.mxu0 0.0
    %606 = vmatpush1.xpose.msra.mxu0 0.0
    %607 = vmatprep.subr.mxu0 0.0
    %608 = vmatpush1.xpose.msra.mxu0 0.0
    %609 = vmatprep.subr.mxu0 0.0
    %610 = vmatpush1.xpose.msra.mxu0 0.0
    %611 = vmatprep.mubr.f32.mxu0 0.0
    %612 = vmatmul.mubr.f32.gmra.mrb[0].mxu0 %v538
    %v613 = vpop.f32.mrb[0].mxu0
    %v614 = vadd.f32 0.0, %v613
    %v615 = vpop.f32.mrb[0].mxu0
    %616 = vmatprep.mubr.f32.mxu0 0.0
    %617 = vmatmul.mubr.f32.gmra.mrb[0].mxu0 %v541
    %v618 = vpop.f32.mrb[0].mxu0
    %v619 = vadd.f32 0.0, %v618
    %v620 = vpop.f32.mrb[0].mxu0
    %621 = vdwg.mxu0
    %624 = vrot.lane.b32.xlu0 %v268, 96
    %v625 = vpop.permute.xlu0 %624
    %626 = vrot.lane.b32.xlu0 %v273, 96
    %v627 = vpop.permute.xlu0 %626
    %v629 = vsel %vm354, %v338, 0
    %v632 = vsel %vm354, %v339, 0
    %v634 = vsel %vm354, %v625, 0
    %v636 = vsel %vm354, %v627, 0
    %638 = vmatprep.subr.mxu0 0.0
    %639 = vmatpush1.xpose.msra.mxu0 %v634
    %640 = vmatprep.subr.mxu0 0.0
    %641 = vmatpush1.xpose.msra.mxu0 %v636
    %642 = vmatprep.subr.mxu0 0.0
    %643 = vmatpush1.xpose.msra.mxu0 0.0
    %644 = vmatprep.subr.mxu0 0.0
    %645 = vmatpush1.xpose.msra.mxu0 0.0
    %646 = vmatprep.subr.mxu0 0.0
    %647 = vmatpush1.xpose.msra.mxu0 0.0
    %648 = vmatprep.subr.mxu0 0.0
    %649 = vmatpush1.xpose.msra.mxu0 0.0
    %650 = vmatprep.subr.mxu0 0.0
    %651 = vmatpush1.xpose.msra.mxu0 0.0
    %652 = vmatprep.subr.mxu0 0.0
    %653 = vmatpush1.xpose.msra.mxu0 0.0
    %654 = vmatprep.subr.mxu0 0.0
    %655 = vmatpush1.xpose.msra.mxu0 0.0
    %656 = vmatprep.subr.mxu0 0.0
    %657 = vmatpush1.xpose.msra.mxu0 0.0
    %658 = vmatprep.subr.mxu0 0.0
    %659 = vmatpush1.xpose.msra.mxu0 0.0
    %660 = vmatprep.subr.mxu0 0.0
    %661 = vmatpush1.xpose.msra.mxu0 0.0
    %662 = vmatprep.subr.mxu0 0.0
    %663 = vmatpush1.xpose.msra.mxu0 0.0
    %664 = vmatprep.subr.mxu0 0.0
    %665 = vmatpush1.xpose.msra.mxu0 0.0
    %666 = vmatprep.subr.mxu0 0.0
    %667 = vmatpush1.xpose.msra.mxu0 0.0
    %668 = vmatprep.subr.mxu0 0.0
    %669 = vmatpush1.xpose.msra.mxu0 0.0
    %670 = vmatprep.subr.mxu0 0.0
    %671 = vmatpush1.xpose.msra.mxu0 0.0
    %672 = vmatprep.subr.mxu0 0.0
    %673 = vmatpush1.xpose.msra.mxu0 0.0
    %674 = vmatprep.subr.mxu0 0.0
    %675 = vmatpush1.xpose.msra.mxu0 0.0
    %676 = vmatprep.subr.mxu0 0.0
    %677 = vmatpush1.xpose.msra.mxu0 0.0
    %678 = vmatprep.subr.mxu0 0.0
    %679 = vmatpush1.xpose.msra.mxu0 0.0
    %680 = vmatprep.subr.mxu0 0.0
    %681 = vmatpush1.xpose.msra.mxu0 0.0
    %682 = vmatprep.subr.mxu0 0.0
    %683 = vmatpush1.xpose.msra.mxu0 0.0
    %684 = vmatprep.subr.mxu0 0.0
    %685 = vmatpush1.xpose.msra.mxu0 0.0
    %686 = vmatprep.subr.mxu0 0.0
    %687 = vmatpush1.xpose.msra.mxu0 0.0
    %688 = vmatprep.subr.mxu0 0.0
    %689 = vmatpush1.xpose.msra.mxu0 0.0
    %690 = vmatprep.subr.mxu0 0.0
    %691 = vmatpush1.xpose.msra.mxu0 0.0
    %692 = vmatprep.subr.mxu0 0.0
    %693 = vmatpush1.xpose.msra.mxu0 0.0
    %694 = vmatprep.subr.mxu0 0.0
    %695 = vmatpush1.xpose.msra.mxu0 0.0
    %696 = vmatprep.subr.mxu0 0.0
    %697 = vmatpush1.xpose.msra.mxu0 0.0
    %698 = vmatprep.subr.mxu0 0.0
    %699 = vmatpush1.xpose.msra.mxu0 0.0
    %700 = vmatprep.subr.mxu0 0.0
    %701 = vmatpush1.xpose.msra.mxu0 0.0
    %702 = vmatprep.mubr.f32.mxu0 0.0
    %703 = vmatmul.mubr.f32.gmra.mrb[0].mxu0 %v629
    %v704 = vpop.f32.mrb[0].mxu0
    %v705 = vadd.f32 0.0, %v704
    %v706 = vpop.f32.mrb[0].mxu0
    %707 = vmatprep.mubr.f32.mxu0 0.0
    %708 = vmatmul.mubr.f32.gmra.mrb[0].mxu0 %v632
    %v709 = vpop.f32.mrb[0].mxu0
    %v710 = vadd.f32 0.0, %v709
    %v711 = vpop.f32.mrb[0].mxu0
    %712 = vdwg.mxu0
    %715 = vrot.lane.b32.xlu0 %v278, 96
    %v716 = vpop.permute.xlu0 %715
    %717 = vrot.lane.b32.xlu0 %v283, 96
    %v718 = vpop.permute.xlu0 %717
    %v720 = vsel %vm354, %v340, 0
    %v723 = vsel %vm354, %v341, 0
    %v725 = vsel %vm354, %v716, 0
    %v727 = vsel %vm354, %v718, 0
    %729 = vmatprep.subr.mxu0 0.0
    %730 = vmatpush1.xpose.msra.mxu0 %v725
    %731 = vmatprep.subr.mxu0 0.0
    %732 = vmatpush1.xpose.msra.mxu0 %v727
    %733 = vmatprep.subr.mxu0 0.0
    %734 = vmatpush1.xpose.msra.mxu0 0.0
    %735 = vmatprep.subr.mxu0 0.0
    %736 = vmatpush1.xpose.msra.mxu0 0.0
    %737 = vmatprep.subr.mxu0 0.0
    %738 = vmatpush1.xpose.msra.mxu0 0.0
    %739 = vmatprep.subr.mxu0 0.0
    %740 = vmatpush1.xpose.msra.mxu0 0.0
    %741 = vmatprep.subr.mxu0 0.0
    %742 = vmatpush1.xpose.msra.mxu0 0.0
    %743 = vmatprep.subr.mxu0 0.0
    %744 = vmatpush1.xpose.msra.mxu0 0.0
    %745 = vmatprep.subr.mxu0 0.0
    %746 = vmatpush1.xpose.msra.mxu0 0.0
    %747 = vmatprep.subr.mxu0 0.0
    %748 = vmatpush1.xpose.msra.mxu0 0.0
    %749 = vmatprep.subr.mxu0 0.0
    %750 = vmatpush1.xpose.msra.mxu0 0.0
    %751 = vmatprep.subr.mxu0 0.0
    %752 = vmatpush1.xpose.msra.mxu0 0.0
    %753 = vmatprep.subr.mxu0 0.0
    %754 = vmatpush1.xpose.msra.mxu0 0.0
    %755 = vmatprep.subr.mxu0 0.0
    %756 = vmatpush1.xpose.msra.mxu0 0.0
    %757 = vmatprep.subr.mxu0 0.0
    %758 = vmatpush1.xpose.msra.mxu0 0.0
    %759 = vmatprep.subr.mxu0 0.0
    %760 = vmatpush1.xpose.msra.mxu0 0.0
    %761 = vmatprep.subr.mxu0 0.0
    %762 = vmatpush1.xpose.msra.mxu0 0.0
    %763 = vmatprep.subr.mxu0 0.0
    %764 = vmatpush1.xpose.msra.mxu0 0.0
    %765 = vmatprep.subr.mxu0 0.0
    %766 = vmatpush1.xpose.msra.mxu0 0.0
    %767 = vmatprep.subr.mxu0 0.0
    %768 = vmatpush1.xpose.msra.mxu0 0.0
    %769 = vmatprep.subr.mxu0 0.0
    %770 = vmatpush1.xpose.msra.mxu0 0.0
    %771 = vmatprep.subr.mxu0 0.0
    %772 = vmatpush1.xpose.msra.mxu0 0.0
    %773 = vmatprep.subr.mxu0 0.0
    %774 = vmatpush1.xpose.msra.mxu0 0.0
    %775 = vmatprep.subr.mxu0 0.0
    %776 = vmatpush1.xpose.msra.mxu0 0.0
    %777 = vmatprep.subr.mxu0 0.0
    %778 = vmatpush1.xpose.msra.mxu0 0.0
    %779 = vmatprep.subr.mxu0 0.0
    %780 = vmatpush1.xpose.msra.mxu0 0.0
    %781 = vmatprep.subr.mxu0 0.0
    %782 = vmatpush1.xpose.msra.mxu0 0.0
    %783 = vmatprep.subr.mxu0 0.0
    %784 = vmatpush1.xpose.msra.mxu0 0.0
    %785 = vmatprep.subr.mxu0 0.0
    %786 = vmatpush1.xpose.msra.mxu0 0.0
    %787 = vmatprep.subr.mxu0 0.0
    %788 = vmatpush1.xpose.msra.mxu0 0.0
    %789 = vmatprep.subr.mxu0 0.0
    %790 = vmatpush1.xpose.msra.mxu0 0.0
    %791 = vmatprep.subr.mxu0 0.0
    %792 = vmatpush1.xpose.msra.mxu0 0.0
    %793 = vmatprep.mubr.f32.mxu0 0.0
    %794 = vmatmul.mubr.f32.gmra.mrb[0].mxu0 %v720
    %v795 = vpop.f32.mrb[0].mxu0
    %v796 = vadd.f32 0.0, %v795
    %v797 = vpop.f32.mrb[0].mxu0
    %798 = vmatprep.mubr.f32.mxu0 0.0
    %799 = vmatmul.mubr.f32.gmra.mrb[0].mxu0 %v723
    %v800 = vpop.f32.mrb[0].mxu0
    %v801 = vadd.f32 0.0, %v800
    %v802 = vpop.f32.mrb[0].mxu0
    %803 = vdwg.mxu0
    %806 = vrot.lane.b32.xlu0 %v288, 96
    %v807 = vpop.permute.xlu0 %806
    %808 = vrot.lane.b32.xlu0 %v293, 96
    %v809 = vpop.permute.xlu0 %808
    %v811 = vsel %vm354, %v342, 0
    %v814 = vsel %vm354, %v343, 0
    %v816 = vsel %vm354, %v807, 0
    %v818 = vsel %vm354, %v809, 0
    %820 = vmatprep.subr.mxu0 0.0
    %821 = vmatpush1.xpose.msra.mxu0 %v816
    %822 = vmatprep.subr.mxu0 0.0
    %823 = vmatpush1.xpose.msra.mxu0 %v818
    %824 = vmatprep.subr.mxu0 0.0
    %825 = vmatpush1.xpose.msra.mxu0 0.0
    %826 = vmatprep.subr.mxu0 0.0
    %827 = vmatpush1.xpose.msra.mxu0 0.0
    %828 = vmatprep.subr.mxu0 0.0
    %829 = vmatpush1.xpose.msra.mxu0 0.0
    %830 = vmatprep.subr.mxu0 0.0
    %831 = vmatpush1.xpose.msra.mxu0 0.0
    %832 = vmatprep.subr.mxu0 0.0
    %833 = vmatpush1.xpose.msra.mxu0 0.0
    %834 = vmatprep.subr.mxu0 0.0
    %835 = vmatpush1.xpose.msra.mxu0 0.0
    %836 = vmatprep.subr.mxu0 0.0
    %837 = vmatpush1.xpose.msra.mxu0 0.0
    %838 = vmatprep.subr.mxu0 0.0
    %839 = vmatpush1.xpose.msra.mxu0 0.0
    %840 = vmatprep.subr.mxu0 0.0
    %841 = vmatpush1.xpose.msra.mxu0 0.0
    %842 = vmatprep.subr.mxu0 0.0
    %843 = vmatpush1.xpose.msra.mxu0 0.0
    %844 = vmatprep.subr.mxu0 0.0
    %845 = vmatpush1.xpose.msra.mxu0 0.0
    %846 = vmatprep.subr.mxu0 0.0
    %847 = vmatpush1.xpose.msra.mxu0 0.0
    %848 = vmatprep.subr.mxu0 0.0
    %849 = vmatpush1.xpose.msra.mxu0 0.0
    %850 = vmatprep.subr.mxu0 0.0
    %851 = vmatpush1.xpose.msra.mxu0 0.0
    %852 = vmatprep.subr.mxu0 0.0
    %853 = vmatpush1.xpose.msra.mxu0 0.0
    %854 = vmatprep.subr.mxu0 0.0
    %855 = vmatpush1.xpose.msra.mxu0 0.0
    %856 = vmatprep.subr.mxu0 0.0
    %857 = vmatpush1.xpose.msra.mxu0 0.0
    %858 = vmatprep.subr.mxu0 0.0
    %859 = vmatpush1.xpose.msra.mxu0 0.0
    %860 = vmatprep.subr.mxu0 0.0
    %861 = vmatpush1.xpose.msra.mxu0 0.0
    %862 = vmatprep.subr.mxu0 0.0
    %863 = vmatpush1.xpose.msra.mxu0 0.0
    %864 = vmatprep.subr.mxu0 0.0
    %865 = vmatpush1.xpose.msra.mxu0 0.0
    %866 = vmatprep.subr.mxu0 0.0
    %867 = vmatpush1.xpose.msra.mxu0 0.0
    %868 = vmatprep.subr.mxu0 0.0
    %869 = vmatpush1.xpose.msra.mxu0 0.0
    %870 = vmatprep.subr.mxu0 0.0
    %871 = vmatpush1.xpose.msra.mxu0 0.0
    %872 = vmatprep.subr.mxu0 0.0
    %873 = vmatpush1.xpose.msra.mxu0 0.0
    %874 = vmatprep.subr.mxu0 0.0
    %875 = vmatpush1.xpose.msra.mxu0 0.0
    %876 = vmatprep.subr.mxu0 0.0
    %877 = vmatpush1.xpose.msra.mxu0 0.0
    %878 = vmatprep.subr.mxu0 0.0
    %879 = vmatpush1.xpose.msra.mxu0 0.0
    %880 = vmatprep.subr.mxu0 0.0
    %881 = vmatpush1.xpose.msra.mxu0 0.0
    %882 = vmatprep.subr.mxu0 0.0
    %883 = vmatpush1.xpose.msra.mxu0 0.0
    %884 = vmatprep.mubr.f32.mxu0 0.0
    %885 = vmatmul.mubr.f32.gmra.mrb[0].mxu0 %v811
    %v886 = vpop.f32.mrb[0].mxu0
    %v887 = vadd.f32 0.0, %v886
    %v888 = vpop.f32.mrb[0].mxu0
    %889 = vmatprep.mubr.f32.mxu0 0.0
    %890 = vmatmul.mubr.f32.gmra.mrb[0].mxu0 %v814
    %v891 = vpop.f32.mrb[0].mxu0
    %v892 = vadd.f32 0.0, %v891
    %v893 = vpop.f32.mrb[0].mxu0
    %894 = vdwg.mxu0
    %897 = vrot.lane.b32.xlu0 %v298, 96
    %v898 = vpop.permute.xlu0 %897
    %899 = vrot.lane.b32.xlu0 %v303, 96
    %v900 = vpop.permute.xlu0 %899
    %v902 = vsel %vm354, %v344, 0
    %v905 = vsel %vm354, %v345, 0
    %v907 = vsel %vm354, %v898, 0
    %v909 = vsel %vm354, %v900, 0
    %911 = vmatprep.subr.mxu0 0.0
    %912 = vmatpush1.xpose.msra.mxu0 %v907
    %913 = vmatprep.subr.mxu0 0.0
    %914 = vmatpush1.xpose.msra.mxu0 %v909
    %915 = vmatprep.subr.mxu0 0.0
    %916 = vmatpush1.xpose.msra.mxu0 0.0
    %917 = vmatprep.subr.mxu0 0.0
    %918 = vmatpush1.xpose.msra.mxu0 0.0
    %919 = vmatprep.subr.mxu0 0.0
    %920 = vmatpush1.xpose.msra.mxu0 0.0
    %921 = vmatprep.subr.mxu0 0.0
    %922 = vmatpush1.xpose.msra.mxu0 0.0
    %923 = vmatprep.subr.mxu0 0.0
    %924 = vmatpush1.xpose.msra.mxu0 0.0
    %925 = vmatprep.subr.mxu0 0.0
    %926 = vmatpush1.xpose.msra.mxu0 0.0
    %927 = vmatprep.subr.mxu0 0.0
    %928 = vmatpush1.xpose.msra.mxu0 0.0
    %929 = vmatprep.subr.mxu0 0.0
    %930 = vmatpush1.xpose.msra.mxu0 0.0
    %931 = vmatprep.subr.mxu0 0.0
    %932 = vmatpush1.xpose.msra.mxu0 0.0
    %933 = vmatprep.subr.mxu0 0.0
    %934 = vmatpush1.xpose.msra.mxu0 0.0
    %935 = vmatprep.subr.mxu0 0.0
    %936 = vmatpush1.xpose.msra.mxu0 0.0
    %937 = vmatprep.subr.mxu0 0.0
    %938 = vmatpush1.xpose.msra.mxu0 0.0
    %939 = vmatprep.subr.mxu0 0.0
    %940 = vmatpush1.xpose.msra.mxu0 0.0
    %941 = vmatprep.subr.mxu0 0.0
    %942 = vmatpush1.xpose.msra.mxu0 0.0
    %943 = vmatprep.subr.mxu0 0.0
    %944 = vmatpush1.xpose.msra.mxu0 0.0
    %945 = vmatprep.subr.mxu0 0.0
    %946 = vmatpush1.xpose.msra.mxu0 0.0
    %947 = vmatprep.subr.mxu0 0.0
    %948 = vmatpush1.xpose.msra.mxu0 0.0
    %949 = vmatprep.subr.mxu0 0.0
    %950 = vmatpush1.xpose.msra.mxu0 0.0
    %951 = vmatprep.subr.mxu0 0.0
    %952 = vmatpush1.xpose.msra.mxu0 0.0
    %953 = vmatprep.subr.mxu0 0.0
    %954 = vmatpush1.xpose.msra.mxu0 0.0
    %955 = vmatprep.subr.mxu0 0.0
    %956 = vmatpush1.xpose.msra.mxu0 0.0
    %957 = vmatprep.subr.mxu0 0.0
    %958 = vmatpush1.xpose.msra.mxu0 0.0
    %959 = vmatprep.subr.mxu0 0.0
    %960 = vmatpush1.xpose.msra.mxu0 0.0
    %961 = vmatprep.subr.mxu0 0.0
    %962 = vmatpush1.xpose.msra.mxu0 0.0
    %963 = vmatprep.subr.mxu0 0.0
    %964 = vmatpush1.xpose.msra.mxu0 0.0
    %965 = vmatprep.subr.mxu0 0.0
    %966 = vmatpush1.xpose.msra.mxu0 0.0
    %967 = vmatprep.subr.mxu0 0.0
    %968 = vmatpush1.xpose.msra.mxu0 0.0
    %969 = vmatprep.subr.mxu0 0.0
    %970 = vmatpush1.xpose.msra.mxu0 0.0
    %971 = vmatprep.subr.mxu0 0.0
    %972 = vmatpush1.xpose.msra.mxu0 0.0
    %973 = vmatprep.subr.mxu0 0.0
    %974 = vmatpush1.xpose.msra.mxu0 0.0
    %975 = vmatprep.mubr.f32.mxu0 0.0
    %976 = vmatmul.mubr.f32.gmra.mrb[0].mxu0 %v902
    %v977 = vpop.f32.mrb[0].mxu0
    %v978 = vadd.f32 0.0, %v977
    %v979 = vpop.f32.mrb[0].mxu0
    %980 = vmatprep.mubr.f32.mxu0 0.0
    %981 = vmatmul.mubr.f32.gmra.mrb[0].mxu0 %v905
    %v982 = vpop.f32.mrb[0].mxu0
    %v983 = vadd.f32 0.0, %v982
    %v984 = vpop.f32.mrb[0].mxu0
    %985 = vdwg.mxu0
    %988 = vrot.lane.b32.xlu0 %v308, 96
    %v989 = vpop.permute.xlu0 %988
    %990 = vrot.lane.b32.xlu0 %v313, 96
    %v991 = vpop.permute.xlu0 %990
    %v993 = vsel %vm354, %v346, 0
    %v996 = vsel %vm354, %v347, 0
    %v998 = vsel %vm354, %v989, 0
    %v1000 = vsel %vm354, %v991, 0
    %1002 = vmatprep.subr.mxu0 0.0
    %1003 = vmatpush1.xpose.msra.mxu0 %v998
    %1004 = vmatprep.subr.mxu0 0.0
    %1005 = vmatpush1.xpose.msra.mxu0 %v1000
    %1006 = vmatprep.subr.mxu0 0.0
    %1007 = vmatpush1.xpose.msra.mxu0 0.0
    %1008 = vmatprep.subr.mxu0 0.0
    %1009 = vmatpush1.xpose.msra.mxu0 0.0
    %1010 = vmatprep.subr.mxu0 0.0
    %1011 = vmatpush1.xpose.msra.mxu0 0.0
    %1012 = vmatprep.subr.mxu0 0.0
    %1013 = vmatpush1.xpose.msra.mxu0 0.0
    %1014 = vmatprep.subr.mxu0 0.0
    %1015 = vmatpush1.xpose.msra.mxu0 0.0
    %1016 = vmatprep.subr.mxu0 0.0
    %1017 = vmatpush1.xpose.msra.mxu0 0.0
    %1018 = vmatprep.subr.mxu0 0.0
    %1019 = vmatpush1.xpose.msra.mxu0 0.0
    %1020 = vmatprep.subr.mxu0 0.0
    %1021 = vmatpush1.xpose.msra.mxu0 0.0
    %1022 = vmatprep.subr.mxu0 0.0
    %1023 = vmatpush1.xpose.msra.mxu0 0.0
    %1024 = vmatprep.subr.mxu0 0.0
    %1025 = vmatpush1.xpose.msra.mxu0 0.0
    %1026 = vmatprep.subr.mxu0 0.0
    %1027 = vmatpush1.xpose.msra.mxu0 0.0
    %1028 = vmatprep.subr.mxu0 0.0
    %1029 = vmatpush1.xpose.msra.mxu0 0.0
    %1030 = vmatprep.subr.mxu0 0.0
    %1031 = vmatpush1.xpose.msra.mxu0 0.0
    %1032 = vmatprep.subr.mxu0 0.0
    %1033 = vmatpush1.xpose.msra.mxu0 0.0
    %1034 = vmatprep.subr.mxu0 0.0
    %1035 = vmatpush1.xpose.msra.mxu0 0.0
    %1036 = vmatprep.subr.mxu0 0.0
    %1037 = vmatpush1.xpose.msra.mxu0 0.0
    %1038 = vmatprep.subr.mxu0 0.0
    %1039 = vmatpush1.xpose.msra.mxu0 0.0
    %1040 = vmatprep.subr.mxu0 0.0
    %1041 = vmatpush1.xpose.msra.mxu0 0.0
    %1042 = vmatprep.subr.mxu0 0.0
    %1043 = vmatpush1.xpose.msra.mxu0 0.0
    %1044 = vmatprep.subr.mxu0 0.0
    %1045 = vmatpush1.xpose.msra.mxu0 0.0
    %1046 = vmatprep.subr.mxu0 0.0
    %1047 = vmatpush1.xpose.msra.mxu0 0.0
    %1048 = vmatprep.subr.mxu0 0.0
    %1049 = vmatpush1.xpose.msra.mxu0 0.0
    %1050 = vmatprep.subr.mxu0 0.0
    %1051 = vmatpush1.xpose.msra.mxu0 0.0
    %1052 = vmatprep.subr.mxu0 0.0
    %1053 = vmatpush1.xpose.msra.mxu0 0.0
    %1054 = vmatprep.subr.mxu0 0.0
    %1055 = vmatpush1.xpose.msra.mxu0 0.0
    %1056 = vmatprep.subr.mxu0 0.0
    %1057 = vmatpush1.xpose.msra.mxu0 0.0
    %1058 = vmatprep.subr.mxu0 0.0
    %1059 = vmatpush1.xpose.msra.mxu0 0.0
    %1060 = vmatprep.subr.mxu0 0.0
    %1061 = vmatpush1.xpose.msra.mxu0 0.0
    %1062 = vmatprep.subr.mxu0 0.0
    %1063 = vmatpush1.xpose.msra.mxu0 0.0
    %1064 = vmatprep.subr.mxu0 0.0
    %1065 = vmatpush1.xpose.msra.mxu0 0.0
    %1066 = vmatprep.mubr.f32.mxu0 0.0
    %1067 = vmatmul.mubr.f32.gmra.mrb[0].mxu0 %v993
    %v1068 = vpop.f32.mrb[0].mxu0
    %v1069 = vadd.f32 0.0, %v1068
    %v1070 = vpop.f32.mrb[0].mxu0
    %1071 = vmatprep.mubr.f32.mxu0 0.0
    %1072 = vmatmul.mubr.f32.gmra.mrb[0].mxu0 %v996
    %v1073 = vpop.f32.mrb[0].mxu0
    %v1074 = vadd.f32 0.0, %v1073
    %v1075 = vpop.f32.mrb[0].mxu0
    %1076 = vdwg.mxu0
    %v1077 = vadd.f32 %v316, %v324
    %v1078 = vadd.f32 %v317, %v325
    %v1079 = vadd.f32 %v316, %v326
    %v1080 = vadd.f32 %v317, %v327
    %v1081 = vadd.f32 %v316, %v328
    %v1082 = vadd.f32 %v317, %v329
    %v1083 = vadd.f32 %v316, %v330
    %v1084 = vadd.f32 %v317, %v331
    %v1085 = vadd.f32 %v432, %v1077
    %v1086 = vadd.f32 %v437, %v1078
    %v1087 = vadd.f32 %v523, %v1079
    %v1088 = vadd.f32 %v528, %v1080
    %v1089 = vadd.f32 %v614, %v1081
    %v1090 = vadd.f32 %v619, %v1082
    %v1091 = vadd.f32 %v705, %v1083
    %v1092 = vadd.f32 %v710, %v1084
    %v1093 = vadd.f32 %v796, %v1077
    %v1094 = vadd.f32 %v801, %v1078
    %v1095 = vadd.f32 %v887, %v1079
    %v1096 = vadd.f32 %v892, %v1080
    %v1097 = vadd.f32 %v978, %v1081
    %v1098 = vadd.f32 %v983, %v1082
    %v1099 = vadd.f32 %v1069, %v1083
    %v1100 = vadd.f32 %v1074, %v1084
    %vm1101 = vcmask 130048
    %v1102 = vsel %vm1101, %v1085, -inf
    %1103 = vmax.xlane.f32.xlu0 %v1102
    %v1104 = vpop.xlane.xlu0 %1103
    %v1105 = vsel %vm1101, %v1086, -inf
    %1106 = vmax.xlane.f32.xlu0 %v1105
    %v1107 = vpop.xlane.xlu0 %1106
    %v1108 = vsel %vm1101, %v1087, -inf
    %1109 = vmax.xlane.f32.xlu0 %v1108
    %v1110 = vpop.xlane.xlu0 %1109
    %v1111 = vsel %vm1101, %v1088, -inf
    %1112 = vmax.xlane.f32.xlu0 %v1111
    %v1113 = vpop.xlane.xlu0 %1112
    %v1114 = vsel %vm1101, %v1089, -inf
    %1115 = vmax.xlane.f32.xlu0 %v1114
    %v1116 = vpop.xlane.xlu0 %1115
    %v1117 = vsel %vm1101, %v1090, -inf
    %1118 = vmax.xlane.f32.xlu0 %v1117
    %v1119 = vpop.xlane.xlu0 %1118
    %v1120 = vsel %vm1101, %v1091, -inf
    %1121 = vmax.xlane.f32.xlu0 %v1120
    %v1122 = vpop.xlane.xlu0 %1121
    %v1123 = vsel %vm1101, %v1092, -inf
    %1124 = vmax.xlane.f32.xlu0 %v1123
    %v1125 = vpop.xlane.xlu0 %1124
    %v1126 = vsel %vm1101, %v1093, -inf
    %1127 = vmax.xlane.f32.xlu0 %v1126
    %v1128 = vpop.xlane.xlu0 %1127
    %v1129 = vsel %vm1101, %v1094, -inf
    %1130 = vmax.xlane.f32.xlu0 %v1129
    %v1131 = vpop.xlane.xlu0 %1130
    %v1132 = vsel %vm1101, %v1095, -inf
    %1133 = vmax.xlane.f32.xlu0 %v1132
    %v1134 = vpop.xlane.xlu0 %1133
    %v1135 = vsel %vm1101, %v1096, -inf
    %1136 = vmax.xlane.f32.xlu0 %v1135
    %v1137 = vpop.xlane.xlu0 %1136
    %v1138 = vsel %vm1101, %v1097, -inf
    %1139 = vmax.xlane.f32.xlu0 %v1138
    %v1140 = vpop.xlane.xlu0 %1139
    %v1141 = vsel %vm1101, %v1098, -inf
    %1142 = vmax.xlane.f32.xlu0 %v1141
    %v1143 = vpop.xlane.xlu0 %1142
    %v1144 = vsel %vm1101, %v1099, -inf
    %1145 = vmax.xlane.f32.xlu0 %v1144
    %v1146 = vpop.xlane.xlu0 %1145
    %v1147 = vsel %vm1101, %v1100, -inf
    %1148 = vmax.xlane.f32.xlu0 %v1147
    %v1149 = vpop.xlane.xlu0 %1148
    %v1150 = vsub.f32 %v1085, %v1104
    %v1151 = vsub.f32 %v1086, %v1107
    %v1152 = vsub.f32 %v1087, %v1110
    %v1153 = vsub.f32 %v1088, %v1113
    %v1154 = vsub.f32 %v1089, %v1116
    %v1155 = vsub.f32 %v1090, %v1119
    %v1156 = vsub.f32 %v1091, %v1122
    %v1157 = vsub.f32 %v1092, %v1125
    %v1158 = vsub.f32 %v1093, %v1128
    %v1159 = vsub.f32 %v1094, %v1131
    %v1160 = vsub.f32 %v1095, %v1134
    %v1161 = vsub.f32 %v1096, %v1137
    %v1162 = vsub.f32 %v1097, %v1140
    %v1163 = vsub.f32 %v1098, %v1143
    %v1164 = vsub.f32 %v1099, %v1146
    %v1165 = vsub.f32 %v1100, %v1149
    %v1166 = vmul.f32 %v1150, 1.442695
    %v1167 = vpow.pop %v1166
    %v1168 = vmul.f32 %v1151, 1.442695
    %v1169 = vpow.pop %v1168
    %v1170 = vmul.f32 %v1152, 1.442695
    %v1171 = vpow.pop %v1170
    %v1172 = vmul.f32 %v1153, 1.442695
    %v1173 = vpow.pop %v1172
    %v1174 = vmul.f32 %v1154, 1.442695
    %v1175 = vpow.pop %v1174
    %v1176 = vmul.f32 %v1155, 1.442695
    %v1177 = vpow.pop %v1176
    %v1178 = vmul.f32 %v1156, 1.442695
    %v1179 = vpow.pop %v1178
    %v1180 = vmul.f32 %v1157, 1.442695
    %v1181 = vpow.pop %v1180
    %v1182 = vmul.f32 %v1158, 1.442695
    %v1183 = vpow.pop %v1182
    %v1184 = vmul.f32 %v1159, 1.442695
    %v1185 = vpow.pop %v1184
    %v1186 = vmul.f32 %v1160, 1.442695
    %v1187 = vpow.pop %v1186
    %v1188 = vmul.f32 %v1161, 1.442695
    %v1189 = vpow.pop %v1188
    %v1190 = vmul.f32 %v1162, 1.442695
    %v1191 = vpow.pop %v1190
    %v1192 = vmul.f32 %v1163, 1.442695
    %v1193 = vpow.pop %v1192
    %v1194 = vmul.f32 %v1164, 1.442695
    %v1195 = vpow.pop %v1194
    %v1196 = vmul.f32 %v1165, 1.442695
    %v1197 = vpow.pop %v1196
    %v1198 = vsel %vm1101, %v1167, 0.0
    %1199 = vadd.xlane.f32.xlu0 %v1198
    %v1200 = vpop.xlane.xlu0 %1199
    %v1201 = vsel %vm1101, %v1169, 0.0
    %1202 = vadd.xlane.f32.xlu0 %v1201
    %v1203 = vpop.xlane.xlu0 %1202
    %v1204 = vsel %vm1101, %v1171, 0.0
    %1205 = vadd.xlane.f32.xlu0 %v1204
    %v1206 = vpop.xlane.xlu0 %1205
    %v1207 = vsel %vm1101, %v1173, 0.0
    %1208 = vadd.xlane.f32.xlu0 %v1207
    %v1209 = vpop.xlane.xlu0 %1208
    %v1210 = vsel %vm1101, %v1175, 0.0
    %1211 = vadd.xlane.f32.xlu0 %v1210
    %v1212 = vpop.xlane.xlu0 %1211
    %v1213 = vsel %vm1101, %v1177, 0.0
    %1214 = vadd.xlane.f32.xlu0 %v1213
    %v1215 = vpop.xlane.xlu0 %1214
    %v1216 = vsel %vm1101, %v1179, 0.0
    %1217 = vadd.xlane.f32.xlu0 %v1216
    %v1218 = vpop.xlane.xlu0 %1217
    %v1219 = vsel %vm1101, %v1181, 0.0
    %1220 = vadd.xlane.f32.xlu0 %v1219
    %v1221 = vpop.xlane.xlu0 %1220
    %v1222 = vsel %vm1101, %v1183, 0.0
    %1223 = vadd.xlane.f32.xlu0 %v1222
    %v1224 = vpop.xlane.xlu0 %1223
    %v1225 = vsel %vm1101, %v1185, 0.0
    %1226 = vadd.xlane.f32.xlu0 %v1225
    %v1227 = vpop.xlane.xlu0 %1226
    %v1228 = vsel %vm1101, %v1187, 0.0
    %1229 = vadd.xlane.f32.xlu0 %v1228
    %v1230 = vpop.xlane.xlu0 %1229
    %v1231 = vsel %vm1101, %v1189, 0.0
    %1232 = vadd.xlane.f32.xlu0 %v1231
    %v1233 = vpop.xlane.xlu0 %1232
    %v1234 = vsel %vm1101, %v1191, 0.0
    %1235 = vadd.xlane.f32.xlu0 %v1234
    %v1236 = vpop.xlane.xlu0 %1235
    %v1237 = vsel %vm1101, %v1193, 0.0
    %1238 = vadd.xlane.f32.xlu0 %v1237
    %v1239 = vpop.xlane.xlu0 %1238
    %v1240 = vsel %vm1101, %v1195, 0.0
    %1241 = vadd.xlane.f32.xlu0 %v1240
    %v1242 = vpop.xlane.xlu0 %1241
    %v1243 = vsel %vm1101, %v1197, 0.0
    %1244 = vadd.xlane.f32.xlu0 %v1243
    %v1245 = vpop.xlane.xlu0 %1244
    %v1246 = vrcp.pop %v1200
    %v1247 = vrcp.pop %v1203
    %v1248 = vrcp.pop %v1206
    %v1249 = vrcp.pop %v1209
    %v1250 = vrcp.pop %v1212
    %v1251 = vrcp.pop %v1215
    %v1252 = vrcp.pop %v1218
    %v1253 = vrcp.pop %v1221
    %v1254 = vrcp.pop %v1224
    %v1255 = vrcp.pop %v1227
    %v1256 = vrcp.pop %v1230
    %v1257 = vrcp.pop %v1233
    %v1258 = vrcp.pop %v1236
    %v1259 = vrcp.pop %v1239
    %v1260 = vrcp.pop %v1242
    %v1261 = vrcp.pop %v1245
    %v1262 = vmul.f32 %v1167, %v1246
    %v1263 = vmul.f32 %v1169, %v1247
    %v1264 = vmul.f32 %v1171, %v1248
    %v1265 = vmul.f32 %v1173, %v1249
    %v1266 = vmul.f32 %v1175, %v1250
    %v1267 = vmul.f32 %v1177, %v1251
    %v1268 = vmul.f32 %v1179, %v1252
    %v1269 = vmul.f32 %v1181, %v1253
    %v1270 = vmul.f32 %v1183, %v1254
    %v1271 = vmul.f32 %v1185, %v1255
    %v1272 = vmul.f32 %v1187, %v1256
    %v1273 = vmul.f32 %v1189, %v1257
    %v1274 = vmul.f32 %v1191, %v1258
    %v1275 = vmul.f32 %v1193, %v1259
    %v1276 = vmul.f32 %v1195, %v1260
    %v1277 = vmul.f32 %v1197, %v1261
    %1278 = vrot.lane.b32.xlu0 %v238, 64
    %v1279 = vpop.permute.xlu0 %1278
    %1280 = vrot.lane.b32.xlu0 %v243, 64
    %v1281 = vpop.permute.xlu0 %1280
    %v1285 = vsel %vm1101, %v1262, 0
    %v1288 = vsel %vm1101, %v1263, 0
    %1290 = vmatprep.subr.mxu0 0.0
    %1291 = vmatpush1.msra.mxu0 %v1279
    %1292 = vmatprep.subr.mxu0 0.0
    %1293 = vmatpush1.msra.mxu0 %v1281
    %1294 = vmatprep.subr.mxu0 0.0
    %1295 = vmatpush1.msra.mxu0 0.0
    %1296 = vmatprep.subr.mxu0 0.0
    %1297 = vmatpush1.msra.mxu0 0.0
    %1298 = vmatprep.subr.mxu0 0.0
    %1299 = vmatpush1.msra.mxu0 0.0
    %1300 = vmatprep.subr.mxu0 0.0
    %1301 = vmatpush1.msra.mxu0 0.0
    %1302 = vmatprep.subr.mxu0 0.0
    %1303 = vmatpush1.msra.mxu0 0.0
    %1304 = vmatprep.subr.mxu0 0.0
    %1305 = vmatpush1.msra.mxu0 0.0
    %1306 = vmatprep.subr.mxu0 0.0
    %1307 = vmatpush1.msra.mxu0 0.0
    %1308 = vmatprep.subr.mxu0 0.0
    %1309 = vmatpush1.msra.mxu0 0.0
    %1310 = vmatprep.subr.mxu0 0.0
    %1311 = vmatpush1.msra.mxu0 0.0
    %1312 = vmatprep.subr.mxu0 0.0
    %1313 = vmatpush1.msra.mxu0 0.0
    %1314 = vmatprep.subr.mxu0 0.0
    %1315 = vmatpush1.msra.mxu0 0.0
    %1316 = vmatprep.subr.mxu0 0.0
    %1317 = vmatpush1.msra.mxu0 0.0
    %1318 = vmatprep.subr.mxu0 0.0
    %1319 = vmatpush1.msra.mxu0 0.0
    %1320 = vmatprep.subr.mxu0 0.0
    %1321 = vmatpush1.msra.mxu0 0.0
    %1322 = vmatprep.subr.mxu0 0.0
    %1323 = vmatpush1.msra.mxu0 0.0
    %1324 = vmatprep.subr.mxu0 0.0
    %1325 = vmatpush1.msra.mxu0 0.0
    %1326 = vmatprep.subr.mxu0 0.0
    %1327 = vmatpush1.msra.mxu0 0.0
    %1328 = vmatprep.subr.mxu0 0.0
    %1329 = vmatpush1.msra.mxu0 0.0
    %1330 = vmatprep.subr.mxu0 0.0
    %1331 = vmatpush1.msra.mxu0 0.0
    %1332 = vmatprep.subr.mxu0 0.0
    %1333 = vmatpush1.msra.mxu0 0.0
    %1334 = vmatprep.subr.mxu0 0.0
    %1335 = vmatpush1.msra.mxu0 0.0
    %1336 = vmatprep.subr.mxu0 0.0
    %1337 = vmatpush1.msra.mxu0 0.0
    %1338 = vmatprep.subr.mxu0 0.0
    %1339 = vmatpush1.msra.mxu0 0.0
    %1340 = vmatprep.subr.mxu0 0.0
    %1341 = vmatpush1.msra.mxu0 0.0
    %1342 = vmatprep.subr.mxu0 0.0
    %1343 = vmatpush1.msra.mxu0 0.0
    %1344 = vmatprep.subr.mxu0 0.0
    %1345 = vmatpush1.msra.mxu0 0.0
    %1346 = vmatprep.subr.mxu0 0.0
    %1347 = vmatpush1.msra.mxu0 0.0
    %1348 = vmatprep.subr.mxu0 0.0
    %1349 = vmatpush1.msra.mxu0 0.0
    %1350 = vmatprep.subr.mxu0 0.0
    %1351 = vmatpush1.msra.mxu0 0.0
    %1352 = vmatprep.subr.mxu0 0.0
    %1353 = vmatpush1.msra.mxu0 0.0
    %1354 = vmatprep.mubr.f32.mxu0 0.0
    %1355 = vmatmul.mubr.f32.gmra.mrb[0].mxu0 %v1285
    %v1356 = vpop.f32.mrb[0].mxu0
    %v1357 = vadd.f32 0.0, %v1356
    %v1358 = vpop.f32.mrb[0].mxu0
    %1359 = vmatprep.mubr.f32.mxu0 0.0
    %1360 = vmatmul.mubr.f32.gmra.mrb[0].mxu0 %v1288
    %v1361 = vpop.f32.mrb[0].mxu0
    %v1362 = vadd.f32 0.0, %v1361
    %v1363 = vpop.f32.mrb[0].mxu0
    %1364 = vdwg.mxu0
    %1365 = vrot.lane.b32.xlu0 %v248, 64
    %v1366 = vpop.permute.xlu0 %1365
    %1367 = vrot.lane.b32.xlu0 %v253, 64
    %v1368 = vpop.permute.xlu0 %1367
    %v1372 = vsel %vm1101, %v1264, 0
    %v1375 = vsel %vm1101, %v1265, 0
    %1377 = vmatprep.subr.mxu0 0.0
    %1378 = vmatpush1.msra.mxu0 %v1366
    %1379 = vmatprep.subr.mxu0 0.0
    %1380 = vmatpush1.msra.mxu0 %v1368
    %1381 = vmatprep.subr.mxu0 0.0
    %1382 = vmatpush1.msra.mxu0 0.0
    %1383 = vmatprep.subr.mxu0 0.0
    %1384 = vmatpush1.msra.mxu0 0.0
    %1385 = vmatprep.subr.mxu0 0.0
    %1386 = vmatpush1.msra.mxu0 0.0
    %1387 = vmatprep.subr.mxu0 0.0
    %1388 = vmatpush1.msra.mxu0 0.0
    %1389 = vmatprep.subr.mxu0 0.0
    %1390 = vmatpush1.msra.mxu0 0.0
    %1391 = vmatprep.subr.mxu0 0.0
    %1392 = vmatpush1.msra.mxu0 0.0
    %1393 = vmatprep.subr.mxu0 0.0
    %1394 = vmatpush1.msra.mxu0 0.0
    %1395 = vmatprep.subr.mxu0 0.0
    %1396 = vmatpush1.msra.mxu0 0.0
    %1397 = vmatprep.subr.mxu0 0.0
    %1398 = vmatpush1.msra.mxu0 0.0
    %1399 = vmatprep.subr.mxu0 0.0
    %1400 = vmatpush1.msra.mxu0 0.0
    %1401 = vmatprep.subr.mxu0 0.0
    %1402 = vmatpush1.msra.mxu0 0.0
    %1403 = vmatprep.subr.mxu0 0.0
    %1404 = vmatpush1.msra.mxu0 0.0
    %1405 = vmatprep.subr.mxu0 0.0
    %1406 = vmatpush1.msra.mxu0 0.0
    %1407 = vmatprep.subr.mxu0 0.0
    %1408 = vmatpush1.msra.mxu0 0.0
    %1409 = vmatprep.subr.mxu0 0.0
    %1410 = vmatpush1.msra.mxu0 0.0
    %1411 = vmatprep.subr.mxu0 0.0
    %1412 = vmatpush1.msra.mxu0 0.0
    %1413 = vmatprep.subr.mxu0 0.0
    %1414 = vmatpush1.msra.mxu0 0.0
    %1415 = vmatprep.subr.mxu0 0.0
    %1416 = vmatpush1.msra.mxu0 0.0
    %1417 = vmatprep.subr.mxu0 0.0
    %1418 = vmatpush1.msra.mxu0 0.0
    %1419 = vmatprep.subr.mxu0 0.0
    %1420 = vmatpush1.msra.mxu0 0.0
    %1421 = vmatprep.subr.mxu0 0.0
    %1422 = vmatpush1.msra.mxu0 0.0
    %1423 = vmatprep.subr.mxu0 0.0
    %1424 = vmatpush1.msra.mxu0 0.0
    %1425 = vmatprep.subr.mxu0 0.0
    %1426 = vmatpush1.msra.mxu0 0.0
    %1427 = vmatprep.subr.mxu0 0.0
    %1428 = vmatpush1.msra.mxu0 0.0
    %1429 = vmatprep.subr.mxu0 0.0
    %1430 = vmatpush1.msra.mxu0 0.0
    %1431 = vmatprep.subr.mxu0 0.0
    %1432 = vmatpush1.msra.mxu0 0.0
    %1433 = vmatprep.subr.mxu0 0.0
    %1434 = vmatpush1.msra.mxu0 0.0
    %1435 = vmatprep.subr.mxu0 0.0
    %1436 = vmatpush1.msra.mxu0 0.0
    %1437 = vmatprep.subr.mxu0 0.0
    %1438 = vmatpush1.msra.mxu0 0.0
    %1439 = vmatprep.subr.mxu0 0.0
    %1440 = vmatpush1.msra.mxu0 0.0
    %1441 = vmatprep.mubr.f32.mxu0 0.0
    %1442 = vmatmul.mubr.f32.gmra.mrb[0].mxu0 %v1372
    %v1443 = vpop.f32.mrb[0].mxu0
    %v1444 = vadd.f32 0.0, %v1443
    %v1445 = vpop.f32.mrb[0].mxu0
    %1446 = vmatprep.mubr.f32.mxu0 0.0
    %1447 = vmatmul.mubr.f32.gmra.mrb[0].mxu0 %v1375
    %v1448 = vpop.f32.mrb[0].mxu0
    %v1449 = vadd.f32 0.0, %v1448
    %v1450 = vpop.f32.mrb[0].mxu0
    %1451 = vdwg.mxu0
    %1452 = vrot.lane.b32.xlu0 %v258, 64
    %v1453 = vpop.permute.xlu0 %1452
    %1454 = vrot.lane.b32.xlu0 %v263, 64
    %v1455 = vpop.permute.xlu0 %1454
    %v1459 = vsel %vm1101, %v1266, 0
    %v1462 = vsel %vm1101, %v1267, 0
    %1464 = vmatprep.subr.mxu0 0.0
    %1465 = vmatpush1.msra.mxu0 %v1453
    %1466 = vmatprep.subr.mxu0 0.0
    %1467 = vmatpush1.msra.mxu0 %v1455
    %1468 = vmatprep.subr.mxu0 0.0
    %1469 = vmatpush1.msra.mxu0 0.0
    %1470 = vmatprep.subr.mxu0 0.0
    %1471 = vmatpush1.msra.mxu0 0.0
    %1472 = vmatprep.subr.mxu0 0.0
    %1473 = vmatpush1.msra.mxu0 0.0
    %1474 = vmatprep.subr.mxu0 0.0
    %1475 = vmatpush1.msra.mxu0 0.0
    %1476 = vmatprep.subr.mxu0 0.0
    %1477 = vmatpush1.msra.mxu0 0.0
    %1478 = vmatprep.subr.mxu0 0.0
    %1479 = vmatpush1.msra.mxu0 0.0
    %1480 = vmatprep.subr.mxu0 0.0
    %1481 = vmatpush1.msra.mxu0 0.0
    %1482 = vmatprep.subr.mxu0 0.0
    %1483 = vmatpush1.msra.mxu0 0.0
    %1484 = vmatprep.subr.mxu0 0.0
    %1485 = vmatpush1.msra.mxu0 0.0
    %1486 = vmatprep.subr.mxu0 0.0
    %1487 = vmatpush1.msra.mxu0 0.0
    %1488 = vmatprep.subr.mxu0 0.0
    %1489 = vmatpush1.msra.mxu0 0.0
    %1490 = vmatprep.subr.mxu0 0.0
    %1491 = vmatpush1.msra.mxu0 0.0
    %1492 = vmatprep.subr.mxu0 0.0
    %1493 = vmatpush1.msra.mxu0 0.0
    %1494 = vmatprep.subr.mxu0 0.0
    %1495 = vmatpush1.msra.mxu0 0.0
    %1496 = vmatprep.subr.mxu0 0.0
    %1497 = vmatpush1.msra.mxu0 0.0
    %1498 = vmatprep.subr.mxu0 0.0
    %1499 = vmatpush1.msra.mxu0 0.0
    %1500 = vmatprep.subr.mxu0 0.0
    %1501 = vmatpush1.msra.mxu0 0.0
    %1502 = vmatprep.subr.mxu0 0.0
    %1503 = vmatpush1.msra.mxu0 0.0
    %1504 = vmatprep.subr.mxu0 0.0
    %1505 = vmatpush1.msra.mxu0 0.0
    %1506 = vmatprep.subr.mxu0 0.0
    %1507 = vmatpush1.msra.mxu0 0.0
    %1508 = vmatprep.subr.mxu0 0.0
    %1509 = vmatpush1.msra.mxu0 0.0
    %1510 = vmatprep.subr.mxu0 0.0
    %1511 = vmatpush1.msra.mxu0 0.0
    %1512 = vmatprep.subr.mxu0 0.0
    %1513 = vmatpush1.msra.mxu0 0.0
    %1514 = vmatprep.subr.mxu0 0.0
    %1515 = vmatpush1.msra.mxu0 0.0
    %1516 = vmatprep.subr.mxu0 0.0
    %1517 = vmatpush1.msra.mxu0 0.0
    %1518 = vmatprep.subr.mxu0 0.0
    %1519 = vmatpush1.msra.mxu0 0.0
    %1520 = vmatprep.subr.mxu0 0.0
    %1521 = vmatpush1.msra.mxu0 0.0
    %1522 = vmatprep.subr.mxu0 0.0
    %1523 = vmatpush1.msra.mxu0 0.0
    %1524 = vmatprep.subr.mxu0 0.0
    %1525 = vmatpush1.msra.mxu0 0.0
    %1526 = vmatprep.subr.mxu0 0.0
    %1527 = vmatpush1.msra.mxu0 0.0
    %1528 = vmatprep.mubr.f32.mxu0 0.0
    %1529 = vmatmul.mubr.f32.gmra.mrb[0].mxu0 %v1459
    %v1530 = vpop.f32.mrb[0].mxu0
    %v1531 = vadd.f32 0.0, %v1530
    %v1532 = vpop.f32.mrb[0].mxu0
    %1533 = vmatprep.mubr.f32.mxu0 0.0
    %1534 = vmatmul.mubr.f32.gmra.mrb[0].mxu0 %v1462
    %v1535 = vpop.f32.mrb[0].mxu0
    %v1536 = vadd.f32 0.0, %v1535
    %v1537 = vpop.f32.mrb[0].mxu0
    %1538 = vdwg.mxu0
    %1539 = vrot.lane.b32.xlu0 %v268, 64
    %v1540 = vpop.permute.xlu0 %1539
    %1541 = vrot.lane.b32.xlu0 %v273, 64
    %v1542 = vpop.permute.xlu0 %1541
    %v1546 = vsel %vm1101, %v1268, 0
    %v1549 = vsel %vm1101, %v1269, 0
    %1551 = vmatprep.subr.mxu0 0.0
    %1552 = vmatpush1.msra.mxu0 %v1540
    %1553 = vmatprep.subr.mxu0 0.0
    %1554 = vmatpush1.msra.mxu0 %v1542
    %1555 = vmatprep.subr.mxu0 0.0
    %1556 = vmatpush1.msra.mxu0 0.0
    %1557 = vmatprep.subr.mxu0 0.0
    %1558 = vmatpush1.msra.mxu0 0.0
    %1559 = vmatprep.subr.mxu0 0.0
    %1560 = vmatpush1.msra.mxu0 0.0
    %1561 = vmatprep.subr.mxu0 0.0
    %1562 = vmatpush1.msra.mxu0 0.0
    %1563 = vmatprep.subr.mxu0 0.0
    %1564 = vmatpush1.msra.mxu0 0.0
    %1565 = vmatprep.subr.mxu0 0.0
    %1566 = vmatpush1.msra.mxu0 0.0
    %1567 = vmatprep.subr.mxu0 0.0
    %1568 = vmatpush1.msra.mxu0 0.0
    %1569 = vmatprep.subr.mxu0 0.0
    %1570 = vmatpush1.msra.mxu0 0.0
    %1571 = vmatprep.subr.mxu0 0.0
    %1572 = vmatpush1.msra.mxu0 0.0
    %1573 = vmatprep.subr.mxu0 0.0
    %1574 = vmatpush1.msra.mxu0 0.0
    %1575 = vmatprep.subr.mxu0 0.0
    %1576 = vmatpush1.msra.mxu0 0.0
    %1577 = vmatprep.subr.mxu0 0.0
    %1578 = vmatpush1.msra.mxu0 0.0
    %1579 = vmatprep.subr.mxu0 0.0
    %1580 = vmatpush1.msra.mxu0 0.0
    %1581 = vmatprep.subr.mxu0 0.0
    %1582 = vmatpush1.msra.mxu0 0.0
    %1583 = vmatprep.subr.mxu0 0.0
    %1584 = vmatpush1.msra.mxu0 0.0
    %1585 = vmatprep.subr.mxu0 0.0
    %1586 = vmatpush1.msra.mxu0 0.0
    %1587 = vmatprep.subr.mxu0 0.0
    %1588 = vmatpush1.msra.mxu0 0.0
    %1589 = vmatprep.subr.mxu0 0.0
    %1590 = vmatpush1.msra.mxu0 0.0
    %1591 = vmatprep.subr.mxu0 0.0
    %1592 = vmatpush1.msra.mxu0 0.0
    %1593 = vmatprep.subr.mxu0 0.0
    %1594 = vmatpush1.msra.mxu0 0.0
    %1595 = vmatprep.subr.mxu0 0.0
    %1596 = vmatpush1.msra.mxu0 0.0
    %1597 = vmatprep.subr.mxu0 0.0
    %1598 = vmatpush1.msra.mxu0 0.0
    %1599 = vmatprep.subr.mxu0 0.0
    %1600 = vmatpush1.msra.mxu0 0.0
    %1601 = vmatprep.subr.mxu0 0.0
    %1602 = vmatpush1.msra.mxu0 0.0
    %1603 = vmatprep.subr.mxu0 0.0
    %1604 = vmatpush1.msra.mxu0 0.0
    %1605 = vmatprep.subr.mxu0 0.0
    %1606 = vmatpush1.msra.mxu0 0.0
    %1607 = vmatprep.subr.mxu0 0.0
    %1608 = vmatpush1.msra.mxu0 0.0
    %1609 = vmatprep.subr.mxu0 0.0
    %1610 = vmatpush1.msra.mxu0 0.0
    %1611 = vmatprep.subr.mxu0 0.0
    %1612 = vmatpush1.msra.mxu0 0.0
    %1613 = vmatprep.subr.mxu0 0.0
    %1614 = vmatpush1.msra.mxu0 0.0
    %1615 = vmatprep.mubr.f32.mxu0 0.0
    %1616 = vmatmul.mubr.f32.gmra.mrb[0].mxu0 %v1546
    %v1617 = vpop.f32.mrb[0].mxu0
    %v1618 = vadd.f32 0.0, %v1617
    %v1619 = vpop.f32.mrb[0].mxu0
    %1620 = vmatprep.mubr.f32.mxu0 0.0
    %1621 = vmatmul.mubr.f32.gmra.mrb[0].mxu0 %v1549
    %v1622 = vpop.f32.mrb[0].mxu0
    %v1623 = vadd.f32 0.0, %v1622
    %v1624 = vpop.f32.mrb[0].mxu0
    %1625 = vdwg.mxu0
    %1626 = vrot.lane.b32.xlu0 %v278, 64
    %v1627 = vpop.permute.xlu0 %1626
    %1628 = vrot.lane.b32.xlu0 %v283, 64
    %v1629 = vpop.permute.xlu0 %1628
    %v1633 = vsel %vm1101, %v1270, 0
    %v1636 = vsel %vm1101, %v1271, 0
    %1638 = vmatprep.subr.mxu0 0.0
    %1639 = vmatpush1.msra.mxu0 %v1627
    %1640 = vmatprep.subr.mxu0 0.0
    %1641 = vmatpush1.msra.mxu0 %v1629
    %1642 = vmatprep.subr.mxu0 0.0
    %1643 = vmatpush1.msra.mxu0 0.0
    %1644 = vmatprep.subr.mxu0 0.0
    %1645 = vmatpush1.msra.mxu0 0.0
    %1646 = vmatprep.subr.mxu0 0.0
    %1647 = vmatpush1.msra.mxu0 0.0
    %1648 = vmatprep.subr.mxu0 0.0
    %1649 = vmatpush1.msra.mxu0 0.0
    %1650 = vmatprep.subr.mxu0 0.0
    %1651 = vmatpush1.msra.mxu0 0.0
    %1652 = vmatprep.subr.mxu0 0.0
    %1653 = vmatpush1.msra.mxu0 0.0
    %1654 = vmatprep.subr.mxu0 0.0
    %1655 = vmatpush1.msra.mxu0 0.0
    %1656 = vmatprep.subr.mxu0 0.0
    %1657 = vmatpush1.msra.mxu0 0.0
    %1658 = vmatprep.subr.mxu0 0.0
    %1659 = vmatpush1.msra.mxu0 0.0
    %1660 = vmatprep.subr.mxu0 0.0
    %1661 = vmatpush1.msra.mxu0 0.0
    %1662 = vmatprep.subr.mxu0 0.0
    %1663 = vmatpush1.msra.mxu0 0.0
    %1664 = vmatprep.subr.mxu0 0.0
    %1665 = vmatpush1.msra.mxu0 0.0
    %1666 = vmatprep.subr.mxu0 0.0
    %1667 = vmatpush1.msra.mxu0 0.0
    %1668 = vmatprep.subr.mxu0 0.0
    %1669 = vmatpush1.msra.mxu0 0.0
    %1670 = vmatprep.subr.mxu0 0.0
    %1671 = vmatpush1.msra.mxu0 0.0
    %1672 = vmatprep.subr.mxu0 0.0
    %1673 = vmatpush1.msra.mxu0 0.0
    %1674 = vmatprep.subr.mxu0 0.0
    %1675 = vmatpush1.msra.mxu0 0.0
    %1676 = vmatprep.subr.mxu0 0.0
    %1677 = vmatpush1.msra.mxu0 0.0
    %1678 = vmatprep.subr.mxu0 0.0
    %1679 = vmatpush1.msra.mxu0 0.0
    %1680 = vmatprep.subr.mxu0 0.0
    %1681 = vmatpush1.msra.mxu0 0.0
    %1682 = vmatprep.subr.mxu0 0.0
    %1683 = vmatpush1.msra.mxu0 0.0
    %1684 = vmatprep.subr.mxu0 0.0
    %1685 = vmatpush1.msra.mxu0 0.0
    %1686 = vmatprep.subr.mxu0 0.0
    %1687 = vmatpush1.msra.mxu0 0.0
    %1688 = vmatprep.subr.mxu0 0.0
    %1689 = vmatpush1.msra.mxu0 0.0
    %1690 = vmatprep.subr.mxu0 0.0
    %1691 = vmatpush1.msra.mxu0 0.0
    %1692 = vmatprep.subr.mxu0 0.0
    %1693 = vmatpush1.msra.mxu0 0.0
    %1694 = vmatprep.subr.mxu0 0.0
    %1695 = vmatpush1.msra.mxu0 0.0
    %1696 = vmatprep.subr.mxu0 0.0
    %1697 = vmatpush1.msra.mxu0 0.0
    %1698 = vmatprep.subr.mxu0 0.0
    %1699 = vmatpush1.msra.mxu0 0.0
    %1700 = vmatprep.subr.mxu0 0.0
    %1701 = vmatpush1.msra.mxu0 0.0
    %1702 = vmatprep.mubr.f32.mxu0 0.0
    %1703 = vmatmul.mubr.f32.gmra.mrb[0].mxu0 %v1633
    %v1704 = vpop.f32.mrb[0].mxu0
    %v1705 = vadd.f32 0.0, %v1704
    %v1706 = vpop.f32.mrb[0].mxu0
    %1707 = vmatprep.mubr.f32.mxu0 0.0
    %1708 = vmatmul.mubr.f32.gmra.mrb[0].mxu0 %v1636
    %v1709 = vpop.f32.mrb[0].mxu0
    %v1710 = vadd.f32 0.0, %v1709
    %v1711 = vpop.f32.mrb[0].mxu0
    %1712 = vdwg.mxu0
    %1713 = vrot.lane.b32.xlu0 %v288, 64
    %v1714 = vpop.permute.xlu0 %1713
    %1715 = vrot.lane.b32.xlu0 %v293, 64
    %v1716 = vpop.permute.xlu0 %1715
    %v1720 = vsel %vm1101, %v1272, 0
    %v1723 = vsel %vm1101, %v1273, 0
    %1725 = vmatprep.subr.mxu0 0.0
    %1726 = vmatpush1.msra.mxu0 %v1714
    %1727 = vmatprep.subr.mxu0 0.0
    %1728 = vmatpush1.msra.mxu0 %v1716
    %1729 = vmatprep.subr.mxu0 0.0
    %1730 = vmatpush1.msra.mxu0 0.0
    %1731 = vmatprep.subr.mxu0 0.0
    %1732 = vmatpush1.msra.mxu0 0.0
    %1733 = vmatprep.subr.mxu0 0.0
    %1734 = vmatpush1.msra.mxu0 0.0
    %1735 = vmatprep.subr.mxu0 0.0
    %1736 = vmatpush1.msra.mxu0 0.0
    %1737 = vmatprep.subr.mxu0 0.0
    %1738 = vmatpush1.msra.mxu0 0.0
    %1739 = vmatprep.subr.mxu0 0.0
    %1740 = vmatpush1.msra.mxu0 0.0
    %1741 = vmatprep.subr.mxu0 0.0
    %1742 = vmatpush1.msra.mxu0 0.0
    %1743 = vmatprep.subr.mxu0 0.0
    %1744 = vmatpush1.msra.mxu0 0.0
    %1745 = vmatprep.subr.mxu0 0.0
    %1746 = vmatpush1.msra.mxu0 0.0
    %1747 = vmatprep.subr.mxu0 0.0
    %1748 = vmatpush1.msra.mxu0 0.0
    %1749 = vmatprep.subr.mxu0 0.0
    %1750 = vmatpush1.msra.mxu0 0.0
    %1751 = vmatprep.subr.mxu0 0.0
    %1752 = vmatpush1.msra.mxu0 0.0
    %1753 = vmatprep.subr.mxu0 0.0
    %1754 = vmatpush1.msra.mxu0 0.0
    %1755 = vmatprep.subr.mxu0 0.0
    %1756 = vmatpush1.msra.mxu0 0.0
    %1757 = vmatprep.subr.mxu0 0.0
    %1758 = vmatpush1.msra.mxu0 0.0
    %1759 = vmatprep.subr.mxu0 0.0
    %1760 = vmatpush1.msra.mxu0 0.0
    %1761 = vmatprep.subr.mxu0 0.0
    %1762 = vmatpush1.msra.mxu0 0.0
    %1763 = vmatprep.subr.mxu0 0.0
    %1764 = vmatpush1.msra.mxu0 0.0
    %1765 = vmatprep.subr.mxu0 0.0
    %1766 = vmatpush1.msra.mxu0 0.0
    %1767 = vmatprep.subr.mxu0 0.0
    %1768 = vmatpush1.msra.mxu0 0.0
    %1769 = vmatprep.subr.mxu0 0.0
    %1770 = vmatpush1.msra.mxu0 0.0
    %1771 = vmatprep.subr.mxu0 0.0
    %1772 = vmatpush1.msra.mxu0 0.0
    %1773 = vmatprep.subr.mxu0 0.0
    %1774 = vmatpush1.msra.mxu0 0.0
    %1775 = vmatprep.subr.mxu0 0.0
    %1776 = vmatpush1.msra.mxu0 0.0
    %1777 = vmatprep.subr.mxu0 0.0
    %1778 = vmatpush1.msra.mxu0 0.0
    %1779 = vmatprep.subr.mxu0 0.0
    %1780 = vmatpush1.msra.mxu0 0.0
    %1781 = vmatprep.subr.mxu0 0.0
    %1782 = vmatpush1.msra.mxu0 0.0
    %1783 = vmatprep.subr.mxu0 0.0
    %1784 = vmatpush1.msra.mxu0 0.0
    %1785 = vmatprep.subr.mxu0 0.0
    %1786 = vmatpush1.msra.mxu0 0.0
    %1787 = vmatprep.subr.mxu0 0.0
    %1788 = vmatpush1.msra.mxu0 0.0
    %1789 = vmatprep.mubr.f32.mxu0 0.0
    %1790 = vmatmul.mubr.f32.gmra.mrb[0].mxu0 %v1720
    %v1791 = vpop.f32.mrb[0].mxu0
    %v1792 = vadd.f32 0.0, %v1791
    %v1793 = vpop.f32.mrb[0].mxu0
    %1794 = vmatprep.mubr.f32.mxu0 0.0
    %1795 = vmatmul.mubr.f32.gmra.mrb[0].mxu0 %v1723
    %v1796 = vpop.f32.mrb[0].mxu0
    %v1797 = vadd.f32 0.0, %v1796
    %v1798 = vpop.f32.mrb[0].mxu0
    %1799 = vdwg.mxu0
    %1800 = vrot.lane.b32.xlu0 %v298, 64
    %v1801 = vpop.permute.xlu0 %1800
    %1802 = vrot.lane.b32.xlu0 %v303, 64
    %v1803 = vpop.permute.xlu0 %1802
    %v1807 = vsel %vm1101, %v1274, 0
    %v1810 = vsel %vm1101, %v1275, 0
    %1812 = vmatprep.subr.mxu0 0.0
    %1813 = vmatpush1.msra.mxu0 %v1801
    %1814 = vmatprep.subr.mxu0 0.0
    %1815 = vmatpush1.msra.mxu0 %v1803
    %1816 = vmatprep.subr.mxu0 0.0
    %1817 = vmatpush1.msra.mxu0 0.0
    %1818 = vmatprep.subr.mxu0 0.0
    %1819 = vmatpush1.msra.mxu0 0.0
    %1820 = vmatprep.subr.mxu0 0.0
    %1821 = vmatpush1.msra.mxu0 0.0
    %1822 = vmatprep.subr.mxu0 0.0
    %1823 = vmatpush1.msra.mxu0 0.0
    %1824 = vmatprep.subr.mxu0 0.0
    %1825 = vmatpush1.msra.mxu0 0.0
    %1826 = vmatprep.subr.mxu0 0.0
    %1827 = vmatpush1.msra.mxu0 0.0
    %1828 = vmatprep.subr.mxu0 0.0
    %1829 = vmatpush1.msra.mxu0 0.0
    %1830 = vmatprep.subr.mxu0 0.0
    %1831 = vmatpush1.msra.mxu0 0.0
    %1832 = vmatprep.subr.mxu0 0.0
    %1833 = vmatpush1.msra.mxu0 0.0
    %1834 = vmatprep.subr.mxu0 0.0
    %1835 = vmatpush1.msra.mxu0 0.0
    %1836 = vmatprep.subr.mxu0 0.0
    %1837 = vmatpush1.msra.mxu0 0.0
    %1838 = vmatprep.subr.mxu0 0.0
    %1839 = vmatpush1.msra.mxu0 0.0
    %1840 = vmatprep.subr.mxu0 0.0
    %1841 = vmatpush1.msra.mxu0 0.0
    %1842 = vmatprep.subr.mxu0 0.0
    %1843 = vmatpush1.msra.mxu0 0.0
    %1844 = vmatprep.subr.mxu0 0.0
    %1845 = vmatpush1.msra.mxu0 0.0
    %1846 = vmatprep.subr.mxu0 0.0
    %1847 = vmatpush1.msra.mxu0 0.0
    %1848 = vmatprep.subr.mxu0 0.0
    %1849 = vmatpush1.msra.mxu0 0.0
    %1850 = vmatprep.subr.mxu0 0.0
    %1851 = vmatpush1.msra.mxu0 0.0
    %1852 = vmatprep.subr.mxu0 0.0
    %1853 = vmatpush1.msra.mxu0 0.0
    %1854 = vmatprep.subr.mxu0 0.0
    %1855 = vmatpush1.msra.mxu0 0.0
    %1856 = vmatprep.subr.mxu0 0.0
    %1857 = vmatpush1.msra.mxu0 0.0
    %1858 = vmatprep.subr.mxu0 0.0
    %1859 = vmatpush1.msra.mxu0 0.0
    %1860 = vmatprep.subr.mxu0 0.0
    %1861 = vmatpush1.msra.mxu0 0.0
    %1862 = vmatprep.subr.mxu0 0.0
    %1863 = vmatpush1.msra.mxu0 0.0
    %1864 = vmatprep.subr.mxu0 0.0
    %1865 = vmatpush1.msra.mxu0 0.0
    %1866 = vmatprep.subr.mxu0 0.0
    %1867 = vmatpush1.msra.mxu0 0.0
    %1868 = vmatprep.subr.mxu0 0.0
    %1869 = vmatpush1.msra.mxu0 0.0
    %1870 = vmatprep.subr.mxu0 0.0
    %1871 = vmatpush1.msra.mxu0 0.0
    %1872 = vmatprep.subr.mxu0 0.0
    %1873 = vmatpush1.msra.mxu0 0.0
    %1874 = vmatprep.subr.mxu0 0.0
    %1875 = vmatpush1.msra.mxu0 0.0
    %1876 = vmatprep.mubr.f32.mxu0 0.0
    %1877 = vmatmul.mubr.f32.gmra.mrb[0].mxu0 %v1807
    %v1878 = vpop.f32.mrb[0].mxu0
    %v1879 = vadd.f32 0.0, %v1878
    %v1880 = vpop.f32.mrb[0].mxu0
    %1881 = vmatprep.mubr.f32.mxu0 0.0
    %1882 = vmatmul.mubr.f32.gmra.mrb[0].mxu0 %v1810
    %v1883 = vpop.f32.mrb[0].mxu0
    %v1884 = vadd.f32 0.0, %v1883
    %v1885 = vpop.f32.mrb[0].mxu0
    %1886 = vdwg.mxu0
    %1887 = vrot.lane.b32.xlu0 %v308, 64
    %v1888 = vpop.permute.xlu0 %1887
    %1889 = vrot.lane.b32.xlu0 %v313, 64
    %v1890 = vpop.permute.xlu0 %1889
    %v1894 = vsel %vm1101, %v1276, 0
    %v1897 = vsel %vm1101, %v1277, 0
    %1899 = vmatprep.subr.mxu0 0.0
    %1900 = vmatpush1.msra.mxu0 %v1888
    %1901 = vmatprep.subr.mxu0 0.0
    %1902 = vmatpush1.msra.mxu0 %v1890
    %1903 = vmatprep.subr.mxu0 0.0
    %1904 = vmatpush1.msra.mxu0 0.0
    %1905 = vmatprep.subr.mxu0 0.0
    %1906 = vmatpush1.msra.mxu0 0.0
    %1907 = vmatprep.subr.mxu0 0.0
    %1908 = vmatpush1.msra.mxu0 0.0
    %1909 = vmatprep.subr.mxu0 0.0
    %1910 = vmatpush1.msra.mxu0 0.0
    %1911 = vmatprep.subr.mxu0 0.0
    %1912 = vmatpush1.msra.mxu0 0.0
    %1913 = vmatprep.subr.mxu0 0.0
    %1914 = vmatpush1.msra.mxu0 0.0
    %1915 = vmatprep.subr.mxu0 0.0
    %1916 = vmatpush1.msra.mxu0 0.0
    %1917 = vmatprep.subr.mxu0 0.0
    %1918 = vmatpush1.msra.mxu0 0.0
    %1919 = vmatprep.subr.mxu0 0.0
    %1920 = vmatpush1.msra.mxu0 0.0
    %1921 = vmatprep.subr.mxu0 0.0
    %1922 = vmatpush1.msra.mxu0 0.0
    %1923 = vmatprep.subr.mxu0 0.0
    %1924 = vmatpush1.msra.mxu0 0.0
    %1925 = vmatprep.subr.mxu0 0.0
    %1926 = vmatpush1.msra.mxu0 0.0
    %1927 = vmatprep.subr.mxu0 0.0
    %1928 = vmatpush1.msra.mxu0 0.0
    %1929 = vmatprep.subr.mxu0 0.0
    %1930 = vmatpush1.msra.mxu0 0.0
    %1931 = vmatprep.subr.mxu0 0.0
    %1932 = vmatpush1.msra.mxu0 0.0
    %1933 = vmatprep.subr.mxu0 0.0
    %1934 = vmatpush1.msra.mxu0 0.0
    %1935 = vmatprep.subr.mxu0 0.0
    %1936 = vmatpush1.msra.mxu0 0.0
    %1937 = vmatprep.subr.mxu0 0.0
    %1938 = vmatpush1.msra.mxu0 0.0
    %1939 = vmatprep.subr.mxu0 0.0
    %1940 = vmatpush1.msra.mxu0 0.0
    %1941 = vmatprep.subr.mxu0 0.0
    %1942 = vmatpush1.msra.mxu0 0.0
    %1943 = vmatprep.subr.mxu0 0.0
    %1944 = vmatpush1.msra.mxu0 0.0
    %1945 = vmatprep.subr.mxu0 0.0
    %1946 = vmatpush1.msra.mxu0 0.0
    %1947 = vmatprep.subr.mxu0 0.0
    %1948 = vmatpush1.msra.mxu0 0.0
    %1949 = vmatprep.subr.mxu0 0.0
    %1950 = vmatpush1.msra.mxu0 0.0
    %1951 = vmatprep.subr.mxu0 0.0
    %1952 = vmatpush1.msra.mxu0 0.0
    %1953 = vmatprep.subr.mxu0 0.0
    %1954 = vmatpush1.msra.mxu0 0.0
    %1955 = vmatprep.subr.mxu0 0.0
    %1956 = vmatpush1.msra.mxu0 0.0
    %1957 = vmatprep.subr.mxu0 0.0
    %1958 = vmatpush1.msra.mxu0 0.0
    %1959 = vmatprep.subr.mxu0 0.0
    %1960 = vmatpush1.msra.mxu0 0.0
    %1961 = vmatprep.subr.mxu0 0.0
    %1962 = vmatpush1.msra.mxu0 0.0
    %1963 = vmatprep.mubr.f32.mxu0 0.0
    %1964 = vmatmul.mubr.f32.gmra.mrb[0].mxu0 %v1894
    %v1965 = vpop.f32.mrb[0].mxu0
    %v1966 = vadd.f32 0.0, %v1965
    %v1967 = vpop.f32.mrb[0].mxu0
    %1968 = vmatprep.mubr.f32.mxu0 0.0
    %1969 = vmatmul.mubr.f32.gmra.mrb[0].mxu0 %v1897
    %v1970 = vpop.f32.mrb[0].mxu0
    %v1971 = vadd.f32 0.0, %v1970
    %v1972 = vpop.f32.mrb[0].mxu0
    %1973 = vdwg.mxu0
    %v1974 = vld [vmem:[#allocation10] sm:$0xff]
    %1975 = vrot.lane.b32.xlu0 %v332, 120
    %v1976 = vpop.permute.xlu0 %1975
    %1977 = vrot.lane.b32.xlu0 %v333, 120
    %v1978 = vpop.permute.xlu0 %1977
    %1979 = vrot.lane.b32.xlu0 %v238, 88
    %v1980 = vpop.permute.xlu0 %1979
    %1981 = vrot.lane.b32.xlu0 %v243, 88
    %v1982 = vpop.permute.xlu0 %1981
    %v1983 = vsel %vm354, %v1976, 0
    %v1985 = vsel %vm354, %v1978, 0
    %v1987 = vsel %vm354, %v1980, 0
    %v1989 = vsel %vm354, %v1982, 0
    %1991 = vmatprep.subr.mxu0 0.0
    %1992 = vmatpush1.xpose.msra.mxu0 %v1987
    %1993 = vmatprep.subr.mxu0 0.0
    %1994 = vmatpush1.xpose.msra.mxu0 %v1989
    %1995 = vmatprep.subr.mxu0 0.0
    %1996 = vmatpush1.xpose.msra.mxu0 0.0
    %1997 = vmatprep.subr.mxu0 0.0
    %1998 = vmatpush1.xpose.msra.mxu0 0.0
    %1999 = vmatprep.subr.mxu0 0.0
    %2000 = vmatpush1.xpose.msra.mxu0 0.0
    %2001 = vmatprep.subr.mxu0 0.0
    %2002 = vmatpush1.xpose.msra.mxu0 0.0
    %2003 = vmatprep.subr.mxu0 0.0
    %2004 = vmatpush1.xpose.msra.mxu0 0.0
    %2005 = vmatprep.subr.mxu0 0.0
    %2006 = vmatpush1.xpose.msra.mxu0 0.0
    %2007 = vmatprep.subr.mxu0 0.0
    %2008 = vmatpush1.xpose.msra.mxu0 0.0
    %2009 = vmatprep.subr.mxu0 0.0
    %2010 = vmatpush1.xpose.msra.mxu0 0.0
    %2011 = vmatprep.subr.mxu0 0.0
    %2012 = vmatpush1.xpose.msra.mxu0 0.0
    %2013 = vmatprep.subr.mxu0 0.0
    %2014 = vmatpush1.xpose.msra.mxu0 0.0
    %2015 = vmatprep.subr.mxu0 0.0
    %2016 = vmatpush1.xpose.msra.mxu0 0.0
    %2017 = vmatprep.subr.mxu0 0.0
    %2018 = vmatpush1.xpose.msra.mxu0 0.0
    %2019 = vmatprep.subr.mxu0 0.0
    %2020 = vmatpush1.xpose.msra.mxu0 0.0
    %2021 = vmatprep.subr.mxu0 0.0
    %2022 = vmatpush1.xpose.msra.mxu0 0.0
    %2023 = vmatprep.subr.mxu0 0.0
    %2024 = vmatpush1.xpose.msra.mxu0 0.0
    %2025 = vmatprep.subr.mxu0 0.0
    %2026 = vmatpush1.xpose.msra.mxu0 0.0
    %2027 = vmatprep.subr.mxu0 0.0
    %2028 = vmatpush1.xpose.msra.mxu0 0.0
    %2029 = vmatprep.subr.mxu0 0.0
    %2030 = vmatpush1.xpose.msra.mxu0 0.0
    %2031 = vmatprep.subr.mxu0 0.0
    %2032 = vmatpush1.xpose.msra.mxu0 0.0
    %2033 = vmatprep.subr.mxu0 0.0
    %2034 = vmatpush1.xpose.msra.mxu0 0.0
    %2035 = vmatprep.subr.mxu0 0.0
    %2036 = vmatpush1.xpose.msra.mxu0 0.0
    %2037 = vmatprep.subr.mxu0 0.0
    %2038 = vmatpush1.xpose.msra.mxu0 0.0
    %2039 = vmatprep.subr.mxu0 0.0
    %2040 = vmatpush1.xpose.msra.mxu0 0.0
    %2041 = vmatprep.subr.mxu0 0.0
    %2042 = vmatpush1.xpose.msra.mxu0 0.0
    %2043 = vmatprep.subr.mxu0 0.0
    %2044 = vmatpush1.xpose.msra.mxu0 0.0
    %2045 = vmatprep.subr.mxu0 0.0
    %2046 = vmatpush1.xpose.msra.mxu0 0.0
    %2047 = vmatprep.subr.mxu0 0.0
    %2048 = vmatpush1.xpose.msra.mxu0 0.0
    %2049 = vmatprep.subr.mxu0 0.0
    %2050 = vmatpush1.xpose.msra.mxu0 0.0
    %2051 = vmatprep.subr.mxu0 0.0
    %2052 = vmatpush1.xpose.msra.mxu0 0.0
    %2053 = vmatprep.subr.mxu0 0.0
    %2054 = vmatpush1.xpose.msra.mxu0 0.0
    %2055 = vmatprep.mubr.f32.mxu0 0.0
    %2056 = vmatmul.mubr.f32.gmra.mrb[0].mxu0 %v1983
    %v2057 = vpop.f32.mrb[0].mxu0
    %v2058 = vadd.f32 0.0, %v2057
    %v2059 = vpop.f32.mrb[0].mxu0
    %2060 = vmatprep.mubr.f32.mxu0 0.0
    %2061 = vmatmul.mubr.f32.gmra.mrb[0].mxu0 %v1985
    %v2062 = vpop.f32.mrb[0].mxu0
    %v2063 = vadd.f32 0.0, %v2062
    %v2064 = vpop.f32.mrb[0].mxu0
    %2065 = vdwg.mxu0
    %2066 = vrot.lane.b32.xlu0 %v334, 120
    %v2067 = vpop.permute.xlu0 %2066
    %2068 = vrot.lane.b32.xlu0 %v335, 120
    %v2069 = vpop.permute.xlu0 %2068
    %2070 = vrot.lane.b32.xlu0 %v248, 88
    %v2071 = vpop.permute.xlu0 %2070
    %2072 = vrot.lane.b32.xlu0 %v253, 88
    %v2073 = vpop.permute.xlu0 %2072
    %v2074 = vsel %vm354, %v2067, 0
    %v2076 = vsel %vm354, %v2069, 0
    %v2078 = vsel %vm354, %v2071, 0
    %v2080 = vsel %vm354, %v2073, 0
    %2082 = vmatprep.subr.mxu0 0.0
    %2083 = vmatpush1.xpose.msra.mxu0 %v2078
    %2084 = vmatprep.subr.mxu0 0.0
    %2085 = vmatpush1.xpose.msra.mxu0 %v2080
    %2086 = vmatprep.subr.mxu0 0.0
    %2087 = vmatpush1.xpose.msra.mxu0 0.0
    %2088 = vmatprep.subr.mxu0 0.0
    %2089 = vmatpush1.xpose.msra.mxu0 0.0
    %2090 = vmatprep.subr.mxu0 0.0
    %2091 = vmatpush1.xpose.msra.mxu0 0.0
    %2092 = vmatprep.subr.mxu0 0.0
    %2093 = vmatpush1.xpose.msra.mxu0 0.0
    %2094 = vmatprep.subr.mxu0 0.0
    %2095 = vmatpush1.xpose.msra.mxu0 0.0
    %2096 = vmatprep.subr.mxu0 0.0
    %2097 = vmatpush1.xpose.msra.mxu0 0.0
    %2098 = vmatprep.subr.mxu0 0.0
    %2099 = vmatpush1.xpose.msra.mxu0 0.0
    %2100 = vmatprep.subr.mxu0 0.0
    %2101 = vmatpush1.xpose.msra.mxu0 0.0
    %2102 = vmatprep.subr.mxu0 0.0
    %2103 = vmatpush1.xpose.msra.mxu0 0.0
    %2104 = vmatprep.subr.mxu0 0.0
    %2105 = vmatpush1.xpose.msra.mxu0 0.0
    %2106 = vmatprep.subr.mxu0 0.0
    %2107 = vmatpush1.xpose.msra.mxu0 0.0
    %2108 = vmatprep.subr.mxu0 0.0
    %2109 = vmatpush1.xpose.msra.mxu0 0.0
    %2110 = vmatprep.subr.mxu0 0.0
    %2111 = vmatpush1.xpose.msra.mxu0 0.0
    %2112 = vmatprep.subr.mxu0 0.0
    %2113 = vmatpush1.xpose.msra.mxu0 0.0
    %2114 = vmatprep.subr.mxu0 0.0
    %2115 = vmatpush1.xpose.msra.mxu0 0.0
    %2116 = vmatprep.subr.mxu0 0.0
    %2117 = vmatpush1.xpose.msra.mxu0 0.0
    %2118 = vmatprep.subr.mxu0 0.0
    %2119 = vmatpush1.xpose.msra.mxu0 0.0
    %2120 = vmatprep.subr.mxu0 0.0
    %2121 = vmatpush1.xpose.msra.mxu0 0.0
    %2122 = vmatprep.subr.mxu0 0.0
    %2123 = vmatpush1.xpose.msra.mxu0 0.0
    %2124 = vmatprep.subr.mxu0 0.0
    %2125 = vmatpush1.xpose.msra.mxu0 0.0
    %2126 = vmatprep.subr.mxu0 0.0
    %2127 = vmatpush1.xpose.msra.mxu0 0.0
    %2128 = vmatprep.subr.mxu0 0.0
    %2129 = vmatpush1.xpose.msra.mxu0 0.0
    %2130 = vmatprep.subr.mxu0 0.0
    %2131 = vmatpush1.xpose.msra.mxu0 0.0
    %2132 = vmatprep.subr.mxu0 0.0
    %2133 = vmatpush1.xpose.msra.mxu0 0.0
    %2134 = vmatprep.subr.mxu0 0.0
    %2135 = vmatpush1.xpose.msra.mxu0 0.0
    %2136 = vmatprep.subr.mxu0 0.0
    %2137 = vmatpush1.xpose.msra.mxu0 0.0
    %2138 = vmatprep.subr.mxu0 0.0
    %2139 = vmatpush1.xpose.msra.mxu0 0.0
    %2140 = vmatprep.subr.mxu0 0.0
    %2141 = vmatpush1.xpose.msra.mxu0 0.0
    %2142 = vmatprep.subr.mxu0 0.0
    %2143 = vmatpush1.xpose.msra.mxu0 0.0
    %2144 = vmatprep.subr.mxu0 0.0
    %2145 = vmatpush1.xpose.msra.mxu0 0.0
    %2146 = vmatprep.mubr.f32.mxu0 0.0
    %2147 = vmatmul.mubr.f32.gmra.mrb[0].mxu0 %v2074
    %v2148 = vpop.f32.mrb[0].mxu0
    %v2149 = vadd.f32 0.0, %v2148
    %v2150 = vpop.f32.mrb[0].mxu0
    %2151 = vmatprep.mubr.f32.mxu0 0.0
    %2152 = vmatmul.mubr.f32.gmra.mrb[0].mxu0 %v2076
    %v2153 = vpop.f32.mrb[0].mxu0
    %v2154 = vadd.f32 0.0, %v2153
    %v2155 = vpop.f32.mrb[0].mxu0
    %2156 = vdwg.mxu0
    %2157 = vrot.lane.b32.xlu0 %v336, 120
    %v2158 = vpop.permute.xlu0 %2157
    %2159 = vrot.lane.b32.xlu0 %v337, 120
    %v2160 = vpop.permute.xlu0 %2159
    %2161 = vrot.lane.b32.xlu0 %v258, 88
    %v2162 = vpop.permute.xlu0 %2161
    %2163 = vrot.lane.b32.xlu0 %v263, 88
    %v2164 = vpop.permute.xlu0 %2163
    %v2165 = vsel %vm354, %v2158, 0
    %v2167 = vsel %vm354, %v2160, 0
    %v2169 = vsel %vm354, %v2162, 0
    %v2171 = vsel %vm354, %v2164, 0
    %2173 = vmatprep.subr.mxu0 0.0
    %2174 = vmatpush1.xpose.msra.mxu0 %v2169
    %2175 = vmatprep.subr.mxu0 0.0
    %2176 = vmatpush1.xpose.msra.mxu0 %v2171
    %2177 = vmatprep.subr.mxu0 0.0
    %2178 = vmatpush1.xpose.msra.mxu0 0.0
    %2179 = vmatprep.subr.mxu0 0.0
    %2180 = vmatpush1.xpose.msra.mxu0 0.0
    %2181 = vmatprep.subr.mxu0 0.0
    %2182 = vmatpush1.xpose.msra.mxu0 0.0
    %2183 = vmatprep.subr.mxu0 0.0
    %2184 = vmatpush1.xpose.msra.mxu0 0.0
    %2185 = vmatprep.subr.mxu0 0.0
    %2186 = vmatpush1.xpose.msra.mxu0 0.0
    %2187 = vmatprep.subr.mxu0 0.0
    %2188 = vmatpush1.xpose.msra.mxu0 0.0
    %2189 = vmatprep.subr.mxu0 0.0
    %2190 = vmatpush1.xpose.msra.mxu0 0.0
    %2191 = vmatprep.subr.mxu0 0.0
    %2192 = vmatpush1.xpose.msra.mxu0 0.0
    %2193 = vmatprep.subr.mxu0 0.0
    %2194 = vmatpush1.xpose.msra.mxu0 0.0
    %2195 = vmatprep.subr.mxu0 0.0
    %2196 = vmatpush1.xpose.msra.mxu0 0.0
    %2197 = vmatprep.subr.mxu0 0.0
    %2198 = vmatpush1.xpose.msra.mxu0 0.0
    %2199 = vmatprep.subr.mxu0 0.0
    %2200 = vmatpush1.xpose.msra.mxu0 0.0
    %2201 = vmatprep.subr.mxu0 0.0
    %2202 = vmatpush1.xpose.msra.mxu0 0.0
    %2203 = vmatprep.subr.mxu0 0.0
    %2204 = vmatpush1.xpose.msra.mxu0 0.0
    %2205 = vmatprep.subr.mxu0 0.0
    %2206 = vmatpush1.xpose.msra.mxu0 0.0
    %2207 = vmatprep.subr.mxu0 0.0
    %2208 = vmatpush1.xpose.msra.mxu0 0.0
    %2209 = vmatprep.subr.mxu0 0.0
    %2210 = vmatpush1.xpose.msra.mxu0 0.0
    %2211 = vmatprep.subr.mxu0 0.0
    %2212 = vmatpush1.xpose.msra.mxu0 0.0
    %2213 = vmatprep.subr.mxu0 0.0
    %2214 = vmatpush1.xpose.msra.mxu0 0.0
    %2215 = vmatprep.subr.mxu0 0.0
    %2216 = vmatpush1.xpose.msra.mxu0 0.0
    %2217 = vmatprep.subr.mxu0 0.0
    %2218 = vmatpush1.xpose.msra.mxu0 0.0
    %2219 = vmatprep.subr.mxu0 0.0
    %2220 = vmatpush1.xpose.msra.mxu0 0.0
    %2221 = vmatprep.subr.mxu0 0.0
    %2222 = vmatpush1.xpose.msra.mxu0 0.0
    %2223 = vmatprep.subr.mxu0 0.0
    %2224 = vmatpush1.xpose.msra.mxu0 0.0
    %2225 = vmatprep.subr.mxu0 0.0
    %2226 = vmatpush1.xpose.msra.mxu0 0.0
    %2227 = vmatprep.subr.mxu0 0.0
    %2228 = vmatpush1.xpose.msra.mxu0 0.0
    %2229 = vmatprep.subr.mxu0 0.0
    %2230 = vmatpush1.xpose.msra.mxu0 0.0
    %2231 = vmatprep.subr.mxu0 0.0
    %2232 = vmatpush1.xpose.msra.mxu0 0.0
    %2233 = vmatprep.subr.mxu0 0.0
    %2234 = vmatpush1.xpose.msra.mxu0 0.0
    %2235 = vmatprep.subr.mxu0 0.0
    %2236 = vmatpush1.xpose.msra.mxu0 0.0
    %2237 = vmatprep.mubr.f32.mxu0 0.0
    %2238 = vmatmul.mubr.f32.gmra.mrb[0].mxu0 %v2165
    %v2239 = vpop.f32.mrb[0].mxu0
    %v2240 = vadd.f32 0.0, %v2239
    %v2241 = vpop.f32.mrb[0].mxu0
    %2242 = vmatprep.mubr.f32.mxu0 0.0
    %2243 = vmatmul.mubr.f32.gmra.mrb[0].mxu0 %v2167
    %v2244 = vpop.f32.mrb[0].mxu0
    %v2245 = vadd.f32 0.0, %v2244
    %v2246 = vpop.f32.mrb[0].mxu0
    %2247 = vdwg.mxu0
    %2248 = vrot.lane.b32.xlu0 %v338, 120
    %v2249 = vpop.permute.xlu0 %2248
    %2250 = vrot.lane.b32.xlu0 %v339, 120
    %v2251 = vpop.permute.xlu0 %2250
    %2252 = vrot.lane.b32.xlu0 %v268, 88
    %v2253 = vpop.permute.xlu0 %2252
    %2254 = vrot.lane.b32.xlu0 %v273, 88
    %v2255 = vpop.permute.xlu0 %2254
    %v2256 = vsel %vm354, %v2249, 0
    %v2258 = vsel %vm354, %v2251, 0
    %v2260 = vsel %vm354, %v2253, 0
    %v2262 = vsel %vm354, %v2255, 0
    %2264 = vmatprep.subr.mxu0 0.0
    %2265 = vmatpush1.xpose.msra.mxu0 %v2260
    %2266 = vmatprep.subr.mxu0 0.0
    %2267 = vmatpush1.xpose.msra.mxu0 %v2262
    %2268 = vmatprep.subr.mxu0 0.0
    %2269 = vmatpush1.xpose.msra.mxu0 0.0
    %2270 = vmatprep.subr.mxu0 0.0
    %2271 = vmatpush1.xpose.msra.mxu0 0.0
    %2272 = vmatprep.subr.mxu0 0.0
    %2273 = vmatpush1.xpose.msra.mxu0 0.0
    %2274 = vmatprep.subr.mxu0 0.0
    %2275 = vmatpush1.xpose.msra.mxu0 0.0
    %2276 = vmatprep.subr.mxu0 0.0
    %2277 = vmatpush1.xpose.msra.mxu0 0.0
    %2278 = vmatprep.subr.mxu0 0.0
    %2279 = vmatpush1.xpose.msra.mxu0 0.0
    %2280 = vmatprep.subr.mxu0 0.0
    %2281 = vmatpush1.xpose.msra.mxu0 0.0
    %2282 = vmatprep.subr.mxu0 0.0
    %2283 = vmatpush1.xpose.msra.mxu0 0.0
    %2284 = vmatprep.subr.mxu0 0.0
    %2285 = vmatpush1.xpose.msra.mxu0 0.0
    %2286 = vmatprep.subr.mxu0 0.0
    %2287 = vmatpush1.xpose.msra.mxu0 0.0
    %2288 = vmatprep.subr.mxu0 0.0
    %2289 = vmatpush1.xpose.msra.mxu0 0.0
    %2290 = vmatprep.subr.mxu0 0.0
    %2291 = vmatpush1.xpose.msra.mxu0 0.0
    %2292 = vmatprep.subr.mxu0 0.0
    %2293 = vmatpush1.xpose.msra.mxu0 0.0
    %2294 = vmatprep.subr.mxu0 0.0
    %2295 = vmatpush1.xpose.msra.mxu0 0.0
    %2296 = vmatprep.subr.mxu0 0.0
    %2297 = vmatpush1.xpose.msra.mxu0 0.0
    %2298 = vmatprep.subr.mxu0 0.0
    %2299 = vmatpush1.xpose.msra.mxu0 0.0
    %2300 = vmatprep.subr.mxu0 0.0
    %2301 = vmatpush1.xpose.msra.mxu0 0.0
    %2302 = vmatprep.subr.mxu0 0.0
    %2303 = vmatpush1.xpose.msra.mxu0 0.0
    %2304 = vmatprep.subr.mxu0 0.0
    %2305 = vmatpush1.xpose.msra.mxu0 0.0
    %2306 = vmatprep.subr.mxu0 0.0
    %2307 = vmatpush1.xpose.msra.mxu0 0.0
    %2308 = vmatprep.subr.mxu0 0.0
    %2309 = vmatpush1.xpose.msra.mxu0 0.0
    %2310 = vmatprep.subr.mxu0 0.0
    %2311 = vmatpush1.xpose.msra.mxu0 0.0
    %2312 = vmatprep.subr.mxu0 0.0
    %2313 = vmatpush1.xpose.msra.mxu0 0.0
    %2314 = vmatprep.subr.mxu0 0.0
    %2315 = vmatpush1.xpose.msra.mxu0 0.0
    %2316 = vmatprep.subr.mxu0 0.0
    %2317 = vmatpush1.xpose.msra.mxu0 0.0
    %2318 = vmatprep.subr.mxu0 0.0
    %2319 = vmatpush1.xpose.msra.mxu0 0.0
    %2320 = vmatprep.subr.mxu0 0.0
    %2321 = vmatpush1.xpose.msra.mxu0 0.0
    %2322 = vmatprep.subr.mxu0 0.0
    %2323 = vmatpush1.xpose.msra.mxu0 0.0
    %2324 = vmatprep.subr.mxu0 0.0
    %2325 = vmatpush1.xpose.msra.mxu0 0.0
    %2326 = vmatprep.subr.mxu0 0.0
    %2327 = vmatpush1.xpose.msra.mxu0 0.0
    %2328 = vmatprep.mubr.f32.mxu0 0.0
    %2329 = vmatmul.mubr.f32.gmra.mrb[0].mxu0 %v2256
    %v2330 = vpop.f32.mrb[0].mxu0
    %v2331 = vadd.f32 0.0, %v2330
    %v2332 = vpop.f32.mrb[0].mxu0
    %2333 = vmatprep.mubr.f32.mxu0 0.0
    %2334 = vmatmul.mubr.f32.gmra.mrb[0].mxu0 %v2258
    %v2335 = vpop.f32.mrb[0].mxu0
    %v2336 = vadd.f32 0.0, %v2335
    %v2337 = vpop.f32.mrb[0].mxu0
    %2338 = vdwg.mxu0
    %2339 = vrot.lane.b32.xlu0 %v340, 120
    %v2340 = vpop.permute.xlu0 %2339
    %2341 = vrot.lane.b32.xlu0 %v341, 120
    %v2342 = vpop.permute.xlu0 %2341
    %2343 = vrot.lane.b32.xlu0 %v278, 88
    %v2344 = vpop.permute.xlu0 %2343
    %2345 = vrot.lane.b32.xlu0 %v283, 88
    %v2346 = vpop.permute.xlu0 %2345
    %v2347 = vsel %vm354, %v2340, 0
    %v2349 = vsel %vm354, %v2342, 0
    %v2351 = vsel %vm354, %v2344, 0
    %v2353 = vsel %vm354, %v2346, 0
    %2355 = vmatprep.subr.mxu0 0.0
    %2356 = vmatpush1.xpose.msra.mxu0 %v2351
    %2357 = vmatprep.subr.mxu0 0.0
    %2358 = vmatpush1.xpose.msra.mxu0 %v2353
    %2359 = vmatprep.subr.mxu0 0.0
    %2360 = vmatpush1.xpose.msra.mxu0 0.0
    %2361 = vmatprep.subr.mxu0 0.0
    %2362 = vmatpush1.xpose.msra.mxu0 0.0
    %2363 = vmatprep.subr.mxu0 0.0
    %2364 = vmatpush1.xpose.msra.mxu0 0.0
    %2365 = vmatprep.subr.mxu0 0.0
    %2366 = vmatpush1.xpose.msra.mxu0 0.0
    %2367 = vmatprep.subr.mxu0 0.0
    %2368 = vmatpush1.xpose.msra.mxu0 0.0
    %2369 = vmatprep.subr.mxu0 0.0
    %2370 = vmatpush1.xpose.msra.mxu0 0.0
    %2371 = vmatprep.subr.mxu0 0.0
    %2372 = vmatpush1.xpose.msra.mxu0 0.0
    %2373 = vmatprep.subr.mxu0 0.0
    %2374 = vmatpush1.xpose.msra.mxu0 0.0
    %2375 = vmatprep.subr.mxu0 0.0
    %2376 = vmatpush1.xpose.msra.mxu0 0.0
    %2377 = vmatprep.subr.mxu0 0.0
    %2378 = vmatpush1.xpose.msra.mxu0 0.0
    %2379 = vmatprep.subr.mxu0 0.0
    %2380 = vmatpush1.xpose.msra.mxu0 0.0
    %2381 = vmatprep.subr.mxu0 0.0
    %2382 = vmatpush1.xpose.msra.mxu0 0.0
    %2383 = vmatprep.subr.mxu0 0.0
    %2384 = vmatpush1.xpose.msra.mxu0 0.0
    %2385 = vmatprep.subr.mxu0 0.0
    %2386 = vmatpush1.xpose.msra.mxu0 0.0
    %2387 = vmatprep.subr.mxu0 0.0
    %2388 = vmatpush1.xpose.msra.mxu0 0.0
    %2389 = vmatprep.subr.mxu0 0.0
    %2390 = vmatpush1.xpose.msra.mxu0 0.0
    %2391 = vmatprep.subr.mxu0 0.0
    %2392 = vmatpush1.xpose.msra.mxu0 0.0
    %2393 = vmatprep.subr.mxu0 0.0
    %2394 = vmatpush1.xpose.msra.mxu0 0.0
    %2395 = vmatprep.subr.mxu0 0.0
    %2396 = vmatpush1.xpose.msra.mxu0 0.0
    %2397 = vmatprep.subr.mxu0 0.0
    %2398 = vmatpush1.xpose.msra.mxu0 0.0
    %2399 = vmatprep.subr.mxu0 0.0
    %2400 = vmatpush1.xpose.msra.mxu0 0.0
    %2401 = vmatprep.subr.mxu0 0.0
    %2402 = vmatpush1.xpose.msra.mxu0 0.0
    %2403 = vmatprep.subr.mxu0 0.0
    %2404 = vmatpush1.xpose.msra.mxu0 0.0
    %2405 = vmatprep.subr.mxu0 0.0
    %2406 = vmatpush1.xpose.msra.mxu0 0.0
    %2407 = vmatprep.subr.mxu0 0.0
    %2408 = vmatpush1.xpose.msra.mxu0 0.0
    %2409 = vmatprep.subr.mxu0 0.0
    %2410 = vmatpush1.xpose.msra.mxu0 0.0
    %2411 = vmatprep.subr.mxu0 0.0
    %2412 = vmatpush1.xpose.msra.mxu0 0.0
    %2413 = vmatprep.subr.mxu0 0.0
    %2414 = vmatpush1.xpose.msra.mxu0 0.0
    %2415 = vmatprep.subr.mxu0 0.0
    %2416 = vmatpush1.xpose.msra.mxu0 0.0
    %2417 = vmatprep.subr.mxu0 0.0
    %2418 = vmatpush1.xpose.msra.mxu0 0.0
    %2419 = vmatprep.mubr.f32.mxu0 0.0
    %2420 = vmatmul.mubr.f32.gmra.mrb[0].mxu0 %v2347
    %v2421 = vpop.f32.mrb[0].mxu0
    %v2422 = vadd.f32 0.0, %v2421
    %v2423 = vpop.f32.mrb[0].mxu0
    %2424 = vmatprep.mubr.f32.mxu0 0.0
    %2425 = vmatmul.mubr.f32.gmra.mrb[0].mxu0 %v2349
    %v2426 = vpop.f32.mrb[0].mxu0
    %v2427 = vadd.f32 0.0, %v2426
    %v2428 = vpop.f32.mrb[0].mxu0
    %2429 = vdwg.mxu0
    %2430 = vrot.lane.b32.xlu0 %v342, 120
    %v2431 = vpop.permute.xlu0 %2430
    %2432 = vrot.lane.b32.xlu0 %v343, 120
    %v2433 = vpop.permute.xlu0 %2432
    %2434 = vrot.lane.b32.xlu0 %v288, 88
    %v2435 = vpop.permute.xlu0 %2434
    %2436 = vrot.lane.b32.xlu0 %v293, 88
    %v2437 = vpop.permute.xlu0 %2436
    %v2438 = vsel %vm354, %v2431, 0
    %v2440 = vsel %vm354, %v2433, 0
    %v2442 = vsel %vm354, %v2435, 0
    %v2444 = vsel %vm354, %v2437, 0
    %2446 = vmatprep.subr.mxu0 0.0
    %2447 = vmatpush1.xpose.msra.mxu0 %v2442
    %2448 = vmatprep.subr.mxu0 0.0
    %2449 = vmatpush1.xpose.msra.mxu0 %v2444
    %2450 = vmatprep.subr.mxu0 0.0
    %2451 = vmatpush1.xpose.msra.mxu0 0.0
    %2452 = vmatprep.subr.mxu0 0.0
    %2453 = vmatpush1.xpose.msra.mxu0 0.0
    %2454 = vmatprep.subr.mxu0 0.0
    %2455 = vmatpush1.xpose.msra.mxu0 0.0
    %2456 = vmatprep.subr.mxu0 0.0
    %2457 = vmatpush1.xpose.msra.mxu0 0.0
    %2458 = vmatprep.subr.mxu0 0.0
    %2459 = vmatpush1.xpose.msra.mxu0 0.0
    %2460 = vmatprep.subr.mxu0 0.0
    %2461 = vmatpush1.xpose.msra.mxu0 0.0
    %2462 = vmatprep.subr.mxu0 0.0
    %2463 = vmatpush1.xpose.msra.mxu0 0.0
    %2464 = vmatprep.subr.mxu0 0.0
    %2465 = vmatpush1.xpose.msra.mxu0 0.0
    %2466 = vmatprep.subr.mxu0 0.0
    %2467 = vmatpush1.xpose.msra.mxu0 0.0
    %2468 = vmatprep.subr.mxu0 0.0
    %2469 = vmatpush1.xpose.msra.mxu0 0.0
    %2470 = vmatprep.subr.mxu0 0.0
    %2471 = vmatpush1.xpose.msra.mxu0 0.0
    %2472 = vmatprep.subr.mxu0 0.0
    %2473 = vmatpush1.xpose.msra.mxu0 0.0
    %2474 = vmatprep.subr.mxu0 0.0
    %2475 = vmatpush1.xpose.msra.mxu0 0.0
    %2476 = vmatprep.subr.mxu0 0.0
    %2477 = vmatpush1.xpose.msra.mxu0 0.0
    %2478 = vmatprep.subr.mxu0 0.0
    %2479 = vmatpush1.xpose.msra.mxu0 0.0
    %2480 = vmatprep.subr.mxu0 0.0
    %2481 = vmatpush1.xpose.msra.mxu0 0.0
    %2482 = vmatprep.subr.mxu0 0.0
    %2483 = vmatpush1.xpose.msra.mxu0 0.0
    %2484 = vmatprep.subr.mxu0 0.0
    %2485 = vmatpush1.xpose.msra.mxu0 0.0
    %2486 = vmatprep.subr.mxu0 0.0
    %2487 = vmatpush1.xpose.msra.mxu0 0.0
    %2488 = vmatprep.subr.mxu0 0.0
    %2489 = vmatpush1.xpose.msra.mxu0 0.0
    %2490 = vmatprep.subr.mxu0 0.0
    %2491 = vmatpush1.xpose.msra.mxu0 0.0
    %2492 = vmatprep.subr.mxu0 0.0
    %2493 = vmatpush1.xpose.msra.mxu0 0.0
    %2494 = vmatprep.subr.mxu0 0.0
    %2495 = vmatpush1.xpose.msra.mxu0 0.0
    %2496 = vmatprep.subr.mxu0 0.0
    %2497 = vmatpush1.xpose.msra.mxu0 0.0
    %2498 = vmatprep.subr.mxu0 0.0
    %2499 = vmatpush1.xpose.msra.mxu0 0.0
    %2500 = vmatprep.subr.mxu0 0.0
    %2501 = vmatpush1.xpose.msra.mxu0 0.0
    %2502 = vmatprep.subr.mxu0 0.0
    %2503 = vmatpush1.xpose.msra.mxu0 0.0
    %2504 = vmatprep.subr.mxu0 0.0
    %2505 = vmatpush1.xpose.msra.mxu0 0.0
    %2506 = vmatprep.subr.mxu0 0.0
    %2507 = vmatpush1.xpose.msra.mxu0 0.0
    %2508 = vmatprep.subr.mxu0 0.0
    %2509 = vmatpush1.xpose.msra.mxu0 0.0
    %2510 = vmatprep.mubr.f32.mxu0 0.0
    %2511 = vmatmul.mubr.f32.gmra.mrb[0].mxu0 %v2438
    %v2512 = vpop.f32.mrb[0].mxu0
    %v2513 = vadd.f32 0.0, %v2512
    %v2514 = vpop.f32.mrb[0].mxu0
    %2515 = vmatprep.mubr.f32.mxu0 0.0
    %2516 = vmatmul.mubr.f32.gmra.mrb[0].mxu0 %v2440
    %v2517 = vpop.f32.mrb[0].mxu0
    %v2518 = vadd.f32 0.0, %v2517
    %v2519 = vpop.f32.mrb[0].mxu0
    %2520 = vdwg.mxu0
    %2521 = vrot.lane.b32.xlu0 %v344, 120
    %v2522 = vpop.permute.xlu0 %2521
    %2523 = vrot.lane.b32.xlu0 %v345, 120
    %v2524 = vpop.permute.xlu0 %2523
    %2525 = vrot.lane.b32.xlu0 %v298, 88
    %v2526 = vpop.permute.xlu0 %2525
    %2527 = vrot.lane.b32.xlu0 %v303, 88
    %v2528 = vpop.permute.xlu0 %2527
    %v2529 = vsel %vm354, %v2522, 0
    %v2531 = vsel %vm354, %v2524, 0
    %v2533 = vsel %vm354, %v2526, 0
    %v2535 = vsel %vm354, %v2528, 0
    %2537 = vmatprep.subr.mxu0 0.0
    %2538 = vmatpush1.xpose.msra.mxu0 %v2533
    %2539 = vmatprep.subr.mxu0 0.0
    %2540 = vmatpush1.xpose.msra.mxu0 %v2535
    %2541 = vmatprep.subr.mxu0 0.0
    %2542 = vmatpush1.xpose.msra.mxu0 0.0
    %2543 = vmatprep.subr.mxu0 0.0
    %2544 = vmatpush1.xpose.msra.mxu0 0.0
    %2545 = vmatprep.subr.mxu0 0.0
    %2546 = vmatpush1.xpose.msra.mxu0 0.0
    %2547 = vmatprep.subr.mxu0 0.0
    %2548 = vmatpush1.xpose.msra.mxu0 0.0
    %2549 = vmatprep.subr.mxu0 0.0
    %2550 = vmatpush1.xpose.msra.mxu0 0.0
    %2551 = vmatprep.subr.mxu0 0.0
    %2552 = vmatpush1.xpose.msra.mxu0 0.0
    %2553 = vmatprep.subr.mxu0 0.0
    %2554 = vmatpush1.xpose.msra.mxu0 0.0
    %2555 = vmatprep.subr.mxu0 0.0
    %2556 = vmatpush1.xpose.msra.mxu0 0.0
    %2557 = vmatprep.subr.mxu0 0.0
    %2558 = vmatpush1.xpose.msra.mxu0 0.0
    %2559 = vmatprep.subr.mxu0 0.0
    %2560 = vmatpush1.xpose.msra.mxu0 0.0
    %2561 = vmatprep.subr.mxu0 0.0
    %2562 = vmatpush1.xpose.msra.mxu0 0.0
    %2563 = vmatprep.subr.mxu0 0.0
    %2564 = vmatpush1.xpose.msra.mxu0 0.0
    %2565 = vmatprep.subr.mxu0 0.0
    %2566 = vmatpush1.xpose.msra.mxu0 0.0
    %2567 = vmatprep.subr.mxu0 0.0
    %2568 = vmatpush1.xpose.msra.mxu0 0.0
    %2569 = vmatprep.subr.mxu0 0.0
    %2570 = vmatpush1.xpose.msra.mxu0 0.0
    %2571 = vmatprep.subr.mxu0 0.0
    %2572 = vmatpush1.xpose.msra.mxu0 0.0
    %2573 = vmatprep.subr.mxu0 0.0
    %2574 = vmatpush1.xpose.msra.mxu0 0.0
    %2575 = vmatprep.subr.mxu0 0.0
    %2576 = vmatpush1.xpose.msra.mxu0 0.0
    %2577 = vmatprep.subr.mxu0 0.0
    %2578 = vmatpush1.xpose.msra.mxu0 0.0
    %2579 = vmatprep.subr.mxu0 0.0
    %2580 = vmatpush1.xpose.msra.mxu0 0.0
    %2581 = vmatprep.subr.mxu0 0.0
    %2582 = vmatpush1.xpose.msra.mxu0 0.0
    %2583 = vmatprep.subr.mxu0 0.0
    %2584 = vmatpush1.xpose.msra.mxu0 0.0
    %2585 = vmatprep.subr.mxu0 0.0
    %2586 = vmatpush1.xpose.msra.mxu0 0.0
    %2587 = vmatprep.subr.mxu0 0.0
    %2588 = vmatpush1.xpose.msra.mxu0 0.0
    %2589 = vmatprep.subr.mxu0 0.0
    %2590 = vmatpush1.xpose.msra.mxu0 0.0
    %2591 = vmatprep.subr.mxu0 0.0
    %2592 = vmatpush1.xpose.msra.mxu0 0.0
    %2593 = vmatprep.subr.mxu0 0.0
    %2594 = vmatpush1.xpose.msra.mxu0 0.0
    %2595 = vmatprep.subr.mxu0 0.0
    %2596 = vmatpush1.xpose.msra.mxu0 0.0
    %2597 = vmatprep.subr.mxu0 0.0
    %2598 = vmatpush1.xpose.msra.mxu0 0.0
    %2599 = vmatprep.subr.mxu0 0.0
    %2600 = vmatpush1.xpose.msra.mxu0 0.0
    %2601 = vmatprep.mubr.f32.mxu0 0.0
    %2602 = vmatmul.mubr.f32.gmra.mrb[0].mxu0 %v2529
    %v2603 = vpop.f32.mrb[0].mxu0
    %v2604 = vadd.f32 0.0, %v2603
    %v2605 = vpop.f32.mrb[0].mxu0
    %2606 = vmatprep.mubr.f32.mxu0 0.0
    %2607 = vmatmul.mubr.f32.gmra.mrb[0].mxu0 %v2531
    %v2608 = vpop.f32.mrb[0].mxu0
    %v2609 = vadd.f32 0.0, %v2608
    %v2610 = vpop.f32.mrb[0].mxu0
    %2611 = vdwg.mxu0
    %2612 = vrot.lane.b32.xlu0 %v346, 120
    %v2613 = vpop.permute.xlu0 %2612
    %2614 = vrot.lane.b32.xlu0 %v347, 120
    %v2615 = vpop.permute.xlu0 %2614
    %2616 = vrot.lane.b32.xlu0 %v308, 88
    %v2617 = vpop.permute.xlu0 %2616
    %2618 = vrot.lane.b32.xlu0 %v313, 88
    %v2619 = vpop.permute.xlu0 %2618
    %v2620 = vsel %vm354, %v2613, 0
    %v2622 = vsel %vm354, %v2615, 0
    %v2624 = vsel %vm354, %v2617, 0
    %v2626 = vsel %vm354, %v2619, 0
    %2628 = vmatprep.subr.mxu0 0.0
    %2629 = vmatpush1.xpose.msra.mxu0 %v2624
    %2630 = vmatprep.subr.mxu0 0.0
    %2631 = vmatpush1.xpose.msra.mxu0 %v2626
    %2632 = vmatprep.subr.mxu0 0.0
    %2633 = vmatpush1.xpose.msra.mxu0 0.0
    %2634 = vmatprep.subr.mxu0 0.0
    %2635 = vmatpush1.xpose.msra.mxu0 0.0
    %2636 = vmatprep.subr.mxu0 0.0
    %2637 = vmatpush1.xpose.msra.mxu0 0.0
    %2638 = vmatprep.subr.mxu0 0.0
    %2639 = vmatpush1.xpose.msra.mxu0 0.0
    %2640 = vmatprep.subr.mxu0 0.0
    %2641 = vmatpush1.xpose.msra.mxu0 0.0
    %2642 = vmatprep.subr.mxu0 0.0
    %2643 = vmatpush1.xpose.msra.mxu0 0.0
    %2644 = vmatprep.subr.mxu0 0.0
    %2645 = vmatpush1.xpose.msra.mxu0 0.0
    %2646 = vmatprep.subr.mxu0 0.0
    %2647 = vmatpush1.xpose.msra.mxu0 0.0
    %2648 = vmatprep.subr.mxu0 0.0
    %2649 = vmatpush1.xpose.msra.mxu0 0.0
    %2650 = vmatprep.subr.mxu0 0.0
    %2651 = vmatpush1.xpose.msra.mxu0 0.0
    %2652 = vmatprep.subr.mxu0 0.0
    %2653 = vmatpush1.xpose.msra.mxu0 0.0
    %2654 = vmatprep.subr.mxu0 0.0
    %2655 = vmatpush1.xpose.msra.mxu0 0.0
    %2656 = vmatprep.subr.mxu0 0.0
    %2657 = vmatpush1.xpose.msra.mxu0 0.0
    %2658 = vmatprep.subr.mxu0 0.0
    %2659 = vmatpush1.xpose.msra.mxu0 0.0
    %2660 = vmatprep.subr.mxu0 0.0
    %2661 = vmatpush1.xpose.msra.mxu0 0.0
    %2662 = vmatprep.subr.mxu0 0.0
    %2663 = vmatpush1.xpose.msra.mxu0 0.0
    %2664 = vmatprep.subr.mxu0 0.0
    %2665 = vmatpush1.xpose.msra.mxu0 0.0
    %2666 = vmatprep.subr.mxu0 0.0
    %2667 = vmatpush1.xpose.msra.mxu0 0.0
    %2668 = vmatprep.subr.mxu0 0.0
    %2669 = vmatpush1.xpose.msra.mxu0 0.0
    %2670 = vmatprep.subr.mxu0 0.0
    %2671 = vmatpush1.xpose.msra.mxu0 0.0
    %2672 = vmatprep.subr.mxu0 0.0
    %2673 = vmatpush1.xpose.msra.mxu0 0.0
    %2674 = vmatprep.subr.mxu0 0.0
    %2675 = vmatpush1.xpose.msra.mxu0 0.0
    %2676 = vmatprep.subr.mxu0 0.0
    %2677 = vmatpush1.xpose.msra.mxu0 0.0
    %2678 = vmatprep.subr.mxu0 0.0
    %2679 = vmatpush1.xpose.msra.mxu0 0.0
    %2680 = vmatprep.subr.mxu0 0.0
    %2681 = vmatpush1.xpose.msra.mxu0 0.0
    %2682 = vmatprep.subr.mxu0 0.0
    %2683 = vmatpush1.xpose.msra.mxu0 0.0
    %2684 = vmatprep.subr.mxu0 0.0
    %2685 = vmatpush1.xpose.msra.mxu0 0.0
    %2686 = vmatprep.subr.mxu0 0.0
    %2687 = vmatpush1.xpose.msra.mxu0 0.0
    %2688 = vmatprep.subr.mxu0 0.0
    %2689 = vmatpush1.xpose.msra.mxu0 0.0
    %2690 = vmatprep.subr.mxu0 0.0
    %2691 = vmatpush1.xpose.msra.mxu0 0.0
    %2692 = vmatprep.mubr.f32.mxu0 0.0
    %2693 = vmatmul.mubr.f32.gmra.mrb[0].mxu0 %v2620
    %v2694 = vpop.f32.mrb[0].mxu0
    %v2695 = vadd.f32 0.0, %v2694
    %v2696 = vpop.f32.mrb[0].mxu0
    %2697 = vmatprep.mubr.f32.mxu0 0.0
    %2698 = vmatmul.mubr.f32.gmra.mrb[0].mxu0 %v2622
    %v2699 = vpop.f32.mrb[0].mxu0
    %v2700 = vadd.f32 0.0, %v2699
    %v2701 = vpop.f32.mrb[0].mxu0
    %2702 = vdwg.mxu0
    %v2703 = vadd.f32 %v318, %v324
    %v2704 = vadd.f32 %v319, %v325
    %v2705 = vadd.f32 %v318, %v326
    %v2706 = vadd.f32 %v319, %v327
    %v2707 = vadd.f32 %v318, %v328
    %v2708 = vadd.f32 %v319, %v329
    %v2709 = vadd.f32 %v318, %v330
    %v2710 = vadd.f32 %v319, %v331
    %v2711 = vadd.f32 %v2058, %v2703
    %v2712 = vadd.f32 %v2063, %v2704
    %v2713 = vadd.f32 %v2149, %v2705
    %v2714 = vadd.f32 %v2154, %v2706
    %v2715 = vadd.f32 %v2240, %v2707
    %v2716 = vadd.f32 %v2245, %v2708
    %v2717 = vadd.f32 %v2331, %v2709
    %v2718 = vadd.f32 %v2336, %v2710
    %v2719 = vadd.f32 %v2422, %v2703
    %v2720 = vadd.f32 %v2427, %v2704
    %v2721 = vadd.f32 %v2513, %v2705
    %v2722 = vadd.f32 %v2518, %v2706
    %v2723 = vadd.f32 %v2604, %v2707
    %v2724 = vadd.f32 %v2609, %v2708
    %v2725 = vadd.f32 %v2695, %v2709
    %v2726 = vadd.f32 %v2700, %v2710
    %v2727 = vsel %vm1101, %v2711, -inf
    %2728 = vmax.xlane.f32.xlu0 %v2727
    %v2729 = vpop.xlane.xlu0 %2728
    %v2730 = vsel %vm1101, %v2712, -inf
    %2731 = vmax.xlane.f32.xlu0 %v2730
    %v2732 = vpop.xlane.xlu0 %2731
    %v2733 = vsel %vm1101, %v2713, -inf
    %2734 = vmax.xlane.f32.xlu0 %v2733
    %v2735 = vpop.xlane.xlu0 %2734
    %v2736 = vsel %vm1101, %v2714, -inf
    %2737 = vmax.xlane.f32.xlu0 %v2736
    %v2738 = vpop.xlane.xlu0 %2737
    %v2739 = vsel %vm1101, %v2715, -inf
    %2740 = vmax.xlane.f32.xlu0 %v2739
    %v2741 = vpop.xlane.xlu0 %2740
    %v2742 = vsel %vm1101, %v2716, -inf
    %2743 = vmax.xlane.f32.xlu0 %v2742
    %v2744 = vpop.xlane.xlu0 %2743
    %v2745 = vsel %vm1101, %v2717, -inf
    %2746 = vmax.xlane.f32.xlu0 %v2745
    %v2747 = vpop.xlane.xlu0 %2746
    %v2748 = vsel %vm1101, %v2718, -inf
    %2749 = vmax.xlane.f32.xlu0 %v2748
    %v2750 = vpop.xlane.xlu0 %2749
    %v2751 = vsel %vm1101, %v2719, -inf
    %2752 = vmax.xlane.f32.xlu0 %v2751
    %v2753 = vpop.xlane.xlu0 %2752
    %v2754 = vsel %vm1101, %v2720, -inf
    %2755 = vmax.xlane.f32.xlu0 %v2754
    %v2756 = vpop.xlane.xlu0 %2755
    %v2757 = vsel %vm1101, %v2721, -inf
    %2758 = vmax.xlane.f32.xlu0 %v2757
    %v2759 = vpop.xlane.xlu0 %2758
    %v2760 = vsel %vm1101, %v2722, -inf
    %2761 = vmax.xlane.f32.xlu0 %v2760
    %v2762 = vpop.xlane.xlu0 %2761
    %v2763 = vsel %vm1101, %v2723, -inf
    %2764 = vmax.xlane.f32.xlu0 %v2763
    %v2765 = vpop.xlane.xlu0 %2764
    %v2766 = vsel %vm1101, %v2724, -inf
    %2767 = vmax.xlane.f32.xlu0 %v2766
    %v2768 = vpop.xlane.xlu0 %2767
    %v2769 = vsel %vm1101, %v2725, -inf
    %2770 = vmax.xlane.f32.xlu0 %v2769
    %v2771 = vpop.xlane.xlu0 %2770
    %v2772 = vsel %vm1101, %v2726, -inf
    %2773 = vmax.xlane.f32.xlu0 %v2772
    %v2774 = vpop.xlane.xlu0 %2773
    %v2775 = vsub.f32 %v2711, %v2729
    %v2776 = vsub.f32 %v2712, %v2732
    %v2777 = vsub.f32 %v2713, %v2735
    %v2778 = vsub.f32 %v2714, %v2738
    %v2779 = vsub.f32 %v2715, %v2741
    %v2780 = vsub.f32 %v2716, %v2744
    %v2781 = vsub.f32 %v2717, %v2747
    %v2782 = vsub.f32 %v2718, %v2750
    %v2783 = vsub.f32 %v2719, %v2753
    %v2784 = vsub.f32 %v2720, %v2756
    %v2785 = vsub.f32 %v2721, %v2759
    %v2786 = vsub.f32 %v2722, %v2762
    %v2787 = vsub.f32 %v2723, %v2765
    %v2788 = vsub.f32 %v2724, %v2768
    %v2789 = vsub.f32 %v2725, %v2771
    %v2790 = vsub.f32 %v2726, %v2774
    %v2791 = vmul.f32 %v2775, 1.442695
    %v2792 = vpow.pop %v2791
    %v2793 = vmul.f32 %v2776, 1.442695
    %v2794 = vpow.pop %v2793
    %v2795 = vmul.f32 %v2777, 1.442695
    %v2796 = vpow.pop %v2795
    %v2797 = vmul.f32 %v2778, 1.442695
    %v2798 = vpow.pop %v2797
    %v2799 = vmul.f32 %v2779, 1.442695
    %v2800 = vpow.pop %v2799
    %v2801 = vmul.f32 %v2780, 1.442695
    %v2802 = vpow.pop %v2801
    %v2803 = vmul.f32 %v2781, 1.442695
    %v2804 = vpow.pop %v2803
    %v2805 = vmul.f32 %v2782, 1.442695
    %v2806 = vpow.pop %v2805
    %v2807 = vmul.f32 %v2783, 1.442695
    %v2808 = vpow.pop %v2807
    %v2809 = vmul.f32 %v2784, 1.442695
    %v2810 = vpow.pop %v2809
    %v2811 = vmul.f32 %v2785, 1.442695
    %v2812 = vpow.pop %v2811
    %v2813 = vmul.f32 %v2786, 1.442695
    %v2814 = vpow.pop %v2813
    %v2815 = vmul.f32 %v2787, 1.442695
    %v2816 = vpow.pop %v2815
    %v2817 = vmul.f32 %v2788, 1.442695
    %v2818 = vpow.pop %v2817
    %v2819 = vmul.f32 %v2789, 1.442695
    %v2820 = vpow.pop %v2819
    %v2821 = vmul.f32 %v2790, 1.442695
    %v2822 = vpow.pop %v2821
    %v2823 = vsel %vm1101, %v2792, 0.0
    %2824 = vadd.xlane.f32.xlu0 %v2823
    %v2825 = vpop.xlane.xlu0 %2824
    %v2826 = vsel %vm1101, %v2794, 0.0
    %2827 = vadd.xlane.f32.xlu0 %v2826
    %v2828 = vpop.xlane.xlu0 %2827
    %v2829 = vsel %vm1101, %v2796, 0.0
    %2830 = vadd.xlane.f32.xlu0 %v2829
    %v2831 = vpop.xlane.xlu0 %2830
    %v2832 = vsel %vm1101, %v2798, 0.0
    %2833 = vadd.xlane.f32.xlu0 %v2832
    %v2834 = vpop.xlane.xlu0 %2833
    %v2835 = vsel %vm1101, %v2800, 0.0
    %2836 = vadd.xlane.f32.xlu0 %v2835
    %v2837 = vpop.xlane.xlu0 %2836
    %v2838 = vsel %vm1101, %v2802, 0.0
    %2839 = vadd.xlane.f32.xlu0 %v2838
    %v2840 = vpop.xlane.xlu0 %2839
    %v2841 = vsel %vm1101, %v2804, 0.0
    %2842 = vadd.xlane.f32.xlu0 %v2841
    %v2843 = vpop.xlane.xlu0 %2842
    %v2844 = vsel %vm1101, %v2806, 0.0
    %2845 = vadd.xlane.f32.xlu0 %v2844
    %v2846 = vpop.xlane.xlu0 %2845
    %v2847 = vsel %vm1101, %v2808, 0.0
    %2848 = vadd.xlane.f32.xlu0 %v2847
    %v2849 = vpop.xlane.xlu0 %2848
    %v2850 = vsel %vm1101, %v2810, 0.0
    %2851 = vadd.xlane.f32.xlu0 %v2850
    %v2852 = vpop.xlane.xlu0 %2851
    %v2853 = vsel %vm1101, %v2812, 0.0
    %2854 = vadd.xlane.f32.xlu0 %v2853
    %v2855 = vpop.xlane.xlu0 %2854
    %v2856 = vsel %vm1101, %v2814, 0.0
    %2857 = vadd.xlane.f32.xlu0 %v2856
    %v2858 = vpop.xlane.xlu0 %2857
    %v2859 = vsel %vm1101, %v2816, 0.0
    %2860 = vadd.xlane.f32.xlu0 %v2859
    %v2861 = vpop.xlane.xlu0 %2860
    %v2862 = vsel %vm1101, %v2818, 0.0
    %2863 = vadd.xlane.f32.xlu0 %v2862
    %v2864 = vpop.xlane.xlu0 %2863
    %v2865 = vsel %vm1101, %v2820, 0.0
    %2866 = vadd.xlane.f32.xlu0 %v2865
    %v2867 = vpop.xlane.xlu0 %2866
    %v2868 = vsel %vm1101, %v2822, 0.0
    %2869 = vadd.xlane.f32.xlu0 %v2868
    %v2870 = vpop.xlane.xlu0 %2869
    %v2871 = vrcp.pop %v2825
    %v2872 = vrcp.pop %v2828
    %v2873 = vrcp.pop %v2831
    %v2874 = vrcp.pop %v2834
    %v2875 = vrcp.pop %v2837
    %v2876 = vrcp.pop %v2840
    %v2877 = vrcp.pop %v2843
    %v2878 = vrcp.pop %v2846
    %v2879 = vrcp.pop %v2849
    %v2880 = vrcp.pop %v2852
    %v2881 = vrcp.pop %v2855
    %v2882 = vrcp.pop %v2858
    %v2883 = vrcp.pop %v2861
    %v2884 = vrcp.pop %v2864
    %v2885 = vrcp.pop %v2867
    %v2886 = vrcp.pop %v2870
    %v2887 = vmul.f32 %v2792, %v2871
    %v2888 = vmul.f32 %v2794, %v2872
    %v2889 = vmul.f32 %v2796, %v2873
    %v2890 = vmul.f32 %v2798, %v2874
    %v2891 = vmul.f32 %v2800, %v2875
    %v2892 = vmul.f32 %v2802, %v2876
    %v2893 = vmul.f32 %v2804, %v2877
    %v2894 = vmul.f32 %v2806, %v2878
    %v2895 = vmul.f32 %v2808, %v2879
    %v2896 = vmul.f32 %v2810, %v2880
    %v2897 = vmul.f32 %v2812, %v2881
    %v2898 = vmul.f32 %v2814, %v2882
    %v2899 = vmul.f32 %v2816, %v2883
    %v2900 = vmul.f32 %v2818, %v2884
    %v2901 = vmul.f32 %v2820, %v2885
    %v2902 = vmul.f32 %v2822, %v2886
    %2903 = vrot.lane.b32.xlu0 %v238, 56
    %v2904 = vpop.permute.xlu0 %2903
    %2905 = vrot.lane.b32.xlu0 %v243, 56
    %v2906 = vpop.permute.xlu0 %2905
    %v2910 = vsel %vm1101, %v2887, 0
    %v2913 = vsel %vm1101, %v2888, 0
    %2915 = vmatprep.subr.mxu0 0.0
    %2916 = vmatpush1.msra.mxu0 %v2904
    %2917 = vmatprep.subr.mxu0 0.0
    %2918 = vmatpush1.msra.mxu0 %v2906
    %2919 = vmatprep.subr.mxu0 0.0
    %2920 = vmatpush1.msra.mxu0 0.0
    %2921 = vmatprep.subr.mxu0 0.0
    %2922 = vmatpush1.msra.mxu0 0.0
    %2923 = vmatprep.subr.mxu0 0.0
    %2924 = vmatpush1.msra.mxu0 0.0
    %2925 = vmatprep.subr.mxu0 0.0
    %2926 = vmatpush1.msra.mxu0 0.0
    %2927 = vmatprep.subr.mxu0 0.0
    %2928 = vmatpush1.msra.mxu0 0.0
    %2929 = vmatprep.subr.mxu0 0.0
    %2930 = vmatpush1.msra.mxu0 0.0
    %2931 = vmatprep.subr.mxu0 0.0
    %2932 = vmatpush1.msra.mxu0 0.0
    %2933 = vmatprep.subr.mxu0 0.0
    %2934 = vmatpush1.msra.mxu0 0.0
    %2935 = vmatprep.subr.mxu0 0.0
    %2936 = vmatpush1.msra.mxu0 0.0
    %2937 = vmatprep.subr.mxu0 0.0
    %2938 = vmatpush1.msra.mxu0 0.0
    %2939 = vmatprep.subr.mxu0 0.0
    %2940 = vmatpush1.msra.mxu0 0.0
    %2941 = vmatprep.subr.mxu0 0.0
    %2942 = vmatpush1.msra.mxu0 0.0
    %2943 = vmatprep.subr.mxu0 0.0
    %2944 = vmatpush1.msra.mxu0 0.0
    %2945 = vmatprep.subr.mxu0 0.0
    %2946 = vmatpush1.msra.mxu0 0.0
    %2947 = vmatprep.subr.mxu0 0.0
    %2948 = vmatpush1.msra.mxu0 0.0
    %2949 = vmatprep.subr.mxu0 0.0
    %2950 = vmatpush1.msra.mxu0 0.0
    %2951 = vmatprep.subr.mxu0 0.0
    %2952 = vmatpush1.msra.mxu0 0.0
    %2953 = vmatprep.subr.mxu0 0.0
    %2954 = vmatpush1.msra.mxu0 0.0
    %2955 = vmatprep.subr.mxu0 0.0
    %2956 = vmatpush1.msra.mxu0 0.0
    %2957 = vmatprep.subr.mxu0 0.0
    %2958 = vmatpush1.msra.mxu0 0.0
    %2959 = vmatprep.subr.mxu0 0.0
    %2960 = vmatpush1.msra.mxu0 0.0
    %2961 = vmatprep.subr.mxu0 0.0
    %2962 = vmatpush1.msra.mxu0 0.0
    %2963 = vmatprep.subr.mxu0 0.0
    %2964 = vmatpush1.msra.mxu0 0.0
    %2965 = vmatprep.subr.mxu0 0.0
    %2966 = vmatpush1.msra.mxu0 0.0
    %2967 = vmatprep.subr.mxu0 0.0
    %2968 = vmatpush1.msra.mxu0 0.0
    %2969 = vmatprep.subr.mxu0 0.0
    %2970 = vmatpush1.msra.mxu0 0.0
    %2971 = vmatprep.subr.mxu0 0.0
    %2972 = vmatpush1.msra.mxu0 0.0
    %2973 = vmatprep.subr.mxu0 0.0
    %2974 = vmatpush1.msra.mxu0 0.0
    %2975 = vmatprep.subr.mxu0 0.0
    %2976 = vmatpush1.msra.mxu0 0.0
    %2977 = vmatprep.subr.mxu0 0.0
    %2978 = vmatpush1.msra.mxu0 0.0
    %2979 = vmatprep.mubr.f32.mxu0 0.0
    %2980 = vmatmul.mubr.f32.gmra.mrb[0].mxu0 %v2910
    %v2981 = vpop.f32.mrb[0].mxu0
    %v2982 = vadd.f32 0.0, %v2981
    %v2983 = vpop.f32.mrb[0].mxu0
    %2984 = vmatprep.mubr.f32.mxu0 0.0
    %2985 = vmatmul.mubr.f32.gmra.mrb[0].mxu0 %v2913
    %v2986 = vpop.f32.mrb[0].mxu0
    %v2987 = vadd.f32 0.0, %v2986
    %v2988 = vpop.f32.mrb[0].mxu0
    %2989 = vdwg.mxu0
    %2990 = vrot.lane.b32.xlu0 %v248, 56
    %v2991 = vpop.permute.xlu0 %2990
    %2992 = vrot.lane.b32.xlu0 %v253, 56
    %v2993 = vpop.permute.xlu0 %2992
    %v2997 = vsel %vm1101, %v2889, 0
    %v3000 = vsel %vm1101, %v2890, 0
    %3002 = vmatprep.subr.mxu0 0.0
    %3003 = vmatpush1.msra.mxu0 %v2991
    %3004 = vmatprep.subr.mxu0 0.0
    %3005 = vmatpush1.msra.mxu0 %v2993
    %3006 = vmatprep.subr.mxu0 0.0
    %3007 = vmatpush1.msra.mxu0 0.0
    %3008 = vmatprep.subr.mxu0 0.0
    %3009 = vmatpush1.msra.mxu0 0.0
    %3010 = vmatprep.subr.mxu0 0.0
    %3011 = vmatpush1.msra.mxu0 0.0
    %3012 = vmatprep.subr.mxu0 0.0
    %3013 = vmatpush1.msra.mxu0 0.0
    %3014 = vmatprep.subr.mxu0 0.0
    %3015 = vmatpush1.msra.mxu0 0.0
    %3016 = vmatprep.subr.mxu0 0.0
    %3017 = vmatpush1.msra.mxu0 0.0
    %3018 = vmatprep.subr.mxu0 0.0
    %3019 = vmatpush1.msra.mxu0 0.0
    %3020 = vmatprep.subr.mxu0 0.0
    %3021 = vmatpush1.msra.mxu0 0.0
    %3022 = vmatprep.subr.mxu0 0.0
    %3023 = vmatpush1.msra.mxu0 0.0
    %3024 = vmatprep.subr.mxu0 0.0
    %3025 = vmatpush1.msra.mxu0 0.0
    %3026 = vmatprep.subr.mxu0 0.0
    %3027 = vmatpush1.msra.mxu0 0.0
    %3028 = vmatprep.subr.mxu0 0.0
    %3029 = vmatpush1.msra.mxu0 0.0
    %3030 = vmatprep.subr.mxu0 0.0
    %3031 = vmatpush1.msra.mxu0 0.0
    %3032 = vmatprep.subr.mxu0 0.0
    %3033 = vmatpush1.msra.mxu0 0.0
    %3034 = vmatprep.subr.mxu0 0.0
    %3035 = vmatpush1.msra.mxu0 0.0
    %3036 = vmatprep.subr.mxu0 0.0
    %3037 = vmatpush1.msra.mxu0 0.0
    %3038 = vmatprep.subr.mxu0 0.0
    %3039 = vmatpush1.msra.mxu0 0.0
    %3040 = vmatprep.subr.mxu0 0.0
    %3041 = vmatpush1.msra.mxu0 0.0
    %3042 = vmatprep.subr.mxu0 0.0
    %3043 = vmatpush1.msra.mxu0 0.0
    %3044 = vmatprep.subr.mxu0 0.0
    %3045 = vmatpush1.msra.mxu0 0.0
    %3046 = vmatprep.subr.mxu0 0.0
    %3047 = vmatpush1.msra.mxu0 0.0
    %3048 = vmatprep.subr.mxu0 0.0
    %3049 = vmatpush1.msra.mxu0 0.0
    %3050 = vmatprep.subr.mxu0 0.0
    %3051 = vmatpush1.msra.mxu0 0.0
    %3052 = vmatprep.subr.mxu0 0.0
    %3053 = vmatpush1.msra.mxu0 0.0
    %3054 = vmatprep.subr.mxu0 0.0
    %3055 = vmatpush1.msra.mxu0 0.0
    %3056 = vmatprep.subr.mxu0 0.0
    %3057 = vmatpush1.msra.mxu0 0.0
    %3058 = vmatprep.subr.mxu0 0.0
    %3059 = vmatpush1.msra.mxu0 0.0
    %3060 = vmatprep.subr.mxu0 0.0
    %3061 = vmatpush1.msra.mxu0 0.0
    %3062 = vmatprep.subr.mxu0 0.0
    %3063 = vmatpush1.msra.mxu0 0.0
    %3064 = vmatprep.subr.mxu0 0.0
    %3065 = vmatpush1.msra.mxu0 0.0
    %3066 = vmatprep.mubr.f32.mxu0 0.0
    %3067 = vmatmul.mubr.f32.gmra.mrb[0].mxu0 %v2997
    %v3068 = vpop.f32.mrb[0].mxu0
    %v3069 = vadd.f32 0.0, %v3068
    %v3070 = vpop.f32.mrb[0].mxu0
    %3071 = vmatprep.mubr.f32.mxu0 0.0
    %3072 = vmatmul.mubr.f32.gmra.mrb[0].mxu0 %v3000
    %v3073 = vpop.f32.mrb[0].mxu0
    %v3074 = vadd.f32 0.0, %v3073
    %v3075 = vpop.f32.mrb[0].mxu0
    %3076 = vdwg.mxu0
    %3077 = vrot.lane.b32.xlu0 %v258, 56
    %v3078 = vpop.permute.xlu0 %3077
    %3079 = vrot.lane.b32.xlu0 %v263, 56
    %v3080 = vpop.permute.xlu0 %3079
    %v3084 = vsel %vm1101, %v2891, 0
    %v3087 = vsel %vm1101, %v2892, 0
    %3089 = vmatprep.subr.mxu0 0.0
    %3090 = vmatpush1.msra.mxu0 %v3078
    %3091 = vmatprep.subr.mxu0 0.0
    %3092 = vmatpush1.msra.mxu0 %v3080
    %3093 = vmatprep.subr.mxu0 0.0
    %3094 = vmatpush1.msra.mxu0 0.0
    %3095 = vmatprep.subr.mxu0 0.0
    %3096 = vmatpush1.msra.mxu0 0.0
    %3097 = vmatprep.subr.mxu0 0.0
    %3098 = vmatpush1.msra.mxu0 0.0
    %3099 = vmatprep.subr.mxu0 0.0
    %3100 = vmatpush1.msra.mxu0 0.0
    %3101 = vmatprep.subr.mxu0 0.0
    %3102 = vmatpush1.msra.mxu0 0.0
    %3103 = vmatprep.subr.mxu0 0.0
    %3104 = vmatpush1.msra.mxu0 0.0
    %3105 = vmatprep.subr.mxu0 0.0
    %3106 = vmatpush1.msra.mxu0 0.0
    %3107 = vmatprep.subr.mxu0 0.0
    %3108 = vmatpush1.msra.mxu0 0.0
    %3109 = vmatprep.subr.mxu0 0.0
    %3110 = vmatpush1.msra.mxu0 0.0
    %3111 = vmatprep.subr.mxu0 0.0
    %3112 = vmatpush1.msra.mxu0 0.0
    %3113 = vmatprep.subr.mxu0 0.0
    %3114 = vmatpush1.msra.mxu0 0.0
    %3115 = vmatprep.subr.mxu0 0.0
    %3116 = vmatpush1.msra.mxu0 0.0
    %3117 = vmatprep.subr.mxu0 0.0
    %3118 = vmatpush1.msra.mxu0 0.0
    %3119 = vmatprep.subr.mxu0 0.0
    %3120 = vmatpush1.msra.mxu0 0.0
    %3121 = vmatprep.subr.mxu0 0.0
    %3122 = vmatpush1.msra.mxu0 0.0
    %3123 = vmatprep.subr.mxu0 0.0
    %3124 = vmatpush1.msra.mxu0 0.0
    %3125 = vmatprep.subr.mxu0 0.0
    %3126 = vmatpush1.msra.mxu0 0.0
    %3127 = vmatprep.subr.mxu0 0.0
    %3128 = vmatpush1.msra.mxu0 0.0
    %3129 = vmatprep.subr.mxu0 0.0
    %3130 = vmatpush1.msra.mxu0 0.0
    %3131 = vmatprep.subr.mxu0 0.0
    %3132 = vmatpush1.msra.mxu0 0.0
    %3133 = vmatprep.subr.mxu0 0.0
    %3134 = vmatpush1.msra.mxu0 0.0
    %3135 = vmatprep.subr.mxu0 0.0
    %3136 = vmatpush1.msra.mxu0 0.0
    %3137 = vmatprep.subr.mxu0 0.0
    %3138 = vmatpush1.msra.mxu0 0.0
    %3139 = vmatprep.subr.mxu0 0.0
    %3140 = vmatpush1.msra.mxu0 0.0
    %3141 = vmatprep.subr.mxu0 0.0
    %3142 = vmatpush1.msra.mxu0 0.0
    %3143 = vmatprep.subr.mxu0 0.0
    %3144 = vmatpush1.msra.mxu0 0.0
    %3145 = vmatprep.subr.mxu0 0.0
    %3146 = vmatpush1.msra.mxu0 0.0
    %3147 = vmatprep.subr.mxu0 0.0
    %3148 = vmatpush1.msra.mxu0 0.0
    %3149 = vmatprep.subr.mxu0 0.0
    %3150 = vmatpush1.msra.mxu0 0.0
    %3151 = vmatprep.subr.mxu0 0.0
    %3152 = vmatpush1.msra.mxu0 0.0
    %3153 = vmatprep.mubr.f32.mxu0 0.0
    %3154 = vmatmul.mubr.f32.gmra.mrb[0].mxu0 %v3084
    %v3155 = vpop.f32.mrb[0].mxu0
    %v3156 = vadd.f32 0.0, %v3155
    %v3157 = vpop.f32.mrb[0].mxu0
    %3158 = vmatprep.mubr.f32.mxu0 0.0
    %3159 = vmatmul.mubr.f32.gmra.mrb[0].mxu0 %v3087
    %v3160 = vpop.f32.mrb[0].mxu0
    %v3161 = vadd.f32 0.0, %v3160
    %v3162 = vpop.f32.mrb[0].mxu0
    %3163 = vdwg.mxu0
    %3164 = vrot.lane.b32.xlu0 %v268, 56
    %v3165 = vpop.permute.xlu0 %3164
    %3166 = vrot.lane.b32.xlu0 %v273, 56
    %v3167 = vpop.permute.xlu0 %3166
    %v3171 = vsel %vm1101, %v2893, 0
    %v3174 = vsel %vm1101, %v2894, 0
    %3176 = vmatprep.subr.mxu0 0.0
    %3177 = vmatpush1.msra.mxu0 %v3165
    %3178 = vmatprep.subr.mxu0 0.0
    %3179 = vmatpush1.msra.mxu0 %v3167
    %3180 = vmatprep.subr.mxu0 0.0
    %3181 = vmatpush1.msra.mxu0 0.0
    %3182 = vmatprep.subr.mxu0 0.0
    %3183 = vmatpush1.msra.mxu0 0.0
    %3184 = vmatprep.subr.mxu0 0.0
    %3185 = vmatpush1.msra.mxu0 0.0
    %3186 = vmatprep.subr.mxu0 0.0
    %3187 = vmatpush1.msra.mxu0 0.0
    %3188 = vmatprep.subr.mxu0 0.0
    %3189 = vmatpush1.msra.mxu0 0.0
    %3190 = vmatprep.subr.mxu0 0.0
    %3191 = vmatpush1.msra.mxu0 0.0
    %3192 = vmatprep.subr.mxu0 0.0
    %3193 = vmatpush1.msra.mxu0 0.0
    %3194 = vmatprep.subr.mxu0 0.0
    %3195 = vmatpush1.msra.mxu0 0.0
    %3196 = vmatprep.subr.mxu0 0.0
    %3197 = vmatpush1.msra.mxu0 0.0
    %3198 = vmatprep.subr.mxu0 0.0
    %3199 = vmatpush1.msra.mxu0 0.0
    %3200 = vmatprep.subr.mxu0 0.0
    %3201 = vmatpush1.msra.mxu0 0.0
    %3202 = vmatprep.subr.mxu0 0.0
    %3203 = vmatpush1.msra.mxu0 0.0
    %3204 = vmatprep.subr.mxu0 0.0
    %3205 = vmatpush1.msra.mxu0 0.0
    %3206 = vmatprep.subr.mxu0 0.0
    %3207 = vmatpush1.msra.mxu0 0.0
    %3208 = vmatprep.subr.mxu0 0.0
    %3209 = vmatpush1.msra.mxu0 0.0
    %3210 = vmatprep.subr.mxu0 0.0
    %3211 = vmatpush1.msra.mxu0 0.0
    %3212 = vmatprep.subr.mxu0 0.0
    %3213 = vmatpush1.msra.mxu0 0.0
    %3214 = vmatprep.subr.mxu0 0.0
    %3215 = vmatpush1.msra.mxu0 0.0
    %3216 = vmatprep.subr.mxu0 0.0
    %3217 = vmatpush1.msra.mxu0 0.0
    %3218 = vmatprep.subr.mxu0 0.0
    %3219 = vmatpush1.msra.mxu0 0.0
    %3220 = vmatprep.subr.mxu0 0.0
    %3221 = vmatpush1.msra.mxu0 0.0
    %3222 = vmatprep.subr.mxu0 0.0
    %3223 = vmatpush1.msra.mxu0 0.0
    %3224 = vmatprep.subr.mxu0 0.0
    %3225 = vmatpush1.msra.mxu0 0.0
    %3226 = vmatprep.subr.mxu0 0.0
    %3227 = vmatpush1.msra.mxu0 0.0
    %3228 = vmatprep.subr.mxu0 0.0
    %3229 = vmatpush1.msra.mxu0 0.0
    %3230 = vmatprep.subr.mxu0 0.0
    %3231 = vmatpush1.msra.mxu0 0.0
    %3232 = vmatprep.subr.mxu0 0.0
    %3233 = vmatpush1.msra.mxu0 0.0
    %3234 = vmatprep.subr.mxu0 0.0
    %3235 = vmatpush1.msra.mxu0 0.0
    %3236 = vmatprep.subr.mxu0 0.0
    %3237 = vmatpush1.msra.mxu0 0.0
    %3238 = vmatprep.subr.mxu0 0.0
    %3239 = vmatpush1.msra.mxu0 0.0
    %3240 = vmatprep.mubr.f32.mxu0 0.0
    %3241 = vmatmul.mubr.f32.gmra.mrb[0].mxu0 %v3171
    %v3242 = vpop.f32.mrb[0].mxu0
    %v3243 = vadd.f32 0.0, %v3242
    %v3244 = vpop.f32.mrb[0].mxu0
    %3245 = vmatprep.mubr.f32.mxu0 0.0
    %3246 = vmatmul.mubr.f32.gmra.mrb[0].mxu0 %v3174
    %v3247 = vpop.f32.mrb[0].mxu0
    %v3248 = vadd.f32 0.0, %v3247
    %v3249 = vpop.f32.mrb[0].mxu0
    %3250 = vdwg.mxu0
    %3251 = vrot.lane.b32.xlu0 %v278, 56
    %v3252 = vpop.permute.xlu0 %3251
    %3253 = vrot.lane.b32.xlu0 %v283, 56
    %v3254 = vpop.permute.xlu0 %3253
    %v3258 = vsel %vm1101, %v2895, 0
    %v3261 = vsel %vm1101, %v2896, 0
    %3263 = vmatprep.subr.mxu0 0.0
    %3264 = vmatpush1.msra.mxu0 %v3252
    %3265 = vmatprep.subr.mxu0 0.0
    %3266 = vmatpush1.msra.mxu0 %v3254
    %3267 = vmatprep.subr.mxu0 0.0
    %3268 = vmatpush1.msra.mxu0 0.0
    %3269 = vmatprep.subr.mxu0 0.0
    %3270 = vmatpush1.msra.mxu0 0.0
    %3271 = vmatprep.subr.mxu0 0.0
    %3272 = vmatpush1.msra.mxu0 0.0
    %3273 = vmatprep.subr.mxu0 0.0
    %3274 = vmatpush1.msra.mxu0 0.0
    %3275 = vmatprep.subr.mxu0 0.0
    %3276 = vmatpush1.msra.mxu0 0.0
    %3277 = vmatprep.subr.mxu0 0.0
    %3278 = vmatpush1.msra.mxu0 0.0
    %3279 = vmatprep.subr.mxu0 0.0
    %3280 = vmatpush1.msra.mxu0 0.0
    %3281 = vmatprep.subr.mxu0 0.0
    %3282 = vmatpush1.msra.mxu0 0.0
    %3283 = vmatprep.subr.mxu0 0.0
    %3284 = vmatpush1.msra.mxu0 0.0
    %3285 = vmatprep.subr.mxu0 0.0
    %3286 = vmatpush1.msra.mxu0 0.0
    %3287 = vmatprep.subr.mxu0 0.0
    %3288 = vmatpush1.msra.mxu0 0.0
    %3289 = vmatprep.subr.mxu0 0.0
    %3290 = vmatpush1.msra.mxu0 0.0
    %3291 = vmatprep.subr.mxu0 0.0
    %3292 = vmatpush1.msra.mxu0 0.0
    %3293 = vmatprep.subr.mxu0 0.0
    %3294 = vmatpush1.msra.mxu0 0.0
    %3295 = vmatprep.subr.mxu0 0.0
    %3296 = vmatpush1.msra.mxu0 0.0
    %3297 = vmatprep.subr.mxu0 0.0
    %3298 = vmatpush1.msra.mxu0 0.0
    %3299 = vmatprep.subr.mxu0 0.0
    %3300 = vmatpush1.msra.mxu0 0.0
    %3301 = vmatprep.subr.mxu0 0.0
    %3302 = vmatpush1.msra.mxu0 0.0
    %3303 = vmatprep.subr.mxu0 0.0
    %3304 = vmatpush1.msra.mxu0 0.0
    %3305 = vmatprep.subr.mxu0 0.0
    %3306 = vmatpush1.msra.mxu0 0.0
    %3307 = vmatprep.subr.mxu0 0.0
    %3308 = vmatpush1.msra.mxu0 0.0
    %3309 = vmatprep.subr.mxu0 0.0
    %3310 = vmatpush1.msra.mxu0 0.0
    %3311 = vmatprep.subr.mxu0 0.0
    %3312 = vmatpush1.msra.mxu0 0.0
    %3313 = vmatprep.subr.mxu0 0.0
    %3314 = vmatpush1.msra.mxu0 0.0
    %3315 = vmatprep.subr.mxu0 0.0
    %3316 = vmatpush1.msra.mxu0 0.0
    %3317 = vmatprep.subr.mxu0 0.0
    %3318 = vmatpush1.msra.mxu0 0.0
    %3319 = vmatprep.subr.mxu0 0.0
    %3320 = vmatpush1.msra.mxu0 0.0
    %3321 = vmatprep.subr.mxu0 0.0
    %3322 = vmatpush1.msra.mxu0 0.0
    %3323 = vmatprep.subr.mxu0 0.0
    %3324 = vmatpush1.msra.mxu0 0.0
    %3325 = vmatprep.subr.mxu0 0.0
    %3326 = vmatpush1.msra.mxu0 0.0
    %3327 = vmatprep.mubr.f32.mxu0 0.0
    %3328 = vmatmul.mubr.f32.gmra.mrb[0].mxu0 %v3258
    %v3329 = vpop.f32.mrb[0].mxu0
    %v3330 = vadd.f32 0.0, %v3329
    %v3331 = vpop.f32.mrb[0].mxu0
    %3332 = vmatprep.mubr.f32.mxu0 0.0
    %3333 = vmatmul.mubr.f32.gmra.mrb[0].mxu0 %v3261
    %v3334 = vpop.f32.mrb[0].mxu0
    %v3335 = vadd.f32 0.0, %v3334
    %v3336 = vpop.f32.mrb[0].mxu0
    %3337 = vdwg.mxu0
    %3338 = vrot.lane.b32.xlu0 %v288, 56
    %v3339 = vpop.permute.xlu0 %3338
    %3340 = vrot.lane.b32.xlu0 %v293, 56
    %v3341 = vpop.permute.xlu0 %3340
    %v3345 = vsel %vm1101, %v2897, 0
    %v3348 = vsel %vm1101, %v2898, 0
    %3350 = vmatprep.subr.mxu0 0.0
    %3351 = vmatpush1.msra.mxu0 %v3339
    %3352 = vmatprep.subr.mxu0 0.0
    %3353 = vmatpush1.msra.mxu0 %v3341
    %3354 = vmatprep.subr.mxu0 0.0
    %3355 = vmatpush1.msra.mxu0 0.0
    %3356 = vmatprep.subr.mxu0 0.0
    %3357 = vmatpush1.msra.mxu0 0.0
    %3358 = vmatprep.subr.mxu0 0.0
    %3359 = vmatpush1.msra.mxu0 0.0
    %3360 = vmatprep.subr.mxu0 0.0
    %3361 = vmatpush1.msra.mxu0 0.0
    %3362 = vmatprep.subr.mxu0 0.0
    %3363 = vmatpush1.msra.mxu0 0.0
    %3364 = vmatprep.subr.mxu0 0.0
    %3365 = vmatpush1.msra.mxu0 0.0
    %3366 = vmatprep.subr.mxu0 0.0
    %3367 = vmatpush1.msra.mxu0 0.0
    %3368 = vmatprep.subr.mxu0 0.0
    %3369 = vmatpush1.msra.mxu0 0.0
    %3370 = vmatprep.subr.mxu0 0.0
    %3371 = vmatpush1.msra.mxu0 0.0
    %3372 = vmatprep.subr.mxu0 0.0
    %3373 = vmatpush1.msra.mxu0 0.0
    %3374 = vmatprep.subr.mxu0 0.0
    %3375 = vmatpush1.msra.mxu0 0.0
    %3376 = vmatprep.subr.mxu0 0.0
    %3377 = vmatpush1.msra.mxu0 0.0
    %3378 = vmatprep.subr.mxu0 0.0
    %3379 = vmatpush1.msra.mxu0 0.0
    %3380 = vmatprep.subr.mxu0 0.0
    %3381 = vmatpush1.msra.mxu0 0.0
    %3382 = vmatprep.subr.mxu0 0.0
    %3383 = vmatpush1.msra.mxu0 0.0
    %3384 = vmatprep.subr.mxu0 0.0
    %3385 = vmatpush1.msra.mxu0 0.0
    %3386 = vmatprep.subr.mxu0 0.0
    %3387 = vmatpush1.msra.mxu0 0.0
    %3388 = vmatprep.subr.mxu0 0.0
    %3389 = vmatpush1.msra.mxu0 0.0
    %3390 = vmatprep.subr.mxu0 0.0
    %3391 = vmatpush1.msra.mxu0 0.0
    %3392 = vmatprep.subr.mxu0 0.0
    %3393 = vmatpush1.msra.mxu0 0.0
    %3394 = vmatprep.subr.mxu0 0.0
    %3395 = vmatpush1.msra.mxu0 0.0
    %3396 = vmatprep.subr.mxu0 0.0
    %3397 = vmatpush1.msra.mxu0 0.0
    %3398 = vmatprep.subr.mxu0 0.0
    %3399 = vmatpush1.msra.mxu0 0.0
    %3400 = vmatprep.subr.mxu0 0.0
    %3401 = vmatpush1.msra.mxu0 0.0
    %3402 = vmatprep.subr.mxu0 0.0
    %3403 = vmatpush1.msra.mxu0 0.0
    %3404 = vmatprep.subr.mxu0 0.0
    %3405 = vmatpush1.msra.mxu0 0.0
    %3406 = vmatprep.subr.mxu0 0.0
    %3407 = vmatpush1.msra.mxu0 0.0
    %3408 = vmatprep.subr.mxu0 0.0
    %3409 = vmatpush1.msra.mxu0 0.0
    %3410 = vmatprep.subr.mxu0 0.0
    %3411 = vmatpush1.msra.mxu0 0.0
    %3412 = vmatprep.subr.mxu0 0.0
    %3413 = vmatpush1.msra.mxu0 0.0
    %3414 = vmatprep.mubr.f32.mxu0 0.0
    %3415 = vmatmul.mubr.f32.gmra.mrb[0].mxu0 %v3345
    %v3416 = vpop.f32.mrb[0].mxu0
    %v3417 = vadd.f32 0.0, %v3416
    %v3418 = vpop.f32.mrb[0].mxu0
    %3419 = vmatprep.mubr.f32.mxu0 0.0
    %3420 = vmatmul.mubr.f32.gmra.mrb[0].mxu0 %v3348
    %v3421 = vpop.f32.mrb[0].mxu0
    %v3422 = vadd.f32 0.0, %v3421
    %v3423 = vpop.f32.mrb[0].mxu0
    %3424 = vdwg.mxu0
    %3425 = vrot.lane.b32.xlu0 %v298, 56
    %v3426 = vpop.permute.xlu0 %3425
    %3427 = vrot.lane.b32.xlu0 %v303, 56
    %v3428 = vpop.permute.xlu0 %3427
    %v3432 = vsel %vm1101, %v2899, 0
    %v3435 = vsel %vm1101, %v2900, 0
    %3437 = vmatprep.subr.mxu0 0.0
    %3438 = vmatpush1.msra.mxu0 %v3426
    %3439 = vmatprep.subr.mxu0 0.0
    %3440 = vmatpush1.msra.mxu0 %v3428
    %3441 = vmatprep.subr.mxu0 0.0
    %3442 = vmatpush1.msra.mxu0 0.0
    %3443 = vmatprep.subr.mxu0 0.0
    %3444 = vmatpush1.msra.mxu0 0.0
    %3445 = vmatprep.subr.mxu0 0.0
    %3446 = vmatpush1.msra.mxu0 0.0
    %3447 = vmatprep.subr.mxu0 0.0
    %3448 = vmatpush1.msra.mxu0 0.0
    %3449 = vmatprep.subr.mxu0 0.0
    %3450 = vmatpush1.msra.mxu0 0.0
    %3451 = vmatprep.subr.mxu0 0.0
    %3452 = vmatpush1.msra.mxu0 0.0
    %3453 = vmatprep.subr.mxu0 0.0
    %3454 = vmatpush1.msra.mxu0 0.0
    %3455 = vmatprep.subr.mxu0 0.0
    %3456 = vmatpush1.msra.mxu0 0.0
    %3457 = vmatprep.subr.mxu0 0.0
    %3458 = vmatpush1.msra.mxu0 0.0
    %3459 = vmatprep.subr.mxu0 0.0
    %3460 = vmatpush1.msra.mxu0 0.0
    %3461 = vmatprep.subr.mxu0 0.0
    %3462 = vmatpush1.msra.mxu0 0.0
    %3463 = vmatprep.subr.mxu0 0.0
    %3464 = vmatpush1.msra.mxu0 0.0
    %3465 = vmatprep.subr.mxu0 0.0
    %3466 = vmatpush1.msra.mxu0 0.0
    %3467 = vmatprep.subr.mxu0 0.0
    %3468 = vmatpush1.msra.mxu0 0.0
    %3469 = vmatprep.subr.mxu0 0.0
    %3470 = vmatpush1.msra.mxu0 0.0
    %3471 = vmatprep.subr.mxu0 0.0
    %3472 = vmatpush1.msra.mxu0 0.0
    %3473 = vmatprep.subr.mxu0 0.0
    %3474 = vmatpush1.msra.mxu0 0.0
    %3475 = vmatprep.subr.mxu0 0.0
    %3476 = vmatpush1.msra.mxu0 0.0
    %3477 = vmatprep.subr.mxu0 0.0
    %3478 = vmatpush1.msra.mxu0 0.0
    %3479 = vmatprep.subr.mxu0 0.0
    %3480 = vmatpush1.msra.mxu0 0.0
    %3481 = vmatprep.subr.mxu0 0.0
    %3482 = vmatpush1.msra.mxu0 0.0
    %3483 = vmatprep.subr.mxu0 0.0
    %3484 = vmatpush1.msra.mxu0 0.0
    %3485 = vmatprep.subr.mxu0 0.0
    %3486 = vmatpush1.msra.mxu0 0.0
    %3487 = vmatprep.subr.mxu0 0.0
    %3488 = vmatpush1.msra.mxu0 0.0
    %3489 = vmatprep.subr.mxu0 0.0
    %3490 = vmatpush1.msra.mxu0 0.0
    %3491 = vmatprep.subr.mxu0 0.0
    %3492 = vmatpush1.msra.mxu0 0.0
    %3493 = vmatprep.subr.mxu0 0.0
    %3494 = vmatpush1.msra.mxu0 0.0
    %3495 = vmatprep.subr.mxu0 0.0
    %3496 = vmatpush1.msra.mxu0 0.0
    %3497 = vmatprep.subr.mxu0 0.0
    %3498 = vmatpush1.msra.mxu0 0.0
    %3499 = vmatprep.subr.mxu0 0.0
    %3500 = vmatpush1.msra.mxu0 0.0
    %3501 = vmatprep.mubr.f32.mxu0 0.0
    %3502 = vmatmul.mubr.f32.gmra.mrb[0].mxu0 %v3432
    %v3503 = vpop.f32.mrb[0].mxu0
    %v3504 = vadd.f32 0.0, %v3503
    %v3505 = vpop.f32.mrb[0].mxu0
    %3506 = vmatprep.mubr.f32.mxu0 0.0
    %3507 = vmatmul.mubr.f32.gmra.mrb[0].mxu0 %v3435
    %v3508 = vpop.f32.mrb[0].mxu0
    %v3509 = vadd.f32 0.0, %v3508
    %v3510 = vpop.f32.mrb[0].mxu0
    %3511 = vdwg.mxu0
    %3512 = vrot.lane.b32.xlu0 %v308, 56
    %v3513 = vpop.permute.xlu0 %3512
    %3514 = vrot.lane.b32.xlu0 %v313, 56
    %v3515 = vpop.permute.xlu0 %3514
    %v3519 = vsel %vm1101, %v2901, 0
    %v3522 = vsel %vm1101, %v2902, 0
    %3524 = vmatprep.subr.mxu0 0.0
    %3525 = vmatpush1.msra.mxu0 %v3513
    %3526 = vmatprep.subr.mxu0 0.0
    %3527 = vmatpush1.msra.mxu0 %v3515
    %3528 = vmatprep.subr.mxu0 0.0
    %3529 = vmatpush1.msra.mxu0 0.0
    %3530 = vmatprep.subr.mxu0 0.0
    %3531 = vmatpush1.msra.mxu0 0.0
    %3532 = vmatprep.subr.mxu0 0.0
    %3533 = vmatpush1.msra.mxu0 0.0
    %3534 = vmatprep.subr.mxu0 0.0
    %3535 = vmatpush1.msra.mxu0 0.0
    %3536 = vmatprep.subr.mxu0 0.0
    %3537 = vmatpush1.msra.mxu0 0.0
    %3538 = vmatprep.subr.mxu0 0.0
    %3539 = vmatpush1.msra.mxu0 0.0
    %3540 = vmatprep.subr.mxu0 0.0
    %3541 = vmatpush1.msra.mxu0 0.0
    %3542 = vmatprep.subr.mxu0 0.0
    %3543 = vmatpush1.msra.mxu0 0.0
    %3544 = vmatprep.subr.mxu0 0.0
    %3545 = vmatpush1.msra.mxu0 0.0
    %3546 = vmatprep.subr.mxu0 0.0
    %3547 = vmatpush1.msra.mxu0 0.0
    %3548 = vmatprep.subr.mxu0 0.0
    %3549 = vmatpush1.msra.mxu0 0.0
    %3550 = vmatprep.subr.mxu0 0.0
    %3551 = vmatpush1.msra.mxu0 0.0
    %3552 = vmatprep.subr.mxu0 0.0
    %3553 = vmatpush1.msra.mxu0 0.0
    %3554 = vmatprep.subr.mxu0 0.0
    %3555 = vmatpush1.msra.mxu0 0.0
    %3556 = vmatprep.subr.mxu0 0.0
    %3557 = vmatpush1.msra.mxu0 0.0
    %3558 = vmatprep.subr.mxu0 0.0
    %3559 = vmatpush1.msra.mxu0 0.0
    %3560 = vmatprep.subr.mxu0 0.0
    %3561 = vmatpush1.msra.mxu0 0.0
    %3562 = vmatprep.subr.mxu0 0.0
    %3563 = vmatpush1.msra.mxu0 0.0
    %3564 = vmatprep.subr.mxu0 0.0
    %3565 = vmatpush1.msra.mxu0 0.0
    %3566 = vmatprep.subr.mxu0 0.0
    %3567 = vmatpush1.msra.mxu0 0.0
    %3568 = vmatprep.subr.mxu0 0.0
    %3569 = vmatpush1.msra.mxu0 0.0
    %3570 = vmatprep.subr.mxu0 0.0
    %3571 = vmatpush1.msra.mxu0 0.0
    %3572 = vmatprep.subr.mxu0 0.0
    %3573 = vmatpush1.msra.mxu0 0.0
    %3574 = vmatprep.subr.mxu0 0.0
    %3575 = vmatpush1.msra.mxu0 0.0
    %3576 = vmatprep.subr.mxu0 0.0
    %3577 = vmatpush1.msra.mxu0 0.0
    %3578 = vmatprep.subr.mxu0 0.0
    %3579 = vmatpush1.msra.mxu0 0.0
    %3580 = vmatprep.subr.mxu0 0.0
    %3581 = vmatpush1.msra.mxu0 0.0
    %3582 = vmatprep.subr.mxu0 0.0
    %3583 = vmatpush1.msra.mxu0 0.0
    %3584 = vmatprep.subr.mxu0 0.0
    %3585 = vmatpush1.msra.mxu0 0.0
    %3586 = vmatprep.subr.mxu0 0.0
    %3587 = vmatpush1.msra.mxu0 0.0
    %3588 = vmatprep.mubr.f32.mxu0 0.0
    %3589 = vmatmul.mubr.f32.gmra.mrb[0].mxu0 %v3519
    %v3590 = vpop.f32.mrb[0].mxu0
    %v3591 = vadd.f32 0.0, %v3590
    %v3592 = vpop.f32.mrb[0].mxu0
    %3593 = vmatprep.mubr.f32.mxu0 0.0
    %3594 = vmatmul.mubr.f32.gmra.mrb[0].mxu0 %v3522
    %v3595 = vpop.f32.mrb[0].mxu0
    %v3596 = vadd.f32 0.0, %v3595
    %v3597 = vpop.f32.mrb[0].mxu0
    %3598 = vdwg.mxu0
    %s3599 = scalar_lea.vmem [#allocation10], 8
    %v3600 = vld [vmem:[%s3599] sm:$0xff]
    %v3602 = vsel %vm354, %v2982, 0
    %v3605 = vsel %vm354, %v2987, 0
    %v3608 = vsel %vm354, %v3069, 0
    %v3611 = vsel %vm354, %v3074, 0
    %v3614 = vsel %vm354, %v3156, 0
    %v3617 = vsel %vm354, %v3161, 0
    %v3620 = vsel %vm354, %v3243, 0
    %v3623 = vsel %vm354, %v3248, 0
    %v3626 = vsel %vm354, %v3330, 0
    %v3629 = vsel %vm354, %v3335, 0
    %v3632 = vsel %vm354, %v3417, 0
    %v3635 = vsel %vm354, %v3422, 0
    %v3638 = vsel %vm354, %v3504, 0
    %v3641 = vsel %vm354, %v3509, 0
    %v3644 = vsel %vm354, %v3591, 0
    %v3647 = vsel %vm354, %v3596, 0
    %3649 = vmatprep.subr.mxu0 0.0
    %3650 = vmatpush1.msra.mxu0 %v3600
    %3651 = vmatprep.subr.mxu0 0.0
    %3652 = vmatpush1.msra.mxu0 0.0
    %3653 = vmatprep.subr.mxu0 0.0
    %3654 = vmatpush1.msra.mxu0 0.0
    %3655 = vmatprep.subr.mxu0 0.0
    %3656 = vmatpush1.msra.mxu0 0.0
    %3657 = vmatprep.subr.mxu0 0.0
    %3658 = vmatpush1.msra.mxu0 0.0
    %3659 = vmatprep.subr.mxu0 0.0
    %3660 = vmatpush1.msra.mxu0 0.0
    %3661 = vmatprep.subr.mxu0 0.0
    %3662 = vmatpush1.msra.mxu0 0.0
    %3663 = vmatprep.subr.mxu0 0.0
    %3664 = vmatpush1.msra.mxu0 0.0
    %3665 = vmatprep.subr.mxu0 0.0
    %3666 = vmatpush1.msra.mxu0 0.0
    %3667 = vmatprep.subr.mxu0 0.0
    %3668 = vmatpush1.msra.mxu0 0.0
    %3669 = vmatprep.subr.mxu0 0.0
    %3670 = vmatpush1.msra.mxu0 0.0
    %3671 = vmatprep.subr.mxu0 0.0
    %3672 = vmatpush1.msra.mxu0 0.0
    %3673 = vmatprep.subr.mxu0 0.0
    %3674 = vmatpush1.msra.mxu0 0.0
    %3675 = vmatprep.subr.mxu0 0.0
    %3676 = vmatpush1.msra.mxu0 0.0
    %3677 = vmatprep.subr.mxu0 0.0
    %3678 = vmatpush1.msra.mxu0 0.0
    %3679 = vmatprep.subr.mxu0 0.0
    %3680 = vmatpush1.msra.mxu0 0.0
    %3681 = vmatprep.subr.mxu0 0.0
    %3682 = vmatpush1.msra.mxu0 0.0
    %3683 = vmatprep.subr.mxu0 0.0
    %3684 = vmatpush1.msra.mxu0 0.0
    %3685 = vmatprep.subr.mxu0 0.0
    %3686 = vmatpush1.msra.mxu0 0.0
    %3687 = vmatprep.subr.mxu0 0.0
    %3688 = vmatpush1.msra.mxu0 0.0
    %3689 = vmatprep.subr.mxu0 0.0
    %3690 = vmatpush1.msra.mxu0 0.0
    %3691 = vmatprep.subr.mxu0 0.0
    %3692 = vmatpush1.msra.mxu0 0.0
    %3693 = vmatprep.subr.mxu0 0.0
    %3694 = vmatpush1.msra.mxu0 0.0
    %3695 = vmatprep.subr.mxu0 0.0
    %3696 = vmatpush1.msra.mxu0 0.0
    %3697 = vmatprep.subr.mxu0 0.0
    %3698 = vmatpush1.msra.mxu0 0.0
    %3699 = vmatprep.subr.mxu0 0.0
    %3700 = vmatpush1.msra.mxu0 0.0
    %3701 = vmatprep.subr.mxu0 0.0
    %3702 = vmatpush1.msra.mxu0 0.0
    %3703 = vmatprep.subr.mxu0 0.0
    %3704 = vmatpush1.msra.mxu0 0.0
    %3705 = vmatprep.subr.mxu0 0.0
    %3706 = vmatpush1.msra.mxu0 0.0
    %3707 = vmatprep.subr.mxu0 0.0
    %3708 = vmatpush1.msra.mxu0 0.0
    %3709 = vmatprep.subr.mxu0 0.0
    %3710 = vmatpush1.msra.mxu0 0.0
    %3711 = vmatprep.subr.mxu0 0.0
    %3712 = vmatpush1.msra.mxu0 0.0
    %3713 = vmatprep.mubr.f32.mxu0 0.0
    %3714 = vmatmul.mubr.f32.gmra.mrb[0].mxu0 %v3602
    %v3715 = vpop.f32.mrb[0].mxu0
    %v3716 = vadd.f32 0.0, %v3715
    %v3717 = vpop.f32.mrb[0].mxu0
    %3718 = vmatprep.mubr.f32.mxu0 0.0
    %3719 = vmatmul.mubr.f32.gmra.mrb[0].mxu0 %v3605
    %v3720 = vpop.f32.mrb[0].mxu0
    %v3721 = vadd.f32 0.0, %v3720
    %v3722 = vpop.f32.mrb[0].mxu0
    %3723 = vmatprep.mubr.f32.mxu0 0.0
    %3724 = vmatmul.mubr.f32.gmra.mrb[0].mxu0 %v3608
    %v3725 = vpop.f32.mrb[0].mxu0
    %v3726 = vadd.f32 0.0, %v3725
    %v3727 = vpop.f32.mrb[0].mxu0
    %3728 = vmatprep.mubr.f32.mxu0 0.0
    %3729 = vmatmul.mubr.f32.gmra.mrb[0].mxu0 %v3611
    %v3730 = vpop.f32.mrb[0].mxu0
    %v3731 = vadd.f32 0.0, %v3730
    %v3732 = vpop.f32.mrb[0].mxu0
    %3733 = vmatprep.mubr.f32.mxu0 0.0
    %3734 = vmatmul.mubr.f32.gmra.mrb[0].mxu0 %v3614
    %v3735 = vpop.f32.mrb[0].mxu0
    %v3736 = vadd.f32 0.0, %v3735
    %v3737 = vpop.f32.mrb[0].mxu0
    %3738 = vmatprep.mubr.f32.mxu0 0.0
    %3739 = vmatmul.mubr.f32.gmra.mrb[0].mxu0 %v3617
    %v3740 = vpop.f32.mrb[0].mxu0
    %v3741 = vadd.f32 0.0, %v3740
    %v3742 = vpop.f32.mrb[0].mxu0
    %3743 = vmatprep.mubr.f32.mxu0 0.0
    %3744 = vmatmul.mubr.f32.gmra.mrb[0].mxu0 %v3620
    %v3745 = vpop.f32.mrb[0].mxu0
    %v3746 = vadd.f32 0.0, %v3745
    %v3747 = vpop.f32.mrb[0].mxu0
    %3748 = vmatprep.mubr.f32.mxu0 0.0
    %3749 = vmatmul.mubr.f32.gmra.mrb[0].mxu0 %v3623
    %v3750 = vpop.f32.mrb[0].mxu0
    %v3751 = vadd.f32 0.0, %v3750
    %v3752 = vpop.f32.mrb[0].mxu0
    %3753 = vmatprep.mubr.f32.mxu0 0.0
    %3754 = vmatmul.mubr.f32.gmra.mrb[0].mxu0 %v3626
    %v3755 = vpop.f32.mrb[0].mxu0
    %v3756 = vadd.f32 0.0, %v3755
    %v3757 = vpop.f32.mrb[0].mxu0
    %3758 = vmatprep.mubr.f32.mxu0 0.0
    %3759 = vmatmul.mubr.f32.gmra.mrb[0].mxu0 %v3629
    %v3760 = vpop.f32.mrb[0].mxu0
    %v3761 = vadd.f32 0.0, %v3760
    %v3762 = vpop.f32.mrb[0].mxu0
    %3763 = vmatprep.mubr.f32.mxu0 0.0
    %3764 = vmatmul.mubr.f32.gmra.mrb[0].mxu0 %v3632
    %v3765 = vpop.f32.mrb[0].mxu0
    %v3766 = vadd.f32 0.0, %v3765
    %v3767 = vpop.f32.mrb[0].mxu0
    %3768 = vmatprep.mubr.f32.mxu0 0.0
    %3769 = vmatmul.mubr.f32.gmra.mrb[0].mxu0 %v3635
    %v3770 = vpop.f32.mrb[0].mxu0
    %v3771 = vadd.f32 0.0, %v3770
    %v3772 = vpop.f32.mrb[0].mxu0
    %3773 = vmatprep.mubr.f32.mxu0 0.0
    %3774 = vmatmul.mubr.f32.gmra.mrb[0].mxu0 %v3638
    %v3775 = vpop.f32.mrb[0].mxu0
    %v3776 = vadd.f32 0.0, %v3775
    %v3777 = vpop.f32.mrb[0].mxu0
    %3778 = vmatprep.mubr.f32.mxu0 0.0
    %3779 = vmatmul.mubr.f32.gmra.mrb[0].mxu0 %v3641
    %v3780 = vpop.f32.mrb[0].mxu0
    %v3781 = vadd.f32 0.0, %v3780
    %v3782 = vpop.f32.mrb[0].mxu0
    %3783 = vmatprep.mubr.f32.mxu0 0.0
    %3784 = vmatmul.mubr.f32.gmra.mrb[0].mxu0 %v3644
    %v3785 = vpop.f32.mrb[0].mxu0
    %v3786 = vadd.f32 0.0, %v3785
    %v3787 = vpop.f32.mrb[0].mxu0
    %3788 = vmatprep.mubr.f32.mxu0 0.0
    %3789 = vmatmul.mubr.f32.gmra.mrb[0].mxu0 %v3647
    %v3790 = vpop.f32.mrb[0].mxu0
    %v3791 = vadd.f32 0.0, %v3790
    %v3792 = vpop.f32.mrb[0].mxu0
    %3793 = vdwg.mxu0
    %v3795 = vsel %vm354, %v1357, 0
    %v3798 = vsel %vm354, %v1362, 0
    %v3801 = vsel %vm354, %v1444, 0
    %v3804 = vsel %vm354, %v1449, 0
    %v3807 = vsel %vm354, %v1531, 0
    %v3810 = vsel %vm354, %v1536, 0
    %v3813 = vsel %vm354, %v1618, 0
    %v3816 = vsel %vm354, %v1623, 0
    %v3819 = vsel %vm354, %v1705, 0
    %v3822 = vsel %vm354, %v1710, 0
    %v3825 = vsel %vm354, %v1792, 0
    %v3828 = vsel %vm354, %v1797, 0
    %v3831 = vsel %vm354, %v1879, 0
    %v3834 = vsel %vm354, %v1884, 0
    %v3837 = vsel %vm354, %v1966, 0
    %v3840 = vsel %vm354, %v1971, 0
    %3842 = vmatprep.subr.mxu0 0.0
    %3843 = vmatpush1.msra.mxu0 %v1974
    %3844 = vmatprep.subr.mxu0 0.0
    %3845 = vmatpush1.msra.mxu0 0.0
    %3846 = vmatprep.subr.mxu0 0.0
    %3847 = vmatpush1.msra.mxu0 0.0
    %3848 = vmatprep.subr.mxu0 0.0
    %3849 = vmatpush1.msra.mxu0 0.0
    %3850 = vmatprep.subr.mxu0 0.0
    %3851 = vmatpush1.msra.mxu0 0.0
    %3852 = vmatprep.subr.mxu0 0.0
    %3853 = vmatpush1.msra.mxu0 0.0
    %3854 = vmatprep.subr.mxu0 0.0
    %3855 = vmatpush1.msra.mxu0 0.0
    %3856 = vmatprep.subr.mxu0 0.0
    %3857 = vmatpush1.msra.mxu0 0.0
    %3858 = vmatprep.subr.mxu0 0.0
    %3859 = vmatpush1.msra.mxu0 0.0
    %3860 = vmatprep.subr.mxu0 0.0
    %3861 = vmatpush1.msra.mxu0 0.0
    %3862 = vmatprep.subr.mxu0 0.0
    %3863 = vmatpush1.msra.mxu0 0.0
    %3864 = vmatprep.subr.mxu0 0.0
    %3865 = vmatpush1.msra.mxu0 0.0
    %3866 = vmatprep.subr.mxu0 0.0
    %3867 = vmatpush1.msra.mxu0 0.0
    %3868 = vmatprep.subr.mxu0 0.0
    %3869 = vmatpush1.msra.mxu0 0.0
    %3870 = vmatprep.subr.mxu0 0.0
    %3871 = vmatpush1.msra.mxu0 0.0
    %3872 = vmatprep.subr.mxu0 0.0
    %3873 = vmatpush1.msra.mxu0 0.0
    %3874 = vmatprep.subr.mxu0 0.0
    %3875 = vmatpush1.msra.mxu0 0.0
    %3876 = vmatprep.subr.mxu0 0.0
    %3877 = vmatpush1.msra.mxu0 0.0
    %3878 = vmatprep.subr.mxu0 0.0
    %3879 = vmatpush1.msra.mxu0 0.0
    %3880 = vmatprep.subr.mxu0 0.0
    %3881 = vmatpush1.msra.mxu0 0.0
    %3882 = vmatprep.subr.mxu0 0.0
    %3883 = vmatpush1.msra.mxu0 0.0
    %3884 = vmatprep.subr.mxu0 0.0
    %3885 = vmatpush1.msra.mxu0 0.0
    %3886 = vmatprep.subr.mxu0 0.0
    %3887 = vmatpush1.msra.mxu0 0.0
    %3888 = vmatprep.subr.mxu0 0.0
    %3889 = vmatpush1.msra.mxu0 0.0
    %3890 = vmatprep.subr.mxu0 0.0
    %3891 = vmatpush1.msra.mxu0 0.0
    %3892 = vmatprep.subr.mxu0 0.0
    %3893 = vmatpush1.msra.mxu0 0.0
    %3894 = vmatprep.subr.mxu0 0.0
    %3895 = vmatpush1.msra.mxu0 0.0
    %3896 = vmatprep.subr.mxu0 0.0
    %3897 = vmatpush1.msra.mxu0 0.0
    %3898 = vmatprep.subr.mxu0 0.0
    %3899 = vmatpush1.msra.mxu0 0.0
    %3900 = vmatprep.subr.mxu0 0.0
    %3901 = vmatpush1.msra.mxu0 0.0
    %3902 = vmatprep.subr.mxu0 0.0
    %3903 = vmatpush1.msra.mxu0 0.0
    %3904 = vmatprep.subr.mxu0 0.0
    %3905 = vmatpush1.msra.mxu0 0.0
    %3906 = vmatprep.mubr.f32.mxu0 0.0
    %3907 = vmatmul.mubr.f32.gmra.mrb[0].mxu0 %v3795
    %v3908 = vpop.f32.mrb[0].mxu0
    %v3909 = vadd.f32 %v3716, %v3908
    %v3910 = vpop.f32.mrb[0].mxu0
    %3911 = vmatprep.mubr.f32.mxu0 0.0
    %3912 = vmatmul.mubr.f32.gmra.mrb[0].mxu0 %v3798
    %v3913 = vpop.f32.mrb[0].mxu0
    %v3914 = vadd.f32 %v3721, %v3913
    %v3915 = vpop.f32.mrb[0].mxu0
    %3916 = vmatprep.mubr.f32.mxu0 0.0
    %3917 = vmatmul.mubr.f32.gmra.mrb[0].mxu0 %v3801
    %v3918 = vpop.f32.mrb[0].mxu0
    %v3919 = vadd.f32 %v3726, %v3918
    %v3920 = vpop.f32.mrb[0].mxu0
    %3921 = vmatprep.mubr.f32.mxu0 0.0
    %3922 = vmatmul.mubr.f32.gmra.mrb[0].mxu0 %v3804
    %v3923 = vpop.f32.mrb[0].mxu0
    %v3924 = vadd.f32 %v3731, %v3923
    %v3925 = vpop.f32.mrb[0].mxu0
    %3926 = vmatprep.mubr.f32.mxu0 0.0
    %3927 = vmatmul.mubr.f32.gmra.mrb[0].mxu0 %v3807
    %v3928 = vpop.f32.mrb[0].mxu0
    %v3929 = vadd.f32 %v3736, %v3928
    %v3930 = vpop.f32.mrb[0].mxu0
    %3931 = vmatprep.mubr.f32.mxu0 0.0
    %3932 = vmatmul.mubr.f32.gmra.mrb[0].mxu0 %v3810
    %v3933 = vpop.f32.mrb[0].mxu0
    %v3934 = vadd.f32 %v3741, %v3933
    %v3935 = vpop.f32.mrb[0].mxu0
    %3936 = vmatprep.mubr.f32.mxu0 0.0
    %3937 = vmatmul.mubr.f32.gmra.mrb[0].mxu0 %v3813
    %v3938 = vpop.f32.mrb[0].mxu0
    %v3939 = vadd.f32 %v3746, %v3938
    %v3940 = vpop.f32.mrb[0].mxu0
    %3941 = vmatprep.mubr.f32.mxu0 0.0
    %3942 = vmatmul.mubr.f32.gmra.mrb[0].mxu0 %v3816
    %v3943 = vpop.f32.mrb[0].mxu0
    %v3944 = vadd.f32 %v3751, %v3943
    %v3945 = vpop.f32.mrb[0].mxu0
    %3946 = vmatprep.mubr.f32.mxu0 0.0
    %3947 = vmatmul.mubr.f32.gmra.mrb[0].mxu0 %v3819
    %v3948 = vpop.f32.mrb[0].mxu0
    %v3949 = vadd.f32 %v3756, %v3948
    %v3950 = vpop.f32.mrb[0].mxu0
    %3951 = vmatprep.mubr.f32.mxu0 0.0
    %3952 = vmatmul.mubr.f32.gmra.mrb[0].mxu0 %v3822
    %v3953 = vpop.f32.mrb[0].mxu0
    %v3954 = vadd.f32 %v3761, %v3953
    %v3955 = vpop.f32.mrb[0].mxu0
    %3956 = vmatprep.mubr.f32.mxu0 0.0
    %3957 = vmatmul.mubr.f32.gmra.mrb[0].mxu0 %v3825
    %v3958 = vpop.f32.mrb[0].mxu0
    %v3959 = vadd.f32 %v3766, %v3958
    %v3960 = vpop.f32.mrb[0].mxu0
    %3961 = vmatprep.mubr.f32.mxu0 0.0
    %3962 = vmatmul.mubr.f32.gmra.mrb[0].mxu0 %v3828
    %v3963 = vpop.f32.mrb[0].mxu0
    %v3964 = vadd.f32 %v3771, %v3963
    %v3965 = vpop.f32.mrb[0].mxu0
    %3966 = vmatprep.mubr.f32.mxu0 0.0
    %3967 = vmatmul.mubr.f32.gmra.mrb[0].mxu0 %v3831
    %v3968 = vpop.f32.mrb[0].mxu0
    %v3969 = vadd.f32 %v3776, %v3968
    %v3970 = vpop.f32.mrb[0].mxu0
    %3971 = vmatprep.mubr.f32.mxu0 0.0
    %3972 = vmatmul.mubr.f32.gmra.mrb[0].mxu0 %v3834
    %v3973 = vpop.f32.mrb[0].mxu0
    %v3974 = vadd.f32 %v3781, %v3973
    %v3975 = vpop.f32.mrb[0].mxu0
    %3976 = vmatprep.mubr.f32.mxu0 0.0
    %3977 = vmatmul.mubr.f32.gmra.mrb[0].mxu0 %v3837
    %v3978 = vpop.f32.mrb[0].mxu0
    %v3979 = vadd.f32 %v3786, %v3978
    %v3980 = vpop.f32.mrb[0].mxu0
    %3981 = vmatprep.mubr.f32.mxu0 0.0
    %3982 = vmatmul.mubr.f32.gmra.mrb[0].mxu0 %v3840
    %v3983 = vpop.f32.mrb[0].mxu0
    %v3984 = vadd.f32 %v3791, %v3983
    %v3985 = vpop.f32.mrb[0].mxu0
    %3986 = vdwg.mxu0
    %3987 = vrot.lane.b32.xlu0 %v332, 112
    %v3988 = vpop.permute.xlu0 %3987
    %3989 = vrot.lane.b32.xlu0 %v333, 112
    %v3990 = vpop.permute.xlu0 %3989
    %3991 = vrot.lane.b32.xlu0 %v238, 80
    %v3992 = vpop.permute.xlu0 %3991
    %3993 = vrot.lane.b32.xlu0 %v243, 80
    %v3994 = vpop.permute.xlu0 %3993
    %v3995 = vsel %vm354, %v3988, 0
    %v3997 = vsel %vm354, %v3990, 0
    %v3999 = vsel %vm354, %v3992, 0
    %v4001 = vsel %vm354, %v3994, 0
    %4003 = vmatprep.subr.mxu0 0.0
    %4004 = vmatpush1.xpose.msra.mxu0 %v3999
    %4005 = vmatprep.subr.mxu0 0.0
    %4006 = vmatpush1.xpose.msra.mxu0 %v4001
    %4007 = vmatprep.subr.mxu0 0.0
    %4008 = vmatpush1.xpose.msra.mxu0 0.0
    %4009 = vmatprep.subr.mxu0 0.0
    %4010 = vmatpush1.xpose.msra.mxu0 0.0
    %4011 = vmatprep.subr.mxu0 0.0
    %4012 = vmatpush1.xpose.msra.mxu0 0.0
    %4013 = vmatprep.subr.mxu0 0.0
    %4014 = vmatpush1.xpose.msra.mxu0 0.0
    %4015 = vmatprep.subr.mxu0 0.0
    %4016 = vmatpush1.xpose.msra.mxu0 0.0
    %4017 = vmatprep.subr.mxu0 0.0
    %4018 = vmatpush1.xpose.msra.mxu0 0.0
    %4019 = vmatprep.subr.mxu0 0.0
    %4020 = vmatpush1.xpose.msra.mxu0 0.0
    %4021 = vmatprep.subr.mxu0 0.0
    %4022 = vmatpush1.xpose.msra.mxu0 0.0
    %4023 = vmatprep.subr.mxu0 0.0
    %4024 = vmatpush1.xpose.msra.mxu0 0.0
    %4025 = vmatprep.subr.mxu0 0.0
    %4026 = vmatpush1.xpose.msra.mxu0 0.0
    %4027 = vmatprep.subr.mxu0 0.0
    %4028 = vmatpush1.xpose.msra.mxu0 0.0
    %4029 = vmatprep.subr.mxu0 0.0
    %4030 = vmatpush1.xpose.msra.mxu0 0.0
    %4031 = vmatprep.subr.mxu0 0.0
    %4032 = vmatpush1.xpose.msra.mxu0 0.0
    %4033 = vmatprep.subr.mxu0 0.0
    %4034 = vmatpush1.xpose.msra.mxu0 0.0
    %4035 = vmatprep.subr.mxu0 0.0
    %4036 = vmatpush1.xpose.msra.mxu0 0.0
    %4037 = vmatprep.subr.mxu0 0.0
    %4038 = vmatpush1.xpose.msra.mxu0 0.0
    %4039 = vmatprep.subr.mxu0 0.0
    %4040 = vmatpush1.xpose.msra.mxu0 0.0
    %4041 = vmatprep.subr.mxu0 0.0
    %4042 = vmatpush1.xpose.msra.mxu0 0.0
    %4043 = vmatprep.subr.mxu0 0.0
    %4044 = vmatpush1.xpose.msra.mxu0 0.0
    %4045 = vmatprep.subr.mxu0 0.0
    %4046 = vmatpush1.xpose.msra.mxu0 0.0
    %4047 = vmatprep.subr.mxu0 0.0
    %4048 = vmatpush1.xpose.msra.mxu0 0.0
    %4049 = vmatprep.subr.mxu0 0.0
    %4050 = vmatpush1.xpose.msra.mxu0 0.0
    %4051 = vmatprep.subr.mxu0 0.0
    %4052 = vmatpush1.xpose.msra.mxu0 0.0
    %4053 = vmatprep.subr.mxu0 0.0
    %4054 = vmatpush1.xpose.msra.mxu0 0.0
    %4055 = vmatprep.subr.mxu0 0.0
    %4056 = vmatpush1.xpose.msra.mxu0 0.0
    %4057 = vmatprep.subr.mxu0 0.0
    %4058 = vmatpush1.xpose.msra.mxu0 0.0
    %4059 = vmatprep.subr.mxu0 0.0
    %4060 = vmatpush1.xpose.msra.mxu0 0.0
    %4061 = vmatprep.subr.mxu0 0.0
    %4062 = vmatpush1.xpose.msra.mxu0 0.0
    %4063 = vmatprep.subr.mxu0 0.0
    %4064 = vmatpush1.xpose.msra.mxu0 0.0
    %4065 = vmatprep.subr.mxu0 0.0
    %4066 = vmatpush1.xpose.msra.mxu0 0.0
    %4067 = vmatprep.mubr.f32.mxu0 0.0
    %4068 = vmatmul.mubr.f32.gmra.mrb[0].mxu0 %v3995
    %v4069 = vpop.f32.mrb[0].mxu0
    %v4070 = vadd.f32 0.0, %v4069
    %v4071 = vpop.f32.mrb[0].mxu0
    %4072 = vmatprep.mubr.f32.mxu0 0.0
    %4073 = vmatmul.mubr.f32.gmra.mrb[0].mxu0 %v3997
    %v4074 = vpop.f32.mrb[0].mxu0
    %v4075 = vadd.f32 0.0, %v4074
    %v4076 = vpop.f32.mrb[0].mxu0
    %4077 = vdwg.mxu0
    %4078 = vrot.lane.b32.xlu0 %v334, 112
    %v4079 = vpop.permute.xlu0 %4078
    %4080 = vrot.lane.b32.xlu0 %v335, 112
    %v4081 = vpop.permute.xlu0 %4080
    %4082 = vrot.lane.b32.xlu0 %v248, 80
    %v4083 = vpop.permute.xlu0 %4082
    %4084 = vrot.lane.b32.xlu0 %v253, 80
    %v4085 = vpop.permute.xlu0 %4084
    %v4086 = vsel %vm354, %v4079, 0
    %v4088 = vsel %vm354, %v4081, 0
    %v4090 = vsel %vm354, %v4083, 0
    %v4092 = vsel %vm354, %v4085, 0
    %4094 = vmatprep.subr.mxu0 0.0
    %4095 = vmatpush1.xpose.msra.mxu0 %v4090
    %4096 = vmatprep.subr.mxu0 0.0
    %4097 = vmatpush1.xpose.msra.mxu0 %v4092
    %4098 = vmatprep.subr.mxu0 0.0
    %4099 = vmatpush1.xpose.msra.mxu0 0.0
    %4100 = vmatprep.subr.mxu0 0.0
    %4101 = vmatpush1.xpose.msra.mxu0 0.0
    %4102 = vmatprep.subr.mxu0 0.0
    %4103 = vmatpush1.xpose.msra.mxu0 0.0
    %4104 = vmatprep.subr.mxu0 0.0
    %4105 = vmatpush1.xpose.msra.mxu0 0.0
    %4106 = vmatprep.subr.mxu0 0.0
    %4107 = vmatpush1.xpose.msra.mxu0 0.0
    %4108 = vmatprep.subr.mxu0 0.0
    %4109 = vmatpush1.xpose.msra.mxu0 0.0
    %4110 = vmatprep.subr.mxu0 0.0
    %4111 = vmatpush1.xpose.msra.mxu0 0.0
    %4112 = vmatprep.subr.mxu0 0.0
    %4113 = vmatpush1.xpose.msra.mxu0 0.0
    %4114 = vmatprep.subr.mxu0 0.0
    %4115 = vmatpush1.xpose.msra.mxu0 0.0
    %4116 = vmatprep.subr.mxu0 0.0
    %4117 = vmatpush1.xpose.msra.mxu0 0.0
    %4118 = vmatprep.subr.mxu0 0.0
    %4119 = vmatpush1.xpose.msra.mxu0 0.0
    %4120 = vmatprep.subr.mxu0 0.0
    %4121 = vmatpush1.xpose.msra.mxu0 0.0
    %4122 = vmatprep.subr.mxu0 0.0
    %4123 = vmatpush1.xpose.msra.mxu0 0.0
    %4124 = vmatprep.subr.mxu0 0.0
    %4125 = vmatpush1.xpose.msra.mxu0 0.0
    %4126 = vmatprep.subr.mxu0 0.0
    %4127 = vmatpush1.xpose.msra.mxu0 0.0
    %4128 = vmatprep.subr.mxu0 0.0
    %4129 = vmatpush1.xpose.msra.mxu0 0.0
    %4130 = vmatprep.subr.mxu0 0.0
    %4131 = vmatpush1.xpose.msra.mxu0 0.0
    %4132 = vmatprep.subr.mxu0 0.0
    %4133 = vmatpush1.xpose.msra.mxu0 0.0
    %4134 = vmatprep.subr.mxu0 0.0
    %4135 = vmatpush1.xpose.msra.mxu0 0.0
    %4136 = vmatprep.subr.mxu0 0.0
    %4137 = vmatpush1.xpose.msra.mxu0 0.0
    %4138 = vmatprep.subr.mxu0 0.0
    %4139 = vmatpush1.xpose.msra.mxu0 0.0
    %4140 = vmatprep.subr.mxu0 0.0
    %4141 = vmatpush1.xpose.msra.mxu0 0.0
    %4142 = vmatprep.subr.mxu0 0.0
    %4143 = vmatpush1.xpose.msra.mxu0 0.0
    %4144 = vmatprep.subr.mxu0 0.0
    %4145 = vmatpush1.xpose.msra.mxu0 0.0
    %4146 = vmatprep.subr.mxu0 0.0
    %4147 = vmatpush1.xpose.msra.mxu0 0.0
    %4148 = vmatprep.subr.mxu0 0.0
    %4149 = vmatpush1.xpose.msra.mxu0 0.0
    %4150 = vmatprep.subr.mxu0 0.0
    %4151 = vmatpush1.xpose.msra.mxu0 0.0
    %4152 = vmatprep.subr.mxu0 0.0
    %4153 = vmatpush1.xpose.msra.mxu0 0.0
    %4154 = vmatprep.subr.mxu0 0.0
    %4155 = vmatpush1.xpose.msra.mxu0 0.0
    %4156 = vmatprep.subr.mxu0 0.0
    %4157 = vmatpush1.xpose.msra.mxu0 0.0
    %4158 = vmatprep.mubr.f32.mxu0 0.0
    %4159 = vmatmul.mubr.f32.gmra.mrb[0].mxu0 %v4086
    %v4160 = vpop.f32.mrb[0].mxu0
    %v4161 = vadd.f32 0.0, %v4160
    %v4162 = vpop.f32.mrb[0].mxu0
    %4163 = vmatprep.mubr.f32.mxu0 0.0
    %4164 = vmatmul.mubr.f32.gmra.mrb[0].mxu0 %v4088
    %v4165 = vpop.f32.mrb[0].mxu0
    %v4166 = vadd.f32 0.0, %v4165
    %v4167 = vpop.f32.mrb[0].mxu0
    %4168 = vdwg.mxu0
    %4169 = vrot.lane.b32.xlu0 %v336, 112
    %v4170 = vpop.permute.xlu0 %4169
    %4171 = vrot.lane.b32.xlu0 %v337, 112
    %v4172 = vpop.permute.xlu0 %4171
    %4173 = vrot.lane.b32.xlu0 %v258, 80
    %v4174 = vpop.permute.xlu0 %4173
    %4175 = vrot.lane.b32.xlu0 %v263, 80
    %v4176 = vpop.permute.xlu0 %4175
    %v4177 = vsel %vm354, %v4170, 0
    %v4179 = vsel %vm354, %v4172, 0
    %v4181 = vsel %vm354, %v4174, 0
    %v4183 = vsel %vm354, %v4176, 0
    %4185 = vmatprep.subr.mxu0 0.0
    %4186 = vmatpush1.xpose.msra.mxu0 %v4181
    %4187 = vmatprep.subr.mxu0 0.0
    %4188 = vmatpush1.xpose.msra.mxu0 %v4183
    %4189 = vmatprep.subr.mxu0 0.0
    %4190 = vmatpush1.xpose.msra.mxu0 0.0
    %4191 = vmatprep.subr.mxu0 0.0
    %4192 = vmatpush1.xpose.msra.mxu0 0.0
    %4193 = vmatprep.subr.mxu0 0.0
    %4194 = vmatpush1.xpose.msra.mxu0 0.0
    %4195 = vmatprep.subr.mxu0 0.0
    %4196 = vmatpush1.xpose.msra.mxu0 0.0
    %4197 = vmatprep.subr.mxu0 0.0
    %4198 = vmatpush1.xpose.msra.mxu0 0.0
    %4199 = vmatprep.subr.mxu0 0.0
    %4200 = vmatpush1.xpose.msra.mxu0 0.0
    %4201 = vmatprep.subr.mxu0 0.0
    %4202 = vmatpush1.xpose.msra.mxu0 0.0
    %4203 = vmatprep.subr.mxu0 0.0
    %4204 = vmatpush1.xpose.msra.mxu0 0.0
    %4205 = vmatprep.subr.mxu0 0.0
    %4206 = vmatpush1.xpose.msra.mxu0 0.0
    %4207 = vmatprep.subr.mxu0 0.0
    %4208 = vmatpush1.xpose.msra.mxu0 0.0
    %4209 = vmatprep.subr.mxu0 0.0
    %4210 = vmatpush1.xpose.msra.mxu0 0.0
    %4211 = vmatprep.subr.mxu0 0.0
    %4212 = vmatpush1.xpose.msra.mxu0 0.0
    %4213 = vmatprep.subr.mxu0 0.0
    %4214 = vmatpush1.xpose.msra.mxu0 0.0
    %4215 = vmatprep.subr.mxu0 0.0
    %4216 = vmatpush1.xpose.msra.mxu0 0.0
    %4217 = vmatprep.subr.mxu0 0.0
    %4218 = vmatpush1.xpose.msra.mxu0 0.0
    %4219 = vmatprep.subr.mxu0 0.0
    %4220 = vmatpush1.xpose.msra.mxu0 0.0
    %4221 = vmatprep.subr.mxu0 0.0
    %4222 = vmatpush1.xpose.msra.mxu0 0.0
    %4223 = vmatprep.subr.mxu0 0.0
    %4224 = vmatpush1.xpose.msra.mxu0 0.0
    %4225 = vmatprep.subr.mxu0 0.0
    %4226 = vmatpush1.xpose.msra.mxu0 0.0
    %4227 = vmatprep.subr.mxu0 0.0
    %4228 = vmatpush1.xpose.msra.mxu0 0.0
    %4229 = vmatprep.subr.mxu0 0.0
    %4230 = vmatpush1.xpose.msra.mxu0 0.0
    %4231 = vmatprep.subr.mxu0 0.0
    %4232 = vmatpush1.xpose.msra.mxu0 0.0
    %4233 = vmatprep.subr.mxu0 0.0
    %4234 = vmatpush1.xpose.msra.mxu0 0.0
    %4235 = vmatprep.subr.mxu0 0.0
    %4236 = vmatpush1.xpose.msra.mxu0 0.0
    %4237 = vmatprep.subr.mxu0 0.0
    %4238 = vmatpush1.xpose.msra.mxu0 0.0
    %4239 = vmatprep.subr.mxu0 0.0
    %4240 = vmatpush1.xpose.msra.mxu0 0.0
    %4241 = vmatprep.subr.mxu0 0.0
    %4242 = vmatpush1.xpose.msra.mxu0 0.0
    %4243 = vmatprep.subr.mxu0 0.0
    %4244 = vmatpush1.xpose.msra.mxu0 0.0
    %4245 = vmatprep.subr.mxu0 0.0
    %4246 = vmatpush1.xpose.msra.mxu0 0.0
    %4247 = vmatprep.subr.mxu0 0.0
    %4248 = vmatpush1.xpose.msra.mxu0 0.0
    %4249 = vmatprep.mubr.f32.mxu0 0.0
    %4250 = vmatmul.mubr.f32.gmra.mrb[0].mxu0 %v4177
    %v4251 = vpop.f32.mrb[0].mxu0
    %v4252 = vadd.f32 0.0, %v4251
    %v4253 = vpop.f32.mrb[0].mxu0
    %4254 = vmatprep.mubr.f32.mxu0 0.0
    %4255 = vmatmul.mubr.f32.gmra.mrb[0].mxu0 %v4179
    %v4256 = vpop.f32.mrb[0].mxu0
    %v4257 = vadd.f32 0.0, %v4256
    %v4258 = vpop.f32.mrb[0].mxu0
    %4259 = vdwg.mxu0
    %4260 = vrot.lane.b32.xlu0 %v338, 112
    %v4261 = vpop.permute.xlu0 %4260
    %4262 = vrot.lane.b32.xlu0 %v339, 112
    %v4263 = vpop.permute.xlu0 %4262
    %4264 = vrot.lane.b32.xlu0 %v268, 80
    %v4265 = vpop.permute.xlu0 %4264
    %4266 = vrot.lane.b32.xlu0 %v273, 80
    %v4267 = vpop.permute.xlu0 %4266
    %v4268 = vsel %vm354, %v4261, 0
    %v4270 = vsel %vm354, %v4263, 0
    %v4272 = vsel %vm354, %v4265, 0
    %v4274 = vsel %vm354, %v4267, 0
    %4276 = vmatprep.subr.mxu0 0.0
    %4277 = vmatpush1.xpose.msra.mxu0 %v4272
    %4278 = vmatprep.subr.mxu0 0.0
    %4279 = vmatpush1.xpose.msra.mxu0 %v4274
    %4280 = vmatprep.subr.mxu0 0.0
    %4281 = vmatpush1.xpose.msra.mxu0 0.0
    %4282 = vmatprep.subr.mxu0 0.0
    %4283 = vmatpush1.xpose.msra.mxu0 0.0
    %4284 = vmatprep.subr.mxu0 0.0
    %4285 = vmatpush1.xpose.msra.mxu0 0.0
    %4286 = vmatprep.subr.mxu0 0.0
    %4287 = vmatpush1.xpose.msra.mxu0 0.0
    %4288 = vmatprep.subr.mxu0 0.0
    %4289 = vmatpush1.xpose.msra.mxu0 0.0
    %4290 = vmatprep.subr.mxu0 0.0
    %4291 = vmatpush1.xpose.msra.mxu0 0.0
    %4292 = vmatprep.subr.mxu0 0.0
    %4293 = vmatpush1.xpose.msra.mxu0 0.0
    %4294 = vmatprep.subr.mxu0 0.0
    %4295 = vmatpush1.xpose.msra.mxu0 0.0
    %4296 = vmatprep.subr.mxu0 0.0
    %4297 = vmatpush1.xpose.msra.mxu0 0.0
    %4298 = vmatprep.subr.mxu0 0.0
    %4299 = vmatpush1.xpose.msra.mxu0 0.0
    %4300 = vmatprep.subr.mxu0 0.0
    %4301 = vmatpush1.xpose.msra.mxu0 0.0
    %4302 = vmatprep.subr.mxu0 0.0
    %4303 = vmatpush1.xpose.msra.mxu0 0.0
    %4304 = vmatprep.subr.mxu0 0.0
    %4305 = vmatpush1.xpose.msra.mxu0 0.0
    %4306 = vmatprep.subr.mxu0 0.0
    %4307 = vmatpush1.xpose.msra.mxu0 0.0
    %4308 = vmatprep.subr.mxu0 0.0
    %4309 = vmatpush1.xpose.msra.mxu0 0.0
    %4310 = vmatprep.subr.mxu0 0.0
    %4311 = vmatpush1.xpose.msra.mxu0 0.0
    %4312 = vmatprep.subr.mxu0 0.0
    %4313 = vmatpush1.xpose.msra.mxu0 0.0
    %4314 = vmatprep.subr.mxu0 0.0
    %4315 = vmatpush1.xpose.msra.mxu0 0.0
    %4316 = vmatprep.subr.mxu0 0.0
    %4317 = vmatpush1.xpose.msra.mxu0 0.0
    %4318 = vmatprep.subr.mxu0 0.0
    %4319 = vmatpush1.xpose.msra.mxu0 0.0
    %4320 = vmatprep.subr.mxu0 0.0
    %4321 = vmatpush1.xpose.msra.mxu0 0.0
    %4322 = vmatprep.subr.mxu0 0.0
    %4323 = vmatpush1.xpose.msra.mxu0 0.0
    %4324 = vmatprep.subr.mxu0 0.0
    %4325 = vmatpush1.xpose.msra.mxu0 0.0
    %4326 = vmatprep.subr.mxu0 0.0
    %4327 = vmatpush1.xpose.msra.mxu0 0.0
    %4328 = vmatprep.subr.mxu0 0.0
    %4329 = vmatpush1.xpose.msra.mxu0 0.0
    %4330 = vmatprep.subr.mxu0 0.0
    %4331 = vmatpush1.xpose.msra.mxu0 0.0
    %4332 = vmatprep.subr.mxu0 0.0
    %4333 = vmatpush1.xpose.msra.mxu0 0.0
    %4334 = vmatprep.subr.mxu0 0.0
    %4335 = vmatpush1.xpose.msra.mxu0 0.0
    %4336 = vmatprep.subr.mxu0 0.0
    %4337 = vmatpush1.xpose.msra.mxu0 0.0
    %4338 = vmatprep.subr.mxu0 0.0
    %4339 = vmatpush1.xpose.msra.mxu0 0.0
    %4340 = vmatprep.mubr.f32.mxu0 0.0
    %4341 = vmatmul.mubr.f32.gmra.mrb[0].mxu0 %v4268
    %v4342 = vpop.f32.mrb[0].mxu0
    %v4343 = vadd.f32 0.0, %v4342
    %v4344 = vpop.f32.mrb[0].mxu0
    %4345 = vmatprep.mubr.f32.mxu0 0.0
    %4346 = vmatmul.mubr.f32.gmra.mrb[0].mxu0 %v4270
    %v4347 = vpop.f32.mrb[0].mxu0
    %v4348 = vadd.f32 0.0, %v4347
    %v4349 = vpop.f32.mrb[0].mxu0
    %4350 = vdwg.mxu0
    %4351 = vrot.lane.b32.xlu0 %v340, 112
    %v4352 = vpop.permute.xlu0 %4351
    %4353 = vrot.lane.b32.xlu0 %v341, 112
    %v4354 = vpop.permute.xlu0 %4353
    %4355 = vrot.lane.b32.xlu0 %v278, 80
    %v4356 = vpop.permute.xlu0 %4355
    %4357 = vrot.lane.b32.xlu0 %v283, 80
    %v4358 = vpop.permute.xlu0 %4357
    %v4359 = vsel %vm354, %v4352, 0
    %v4361 = vsel %vm354, %v4354, 0
    %v4363 = vsel %vm354, %v4356, 0
    %v4365 = vsel %vm354, %v4358, 0
    %4367 = vmatprep.subr.mxu0 0.0
    %4368 = vmatpush1.xpose.msra.mxu0 %v4363
    %4369 = vmatprep.subr.mxu0 0.0
    %4370 = vmatpush1.xpose.msra.mxu0 %v4365
    %4371 = vmatprep.subr.mxu0 0.0
    %4372 = vmatpush1.xpose.msra.mxu0 0.0
    %4373 = vmatprep.subr.mxu0 0.0
    %4374 = vmatpush1.xpose.msra.mxu0 0.0
    %4375 = vmatprep.subr.mxu0 0.0
    %4376 = vmatpush1.xpose.msra.mxu0 0.0
    %4377 = vmatprep.subr.mxu0 0.0
    %4378 = vmatpush1.xpose.msra.mxu0 0.0
    %4379 = vmatprep.subr.mxu0 0.0
    %4380 = vmatpush1.xpose.msra.mxu0 0.0
    %4381 = vmatprep.subr.mxu0 0.0
    %4382 = vmatpush1.xpose.msra.mxu0 0.0
    %4383 = vmatprep.subr.mxu0 0.0
    %4384 = vmatpush1.xpose.msra.mxu0 0.0
    %4385 = vmatprep.subr.mxu0 0.0
    %4386 = vmatpush1.xpose.msra.mxu0 0.0
    %4387 = vmatprep.subr.mxu0 0.0
    %4388 = vmatpush1.xpose.msra.mxu0 0.0
    %4389 = vmatprep.subr.mxu0 0.0
    %4390 = vmatpush1.xpose.msra.mxu0 0.0
    %4391 = vmatprep.subr.mxu0 0.0
    %4392 = vmatpush1.xpose.msra.mxu0 0.0
    %4393 = vmatprep.subr.mxu0 0.0
    %4394 = vmatpush1.xpose.msra.mxu0 0.0
    %4395 = vmatprep.subr.mxu0 0.0
    %4396 = vmatpush1.xpose.msra.mxu0 0.0
    %4397 = vmatprep.subr.mxu0 0.0
    %4398 = vmatpush1.xpose.msra.mxu0 0.0
    %4399 = vmatprep.subr.mxu0 0.0
    %4400 = vmatpush1.xpose.msra.mxu0 0.0
    %4401 = vmatprep.subr.mxu0 0.0
    %4402 = vmatpush1.xpose.msra.mxu0 0.0
    %4403 = vmatprep.subr.mxu0 0.0
    %4404 = vmatpush1.xpose.msra.mxu0 0.0
    %4405 = vmatprep.subr.mxu0 0.0
    %4406 = vmatpush1.xpose.msra.mxu0 0.0
    %4407 = vmatprep.subr.mxu0 0.0
    %4408 = vmatpush1.xpose.msra.mxu0 0.0
    %4409 = vmatprep.subr.mxu0 0.0
    %4410 = vmatpush1.xpose.msra.mxu0 0.0
    %4411 = vmatprep.subr.mxu0 0.0
    %4412 = vmatpush1.xpose.msra.mxu0 0.0
    %4413 = vmatprep.subr.mxu0 0.0
    %4414 = vmatpush1.xpose.msra.mxu0 0.0
    %4415 = vmatprep.subr.mxu0 0.0
    %4416 = vmatpush1.xpose.msra.mxu0 0.0
    %4417 = vmatprep.subr.mxu0 0.0
    %4418 = vmatpush1.xpose.msra.mxu0 0.0
    %4419 = vmatprep.subr.mxu0 0.0
    %4420 = vmatpush1.xpose.msra.mxu0 0.0
    %4421 = vmatprep.subr.mxu0 0.0
    %4422 = vmatpush1.xpose.msra.mxu0 0.0
    %4423 = vmatprep.subr.mxu0 0.0
    %4424 = vmatpush1.xpose.msra.mxu0 0.0
    %4425 = vmatprep.subr.mxu0 0.0
    %4426 = vmatpush1.xpose.msra.mxu0 0.0
    %4427 = vmatprep.subr.mxu0 0.0
    %4428 = vmatpush1.xpose.msra.mxu0 0.0
    %4429 = vmatprep.subr.mxu0 0.0
    %4430 = vmatpush1.xpose.msra.mxu0 0.0
    %4431 = vmatprep.mubr.f32.mxu0 0.0
    %4432 = vmatmul.mubr.f32.gmra.mrb[0].mxu0 %v4359
    %v4433 = vpop.f32.mrb[0].mxu0
    %v4434 = vadd.f32 0.0, %v4433
    %v4435 = vpop.f32.mrb[0].mxu0
    %4436 = vmatprep.mubr.f32.mxu0 0.0
    %4437 = vmatmul.mubr.f32.gmra.mrb[0].mxu0 %v4361
    %v4438 = vpop.f32.mrb[0].mxu0
    %v4439 = vadd.f32 0.0, %v4438
    %v4440 = vpop.f32.mrb[0].mxu0
    %4441 = vdwg.mxu0
    %4442 = vrot.lane.b32.xlu0 %v342, 112
    %v4443 = vpop.permute.xlu0 %4442
    %4444 = vrot.lane.b32.xlu0 %v343, 112
    %v4445 = vpop.permute.xlu0 %4444
    %4446 = vrot.lane.b32.xlu0 %v288, 80
    %v4447 = vpop.permute.xlu0 %4446
    %4448 = vrot.lane.b32.xlu0 %v293, 80
    %v4449 = vpop.permute.xlu0 %4448
    %v4450 = vsel %vm354, %v4443, 0
    %v4452 = vsel %vm354, %v4445, 0
    %v4454 = vsel %vm354, %v4447, 0
    %v4456 = vsel %vm354, %v4449, 0
    %4458 = vmatprep.subr.mxu0 0.0
    %4459 = vmatpush1.xpose.msra.mxu0 %v4454
    %4460 = vmatprep.subr.mxu0 0.0
    %4461 = vmatpush1.xpose.msra.mxu0 %v4456
    %4462 = vmatprep.subr.mxu0 0.0
    %4463 = vmatpush1.xpose.msra.mxu0 0.0
    %4464 = vmatprep.subr.mxu0 0.0
    %4465 = vmatpush1.xpose.msra.mxu0 0.0
    %4466 = vmatprep.subr.mxu0 0.0
    %4467 = vmatpush1.xpose.msra.mxu0 0.0
    %4468 = vmatprep.subr.mxu0 0.0
    %4469 = vmatpush1.xpose.msra.mxu0 0.0
    %4470 = vmatprep.subr.mxu0 0.0
    %4471 = vmatpush1.xpose.msra.mxu0 0.0
    %4472 = vmatprep.subr.mxu0 0.0
    %4473 = vmatpush1.xpose.msra.mxu0 0.0
    %4474 = vmatprep.subr.mxu0 0.0
    %4475 = vmatpush1.xpose.msra.mxu0 0.0
    %4476 = vmatprep.subr.mxu0 0.0
    %4477 = vmatpush1.xpose.msra.mxu0 0.0
    %4478 = vmatprep.subr.mxu0 0.0
    %4479 = vmatpush1.xpose.msra.mxu0 0.0
    %4480 = vmatprep.subr.mxu0 0.0
    %4481 = vmatpush1.xpose.msra.mxu0 0.0
    %4482 = vmatprep.subr.mxu0 0.0
    %4483 = vmatpush1.xpose.msra.mxu0 0.0
    %4484 = vmatprep.subr.mxu0 0.0
    %4485 = vmatpush1.xpose.msra.mxu0 0.0
    %4486 = vmatprep.subr.mxu0 0.0
    %4487 = vmatpush1.xpose.msra.mxu0 0.0
    %4488 = vmatprep.subr.mxu0 0.0
    %4489 = vmatpush1.xpose.msra.mxu0 0.0
    %4490 = vmatprep.subr.mxu0 0.0
    %4491 = vmatpush1.xpose.msra.mxu0 0.0
    %4492 = vmatprep.subr.mxu0 0.0
    %4493 = vmatpush1.xpose.msra.mxu0 0.0
    %4494 = vmatprep.subr.mxu0 0.0
    %4495 = vmatpush1.xpose.msra.mxu0 0.0
    %4496 = vmatprep.subr.mxu0 0.0
    %4497 = vmatpush1.xpose.msra.mxu0 0.0
    %4498 = vmatprep.subr.mxu0 0.0
    %4499 = vmatpush1.xpose.msra.mxu0 0.0
    %4500 = vmatprep.subr.mxu0 0.0
    %4501 = vmatpush1.xpose.msra.mxu0 0.0
    %4502 = vmatprep.subr.mxu0 0.0
    %4503 = vmatpush1.xpose.msra.mxu0 0.0
    %4504 = vmatprep.subr.mxu0 0.0
    %4505 = vmatpush1.xpose.msra.mxu0 0.0
    %4506 = vmatprep.subr.mxu0 0.0
    %4507 = vmatpush1.xpose.msra.mxu0 0.0
    %4508 = vmatprep.subr.mxu0 0.0
    %4509 = vmatpush1.xpose.msra.mxu0 0.0
    %4510 = vmatprep.subr.mxu0 0.0
    %4511 = vmatpush1.xpose.msra.mxu0 0.0
    %4512 = vmatprep.subr.mxu0 0.0
    %4513 = vmatpush1.xpose.msra.mxu0 0.0
    %4514 = vmatprep.subr.mxu0 0.0
    %4515 = vmatpush1.xpose.msra.mxu0 0.0
    %4516 = vmatprep.subr.mxu0 0.0
    %4517 = vmatpush1.xpose.msra.mxu0 0.0
    %4518 = vmatprep.subr.mxu0 0.0
    %4519 = vmatpush1.xpose.msra.mxu0 0.0
    %4520 = vmatprep.subr.mxu0 0.0
    %4521 = vmatpush1.xpose.msra.mxu0 0.0
    %4522 = vmatprep.mubr.f32.mxu0 0.0
    %4523 = vmatmul.mubr.f32.gmra.mrb[0].mxu0 %v4450
    %v4524 = vpop.f32.mrb[0].mxu0
    %v4525 = vadd.f32 0.0, %v4524
    %v4526 = vpop.f32.mrb[0].mxu0
    %4527 = vmatprep.mubr.f32.mxu0 0.0
    %4528 = vmatmul.mubr.f32.gmra.mrb[0].mxu0 %v4452
    %v4529 = vpop.f32.mrb[0].mxu0
    %v4530 = vadd.f32 0.0, %v4529
    %v4531 = vpop.f32.mrb[0].mxu0
    %4532 = vdwg.mxu0
    %4533 = vrot.lane.b32.xlu0 %v344, 112
    %v4534 = vpop.permute.xlu0 %4533
    %4535 = vrot.lane.b32.xlu0 %v345, 112
    %v4536 = vpop.permute.xlu0 %4535
    %4537 = vrot.lane.b32.xlu0 %v298, 80
    %v4538 = vpop.permute.xlu0 %4537
    %4539 = vrot.lane.b32.xlu0 %v303, 80
    %v4540 = vpop.permute.xlu0 %4539
    %v4541 = vsel %vm354, %v4534, 0
    %v4543 = vsel %vm354, %v4536, 0
    %v4545 = vsel %vm354, %v4538, 0
    %v4547 = vsel %vm354, %v4540, 0
    %4549 = vmatprep.subr.mxu0 0.0
    %4550 = vmatpush1.xpose.msra.mxu0 %v4545
    %4551 = vmatprep.subr.mxu0 0.0
    %4552 = vmatpush1.xpose.msra.mxu0 %v4547
    %4553 = vmatprep.subr.mxu0 0.0
    %4554 = vmatpush1.xpose.msra.mxu0 0.0
    %4555 = vmatprep.subr.mxu0 0.0
    %4556 = vmatpush1.xpose.msra.mxu0 0.0
    %4557 = vmatprep.subr.mxu0 0.0
    %4558 = vmatpush1.xpose.msra.mxu0 0.0
    %4559 = vmatprep.subr.mxu0 0.0
    %4560 = vmatpush1.xpose.msra.mxu0 0.0
    %4561 = vmatprep.subr.mxu0 0.0
    %4562 = vmatpush1.xpose.msra.mxu0 0.0
    %4563 = vmatprep.subr.mxu0 0.0
    %4564 = vmatpush1.xpose.msra.mxu0 0.0
    %4565 = vmatprep.subr.mxu0 0.0
    %4566 = vmatpush1.xpose.msra.mxu0 0.0
    %4567 = vmatprep.subr.mxu0 0.0
    %4568 = vmatpush1.xpose.msra.mxu0 0.0
    %4569 = vmatprep.subr.mxu0 0.0
    %4570 = vmatpush1.xpose.msra.mxu0 0.0
    %4571 = vmatprep.subr.mxu0 0.0
    %4572 = vmatpush1.xpose.msra.mxu0 0.0
    %4573 = vmatprep.subr.mxu0 0.0
    %4574 = vmatpush1.xpose.msra.mxu0 0.0
    %4575 = vmatprep.subr.mxu0 0.0
    %4576 = vmatpush1.xpose.msra.mxu0 0.0
    %4577 = vmatprep.subr.mxu0 0.0
    %4578 = vmatpush1.xpose.msra.mxu0 0.0
    %4579 = vmatprep.subr.mxu0 0.0
    %4580 = vmatpush1.xpose.msra.mxu0 0.0
    %4581 = vmatprep.subr.mxu0 0.0
    %4582 = vmatpush1.xpose.msra.mxu0 0.0
    %4583 = vmatprep.subr.mxu0 0.0
    %4584 = vmatpush1.xpose.msra.mxu0 0.0
    %4585 = vmatprep.subr.mxu0 0.0
    %4586 = vmatpush1.xpose.msra.mxu0 0.0
    %4587 = vmatprep.subr.mxu0 0.0
    %4588 = vmatpush1.xpose.msra.mxu0 0.0
    %4589 = vmatprep.subr.mxu0 0.0
    %4590 = vmatpush1.xpose.msra.mxu0 0.0
    %4591 = vmatprep.subr.mxu0 0.0
    %4592 = vmatpush1.xpose.msra.mxu0 0.0
    %4593 = vmatprep.subr.mxu0 0.0
    %4594 = vmatpush1.xpose.msra.mxu0 0.0
    %4595 = vmatprep.subr.mxu0 0.0
    %4596 = vmatpush1.xpose.msra.mxu0 0.0
    %4597 = vmatprep.subr.mxu0 0.0
    %4598 = vmatpush1.xpose.msra.mxu0 0.0
    %4599 = vmatprep.subr.mxu0 0.0
    %4600 = vmatpush1.xpose.msra.mxu0 0.0
    %4601 = vmatprep.subr.mxu0 0.0
    %4602 = vmatpush1.xpose.msra.mxu0 0.0
    %4603 = vmatprep.subr.mxu0 0.0
    %4604 = vmatpush1.xpose.msra.mxu0 0.0
    %4605 = vmatprep.subr.mxu0 0.0
    %4606 = vmatpush1.xpose.msra.mxu0 0.0
    %4607 = vmatprep.subr.mxu0 0.0
    %4608 = vmatpush1.xpose.msra.mxu0 0.0
    %4609 = vmatprep.subr.mxu0 0.0
    %4610 = vmatpush1.xpose.msra.mxu0 0.0
    %4611 = vmatprep.subr.mxu0 0.0
    %4612 = vmatpush1.xpose.msra.mxu0 0.0
    %4613 = vmatprep.mubr.f32.mxu0 0.0
    %4614 = vmatmul.mubr.f32.gmra.mrb[0].mxu0 %v4541
    %v4615 = vpop.f32.mrb[0].mxu0
    %v4616 = vadd.f32 0.0, %v4615
    %v4617 = vpop.f32.mrb[0].mxu0
    %4618 = vmatprep.mubr.f32.mxu0 0.0
    %4619 = vmatmul.mubr.f32.gmra.mrb[0].mxu0 %v4543
    %v4620 = vpop.f32.mrb[0].mxu0
    %v4621 = vadd.f32 0.0, %v4620
    %v4622 = vpop.f32.mrb[0].mxu0
    %4623 = vdwg.mxu0
    %4624 = vrot.lane.b32.xlu0 %v346, 112
    %v4625 = vpop.permute.xlu0 %4624
    %4626 = vrot.lane.b32.xlu0 %v347, 112
    %v4627 = vpop.permute.xlu0 %4626
    %4628 = vrot.lane.b32.xlu0 %v308, 80
    %v4629 = vpop.permute.xlu0 %4628
    %4630 = vrot.lane.b32.xlu0 %v313, 80
    %v4631 = vpop.permute.xlu0 %4630
    %v4632 = vsel %vm354, %v4625, 0
    %v4634 = vsel %vm354, %v4627, 0
    %v4636 = vsel %vm354, %v4629, 0
    %v4638 = vsel %vm354, %v4631, 0
    %4640 = vmatprep.subr.mxu0 0.0
    %4641 = vmatpush1.xpose.msra.mxu0 %v4636
    %4642 = vmatprep.subr.mxu0 0.0
    %4643 = vmatpush1.xpose.msra.mxu0 %v4638
    %4644 = vmatprep.subr.mxu0 0.0
    %4645 = vmatpush1.xpose.msra.mxu0 0.0
    %4646 = vmatprep.subr.mxu0 0.0
    %4647 = vmatpush1.xpose.msra.mxu0 0.0
    %4648 = vmatprep.subr.mxu0 0.0
    %4649 = vmatpush1.xpose.msra.mxu0 0.0
    %4650 = vmatprep.subr.mxu0 0.0
    %4651 = vmatpush1.xpose.msra.mxu0 0.0
    %4652 = vmatprep.subr.mxu0 0.0
    %4653 = vmatpush1.xpose.msra.mxu0 0.0
    %4654 = vmatprep.subr.mxu0 0.0
    %4655 = vmatpush1.xpose.msra.mxu0 0.0
    %4656 = vmatprep.subr.mxu0 0.0
    %4657 = vmatpush1.xpose.msra.mxu0 0.0
    %4658 = vmatprep.subr.mxu0 0.0
    %4659 = vmatpush1.xpose.msra.mxu0 0.0
    %4660 = vmatprep.subr.mxu0 0.0
    %4661 = vmatpush1.xpose.msra.mxu0 0.0
    %4662 = vmatprep.subr.mxu0 0.0
    %4663 = vmatpush1.xpose.msra.mxu0 0.0
    %4664 = vmatprep.subr.mxu0 0.0
    %4665 = vmatpush1.xpose.msra.mxu0 0.0
    %4666 = vmatprep.subr.mxu0 0.0
    %4667 = vmatpush1.xpose.msra.mxu0 0.0
    %4668 = vmatprep.subr.mxu0 0.0
    %4669 = vmatpush1.xpose.msra.mxu0 0.0
    %4670 = vmatprep.subr.mxu0 0.0
    %4671 = vmatpush1.xpose.msra.mxu0 0.0
    %4672 = vmatprep.subr.mxu0 0.0
    %4673 = vmatpush1.xpose.msra.mxu0 0.0
    %4674 = vmatprep.subr.mxu0 0.0
    %4675 = vmatpush1.xpose.msra.mxu0 0.0
    %4676 = vmatprep.subr.mxu0 0.0
    %4677 = vmatpush1.xpose.msra.mxu0 0.0
    %4678 = vmatprep.subr.mxu0 0.0
    %4679 = vmatpush1.xpose.msra.mxu0 0.0
    %4680 = vmatprep.subr.mxu0 0.0
    %4681 = vmatpush1.xpose.msra.mxu0 0.0
    %4682 = vmatprep.subr.mxu0 0.0
    %4683 = vmatpush1.xpose.msra.mxu0 0.0
    %4684 = vmatprep.subr.mxu0 0.0
    %4685 = vmatpush1.xpose.msra.mxu0 0.0
    %4686 = vmatprep.subr.mxu0 0.0
    %4687 = vmatpush1.xpose.msra.mxu0 0.0
    %4688 = vmatprep.subr.mxu0 0.0
    %4689 = vmatpush1.xpose.msra.mxu0 0.0
    %4690 = vmatprep.subr.mxu0 0.0
    %4691 = vmatpush1.xpose.msra.mxu0 0.0
    %4692 = vmatprep.subr.mxu0 0.0
    %4693 = vmatpush1.xpose.msra.mxu0 0.0
    %4694 = vmatprep.subr.mxu0 0.0
    %4695 = vmatpush1.xpose.msra.mxu0 0.0
    %4696 = vmatprep.subr.mxu0 0.0
    %4697 = vmatpush1.xpose.msra.mxu0 0.0
    %4698 = vmatprep.subr.mxu0 0.0
    %4699 = vmatpush1.xpose.msra.mxu0 0.0
    %4700 = vmatprep.subr.mxu0 0.0
    %4701 = vmatpush1.xpose.msra.mxu0 0.0
    %4702 = vmatprep.subr.mxu0 0.0
    %4703 = vmatpush1.xpose.msra.mxu0 0.0
    %4704 = vmatprep.mubr.f32.mxu0 0.0
    %4705 = vmatmul.mubr.f32.gmra.mrb[0].mxu0 %v4632
    %v4706 = vpop.f32.mrb[0].mxu0
    %v4707 = vadd.f32 0.0, %v4706
    %v4708 = vpop.f32.mrb[0].mxu0
    %4709 = vmatprep.mubr.f32.mxu0 0.0
    %4710 = vmatmul.mubr.f32.gmra.mrb[0].mxu0 %v4634
    %v4711 = vpop.f32.mrb[0].mxu0
    %v4712 = vadd.f32 0.0, %v4711
    %v4713 = vpop.f32.mrb[0].mxu0
    %4714 = vdwg.mxu0
    %v4715 = vadd.f32 %v320, %v324
    %v4716 = vadd.f32 %v321, %v325
    %v4717 = vadd.f32 %v320, %v326
    %v4718 = vadd.f32 %v321, %v327
    %v4719 = vadd.f32 %v320, %v328
    %v4720 = vadd.f32 %v321, %v329
    %v4721 = vadd.f32 %v320, %v330
    %v4722 = vadd.f32 %v321, %v331
    %v4723 = vadd.f32 %v4070, %v4715
    %v4724 = vadd.f32 %v4075, %v4716
    %v4725 = vadd.f32 %v4161, %v4717
    %v4726 = vadd.f32 %v4166, %v4718
    %v4727 = vadd.f32 %v4252, %v4719
    %v4728 = vadd.f32 %v4257, %v4720
    %v4729 = vadd.f32 %v4343, %v4721
    %v4730 = vadd.f32 %v4348, %v4722
    %v4731 = vadd.f32 %v4434, %v4715
    %v4732 = vadd.f32 %v4439, %v4716
    %v4733 = vadd.f32 %v4525, %v4717
    %v4734 = vadd.f32 %v4530, %v4718
    %v4735 = vadd.f32 %v4616, %v4719
    %v4736 = vadd.f32 %v4621, %v4720
    %v4737 = vadd.f32 %v4707, %v4721
    %v4738 = vadd.f32 %v4712, %v4722
    %v4739 = vsel %vm1101, %v4723, -inf
    %4740 = vmax.xlane.f32.xlu0 %v4739
    %v4741 = vpop.xlane.xlu0 %4740
    %v4742 = vsel %vm1101, %v4724, -inf
    %4743 = vmax.xlane.f32.xlu0 %v4742
    %v4744 = vpop.xlane.xlu0 %4743
    %v4745 = vsel %vm1101, %v4725, -inf
    %4746 = vmax.xlane.f32.xlu0 %v4745
    %v4747 = vpop.xlane.xlu0 %4746
    %v4748 = vsel %vm1101, %v4726, -inf
    %4749 = vmax.xlane.f32.xlu0 %v4748
    %v4750 = vpop.xlane.xlu0 %4749
    %v4751 = vsel %vm1101, %v4727, -inf
    %4752 = vmax.xlane.f32.xlu0 %v4751
    %v4753 = vpop.xlane.xlu0 %4752
    %v4754 = vsel %vm1101, %v4728, -inf
    %4755 = vmax.xlane.f32.xlu0 %v4754
    %v4756 = vpop.xlane.xlu0 %4755
    %v4757 = vsel %vm1101, %v4729, -inf
    %4758 = vmax.xlane.f32.xlu0 %v4757
    %v4759 = vpop.xlane.xlu0 %4758
    %v4760 = vsel %vm1101, %v4730, -inf
    %4761 = vmax.xlane.f32.xlu0 %v4760
    %v4762 = vpop.xlane.xlu0 %4761
    %v4763 = vsel %vm1101, %v4731, -inf
    %4764 = vmax.xlane.f32.xlu0 %v4763
    %v4765 = vpop.xlane.xlu0 %4764
    %v4766 = vsel %vm1101, %v4732, -inf
    %4767 = vmax.xlane.f32.xlu0 %v4766
    %v4768 = vpop.xlane.xlu0 %4767
    %v4769 = vsel %vm1101, %v4733, -inf
    %4770 = vmax.xlane.f32.xlu0 %v4769
    %v4771 = vpop.xlane.xlu0 %4770
    %v4772 = vsel %vm1101, %v4734, -inf
    %4773 = vmax.xlane.f32.xlu0 %v4772
    %v4774 = vpop.xlane.xlu0 %4773
    %v4775 = vsel %vm1101, %v4735, -inf
    %4776 = vmax.xlane.f32.xlu0 %v4775
    %v4777 = vpop.xlane.xlu0 %4776
    %v4778 = vsel %vm1101, %v4736, -inf
    %4779 = vmax.xlane.f32.xlu0 %v4778
    %v4780 = vpop.xlane.xlu0 %4779
    %v4781 = vsel %vm1101, %v4737, -inf
    %4782 = vmax.xlane.f32.xlu0 %v4781
    %v4783 = vpop.xlane.xlu0 %4782
    %v4784 = vsel %vm1101, %v4738, -inf
    %4785 = vmax.xlane.f32.xlu0 %v4784
    %v4786 = vpop.xlane.xlu0 %4785
    %v4787 = vsub.f32 %v4723, %v4741
    %v4788 = vsub.f32 %v4724, %v4744
    %v4789 = vsub.f32 %v4725, %v4747
    %v4790 = vsub.f32 %v4726, %v4750
    %v4791 = vsub.f32 %v4727, %v4753
    %v4792 = vsub.f32 %v4728, %v4756
    %v4793 = vsub.f32 %v4729, %v4759
    %v4794 = vsub.f32 %v4730, %v4762
    %v4795 = vsub.f32 %v4731, %v4765
    %v4796 = vsub.f32 %v4732, %v4768
    %v4797 = vsub.f32 %v4733, %v4771
    %v4798 = vsub.f32 %v4734, %v4774
    %v4799 = vsub.f32 %v4735, %v4777
    %v4800 = vsub.f32 %v4736, %v4780
    %v4801 = vsub.f32 %v4737, %v4783
    %v4802 = vsub.f32 %v4738, %v4786
    %v4803 = vmul.f32 %v4787, 1.442695
    %v4804 = vpow.pop %v4803
    %v4805 = vmul.f32 %v4788, 1.442695
    %v4806 = vpow.pop %v4805
    %v4807 = vmul.f32 %v4789, 1.442695
    %v4808 = vpow.pop %v4807
    %v4809 = vmul.f32 %v4790, 1.442695
    %v4810 = vpow.pop %v4809
    %v4811 = vmul.f32 %v4791, 1.442695
    %v4812 = vpow.pop %v4811
    %v4813 = vmul.f32 %v4792, 1.442695
    %v4814 = vpow.pop %v4813
    %v4815 = vmul.f32 %v4793, 1.442695
    %v4816 = vpow.pop %v4815
    %v4817 = vmul.f32 %v4794, 1.442695
    %v4818 = vpow.pop %v4817
    %v4819 = vmul.f32 %v4795, 1.442695
    %v4820 = vpow.pop %v4819
    %v4821 = vmul.f32 %v4796, 1.442695
    %v4822 = vpow.pop %v4821
    %v4823 = vmul.f32 %v4797, 1.442695
    %v4824 = vpow.pop %v4823
    %v4825 = vmul.f32 %v4798, 1.442695
    %v4826 = vpow.pop %v4825
    %v4827 = vmul.f32 %v4799, 1.442695
    %v4828 = vpow.pop %v4827
    %v4829 = vmul.f32 %v4800, 1.442695
    %v4830 = vpow.pop %v4829
    %v4831 = vmul.f32 %v4801, 1.442695
    %v4832 = vpow.pop %v4831
    %v4833 = vmul.f32 %v4802, 1.442695
    %v4834 = vpow.pop %v4833
    %v4835 = vsel %vm1101, %v4804, 0.0
    %4836 = vadd.xlane.f32.xlu0 %v4835
    %v4837 = vpop.xlane.xlu0 %4836
    %v4838 = vsel %vm1101, %v4806, 0.0
    %4839 = vadd.xlane.f32.xlu0 %v4838
    %v4840 = vpop.xlane.xlu0 %4839
    %v4841 = vsel %vm1101, %v4808, 0.0
    %4842 = vadd.xlane.f32.xlu0 %v4841
    %v4843 = vpop.xlane.xlu0 %4842
    %v4844 = vsel %vm1101, %v4810, 0.0
    %4845 = vadd.xlane.f32.xlu0 %v4844
    %v4846 = vpop.xlane.xlu0 %4845
    %v4847 = vsel %vm1101, %v4812, 0.0
    %4848 = vadd.xlane.f32.xlu0 %v4847
    %v4849 = vpop.xlane.xlu0 %4848
    %v4850 = vsel %vm1101, %v4814, 0.0
    %4851 = vadd.xlane.f32.xlu0 %v4850
    %v4852 = vpop.xlane.xlu0 %4851
    %v4853 = vsel %vm1101, %v4816, 0.0
    %4854 = vadd.xlane.f32.xlu0 %v4853
    %v4855 = vpop.xlane.xlu0 %4854
    %v4856 = vsel %vm1101, %v4818, 0.0
    %4857 = vadd.xlane.f32.xlu0 %v4856
    %v4858 = vpop.xlane.xlu0 %4857
    %v4859 = vsel %vm1101, %v4820, 0.0
    %4860 = vadd.xlane.f32.xlu0 %v4859
    %v4861 = vpop.xlane.xlu0 %4860
    %v4862 = vsel %vm1101, %v4822, 0.0
    %4863 = vadd.xlane.f32.xlu0 %v4862
    %v4864 = vpop.xlane.xlu0 %4863
    %v4865 = vsel %vm1101, %v4824, 0.0
    %4866 = vadd.xlane.f32.xlu0 %v4865
    %v4867 = vpop.xlane.xlu0 %4866
    %v4868 = vsel %vm1101, %v4826, 0.0
    %4869 = vadd.xlane.f32.xlu0 %v4868
    %v4870 = vpop.xlane.xlu0 %4869
    %v4871 = vsel %vm1101, %v4828, 0.0
    %4872 = vadd.xlane.f32.xlu0 %v4871
    %v4873 = vpop.xlane.xlu0 %4872
    %v4874 = vsel %vm1101, %v4830, 0.0
    %4875 = vadd.xlane.f32.xlu0 %v4874
    %v4876 = vpop.xlane.xlu0 %4875
    %v4877 = vsel %vm1101, %v4832, 0.0
    %4878 = vadd.xlane.f32.xlu0 %v4877
    %v4879 = vpop.xlane.xlu0 %4878
    %v4880 = vsel %vm1101, %v4834, 0.0
    %4881 = vadd.xlane.f32.xlu0 %v4880
    %v4882 = vpop.xlane.xlu0 %4881
    %v4883 = vrcp.pop %v4837
    %v4884 = vrcp.pop %v4840
    %v4885 = vrcp.pop %v4843
    %v4886 = vrcp.pop %v4846
    %v4887 = vrcp.pop %v4849
    %v4888 = vrcp.pop %v4852
    %v4889 = vrcp.pop %v4855
    %v4890 = vrcp.pop %v4858
    %v4891 = vrcp.pop %v4861
    %v4892 = vrcp.pop %v4864
    %v4893 = vrcp.pop %v4867
    %v4894 = vrcp.pop %v4870
    %v4895 = vrcp.pop %v4873
    %v4896 = vrcp.pop %v4876
    %v4897 = vrcp.pop %v4879
    %v4898 = vrcp.pop %v4882
    %v4899 = vmul.f32 %v4804, %v4883
    %v4900 = vmul.f32 %v4806, %v4884
    %v4901 = vmul.f32 %v4808, %v4885
    %v4902 = vmul.f32 %v4810, %v4886
    %v4903 = vmul.f32 %v4812, %v4887
    %v4904 = vmul.f32 %v4814, %v4888
    %v4905 = vmul.f32 %v4816, %v4889
    %v4906 = vmul.f32 %v4818, %v4890
    %v4907 = vmul.f32 %v4820, %v4891
    %v4908 = vmul.f32 %v4822, %v4892
    %v4909 = vmul.f32 %v4824, %v4893
    %v4910 = vmul.f32 %v4826, %v4894
    %v4911 = vmul.f32 %v4828, %v4895
    %v4912 = vmul.f32 %v4830, %v4896
    %v4913 = vmul.f32 %v4832, %v4897
    %v4914 = vmul.f32 %v4834, %v4898
    %4915 = vrot.lane.b32.xlu0 %v238, 48
    %v4916 = vpop.permute.xlu0 %4915
    %4917 = vrot.lane.b32.xlu0 %v243, 48
    %v4918 = vpop.permute.xlu0 %4917
    %v4922 = vsel %vm1101, %v4899, 0
    %v4925 = vsel %vm1101, %v4900, 0
    %4927 = vmatprep.subr.mxu0 0.0
    %4928 = vmatpush1.msra.mxu0 %v4916
    %4929 = vmatprep.subr.mxu0 0.0
    %4930 = vmatpush1.msra.mxu0 %v4918
    %4931 = vmatprep.subr.mxu0 0.0
    %4932 = vmatpush1.msra.mxu0 0.0
    %4933 = vmatprep.subr.mxu0 0.0
    %4934 = vmatpush1.msra.mxu0 0.0
    %4935 = vmatprep.subr.mxu0 0.0
    %4936 = vmatpush1.msra.mxu0 0.0
    %4937 = vmatprep.subr.mxu0 0.0
    %4938 = vmatpush1.msra.mxu0 0.0
    %4939 = vmatprep.subr.mxu0 0.0
    %4940 = vmatpush1.msra.mxu0 0.0
    %4941 = vmatprep.subr.mxu0 0.0
    %4942 = vmatpush1.msra.mxu0 0.0
    %4943 = vmatprep.subr.mxu0 0.0
    %4944 = vmatpush1.msra.mxu0 0.0
    %4945 = vmatprep.subr.mxu0 0.0
    %4946 = vmatpush1.msra.mxu0 0.0
    %4947 = vmatprep.subr.mxu0 0.0
    %4948 = vmatpush1.msra.mxu0 0.0
    %4949 = vmatprep.subr.mxu0 0.0
    %4950 = vmatpush1.msra.mxu0 0.0
    %4951 = vmatprep.subr.mxu0 0.0
    %4952 = vmatpush1.msra.mxu0 0.0
    %4953 = vmatprep.subr.mxu0 0.0
    %4954 = vmatpush1.msra.mxu0 0.0
    %4955 = vmatprep.subr.mxu0 0.0
    %4956 = vmatpush1.msra.mxu0 0.0
    %4957 = vmatprep.subr.mxu0 0.0
    %4958 = vmatpush1.msra.mxu0 0.0
    %4959 = vmatprep.subr.mxu0 0.0
    %4960 = vmatpush1.msra.mxu0 0.0
    %4961 = vmatprep.subr.mxu0 0.0
    %4962 = vmatpush1.msra.mxu0 0.0
    %4963 = vmatprep.subr.mxu0 0.0
    %4964 = vmatpush1.msra.mxu0 0.0
    %4965 = vmatprep.subr.mxu0 0.0
    %4966 = vmatpush1.msra.mxu0 0.0
    %4967 = vmatprep.subr.mxu0 0.0
    %4968 = vmatpush1.msra.mxu0 0.0
    %4969 = vmatprep.subr.mxu0 0.0
    %4970 = vmatpush1.msra.mxu0 0.0
    %4971 = vmatprep.subr.mxu0 0.0
    %4972 = vmatpush1.msra.mxu0 0.0
    %4973 = vmatprep.subr.mxu0 0.0
    %4974 = vmatpush1.msra.mxu0 0.0
    %4975 = vmatprep.subr.mxu0 0.0
    %4976 = vmatpush1.msra.mxu0 0.0
    %4977 = vmatprep.subr.mxu0 0.0
    %4978 = vmatpush1.msra.mxu0 0.0
    %4979 = vmatprep.subr.mxu0 0.0
    %4980 = vmatpush1.msra.mxu0 0.0
    %4981 = vmatprep.subr.mxu0 0.0
    %4982 = vmatpush1.msra.mxu0 0.0
    %4983 = vmatprep.subr.mxu0 0.0
    %4984 = vmatpush1.msra.mxu0 0.0
    %4985 = vmatprep.subr.mxu0 0.0
    %4986 = vmatpush1.msra.mxu0 0.0
    %4987 = vmatprep.subr.mxu0 0.0
    %4988 = vmatpush1.msra.mxu0 0.0
    %4989 = vmatprep.subr.mxu0 0.0
    %4990 = vmatpush1.msra.mxu0 0.0
    %4991 = vmatprep.mubr.f32.mxu0 0.0
    %4992 = vmatmul.mubr.f32.gmra.mrb[0].mxu0 %v4922
    %v4993 = vpop.f32.mrb[0].mxu0
    %v4994 = vadd.f32 0.0, %v4993
    %v4995 = vpop.f32.mrb[0].mxu0
    %4996 = vmatprep.mubr.f32.mxu0 0.0
    %4997 = vmatmul.mubr.f32.gmra.mrb[0].mxu0 %v4925
    %v4998 = vpop.f32.mrb[0].mxu0
    %v4999 = vadd.f32 0.0, %v4998
    %v5000 = vpop.f32.mrb[0].mxu0
    %5001 = vdwg.mxu0
    %5002 = vrot.lane.b32.xlu0 %v248, 48
    %v5003 = vpop.permute.xlu0 %5002
    %5004 = vrot.lane.b32.xlu0 %v253, 48
    %v5005 = vpop.permute.xlu0 %5004
    %v5009 = vsel %vm1101, %v4901, 0
    %v5012 = vsel %vm1101, %v4902, 0
    %5014 = vmatprep.subr.mxu0 0.0
    %5015 = vmatpush1.msra.mxu0 %v5003
    %5016 = vmatprep.subr.mxu0 0.0
    %5017 = vmatpush1.msra.mxu0 %v5005
    %5018 = vmatprep.subr.mxu0 0.0
    %5019 = vmatpush1.msra.mxu0 0.0
    %5020 = vmatprep.subr.mxu0 0.0
    %5021 = vmatpush1.msra.mxu0 0.0
    %5022 = vmatprep.subr.mxu0 0.0
    %5023 = vmatpush1.msra.mxu0 0.0
    %5024 = vmatprep.subr.mxu0 0.0
    %5025 = vmatpush1.msra.mxu0 0.0
    %5026 = vmatprep.subr.mxu0 0.0
    %5027 = vmatpush1.msra.mxu0 0.0
    %5028 = vmatprep.subr.mxu0 0.0
    %5029 = vmatpush1.msra.mxu0 0.0
    %5030 = vmatprep.subr.mxu0 0.0
    %5031 = vmatpush1.msra.mxu0 0.0
    %5032 = vmatprep.subr.mxu0 0.0
    %5033 = vmatpush1.msra.mxu0 0.0
    %5034 = vmatprep.subr.mxu0 0.0
    %5035 = vmatpush1.msra.mxu0 0.0
    %5036 = vmatprep.subr.mxu0 0.0
    %5037 = vmatpush1.msra.mxu0 0.0
    %5038 = vmatprep.subr.mxu0 0.0
    %5039 = vmatpush1.msra.mxu0 0.0
    %5040 = vmatprep.subr.mxu0 0.0
    %5041 = vmatpush1.msra.mxu0 0.0
    %5042 = vmatprep.subr.mxu0 0.0
    %5043 = vmatpush1.msra.mxu0 0.0
    %5044 = vmatprep.subr.mxu0 0.0
    %5045 = vmatpush1.msra.mxu0 0.0
    %5046 = vmatprep.subr.mxu0 0.0
    %5047 = vmatpush1.msra.mxu0 0.0
    %5048 = vmatprep.subr.mxu0 0.0
    %5049 = vmatpush1.msra.mxu0 0.0
    %5050 = vmatprep.subr.mxu0 0.0
    %5051 = vmatpush1.msra.mxu0 0.0
    %5052 = vmatprep.subr.mxu0 0.0
    %5053 = vmatpush1.msra.mxu0 0.0
    %5054 = vmatprep.subr.mxu0 0.0
    %5055 = vmatpush1.msra.mxu0 0.0
    %5056 = vmatprep.subr.mxu0 0.0
    %5057 = vmatpush1.msra.mxu0 0.0
    %5058 = vmatprep.subr.mxu0 0.0
    %5059 = vmatpush1.msra.mxu0 0.0
    %5060 = vmatprep.subr.mxu0 0.0
    %5061 = vmatpush1.msra.mxu0 0.0
    %5062 = vmatprep.subr.mxu0 0.0
    %5063 = vmatpush1.msra.mxu0 0.0
    %5064 = vmatprep.subr.mxu0 0.0
    %5065 = vmatpush1.msra.mxu0 0.0
    %5066 = vmatprep.subr.mxu0 0.0
    %5067 = vmatpush1.msra.mxu0 0.0
    %5068 = vmatprep.subr.mxu0 0.0
    %5069 = vmatpush1.msra.mxu0 0.0
    %5070 = vmatprep.subr.mxu0 0.0
    %5071 = vmatpush1.msra.mxu0 0.0
    %5072 = vmatprep.subr.mxu0 0.0
    %5073 = vmatpush1.msra.mxu0 0.0
    %5074 = vmatprep.subr.mxu0 0.0
    %5075 = vmatpush1.msra.mxu0 0.0
    %5076 = vmatprep.subr.mxu0 0.0
    %5077 = vmatpush1.msra.mxu0 0.0
    %5078 = vmatprep.mubr.f32.mxu0 0.0
    %5079 = vmatmul.mubr.f32.gmra.mrb[0].mxu0 %v5009
    %v5080 = vpop.f32.mrb[0].mxu0
    %v5081 = vadd.f32 0.0, %v5080
    %v5082 = vpop.f32.mrb[0].mxu0
    %5083 = vmatprep.mubr.f32.mxu0 0.0
    %5084 = vmatmul.mubr.f32.gmra.mrb[0].mxu0 %v5012
    %v5085 = vpop.f32.mrb[0].mxu0
    %v5086 = vadd.f32 0.0, %v5085
    %v5087 = vpop.f32.mrb[0].mxu0
    %5088 = vdwg.mxu0
    %5089 = vrot.lane.b32.xlu0 %v258, 48
    %v5090 = vpop.permute.xlu0 %5089
    %5091 = vrot.lane.b32.xlu0 %v263, 48
    %v5092 = vpop.permute.xlu0 %5091
    %v5096 = vsel %vm1101, %v4903, 0
    %v5099 = vsel %vm1101, %v4904, 0
    %5101 = vmatprep.subr.mxu0 0.0
    %5102 = vmatpush1.msra.mxu0 %v5090
    %5103 = vmatprep.subr.mxu0 0.0
    %5104 = vmatpush1.msra.mxu0 %v5092
    %5105 = vmatprep.subr.mxu0 0.0
    %5106 = vmatpush1.msra.mxu0 0.0
    %5107 = vmatprep.subr.mxu0 0.0
    %5108 = vmatpush1.msra.mxu0 0.0
    %5109 = vmatprep.subr.mxu0 0.0
    %5110 = vmatpush1.msra.mxu0 0.0
    %5111 = vmatprep.subr.mxu0 0.0
    %5112 = vmatpush1.msra.mxu0 0.0
    %5113 = vmatprep.subr.mxu0 0.0
    %5114 = vmatpush1.msra.mxu0 0.0
    %5115 = vmatprep.subr.mxu0 0.0
    %5116 = vmatpush1.msra.mxu0 0.0
    %5117 = vmatprep.subr.mxu0 0.0
    %5118 = vmatpush1.msra.mxu0 0.0
    %5119 = vmatprep.subr.mxu0 0.0
    %5120 = vmatpush1.msra.mxu0 0.0
    %5121 = vmatprep.subr.mxu0 0.0
    %5122 = vmatpush1.msra.mxu0 0.0
    %5123 = vmatprep.subr.mxu0 0.0
    %5124 = vmatpush1.msra.mxu0 0.0
    %5125 = vmatprep.subr.mxu0 0.0
    %5126 = vmatpush1.msra.mxu0 0.0
    %5127 = vmatprep.subr.mxu0 0.0
    %5128 = vmatpush1.msra.mxu0 0.0
    %5129 = vmatprep.subr.mxu0 0.0
    %5130 = vmatpush1.msra.mxu0 0.0
    %5131 = vmatprep.subr.mxu0 0.0
    %5132 = vmatpush1.msra.mxu0 0.0
    %5133 = vmatprep.subr.mxu0 0.0
    %5134 = vmatpush1.msra.mxu0 0.0
    %5135 = vmatprep.subr.mxu0 0.0
    %5136 = vmatpush1.msra.mxu0 0.0
    %5137 = vmatprep.subr.mxu0 0.0
    %5138 = vmatpush1.msra.mxu0 0.0
    %5139 = vmatprep.subr.mxu0 0.0
    %5140 = vmatpush1.msra.mxu0 0.0
    %5141 = vmatprep.subr.mxu0 0.0
    %5142 = vmatpush1.msra.mxu0 0.0
    %5143 = vmatprep.subr.mxu0 0.0
    %5144 = vmatpush1.msra.mxu0 0.0
    %5145 = vmatprep.subr.mxu0 0.0
    %5146 = vmatpush1.msra.mxu0 0.0
    %5147 = vmatprep.subr.mxu0 0.0
    %5148 = vmatpush1.msra.mxu0 0.0
    %5149 = vmatprep.subr.mxu0 0.0
    %5150 = vmatpush1.msra.mxu0 0.0
    %5151 = vmatprep.subr.mxu0 0.0
    %5152 = vmatpush1.msra.mxu0 0.0
    %5153 = vmatprep.subr.mxu0 0.0
    %5154 = vmatpush1.msra.mxu0 0.0
    %5155 = vmatprep.subr.mxu0 0.0
    %5156 = vmatpush1.msra.mxu0 0.0
    %5157 = vmatprep.subr.mxu0 0.0
    %5158 = vmatpush1.msra.mxu0 0.0
    %5159 = vmatprep.subr.mxu0 0.0
    %5160 = vmatpush1.msra.mxu0 0.0
    %5161 = vmatprep.subr.mxu0 0.0
    %5162 = vmatpush1.msra.mxu0 0.0
    %5163 = vmatprep.subr.mxu0 0.0
    %5164 = vmatpush1.msra.mxu0 0.0
    %5165 = vmatprep.mubr.f32.mxu0 0.0
    %5166 = vmatmul.mubr.f32.gmra.mrb[0].mxu0 %v5096
    %v5167 = vpop.f32.mrb[0].mxu0
    %v5168 = vadd.f32 0.0, %v5167
    %v5169 = vpop.f32.mrb[0].mxu0
    %5170 = vmatprep.mubr.f32.mxu0 0.0
    %5171 = vmatmul.mubr.f32.gmra.mrb[0].mxu0 %v5099
    %v5172 = vpop.f32.mrb[0].mxu0
    %v5173 = vadd.f32 0.0, %v5172
    %v5174 = vpop.f32.mrb[0].mxu0
    %5175 = vdwg.mxu0
    %5176 = vrot.lane.b32.xlu0 %v268, 48
    %v5177 = vpop.permute.xlu0 %5176
    %5178 = vrot.lane.b32.xlu0 %v273, 48
    %v5179 = vpop.permute.xlu0 %5178
    %v5183 = vsel %vm1101, %v4905, 0
    %v5186 = vsel %vm1101, %v4906, 0
    %5188 = vmatprep.subr.mxu0 0.0
    %5189 = vmatpush1.msra.mxu0 %v5177
    %5190 = vmatprep.subr.mxu0 0.0
    %5191 = vmatpush1.msra.mxu0 %v5179
    %5192 = vmatprep.subr.mxu0 0.0
    %5193 = vmatpush1.msra.mxu0 0.0
    %5194 = vmatprep.subr.mxu0 0.0
    %5195 = vmatpush1.msra.mxu0 0.0
    %5196 = vmatprep.subr.mxu0 0.0
    %5197 = vmatpush1.msra.mxu0 0.0
    %5198 = vmatprep.subr.mxu0 0.0
    %5199 = vmatpush1.msra.mxu0 0.0
    %5200 = vmatprep.subr.mxu0 0.0
    %5201 = vmatpush1.msra.mxu0 0.0
    %5202 = vmatprep.subr.mxu0 0.0
    %5203 = vmatpush1.msra.mxu0 0.0
    %5204 = vmatprep.subr.mxu0 0.0
    %5205 = vmatpush1.msra.mxu0 0.0
    %5206 = vmatprep.subr.mxu0 0.0
    %5207 = vmatpush1.msra.mxu0 0.0
    %5208 = vmatprep.subr.mxu0 0.0
    %5209 = vmatpush1.msra.mxu0 0.0
    %5210 = vmatprep.subr.mxu0 0.0
    %5211 = vmatpush1.msra.mxu0 0.0
    %5212 = vmatprep.subr.mxu0 0.0
    %5213 = vmatpush1.msra.mxu0 0.0
    %5214 = vmatprep.subr.mxu0 0.0
    %5215 = vmatpush1.msra.mxu0 0.0
    %5216 = vmatprep.subr.mxu0 0.0
    %5217 = vmatpush1.msra.mxu0 0.0
    %5218 = vmatprep.subr.mxu0 0.0
    %5219 = vmatpush1.msra.mxu0 0.0
    %5220 = vmatprep.subr.mxu0 0.0
    %5221 = vmatpush1.msra.mxu0 0.0
    %5222 = vmatprep.subr.mxu0 0.0
    %5223 = vmatpush1.msra.mxu0 0.0
    %5224 = vmatprep.subr.mxu0 0.0
    %5225 = vmatpush1.msra.mxu0 0.0
    %5226 = vmatprep.subr.mxu0 0.0
    %5227 = vmatpush1.msra.mxu0 0.0
    %5228 = vmatprep.subr.mxu0 0.0
    %5229 = vmatpush1.msra.mxu0 0.0
    %5230 = vmatprep.subr.mxu0 0.0
    %5231 = vmatpush1.msra.mxu0 0.0
    %5232 = vmatprep.subr.mxu0 0.0
    %5233 = vmatpush1.msra.mxu0 0.0
    %5234 = vmatprep.subr.mxu0 0.0
    %5235 = vmatpush1.msra.mxu0 0.0
    %5236 = vmatprep.subr.mxu0 0.0
    %5237 = vmatpush1.msra.mxu0 0.0
    %5238 = vmatprep.subr.mxu0 0.0
    %5239 = vmatpush1.msra.mxu0 0.0
    %5240 = vmatprep.subr.mxu0 0.0
    %5241 = vmatpush1.msra.mxu0 0.0
    %5242 = vmatprep.subr.mxu0 0.0
    %5243 = vmatpush1.msra.mxu0 0.0
    %5244 = vmatprep.subr.mxu0 0.0
    %5245 = vmatpush1.msra.mxu0 0.0
    %5246 = vmatprep.subr.mxu0 0.0
    %5247 = vmatpush1.msra.mxu0 0.0
    %5248 = vmatprep.subr.mxu0 0.0
    %5249 = vmatpush1.msra.mxu0 0.0
    %5250 = vmatprep.subr.mxu0 0.0
    %5251 = vmatpush1.msra.mxu0 0.0
    %5252 = vmatprep.mubr.f32.mxu0 0.0
    %5253 = vmatmul.mubr.f32.gmra.mrb[0].mxu0 %v5183
    %v5254 = vpop.f32.mrb[0].mxu0
    %v5255 = vadd.f32 0.0, %v5254
    %v5256 = vpop.f32.mrb[0].mxu0
    %5257 = vmatprep.mubr.f32.mxu0 0.0
    %5258 = vmatmul.mubr.f32.gmra.mrb[0].mxu0 %v5186
    %v5259 = vpop.f32.mrb[0].mxu0
    %v5260 = vadd.f32 0.0, %v5259
    %v5261 = vpop.f32.mrb[0].mxu0
    %5262 = vdwg.mxu0
    %5263 = vrot.lane.b32.xlu0 %v278, 48
    %v5264 = vpop.permute.xlu0 %5263
    %5265 = vrot.lane.b32.xlu0 %v283, 48
    %v5266 = vpop.permute.xlu0 %5265
    %v5270 = vsel %vm1101, %v4907, 0
    %v5273 = vsel %vm1101, %v4908, 0
    %5275 = vmatprep.subr.mxu0 0.0
    %5276 = vmatpush1.msra.mxu0 %v5264
    %5277 = vmatprep.subr.mxu0 0.0
    %5278 = vmatpush1.msra.mxu0 %v5266
    %5279 = vmatprep.subr.mxu0 0.0
    %5280 = vmatpush1.msra.mxu0 0.0
    %5281 = vmatprep.subr.mxu0 0.0
    %5282 = vmatpush1.msra.mxu0 0.0
    %5283 = vmatprep.subr.mxu0 0.0
    %5284 = vmatpush1.msra.mxu0 0.0
    %5285 = vmatprep.subr.mxu0 0.0
    %5286 = vmatpush1.msra.mxu0 0.0
    %5287 = vmatprep.subr.mxu0 0.0
    %5288 = vmatpush1.msra.mxu0 0.0
    %5289 = vmatprep.subr.mxu0 0.0
    %5290 = vmatpush1.msra.mxu0 0.0
    %5291 = vmatprep.subr.mxu0 0.0
    %5292 = vmatpush1.msra.mxu0 0.0
    %5293 = vmatprep.subr.mxu0 0.0
    %5294 = vmatpush1.msra.mxu0 0.0
    %5295 = vmatprep.subr.mxu0 0.0
    %5296 = vmatpush1.msra.mxu0 0.0
    %5297 = vmatprep.subr.mxu0 0.0
    %5298 = vmatpush1.msra.mxu0 0.0
    %5299 = vmatprep.subr.mxu0 0.0
    %5300 = vmatpush1.msra.mxu0 0.0
    %5301 = vmatprep.subr.mxu0 0.0
    %5302 = vmatpush1.msra.mxu0 0.0
    %5303 = vmatprep.subr.mxu0 0.0
    %5304 = vmatpush1.msra.mxu0 0.0
    %5305 = vmatprep.subr.mxu0 0.0
    %5306 = vmatpush1.msra.mxu0 0.0
    %5307 = vmatprep.subr.mxu0 0.0
    %5308 = vmatpush1.msra.mxu0 0.0
    %5309 = vmatprep.subr.mxu0 0.0
    %5310 = vmatpush1.msra.mxu0 0.0
    %5311 = vmatprep.subr.mxu0 0.0
    %5312 = vmatpush1.msra.mxu0 0.0
    %5313 = vmatprep.subr.mxu0 0.0
    %5314 = vmatpush1.msra.mxu0 0.0
    %5315 = vmatprep.subr.mxu0 0.0
    %5316 = vmatpush1.msra.mxu0 0.0
    %5317 = vmatprep.subr.mxu0 0.0
    %5318 = vmatpush1.msra.mxu0 0.0
    %5319 = vmatprep.subr.mxu0 0.0
    %5320 = vmatpush1.msra.mxu0 0.0
    %5321 = vmatprep.subr.mxu0 0.0
    %5322 = vmatpush1.msra.mxu0 0.0
    %5323 = vmatprep.subr.mxu0 0.0
    %5324 = vmatpush1.msra.mxu0 0.0
    %5325 = vmatprep.subr.mxu0 0.0
    %5326 = vmatpush1.msra.mxu0 0.0
    %5327 = vmatprep.subr.mxu0 0.0
    %5328 = vmatpush1.msra.mxu0 0.0
    %5329 = vmatprep.subr.mxu0 0.0
    %5330 = vmatpush1.msra.mxu0 0.0
    %5331 = vmatprep.subr.mxu0 0.0
    %5332 = vmatpush1.msra.mxu0 0.0
    %5333 = vmatprep.subr.mxu0 0.0
    %5334 = vmatpush1.msra.mxu0 0.0
    %5335 = vmatprep.subr.mxu0 0.0
    %5336 = vmatpush1.msra.mxu0 0.0
    %5337 = vmatprep.subr.mxu0 0.0
    %5338 = vmatpush1.msra.mxu0 0.0
    %5339 = vmatprep.mubr.f32.mxu0 0.0
    %5340 = vmatmul.mubr.f32.gmra.mrb[0].mxu0 %v5270
    %v5341 = vpop.f32.mrb[0].mxu0
    %v5342 = vadd.f32 0.0, %v5341
    %v5343 = vpop.f32.mrb[0].mxu0
    %5344 = vmatprep.mubr.f32.mxu0 0.0
    %5345 = vmatmul.mubr.f32.gmra.mrb[0].mxu0 %v5273
    %v5346 = vpop.f32.mrb[0].mxu0
    %v5347 = vadd.f32 0.0, %v5346
    %v5348 = vpop.f32.mrb[0].mxu0
    %5349 = vdwg.mxu0
    %5350 = vrot.lane.b32.xlu0 %v288, 48
    %v5351 = vpop.permute.xlu0 %5350
    %5352 = vrot.lane.b32.xlu0 %v293, 48
    %v5353 = vpop.permute.xlu0 %5352
    %v5357 = vsel %vm1101, %v4909, 0
    %v5360 = vsel %vm1101, %v4910, 0
    %5362 = vmatprep.subr.mxu0 0.0
    %5363 = vmatpush1.msra.mxu0 %v5351
    %5364 = vmatprep.subr.mxu0 0.0
    %5365 = vmatpush1.msra.mxu0 %v5353
    %5366 = vmatprep.subr.mxu0 0.0
    %5367 = vmatpush1.msra.mxu0 0.0
    %5368 = vmatprep.subr.mxu0 0.0
    %5369 = vmatpush1.msra.mxu0 0.0
    %5370 = vmatprep.subr.mxu0 0.0
    %5371 = vmatpush1.msra.mxu0 0.0
    %5372 = vmatprep.subr.mxu0 0.0
    %5373 = vmatpush1.msra.mxu0 0.0
    %5374 = vmatprep.subr.mxu0 0.0
    %5375 = vmatpush1.msra.mxu0 0.0
    %5376 = vmatprep.subr.mxu0 0.0
    %5377 = vmatpush1.msra.mxu0 0.0
    %5378 = vmatprep.subr.mxu0 0.0
    %5379 = vmatpush1.msra.mxu0 0.0
    %5380 = vmatprep.subr.mxu0 0.0
    %5381 = vmatpush1.msra.mxu0 0.0
    %5382 = vmatprep.subr.mxu0 0.0
    %5383 = vmatpush1.msra.mxu0 0.0
    %5384 = vmatprep.subr.mxu0 0.0
    %5385 = vmatpush1.msra.mxu0 0.0
    %5386 = vmatprep.subr.mxu0 0.0
    %5387 = vmatpush1.msra.mxu0 0.0
    %5388 = vmatprep.subr.mxu0 0.0
    %5389 = vmatpush1.msra.mxu0 0.0
    %5390 = vmatprep.subr.mxu0 0.0
    %5391 = vmatpush1.msra.mxu0 0.0
    %5392 = vmatprep.subr.mxu0 0.0
    %5393 = vmatpush1.msra.mxu0 0.0
    %5394 = vmatprep.subr.mxu0 0.0
    %5395 = vmatpush1.msra.mxu0 0.0
    %5396 = vmatprep.subr.mxu0 0.0
    %5397 = vmatpush1.msra.mxu0 0.0
    %5398 = vmatprep.subr.mxu0 0.0
    %5399 = vmatpush1.msra.mxu0 0.0
    %5400 = vmatprep.subr.mxu0 0.0
    %5401 = vmatpush1.msra.mxu0 0.0
    %5402 = vmatprep.subr.mxu0 0.0
    %5403 = vmatpush1.msra.mxu0 0.0
    %5404 = vmatprep.subr.mxu0 0.0
    %5405 = vmatpush1.msra.mxu0 0.0
    %5406 = vmatprep.subr.mxu0 0.0
    %5407 = vmatpush1.msra.mxu0 0.0
    %5408 = vmatprep.subr.mxu0 0.0
    %5409 = vmatpush1.msra.mxu0 0.0
    %5410 = vmatprep.subr.mxu0 0.0
    %5411 = vmatpush1.msra.mxu0 0.0
    %5412 = vmatprep.subr.mxu0 0.0
    %5413 = vmatpush1.msra.mxu0 0.0
    %5414 = vmatprep.subr.mxu0 0.0
    %5415 = vmatpush1.msra.mxu0 0.0
    %5416 = vmatprep.subr.mxu0 0.0
    %5417 = vmatpush1.msra.mxu0 0.0
    %5418 = vmatprep.subr.mxu0 0.0
    %5419 = vmatpush1.msra.mxu0 0.0
    %5420 = vmatprep.subr.mxu0 0.0
    %5421 = vmatpush1.msra.mxu0 0.0
    %5422 = vmatprep.subr.mxu0 0.0
    %5423 = vmatpush1.msra.mxu0 0.0
    %5424 = vmatprep.subr.mxu0 0.0
    %5425 = vmatpush1.msra.mxu0 0.0
    %5426 = vmatprep.mubr.f32.mxu0 0.0
    %5427 = vmatmul.mubr.f32.gmra.mrb[0].mxu0 %v5357
    %v5428 = vpop.f32.mrb[0].mxu0
    %v5429 = vadd.f32 0.0, %v5428
    %v5430 = vpop.f32.mrb[0].mxu0
    %5431 = vmatprep.mubr.f32.mxu0 0.0
    %5432 = vmatmul.mubr.f32.gmra.mrb[0].mxu0 %v5360
    %v5433 = vpop.f32.mrb[0].mxu0
    %v5434 = vadd.f32 0.0, %v5433
    %v5435 = vpop.f32.mrb[0].mxu0
    %5436 = vdwg.mxu0
    %5437 = vrot.lane.b32.xlu0 %v298, 48
    %v5438 = vpop.permute.xlu0 %5437
    %5439 = vrot.lane.b32.xlu0 %v303, 48
    %v5440 = vpop.permute.xlu0 %5439
    %v5444 = vsel %vm1101, %v4911, 0
    %v5447 = vsel %vm1101, %v4912, 0
    %5449 = vmatprep.subr.mxu0 0.0
    %5450 = vmatpush1.msra.mxu0 %v5438
    %5451 = vmatprep.subr.mxu0 0.0
    %5452 = vmatpush1.msra.mxu0 %v5440
    %5453 = vmatprep.subr.mxu0 0.0
    %5454 = vmatpush1.msra.mxu0 0.0
    %5455 = vmatprep.subr.mxu0 0.0
    %5456 = vmatpush1.msra.mxu0 0.0
    %5457 = vmatprep.subr.mxu0 0.0
    %5458 = vmatpush1.msra.mxu0 0.0
    %5459 = vmatprep.subr.mxu0 0.0
    %5460 = vmatpush1.msra.mxu0 0.0
    %5461 = vmatprep.subr.mxu0 0.0
    %5462 = vmatpush1.msra.mxu0 0.0
    %5463 = vmatprep.subr.mxu0 0.0
    %5464 = vmatpush1.msra.mxu0 0.0
    %5465 = vmatprep.subr.mxu0 0.0
    %5466 = vmatpush1.msra.mxu0 0.0
    %5467 = vmatprep.subr.mxu0 0.0
    %5468 = vmatpush1.msra.mxu0 0.0
    %5469 = vmatprep.subr.mxu0 0.0
    %5470 = vmatpush1.msra.mxu0 0.0
    %5471 = vmatprep.subr.mxu0 0.0
    %5472 = vmatpush1.msra.mxu0 0.0
    %5473 = vmatprep.subr.mxu0 0.0
    %5474 = vmatpush1.msra.mxu0 0.0
    %5475 = vmatprep.subr.mxu0 0.0
    %5476 = vmatpush1.msra.mxu0 0.0
    %5477 = vmatprep.subr.mxu0 0.0
    %5478 = vmatpush1.msra.mxu0 0.0
    %5479 = vmatprep.subr.mxu0 0.0
    %5480 = vmatpush1.msra.mxu0 0.0
    %5481 = vmatprep.subr.mxu0 0.0
    %5482 = vmatpush1.msra.mxu0 0.0
    %5483 = vmatprep.subr.mxu0 0.0
    %5484 = vmatpush1.msra.mxu0 0.0
    %5485 = vmatprep.subr.mxu0 0.0
    %5486 = vmatpush1.msra.mxu0 0.0
    %5487 = vmatprep.subr.mxu0 0.0
    %5488 = vmatpush1.msra.mxu0 0.0
    %5489 = vmatprep.subr.mxu0 0.0
    %5490 = vmatpush1.msra.mxu0 0.0
    %5491 = vmatprep.subr.mxu0 0.0
    %5492 = vmatpush1.msra.mxu0 0.0
    %5493 = vmatprep.subr.mxu0 0.0
    %5494 = vmatpush1.msra.mxu0 0.0
    %5495 = vmatprep.subr.mxu0 0.0
    %5496 = vmatpush1.msra.mxu0 0.0
    %5497 = vmatprep.subr.mxu0 0.0
    %5498 = vmatpush1.msra.mxu0 0.0
    %5499 = vmatprep.subr.mxu0 0.0
    %5500 = vmatpush1.msra.mxu0 0.0
    %5501 = vmatprep.subr.mxu0 0.0
    %5502 = vmatpush1.msra.mxu0 0.0
    %5503 = vmatprep.subr.mxu0 0.0
    %5504 = vmatpush1.msra.mxu0 0.0
    %5505 = vmatprep.subr.mxu0 0.0
    %5506 = vmatpush1.msra.mxu0 0.0
    %5507 = vmatprep.subr.mxu0 0.0
    %5508 = vmatpush1.msra.mxu0 0.0
    %5509 = vmatprep.subr.mxu0 0.0
    %5510 = vmatpush1.msra.mxu0 0.0
    %5511 = vmatprep.subr.mxu0 0.0
    %5512 = vmatpush1.msra.mxu0 0.0
    %5513 = vmatprep.mubr.f32.mxu0 0.0
    %5514 = vmatmul.mubr.f32.gmra.mrb[0].mxu0 %v5444
    %v5515 = vpop.f32.mrb[0].mxu0
    %v5516 = vadd.f32 0.0, %v5515
    %v5517 = vpop.f32.mrb[0].mxu0
    %5518 = vmatprep.mubr.f32.mxu0 0.0
    %5519 = vmatmul.mubr.f32.gmra.mrb[0].mxu0 %v5447
    %v5520 = vpop.f32.mrb[0].mxu0
    %v5521 = vadd.f32 0.0, %v5520
    %v5522 = vpop.f32.mrb[0].mxu0
    %5523 = vdwg.mxu0
    %5524 = vrot.lane.b32.xlu0 %v308, 48
    %v5525 = vpop.permute.xlu0 %5524
    %5526 = vrot.lane.b32.xlu0 %v313, 48
    %v5527 = vpop.permute.xlu0 %5526
    %v5531 = vsel %vm1101, %v4913, 0
    %v5534 = vsel %vm1101, %v4914, 0
    %5536 = vmatprep.subr.mxu0 0.0
    %5537 = vmatpush1.msra.mxu0 %v5525
    %5538 = vmatprep.subr.mxu0 0.0
    %5539 = vmatpush1.msra.mxu0 %v5527
    %5540 = vmatprep.subr.mxu0 0.0
    %5541 = vmatpush1.msra.mxu0 0.0
    %5542 = vmatprep.subr.mxu0 0.0
    %5543 = vmatpush1.msra.mxu0 0.0
    %5544 = vmatprep.subr.mxu0 0.0
    %5545 = vmatpush1.msra.mxu0 0.0
    %5546 = vmatprep.subr.mxu0 0.0
    %5547 = vmatpush1.msra.mxu0 0.0
    %5548 = vmatprep.subr.mxu0 0.0
    %5549 = vmatpush1.msra.mxu0 0.0
    %5550 = vmatprep.subr.mxu0 0.0
    %5551 = vmatpush1.msra.mxu0 0.0
    %5552 = vmatprep.subr.mxu0 0.0
    %5553 = vmatpush1.msra.mxu0 0.0
    %5554 = vmatprep.subr.mxu0 0.0
    %5555 = vmatpush1.msra.mxu0 0.0
    %5556 = vmatprep.subr.mxu0 0.0
    %5557 = vmatpush1.msra.mxu0 0.0
    %5558 = vmatprep.subr.mxu0 0.0
    %5559 = vmatpush1.msra.mxu0 0.0
    %5560 = vmatprep.subr.mxu0 0.0
    %5561 = vmatpush1.msra.mxu0 0.0
    %5562 = vmatprep.subr.mxu0 0.0
    %5563 = vmatpush1.msra.mxu0 0.0
    %5564 = vmatprep.subr.mxu0 0.0
    %5565 = vmatpush1.msra.mxu0 0.0
    %5566 = vmatprep.subr.mxu0 0.0
    %5567 = vmatpush1.msra.mxu0 0.0
    %5568 = vmatprep.subr.mxu0 0.0
    %5569 = vmatpush1.msra.mxu0 0.0
    %5570 = vmatprep.subr.mxu0 0.0
    %5571 = vmatpush1.msra.mxu0 0.0
    %5572 = vmatprep.subr.mxu0 0.0
    %5573 = vmatpush1.msra.mxu0 0.0
    %5574 = vmatprep.subr.mxu0 0.0
    %5575 = vmatpush1.msra.mxu0 0.0
    %5576 = vmatprep.subr.mxu0 0.0
    %5577 = vmatpush1.msra.mxu0 0.0
    %5578 = vmatprep.subr.mxu0 0.0
    %5579 = vmatpush1.msra.mxu0 0.0
    %5580 = vmatprep.subr.mxu0 0.0
    %5581 = vmatpush1.msra.mxu0 0.0
    %5582 = vmatprep.subr.mxu0 0.0
    %5583 = vmatpush1.msra.mxu0 0.0
    %5584 = vmatprep.subr.mxu0 0.0
    %5585 = vmatpush1.msra.mxu0 0.0
    %5586 = vmatprep.subr.mxu0 0.0
    %5587 = vmatpush1.msra.mxu0 0.0
    %5588 = vmatprep.subr.mxu0 0.0
    %5589 = vmatpush1.msra.mxu0 0.0
    %5590 = vmatprep.subr.mxu0 0.0
    %5591 = vmatpush1.msra.mxu0 0.0
    %5592 = vmatprep.subr.mxu0 0.0
    %5593 = vmatpush1.msra.mxu0 0.0
    %5594 = vmatprep.subr.mxu0 0.0
    %5595 = vmatpush1.msra.mxu0 0.0
    %5596 = vmatprep.subr.mxu0 0.0
    %5597 = vmatpush1.msra.mxu0 0.0
    %5598 = vmatprep.subr.mxu0 0.0
    %5599 = vmatpush1.msra.mxu0 0.0
    %5600 = vmatprep.mubr.f32.mxu0 0.0
    %5601 = vmatmul.mubr.f32.gmra.mrb[0].mxu0 %v5531
    %v5602 = vpop.f32.mrb[0].mxu0
    %v5603 = vadd.f32 0.0, %v5602
    %v5604 = vpop.f32.mrb[0].mxu0
    %5605 = vmatprep.mubr.f32.mxu0 0.0
    %5606 = vmatmul.mubr.f32.gmra.mrb[0].mxu0 %v5534
    %v5607 = vpop.f32.mrb[0].mxu0
    %v5608 = vadd.f32 0.0, %v5607
    %v5609 = vpop.f32.mrb[0].mxu0
    %5610 = vdwg.mxu0
    %s5611 = scalar_lea.vmem [#allocation10], 16
    %v5612 = vld [vmem:[%s5611] sm:$0xff]
    %v5614 = vsel %vm354, %v4994, 0
    %v5617 = vsel %vm354, %v4999, 0
    %v5620 = vsel %vm354, %v5081, 0
    %v5623 = vsel %vm354, %v5086, 0
    %v5626 = vsel %vm354, %v5168, 0
    %v5629 = vsel %vm354, %v5173, 0
    %v5632 = vsel %vm354, %v5255, 0
    %v5635 = vsel %vm354, %v5260, 0
    %v5638 = vsel %vm354, %v5342, 0
    %v5641 = vsel %vm354, %v5347, 0
    %v5644 = vsel %vm354, %v5429, 0
    %v5647 = vsel %vm354, %v5434, 0
    %v5650 = vsel %vm354, %v5516, 0
    %v5653 = vsel %vm354, %v5521, 0
    %v5656 = vsel %vm354, %v5603, 0
    %v5659 = vsel %vm354, %v5608, 0
    %5661 = vmatprep.subr.mxu0 0.0
    %5662 = vmatpush1.msra.mxu0 %v5612
    %5663 = vmatprep.subr.mxu0 0.0
    %5664 = vmatpush1.msra.mxu0 0.0
    %5665 = vmatprep.subr.mxu0 0.0
    %5666 = vmatpush1.msra.mxu0 0.0
    %5667 = vmatprep.subr.mxu0 0.0
    %5668 = vmatpush1.msra.mxu0 0.0
    %5669 = vmatprep.subr.mxu0 0.0
    %5670 = vmatpush1.msra.mxu0 0.0
    %5671 = vmatprep.subr.mxu0 0.0
    %5672 = vmatpush1.msra.mxu0 0.0
    %5673 = vmatprep.subr.mxu0 0.0
    %5674 = vmatpush1.msra.mxu0 0.0
    %5675 = vmatprep.subr.mxu0 0.0
    %5676 = vmatpush1.msra.mxu0 0.0
    %5677 = vmatprep.subr.mxu0 0.0
    %5678 = vmatpush1.msra.mxu0 0.0
    %5679 = vmatprep.subr.mxu0 0.0
    %5680 = vmatpush1.msra.mxu0 0.0
    %5681 = vmatprep.subr.mxu0 0.0
    %5682 = vmatpush1.msra.mxu0 0.0
    %5683 = vmatprep.subr.mxu0 0.0
    %5684 = vmatpush1.msra.mxu0 0.0
    %5685 = vmatprep.subr.mxu0 0.0
    %5686 = vmatpush1.msra.mxu0 0.0
    %5687 = vmatprep.subr.mxu0 0.0
    %5688 = vmatpush1.msra.mxu0 0.0
    %5689 = vmatprep.subr.mxu0 0.0
    %5690 = vmatpush1.msra.mxu0 0.0
    %5691 = vmatprep.subr.mxu0 0.0
    %5692 = vmatpush1.msra.mxu0 0.0
    %5693 = vmatprep.subr.mxu0 0.0
    %5694 = vmatpush1.msra.mxu0 0.0
    %5695 = vmatprep.subr.mxu0 0.0
    %5696 = vmatpush1.msra.mxu0 0.0
    %5697 = vmatprep.subr.mxu0 0.0
    %5698 = vmatpush1.msra.mxu0 0.0
    %5699 = vmatprep.subr.mxu0 0.0
    %5700 = vmatpush1.msra.mxu0 0.0
    %5701 = vmatprep.subr.mxu0 0.0
    %5702 = vmatpush1.msra.mxu0 0.0
    %5703 = vmatprep.subr.mxu0 0.0
    %5704 = vmatpush1.msra.mxu0 0.0
    %5705 = vmatprep.subr.mxu0 0.0
    %5706 = vmatpush1.msra.mxu0 0.0
    %5707 = vmatprep.subr.mxu0 0.0
    %5708 = vmatpush1.msra.mxu0 0.0
    %5709 = vmatprep.subr.mxu0 0.0
    %5710 = vmatpush1.msra.mxu0 0.0
    %5711 = vmatprep.subr.mxu0 0.0
    %5712 = vmatpush1.msra.mxu0 0.0
    %5713 = vmatprep.subr.mxu0 0.0
    %5714 = vmatpush1.msra.mxu0 0.0
    %5715 = vmatprep.subr.mxu0 0.0
    %5716 = vmatpush1.msra.mxu0 0.0
    %5717 = vmatprep.subr.mxu0 0.0
    %5718 = vmatpush1.msra.mxu0 0.0
    %5719 = vmatprep.subr.mxu0 0.0
    %5720 = vmatpush1.msra.mxu0 0.0
    %5721 = vmatprep.subr.mxu0 0.0
    %5722 = vmatpush1.msra.mxu0 0.0
    %5723 = vmatprep.subr.mxu0 0.0
    %5724 = vmatpush1.msra.mxu0 0.0
    %5725 = vmatprep.mubr.f32.mxu0 0.0
    %5726 = vmatmul.mubr.f32.gmra.mrb[0].mxu0 %v5614
    %v5727 = vpop.f32.mrb[0].mxu0
    %v5728 = vadd.f32 0.0, %v5727
    %v5729 = vpop.f32.mrb[0].mxu0
    %5730 = vmatprep.mubr.f32.mxu0 0.0
    %5731 = vmatmul.mubr.f32.gmra.mrb[0].mxu0 %v5617
    %v5732 = vpop.f32.mrb[0].mxu0
    %v5733 = vadd.f32 0.0, %v5732
    %v5734 = vpop.f32.mrb[0].mxu0
    %5735 = vmatprep.mubr.f32.mxu0 0.0
    %5736 = vmatmul.mubr.f32.gmra.mrb[0].mxu0 %v5620
    %v5737 = vpop.f32.mrb[0].mxu0
    %v5738 = vadd.f32 0.0, %v5737
    %v5739 = vpop.f32.mrb[0].mxu0
    %5740 = vmatprep.mubr.f32.mxu0 0.0
    %5741 = vmatmul.mubr.f32.gmra.mrb[0].mxu0 %v5623
    %v5742 = vpop.f32.mrb[0].mxu0
    %v5743 = vadd.f32 0.0, %v5742
    %v5744 = vpop.f32.mrb[0].mxu0
    %5745 = vmatprep.mubr.f32.mxu0 0.0
    %5746 = vmatmul.mubr.f32.gmra.mrb[0].mxu0 %v5626
    %v5747 = vpop.f32.mrb[0].mxu0
    %v5748 = vadd.f32 0.0, %v5747
    %v5749 = vpop.f32.mrb[0].mxu0
    %5750 = vmatprep.mubr.f32.mxu0 0.0
    %5751 = vmatmul.mubr.f32.gmra.mrb[0].mxu0 %v5629
    %v5752 = vpop.f32.mrb[0].mxu0
    %v5753 = vadd.f32 0.0, %v5752
    %v5754 = vpop.f32.mrb[0].mxu0
    %5755 = vmatprep.mubr.f32.mxu0 0.0
    %5756 = vmatmul.mubr.f32.gmra.mrb[0].mxu0 %v5632
    %v5757 = vpop.f32.mrb[0].mxu0
    %v5758 = vadd.f32 0.0, %v5757
    %v5759 = vpop.f32.mrb[0].mxu0
    %5760 = vmatprep.mubr.f32.mxu0 0.0
    %5761 = vmatmul.mubr.f32.gmra.mrb[0].mxu0 %v5635
    %v5762 = vpop.f32.mrb[0].mxu0
    %v5763 = vadd.f32 0.0, %v5762
    %v5764 = vpop.f32.mrb[0].mxu0
    %5765 = vmatprep.mubr.f32.mxu0 0.0
    %5766 = vmatmul.mubr.f32.gmra.mrb[0].mxu0 %v5638
    %v5767 = vpop.f32.mrb[0].mxu0
    %v5768 = vadd.f32 0.0, %v5767
    %v5769 = vpop.f32.mrb[0].mxu0
    %5770 = vmatprep.mubr.f32.mxu0 0.0
    %5771 = vmatmul.mubr.f32.gmra.mrb[0].mxu0 %v5641
    %v5772 = vpop.f32.mrb[0].mxu0
    %v5773 = vadd.f32 0.0, %v5772
    %v5774 = vpop.f32.mrb[0].mxu0
    %5775 = vmatprep.mubr.f32.mxu0 0.0
    %5776 = vmatmul.mubr.f32.gmra.mrb[0].mxu0 %v5644
    %v5777 = vpop.f32.mrb[0].mxu0
    %v5778 = vadd.f32 0.0, %v5777
    %v5779 = vpop.f32.mrb[0].mxu0
    %5780 = vmatprep.mubr.f32.mxu0 0.0
    %5781 = vmatmul.mubr.f32.gmra.mrb[0].mxu0 %v5647
    %v5782 = vpop.f32.mrb[0].mxu0
    %v5783 = vadd.f32 0.0, %v5782
    %v5784 = vpop.f32.mrb[0].mxu0
    %5785 = vmatprep.mubr.f32.mxu0 0.0
    %5786 = vmatmul.mubr.f32.gmra.mrb[0].mxu0 %v5650
    %v5787 = vpop.f32.mrb[0].mxu0
    %v5788 = vadd.f32 0.0, %v5787
    %v5789 = vpop.f32.mrb[0].mxu0
    %5790 = vmatprep.mubr.f32.mxu0 0.0
    %5791 = vmatmul.mubr.f32.gmra.mrb[0].mxu0 %v5653
    %v5792 = vpop.f32.mrb[0].mxu0
    %v5793 = vadd.f32 0.0, %v5792
    %v5794 = vpop.f32.mrb[0].mxu0
    %5795 = vmatprep.mubr.f32.mxu0 0.0
    %5796 = vmatmul.mubr.f32.gmra.mrb[0].mxu0 %v5656
    %v5797 = vpop.f32.mrb[0].mxu0
    %v5798 = vadd.f32 0.0, %v5797
    %v5799 = vpop.f32.mrb[0].mxu0
    %5800 = vmatprep.mubr.f32.mxu0 0.0
    %5801 = vmatmul.mubr.f32.gmra.mrb[0].mxu0 %v5659
    %v5802 = vpop.f32.mrb[0].mxu0
    %v5803 = vadd.f32 0.0, %v5802
    %v5804 = vpop.f32.mrb[0].mxu0
    %5805 = vdwg.mxu0
    %v5806 = vadd.f32 %v3909, %v5728
    %v5807 = vadd.f32 %v3914, %v5733
    %v5808 = vadd.f32 %v3919, %v5738
    %v5809 = vadd.f32 %v3924, %v5743
    %v5810 = vadd.f32 %v3929, %v5748
    %v5811 = vadd.f32 %v3934, %v5753
    %v5812 = vadd.f32 %v3939, %v5758
    %v5813 = vadd.f32 %v3944, %v5763
    %v5814 = vadd.f32 %v3949, %v5768
    %v5815 = vadd.f32 %v3954, %v5773
    %v5816 = vadd.f32 %v3959, %v5778
    %v5817 = vadd.f32 %v3964, %v5783
    %v5818 = vadd.f32 %v3969, %v5788
    %v5819 = vadd.f32 %v3974, %v5793
    %v5820 = vadd.f32 %v3979, %v5798
    %v5821 = vadd.f32 %v3984, %v5803
    %5822 = vrot.lane.b32.xlu0 %v332, 104
    %v5823 = vpop.permute.xlu0 %5822
    %5824 = vrot.lane.b32.xlu0 %v333, 104
    %v5825 = vpop.permute.xlu0 %5824
    %5826 = vrot.lane.b32.xlu0 %v238, 72
    %v5827 = vpop.permute.xlu0 %5826
    %5828 = vrot.lane.b32.xlu0 %v243, 72
    %v5829 = vpop.permute.xlu0 %5828
    %v5830 = vsel %vm354, %v5823, 0
    %v5832 = vsel %vm354, %v5825, 0
    %v5834 = vsel %vm354, %v5827, 0
    %v5836 = vsel %vm354, %v5829, 0
    %5838 = vmatprep.subr.mxu0 0.0
    %5839 = vmatpush1.xpose.msra.mxu0 %v5834
    %5840 = vmatprep.subr.mxu0 0.0
    %5841 = vmatpush1.xpose.msra.mxu0 %v5836
    %5842 = vmatprep.subr.mxu0 0.0
    %5843 = vmatpush1.xpose.msra.mxu0 0.0
    %5844 = vmatprep.subr.mxu0 0.0
    %5845 = vmatpush1.xpose.msra.mxu0 0.0
    %5846 = vmatprep.subr.mxu0 0.0
    %5847 = vmatpush1.xpose.msra.mxu0 0.0
    %5848 = vmatprep.subr.mxu0 0.0
    %5849 = vmatpush1.xpose.msra.mxu0 0.0
    %5850 = vmatprep.subr.mxu0 0.0
    %5851 = vmatpush1.xpose.msra.mxu0 0.0
    %5852 = vmatprep.subr.mxu0 0.0
    %5853 = vmatpush1.xpose.msra.mxu0 0.0
    %5854 = vmatprep.subr.mxu0 0.0
    %5855 = vmatpush1.xpose.msra.mxu0 0.0
    %5856 = vmatprep.subr.mxu0 0.0
    %5857 = vmatpush1.xpose.msra.mxu0 0.0
    %5858 = vmatprep.subr.mxu0 0.0
    %5859 = vmatpush1.xpose.msra.mxu0 0.0
    %5860 = vmatprep.subr.mxu0 0.0
    %5861 = vmatpush1.xpose.msra.mxu0 0.0
    %5862 = vmatprep.subr.mxu0 0.0
    %5863 = vmatpush1.xpose.msra.mxu0 0.0
    %5864 = vmatprep.subr.mxu0 0.0
    %5865 = vmatpush1.xpose.msra.mxu0 0.0
    %5866 = vmatprep.subr.mxu0 0.0
    %5867 = vmatpush1.xpose.msra.mxu0 0.0
    %5868 = vmatprep.subr.mxu0 0.0
    %5869 = vmatpush1.xpose.msra.mxu0 0.0
    %5870 = vmatprep.subr.mxu0 0.0
    %5871 = vmatpush1.xpose.msra.mxu0 0.0
    %5872 = vmatprep.subr.mxu0 0.0
    %5873 = vmatpush1.xpose.msra.mxu0 0.0
    %5874 = vmatprep.subr.mxu0 0.0
    %5875 = vmatpush1.xpose.msra.mxu0 0.0
    %5876 = vmatprep.subr.mxu0 0.0
    %5877 = vmatpush1.xpose.msra.mxu0 0.0
    %5878 = vmatprep.subr.mxu0 0.0
    %5879 = vmatpush1.xpose.msra.mxu0 0.0
    %5880 = vmatprep.subr.mxu0 0.0
    %5881 = vmatpush1.xpose.msra.mxu0 0.0
    %5882 = vmatprep.subr.mxu0 0.0
    %5883 = vmatpush1.xpose.msra.mxu0 0.0
    %5884 = vmatprep.subr.mxu0 0.0
    %5885 = vmatpush1.xpose.msra.mxu0 0.0
    %5886 = vmatprep.subr.mxu0 0.0
    %5887 = vmatpush1.xpose.msra.mxu0 0.0
    %5888 = vmatprep.subr.mxu0 0.0
    %5889 = vmatpush1.xpose.msra.mxu0 0.0
    %5890 = vmatprep.subr.mxu0 0.0
    %5891 = vmatpush1.xpose.msra.mxu0 0.0
    %5892 = vmatprep.subr.mxu0 0.0
    %5893 = vmatpush1.xpose.msra.mxu0 0.0
    %5894 = vmatprep.subr.mxu0 0.0
    %5895 = vmatpush1.xpose.msra.mxu0 0.0
    %5896 = vmatprep.subr.mxu0 0.0
    %5897 = vmatpush1.xpose.msra.mxu0 0.0
    %5898 = vmatprep.subr.mxu0 0.0
    %5899 = vmatpush1.xpose.msra.mxu0 0.0
    %5900 = vmatprep.subr.mxu0 0.0
    %5901 = vmatpush1.xpose.msra.mxu0 0.0
    %5902 = vmatprep.mubr.f32.mxu0 0.0
    %5903 = vmatmul.mubr.f32.gmra.mrb[0].mxu0 %v5830
    %v5904 = vpop.f32.mrb[0].mxu0
    %v5905 = vadd.f32 0.0, %v5904
    %v5906 = vpop.f32.mrb[0].mxu0
    %5907 = vmatprep.mubr.f32.mxu0 0.0
    %5908 = vmatmul.mubr.f32.gmra.mrb[0].mxu0 %v5832
    %v5909 = vpop.f32.mrb[0].mxu0
    %v5910 = vadd.f32 0.0, %v5909
    %v5911 = vpop.f32.mrb[0].mxu0
    %5912 = vdwg.mxu0
    %5913 = vrot.lane.b32.xlu0 %v334, 104
    %v5914 = vpop.permute.xlu0 %5913
    %5915 = vrot.lane.b32.xlu0 %v335, 104
    %v5916 = vpop.permute.xlu0 %5915
    %5917 = vrot.lane.b32.xlu0 %v248, 72
    %v5918 = vpop.permute.xlu0 %5917
    %5919 = vrot.lane.b32.xlu0 %v253, 72
    %v5920 = vpop.permute.xlu0 %5919
    %v5921 = vsel %vm354, %v5914, 0
    %v5923 = vsel %vm354, %v5916, 0
    %v5925 = vsel %vm354, %v5918, 0
    %v5927 = vsel %vm354, %v5920, 0
    %5929 = vmatprep.subr.mxu0 0.0
    %5930 = vmatpush1.xpose.msra.mxu0 %v5925
    %5931 = vmatprep.subr.mxu0 0.0
    %5932 = vmatpush1.xpose.msra.mxu0 %v5927
    %5933 = vmatprep.subr.mxu0 0.0
    %5934 = vmatpush1.xpose.msra.mxu0 0.0
    %5935 = vmatprep.subr.mxu0 0.0
    %5936 = vmatpush1.xpose.msra.mxu0 0.0
    %5937 = vmatprep.subr.mxu0 0.0
    %5938 = vmatpush1.xpose.msra.mxu0 0.0
    %5939 = vmatprep.subr.mxu0 0.0
    %5940 = vmatpush1.xpose.msra.mxu0 0.0
    %5941 = vmatprep.subr.mxu0 0.0
    %5942 = vmatpush1.xpose.msra.mxu0 0.0
    %5943 = vmatprep.subr.mxu0 0.0
    %5944 = vmatpush1.xpose.msra.mxu0 0.0
    %5945 = vmatprep.subr.mxu0 0.0
    %5946 = vmatpush1.xpose.msra.mxu0 0.0
    %5947 = vmatprep.subr.mxu0 0.0
    %5948 = vmatpush1.xpose.msra.mxu0 0.0
    %5949 = vmatprep.subr.mxu0 0.0
    %5950 = vmatpush1.xpose.msra.mxu0 0.0
    %5951 = vmatprep.subr.mxu0 0.0
    %5952 = vmatpush1.xpose.msra.mxu0 0.0
    %5953 = vmatprep.subr.mxu0 0.0
    %5954 = vmatpush1.xpose.msra.mxu0 0.0
    %5955 = vmatprep.subr.mxu0 0.0
    %5956 = vmatpush1.xpose.msra.mxu0 0.0
    %5957 = vmatprep.subr.mxu0 0.0
    %5958 = vmatpush1.xpose.msra.mxu0 0.0
    %5959 = vmatprep.subr.mxu0 0.0
    %5960 = vmatpush1.xpose.msra.mxu0 0.0
    %5961 = vmatprep.subr.mxu0 0.0
    %5962 = vmatpush1.xpose.msra.mxu0 0.0
    %5963 = vmatprep.subr.mxu0 0.0
    %5964 = vmatpush1.xpose.msra.mxu0 0.0
    %5965 = vmatprep.subr.mxu0 0.0
    %5966 = vmatpush1.xpose.msra.mxu0 0.0
    %5967 = vmatprep.subr.mxu0 0.0
    %5968 = vmatpush1.xpose.msra.mxu0 0.0
    %5969 = vmatprep.subr.mxu0 0.0
    %5970 = vmatpush1.xpose.msra.mxu0 0.0
    %5971 = vmatprep.subr.mxu0 0.0
    %5972 = vmatpush1.xpose.msra.mxu0 0.0
    %5973 = vmatprep.subr.mxu0 0.0
    %5974 = vmatpush1.xpose.msra.mxu0 0.0
    %5975 = vmatprep.subr.mxu0 0.0
    %5976 = vmatpush1.xpose.msra.mxu0 0.0
    %5977 = vmatprep.subr.mxu0 0.0
    %5978 = vmatpush1.xpose.msra.mxu0 0.0
    %5979 = vmatprep.subr.mxu0 0.0
    %5980 = vmatpush1.xpose.msra.mxu0 0.0
    %5981 = vmatprep.subr.mxu0 0.0
    %5982 = vmatpush1.xpose.msra.mxu0 0.0
    %5983 = vmatprep.subr.mxu0 0.0
    %5984 = vmatpush1.xpose.msra.mxu0 0.0
    %5985 = vmatprep.subr.mxu0 0.0
    %5986 = vmatpush1.xpose.msra.mxu0 0.0
    %5987 = vmatprep.subr.mxu0 0.0
    %5988 = vmatpush1.xpose.msra.mxu0 0.0
    %5989 = vmatprep.subr.mxu0 0.0
    %5990 = vmatpush1.xpose.msra.mxu0 0.0
    %5991 = vmatprep.subr.mxu0 0.0
    %5992 = vmatpush1.xpose.msra.mxu0 0.0
    %5993 = vmatprep.mubr.f32.mxu0 0.0
    %5994 = vmatmul.mubr.f32.gmra.mrb[0].mxu0 %v5921
    %v5995 = vpop.f32.mrb[0].mxu0
    %v5996 = vadd.f32 0.0, %v5995
    %v5997 = vpop.f32.mrb[0].mxu0
    %5998 = vmatprep.mubr.f32.mxu0 0.0
    %5999 = vmatmul.mubr.f32.gmra.mrb[0].mxu0 %v5923
    %v6000 = vpop.f32.mrb[0].mxu0
    %v6001 = vadd.f32 0.0, %v6000
    %v6002 = vpop.f32.mrb[0].mxu0
    %6003 = vdwg.mxu0
    %6004 = vrot.lane.b32.xlu0 %v336, 104
    %v6005 = vpop.permute.xlu0 %6004
    %6006 = vrot.lane.b32.xlu0 %v337, 104
    %v6007 = vpop.permute.xlu0 %6006
    %6008 = vrot.lane.b32.xlu0 %v258, 72
    %v6009 = vpop.permute.xlu0 %6008
    %6010 = vrot.lane.b32.xlu0 %v263, 72
    %v6011 = vpop.permute.xlu0 %6010
    %v6012 = vsel %vm354, %v6005, 0
    %v6014 = vsel %vm354, %v6007, 0
    %v6016 = vsel %vm354, %v6009, 0
    %v6018 = vsel %vm354, %v6011, 0
    %6020 = vmatprep.subr.mxu0 0.0
    %6021 = vmatpush1.xpose.msra.mxu0 %v6016
    %6022 = vmatprep.subr.mxu0 0.0
    %6023 = vmatpush1.xpose.msra.mxu0 %v6018
    %6024 = vmatprep.subr.mxu0 0.0
    %6025 = vmatpush1.xpose.msra.mxu0 0.0
    %6026 = vmatprep.subr.mxu0 0.0
    %6027 = vmatpush1.xpose.msra.mxu0 0.0
    %6028 = vmatprep.subr.mxu0 0.0
    %6029 = vmatpush1.xpose.msra.mxu0 0.0
    %6030 = vmatprep.subr.mxu0 0.0
    %6031 = vmatpush1.xpose.msra.mxu0 0.0
    %6032 = vmatprep.subr.mxu0 0.0
    %6033 = vmatpush1.xpose.msra.mxu0 0.0
    %6034 = vmatprep.subr.mxu0 0.0
    %6035 = vmatpush1.xpose.msra.mxu0 0.0
    %6036 = vmatprep.subr.mxu0 0.0
    %6037 = vmatpush1.xpose.msra.mxu0 0.0
    %6038 = vmatprep.subr.mxu0 0.0
    %6039 = vmatpush1.xpose.msra.mxu0 0.0
    %6040 = vmatprep.subr.mxu0 0.0
    %6041 = vmatpush1.xpose.msra.mxu0 0.0
    %6042 = vmatprep.subr.mxu0 0.0
    %6043 = vmatpush1.xpose.msra.mxu0 0.0
    %6044 = vmatprep.subr.mxu0 0.0
    %6045 = vmatpush1.xpose.msra.mxu0 0.0
    %6046 = vmatprep.subr.mxu0 0.0
    %6047 = vmatpush1.xpose.msra.mxu0 0.0
    %6048 = vmatprep.subr.mxu0 0.0
    %6049 = vmatpush1.xpose.msra.mxu0 0.0
    %6050 = vmatprep.subr.mxu0 0.0
    %6051 = vmatpush1.xpose.msra.mxu0 0.0
    %6052 = vmatprep.subr.mxu0 0.0
    %6053 = vmatpush1.xpose.msra.mxu0 0.0
    %6054 = vmatprep.subr.mxu0 0.0
    %6055 = vmatpush1.xpose.msra.mxu0 0.0
    %6056 = vmatprep.subr.mxu0 0.0
    %6057 = vmatpush1.xpose.msra.mxu0 0.0
    %6058 = vmatprep.subr.mxu0 0.0
    %6059 = vmatpush1.xpose.msra.mxu0 0.0
    %6060 = vmatprep.subr.mxu0 0.0
    %6061 = vmatpush1.xpose.msra.mxu0 0.0
    %6062 = vmatprep.subr.mxu0 0.0
    %6063 = vmatpush1.xpose.msra.mxu0 0.0
    %6064 = vmatprep.subr.mxu0 0.0
    %6065 = vmatpush1.xpose.msra.mxu0 0.0
    %6066 = vmatprep.subr.mxu0 0.0
    %6067 = vmatpush1.xpose.msra.mxu0 0.0
    %6068 = vmatprep.subr.mxu0 0.0
    %6069 = vmatpush1.xpose.msra.mxu0 0.0
    %6070 = vmatprep.subr.mxu0 0.0
    %6071 = vmatpush1.xpose.msra.mxu0 0.0
    %6072 = vmatprep.subr.mxu0 0.0
    %6073 = vmatpush1.xpose.msra.mxu0 0.0
    %6074 = vmatprep.subr.mxu0 0.0
    %6075 = vmatpush1.xpose.msra.mxu0 0.0
    %6076 = vmatprep.subr.mxu0 0.0
    %6077 = vmatpush1.xpose.msra.mxu0 0.0
    %6078 = vmatprep.subr.mxu0 0.0
    %6079 = vmatpush1.xpose.msra.mxu0 0.0
    %6080 = vmatprep.subr.mxu0 0.0
    %6081 = vmatpush1.xpose.msra.mxu0 0.0
    %6082 = vmatprep.subr.mxu0 0.0
    %6083 = vmatpush1.xpose.msra.mxu0 0.0
    %6084 = vmatprep.mubr.f32.mxu0 0.0
    %6085 = vmatmul.mubr.f32.gmra.mrb[0].mxu0 %v6012
    %v6086 = vpop.f32.mrb[0].mxu0
    %v6087 = vadd.f32 0.0, %v6086
    %v6088 = vpop.f32.mrb[0].mxu0
    %6089 = vmatprep.mubr.f32.mxu0 0.0
    %6090 = vmatmul.mubr.f32.gmra.mrb[0].mxu0 %v6014
    %v6091 = vpop.f32.mrb[0].mxu0
    %v6092 = vadd.f32 0.0, %v6091
    %v6093 = vpop.f32.mrb[0].mxu0
    %6094 = vdwg.mxu0
    %6095 = vrot.lane.b32.xlu0 %v338, 104
    %v6096 = vpop.permute.xlu0 %6095
    %6097 = vrot.lane.b32.xlu0 %v339, 104
    %v6098 = vpop.permute.xlu0 %6097
    %6099 = vrot.lane.b32.xlu0 %v268, 72
    %v6100 = vpop.permute.xlu0 %6099
    %6101 = vrot.lane.b32.xlu0 %v273, 72
    %v6102 = vpop.permute.xlu0 %6101
    %v6103 = vsel %vm354, %v6096, 0
    %v6105 = vsel %vm354, %v6098, 0
    %v6107 = vsel %vm354, %v6100, 0
    %v6109 = vsel %vm354, %v6102, 0
    %6111 = vmatprep.subr.mxu0 0.0
    %6112 = vmatpush1.xpose.msra.mxu0 %v6107
    %6113 = vmatprep.subr.mxu0 0.0
    %6114 = vmatpush1.xpose.msra.mxu0 %v6109
    %6115 = vmatprep.subr.mxu0 0.0
    %6116 = vmatpush1.xpose.msra.mxu0 0.0
    %6117 = vmatprep.subr.mxu0 0.0
    %6118 = vmatpush1.xpose.msra.mxu0 0.0
    %6119 = vmatprep.subr.mxu0 0.0
    %6120 = vmatpush1.xpose.msra.mxu0 0.0
    %6121 = vmatprep.subr.mxu0 0.0
    %6122 = vmatpush1.xpose.msra.mxu0 0.0
    %6123 = vmatprep.subr.mxu0 0.0
    %6124 = vmatpush1.xpose.msra.mxu0 0.0
    %6125 = vmatprep.subr.mxu0 0.0
    %6126 = vmatpush1.xpose.msra.mxu0 0.0
    %6127 = vmatprep.subr.mxu0 0.0
    %6128 = vmatpush1.xpose.msra.mxu0 0.0
    %6129 = vmatprep.subr.mxu0 0.0
    %6130 = vmatpush1.xpose.msra.mxu0 0.0
    %6131 = vmatprep.subr.mxu0 0.0
    %6132 = vmatpush1.xpose.msra.mxu0 0.0
    %6133 = vmatprep.subr.mxu0 0.0
    %6134 = vmatpush1.xpose.msra.mxu0 0.0
    %6135 = vmatprep.subr.mxu0 0.0
    %6136 = vmatpush1.xpose.msra.mxu0 0.0
    %6137 = vmatprep.subr.mxu0 0.0
    %6138 = vmatpush1.xpose.msra.mxu0 0.0
    %6139 = vmatprep.subr.mxu0 0.0
    %6140 = vmatpush1.xpose.msra.mxu0 0.0
    %6141 = vmatprep.subr.mxu0 0.0
    %6142 = vmatpush1.xpose.msra.mxu0 0.0
    %6143 = vmatprep.subr.mxu0 0.0
    %6144 = vmatpush1.xpose.msra.mxu0 0.0
    %6145 = vmatprep.subr.mxu0 0.0
    %6146 = vmatpush1.xpose.msra.mxu0 0.0
    %6147 = vmatprep.subr.mxu0 0.0
    %6148 = vmatpush1.xpose.msra.mxu0 0.0
    %6149 = vmatprep.subr.mxu0 0.0
    %6150 = vmatpush1.xpose.msra.mxu0 0.0
    %6151 = vmatprep.subr.mxu0 0.0
    %6152 = vmatpush1.xpose.msra.mxu0 0.0
    %6153 = vmatprep.subr.mxu0 0.0
    %6154 = vmatpush1.xpose.msra.mxu0 0.0
    %6155 = vmatprep.subr.mxu0 0.0
    %6156 = vmatpush1.xpose.msra.mxu0 0.0
    %6157 = vmatprep.subr.mxu0 0.0
    %6158 = vmatpush1.xpose.msra.mxu0 0.0
    %6159 = vmatprep.subr.mxu0 0.0
    %6160 = vmatpush1.xpose.msra.mxu0 0.0
    %6161 = vmatprep.subr.mxu0 0.0
    %6162 = vmatpush1.xpose.msra.mxu0 0.0
    %6163 = vmatprep.subr.mxu0 0.0
    %6164 = vmatpush1.xpose.msra.mxu0 0.0
    %6165 = vmatprep.subr.mxu0 0.0
    %6166 = vmatpush1.xpose.msra.mxu0 0.0
    %6167 = vmatprep.subr.mxu0 0.0
    %6168 = vmatpush1.xpose.msra.mxu0 0.0
    %6169 = vmatprep.subr.mxu0 0.0
    %6170 = vmatpush1.xpose.msra.mxu0 0.0
    %6171 = vmatprep.subr.mxu0 0.0
    %6172 = vmatpush1.xpose.msra.mxu0 0.0
    %6173 = vmatprep.subr.mxu0 0.0
    %6174 = vmatpush1.xpose.msra.mxu0 0.0
    %6175 = vmatprep.mubr.f32.mxu0 0.0
    %6176 = vmatmul.mubr.f32.gmra.mrb[0].mxu0 %v6103
    %v6177 = vpop.f32.mrb[0].mxu0
    %v6178 = vadd.f32 0.0, %v6177
    %v6179 = vpop.f32.mrb[0].mxu0
    %6180 = vmatprep.mubr.f32.mxu0 0.0
    %6181 = vmatmul.mubr.f32.gmra.mrb[0].mxu0 %v6105
    %v6182 = vpop.f32.mrb[0].mxu0
    %v6183 = vadd.f32 0.0, %v6182
    %v6184 = vpop.f32.mrb[0].mxu0
    %6185 = vdwg.mxu0
    %6186 = vrot.lane.b32.xlu0 %v340, 104
    %v6187 = vpop.permute.xlu0 %6186
    %6188 = vrot.lane.b32.xlu0 %v341, 104
    %v6189 = vpop.permute.xlu0 %6188
    %6190 = vrot.lane.b32.xlu0 %v278, 72
    %v6191 = vpop.permute.xlu0 %6190
    %6192 = vrot.lane.b32.xlu0 %v283, 72
    %v6193 = vpop.permute.xlu0 %6192
    %v6194 = vsel %vm354, %v6187, 0
    %v6196 = vsel %vm354, %v6189, 0
    %v6198 = vsel %vm354, %v6191, 0
    %v6200 = vsel %vm354, %v6193, 0
    %6202 = vmatprep.subr.mxu0 0.0
    %6203 = vmatpush1.xpose.msra.mxu0 %v6198
    %6204 = vmatprep.subr.mxu0 0.0
    %6205 = vmatpush1.xpose.msra.mxu0 %v6200
    %6206 = vmatprep.subr.mxu0 0.0
    %6207 = vmatpush1.xpose.msra.mxu0 0.0
    %6208 = vmatprep.subr.mxu0 0.0
    %6209 = vmatpush1.xpose.msra.mxu0 0.0
    %6210 = vmatprep.subr.mxu0 0.0
    %6211 = vmatpush1.xpose.msra.mxu0 0.0
    %6212 = vmatprep.subr.mxu0 0.0
    %6213 = vmatpush1.xpose.msra.mxu0 0.0
    %6214 = vmatprep.subr.mxu0 0.0
    %6215 = vmatpush1.xpose.msra.mxu0 0.0
    %6216 = vmatprep.subr.mxu0 0.0
    %6217 = vmatpush1.xpose.msra.mxu0 0.0
    %6218 = vmatprep.subr.mxu0 0.0
    %6219 = vmatpush1.xpose.msra.mxu0 0.0
    %6220 = vmatprep.subr.mxu0 0.0
    %6221 = vmatpush1.xpose.msra.mxu0 0.0
    %6222 = vmatprep.subr.mxu0 0.0
    %6223 = vmatpush1.xpose.msra.mxu0 0.0
    %6224 = vmatprep.subr.mxu0 0.0
    %6225 = vmatpush1.xpose.msra.mxu0 0.0
    %6226 = vmatprep.subr.mxu0 0.0
    %6227 = vmatpush1.xpose.msra.mxu0 0.0
    %6228 = vmatprep.subr.mxu0 0.0
    %6229 = vmatpush1.xpose.msra.mxu0 0.0
    %6230 = vmatprep.subr.mxu0 0.0
    %6231 = vmatpush1.xpose.msra.mxu0 0.0
    %6232 = vmatprep.subr.mxu0 0.0
    %6233 = vmatpush1.xpose.msra.mxu0 0.0
    %6234 = vmatprep.subr.mxu0 0.0
    %6235 = vmatpush1.xpose.msra.mxu0 0.0
    %6236 = vmatprep.subr.mxu0 0.0
    %6237 = vmatpush1.xpose.msra.mxu0 0.0
    %6238 = vmatprep.subr.mxu0 0.0
    %6239 = vmatpush1.xpose.msra.mxu0 0.0
    %6240 = vmatprep.subr.mxu0 0.0
    %6241 = vmatpush1.xpose.msra.mxu0 0.0
    %6242 = vmatprep.subr.mxu0 0.0
    %6243 = vmatpush1.xpose.msra.mxu0 0.0
    %6244 = vmatprep.subr.mxu0 0.0
    %6245 = vmatpush1.xpose.msra.mxu0 0.0
    %6246 = vmatprep.subr.mxu0 0.0
    %6247 = vmatpush1.xpose.msra.mxu0 0.0
    %6248 = vmatprep.subr.mxu0 0.0
    %6249 = vmatpush1.xpose.msra.mxu0 0.0
    %6250 = vmatprep.subr.mxu0 0.0
    %6251 = vmatpush1.xpose.msra.mxu0 0.0
    %6252 = vmatprep.subr.mxu0 0.0
    %6253 = vmatpush1.xpose.msra.mxu0 0.0
    %6254 = vmatprep.subr.mxu0 0.0
    %6255 = vmatpush1.xpose.msra.mxu0 0.0
    %6256 = vmatprep.subr.mxu0 0.0
    %6257 = vmatpush1.xpose.msra.mxu0 0.0
    %6258 = vmatprep.subr.mxu0 0.0
    %6259 = vmatpush1.xpose.msra.mxu0 0.0
    %6260 = vmatprep.subr.mxu0 0.0
    %6261 = vmatpush1.xpose.msra.mxu0 0.0
    %6262 = vmatprep.subr.mxu0 0.0
    %6263 = vmatpush1.xpose.msra.mxu0 0.0
    %6264 = vmatprep.subr.mxu0 0.0
    %6265 = vmatpush1.xpose.msra.mxu0 0.0
    %6266 = vmatprep.mubr.f32.mxu0 0.0
    %6267 = vmatmul.mubr.f32.gmra.mrb[0].mxu0 %v6194
    %v6268 = vpop.f32.mrb[0].mxu0
    %v6269 = vadd.f32 0.0, %v6268
    %v6270 = vpop.f32.mrb[0].mxu0
    %6271 = vmatprep.mubr.f32.mxu0 0.0
    %6272 = vmatmul.mubr.f32.gmra.mrb[0].mxu0 %v6196
    %v6273 = vpop.f32.mrb[0].mxu0
    %v6274 = vadd.f32 0.0, %v6273
    %v6275 = vpop.f32.mrb[0].mxu0
    %6276 = vdwg.mxu0
    %6277 = vrot.lane.b32.xlu0 %v342, 104
    %v6278 = vpop.permute.xlu0 %6277
    %6279 = vrot.lane.b32.xlu0 %v343, 104
    %v6280 = vpop.permute.xlu0 %6279
    %6281 = vrot.lane.b32.xlu0 %v288, 72
    %v6282 = vpop.permute.xlu0 %6281
    %6283 = vrot.lane.b32.xlu0 %v293, 72
    %v6284 = vpop.permute.xlu0 %6283
    %v6285 = vsel %vm354, %v6278, 0
    %v6287 = vsel %vm354, %v6280, 0
    %v6289 = vsel %vm354, %v6282, 0
    %v6291 = vsel %vm354, %v6284, 0
    %6293 = vmatprep.subr.mxu0 0.0
    %6294 = vmatpush1.xpose.msra.mxu0 %v6289
    %6295 = vmatprep.subr.mxu0 0.0
    %6296 = vmatpush1.xpose.msra.mxu0 %v6291
    %6297 = vmatprep.subr.mxu0 0.0
    %6298 = vmatpush1.xpose.msra.mxu0 0.0
    %6299 = vmatprep.subr.mxu0 0.0
    %6300 = vmatpush1.xpose.msra.mxu0 0.0
    %6301 = vmatprep.subr.mxu0 0.0
    %6302 = vmatpush1.xpose.msra.mxu0 0.0
    %6303 = vmatprep.subr.mxu0 0.0
    %6304 = vmatpush1.xpose.msra.mxu0 0.0
    %6305 = vmatprep.subr.mxu0 0.0
    %6306 = vmatpush1.xpose.msra.mxu0 0.0
    %6307 = vmatprep.subr.mxu0 0.0
    %6308 = vmatpush1.xpose.msra.mxu0 0.0
    %6309 = vmatprep.subr.mxu0 0.0
    %6310 = vmatpush1.xpose.msra.mxu0 0.0
    %6311 = vmatprep.subr.mxu0 0.0
    %6312 = vmatpush1.xpose.msra.mxu0 0.0
    %6313 = vmatprep.subr.mxu0 0.0
    %6314 = vmatpush1.xpose.msra.mxu0 0.0
    %6315 = vmatprep.subr.mxu0 0.0
    %6316 = vmatpush1.xpose.msra.mxu0 0.0
    %6317 = vmatprep.subr.mxu0 0.0
    %6318 = vmatpush1.xpose.msra.mxu0 0.0
    %6319 = vmatprep.subr.mxu0 0.0
    %6320 = vmatpush1.xpose.msra.mxu0 0.0
    %6321 = vmatprep.subr.mxu0 0.0
    %6322 = vmatpush1.xpose.msra.mxu0 0.0
    %6323 = vmatprep.subr.mxu0 0.0
    %6324 = vmatpush1.xpose.msra.mxu0 0.0
    %6325 = vmatprep.subr.mxu0 0.0
    %6326 = vmatpush1.xpose.msra.mxu0 0.0
    %6327 = vmatprep.subr.mxu0 0.0
    %6328 = vmatpush1.xpose.msra.mxu0 0.0
    %6329 = vmatprep.subr.mxu0 0.0
    %6330 = vmatpush1.xpose.msra.mxu0 0.0
    %6331 = vmatprep.subr.mxu0 0.0
    %6332 = vmatpush1.xpose.msra.mxu0 0.0
    %6333 = vmatprep.subr.mxu0 0.0
    %6334 = vmatpush1.xpose.msra.mxu0 0.0
    %6335 = vmatprep.subr.mxu0 0.0
    %6336 = vmatpush1.xpose.msra.mxu0 0.0
    %6337 = vmatprep.subr.mxu0 0.0
    %6338 = vmatpush1.xpose.msra.mxu0 0.0
    %6339 = vmatprep.subr.mxu0 0.0
    %6340 = vmatpush1.xpose.msra.mxu0 0.0
    %6341 = vmatprep.subr.mxu0 0.0
    %6342 = vmatpush1.xpose.msra.mxu0 0.0
    %6343 = vmatprep.subr.mxu0 0.0
    %6344 = vmatpush1.xpose.msra.mxu0 0.0
    %6345 = vmatprep.subr.mxu0 0.0
    %6346 = vmatpush1.xpose.msra.mxu0 0.0
    %6347 = vmatprep.subr.mxu0 0.0
    %6348 = vmatpush1.xpose.msra.mxu0 0.0
    %6349 = vmatprep.subr.mxu0 0.0
    %6350 = vmatpush1.xpose.msra.mxu0 0.0
    %6351 = vmatprep.subr.mxu0 0.0
    %6352 = vmatpush1.xpose.msra.mxu0 0.0
    %6353 = vmatprep.subr.mxu0 0.0
    %6354 = vmatpush1.xpose.msra.mxu0 0.0
    %6355 = vmatprep.subr.mxu0 0.0
    %6356 = vmatpush1.xpose.msra.mxu0 0.0
    %6357 = vmatprep.mubr.f32.mxu0 0.0
    %6358 = vmatmul.mubr.f32.gmra.mrb[0].mxu0 %v6285
    %v6359 = vpop.f32.mrb[0].mxu0
    %v6360 = vadd.f32 0.0, %v6359
    %v6361 = vpop.f32.mrb[0].mxu0
    %6362 = vmatprep.mubr.f32.mxu0 0.0
    %6363 = vmatmul.mubr.f32.gmra.mrb[0].mxu0 %v6287
    %v6364 = vpop.f32.mrb[0].mxu0
    %v6365 = vadd.f32 0.0, %v6364
    %v6366 = vpop.f32.mrb[0].mxu0
    %6367 = vdwg.mxu0
    %6368 = vrot.lane.b32.xlu0 %v344, 104
    %v6369 = vpop.permute.xlu0 %6368
    %6370 = vrot.lane.b32.xlu0 %v345, 104
    %v6371 = vpop.permute.xlu0 %6370
    %6372 = vrot.lane.b32.xlu0 %v298, 72
    %v6373 = vpop.permute.xlu0 %6372
    %6374 = vrot.lane.b32.xlu0 %v303, 72
    %v6375 = vpop.permute.xlu0 %6374
    %v6376 = vsel %vm354, %v6369, 0
    %v6378 = vsel %vm354, %v6371, 0
    %v6380 = vsel %vm354, %v6373, 0
    %v6382 = vsel %vm354, %v6375, 0
    %6384 = vmatprep.subr.mxu0 0.0
    %6385 = vmatpush1.xpose.msra.mxu0 %v6380
    %6386 = vmatprep.subr.mxu0 0.0
    %6387 = vmatpush1.xpose.msra.mxu0 %v6382
    %6388 = vmatprep.subr.mxu0 0.0
    %6389 = vmatpush1.xpose.msra.mxu0 0.0
    %6390 = vmatprep.subr.mxu0 0.0
    %6391 = vmatpush1.xpose.msra.mxu0 0.0
    %6392 = vmatprep.subr.mxu0 0.0
    %6393 = vmatpush1.xpose.msra.mxu0 0.0
    %6394 = vmatprep.subr.mxu0 0.0
    %6395 = vmatpush1.xpose.msra.mxu0 0.0
    %6396 = vmatprep.subr.mxu0 0.0
    %6397 = vmatpush1.xpose.msra.mxu0 0.0
    %6398 = vmatprep.subr.mxu0 0.0
    %6399 = vmatpush1.xpose.msra.mxu0 0.0
    %6400 = vmatprep.subr.mxu0 0.0
    %6401 = vmatpush1.xpose.msra.mxu0 0.0
    %6402 = vmatprep.subr.mxu0 0.0
    %6403 = vmatpush1.xpose.msra.mxu0 0.0
    %6404 = vmatprep.subr.mxu0 0.0
    %6405 = vmatpush1.xpose.msra.mxu0 0.0
    %6406 = vmatprep.subr.mxu0 0.0
    %6407 = vmatpush1.xpose.msra.mxu0 0.0
    %6408 = vmatprep.subr.mxu0 0.0
    %6409 = vmatpush1.xpose.msra.mxu0 0.0
    %6410 = vmatprep.subr.mxu0 0.0
    %6411 = vmatpush1.xpose.msra.mxu0 0.0
    %6412 = vmatprep.subr.mxu0 0.0
    %6413 = vmatpush1.xpose.msra.mxu0 0.0
    %6414 = vmatprep.subr.mxu0 0.0
    %6415 = vmatpush1.xpose.msra.mxu0 0.0
    %6416 = vmatprep.subr.mxu0 0.0
    %6417 = vmatpush1.xpose.msra.mxu0 0.0
    %6418 = vmatprep.subr.mxu0 0.0
    %6419 = vmatpush1.xpose.msra.mxu0 0.0
    %6420 = vmatprep.subr.mxu0 0.0
    %6421 = vmatpush1.xpose.msra.mxu0 0.0
    %6422 = vmatprep.subr.mxu0 0.0
    %6423 = vmatpush1.xpose.msra.mxu0 0.0
    %6424 = vmatprep.subr.mxu0 0.0
    %6425 = vmatpush1.xpose.msra.mxu0 0.0
    %6426 = vmatprep.subr.mxu0 0.0
    %6427 = vmatpush1.xpose.msra.mxu0 0.0
    %6428 = vmatprep.subr.mxu0 0.0
    %6429 = vmatpush1.xpose.msra.mxu0 0.0
    %6430 = vmatprep.subr.mxu0 0.0
    %6431 = vmatpush1.xpose.msra.mxu0 0.0
    %6432 = vmatprep.subr.mxu0 0.0
    %6433 = vmatpush1.xpose.msra.mxu0 0.0
    %6434 = vmatprep.subr.mxu0 0.0
    %6435 = vmatpush1.xpose.msra.mxu0 0.0
    %6436 = vmatprep.subr.mxu0 0.0
    %6437 = vmatpush1.xpose.msra.mxu0 0.0
    %6438 = vmatprep.subr.mxu0 0.0
    %6439 = vmatpush1.xpose.msra.mxu0 0.0
    %6440 = vmatprep.subr.mxu0 0.0
    %6441 = vmatpush1.xpose.msra.mxu0 0.0
    %6442 = vmatprep.subr.mxu0 0.0
    %6443 = vmatpush1.xpose.msra.mxu0 0.0
    %6444 = vmatprep.subr.mxu0 0.0
    %6445 = vmatpush1.xpose.msra.mxu0 0.0
    %6446 = vmatprep.subr.mxu0 0.0
    %6447 = vmatpush1.xpose.msra.mxu0 0.0
    %6448 = vmatprep.mubr.f32.mxu0 0.0
    %6449 = vmatmul.mubr.f32.gmra.mrb[0].mxu0 %v6376
    %v6450 = vpop.f32.mrb[0].mxu0
    %v6451 = vadd.f32 0.0, %v6450
    %v6452 = vpop.f32.mrb[0].mxu0
    %6453 = vmatprep.mubr.f32.mxu0 0.0
    %6454 = vmatmul.mubr.f32.gmra.mrb[0].mxu0 %v6378
    %v6455 = vpop.f32.mrb[0].mxu0
    %v6456 = vadd.f32 0.0, %v6455
    %v6457 = vpop.f32.mrb[0].mxu0
    %6458 = vdwg.mxu0
    %6459 = vrot.lane.b32.xlu0 %v346, 104
    %v6460 = vpop.permute.xlu0 %6459
    %6461 = vrot.lane.b32.xlu0 %v347, 104
    %v6462 = vpop.permute.xlu0 %6461
    %6463 = vrot.lane.b32.xlu0 %v308, 72
    %v6464 = vpop.permute.xlu0 %6463
    %6465 = vrot.lane.b32.xlu0 %v313, 72
    %v6466 = vpop.permute.xlu0 %6465
    %v6467 = vsel %vm354, %v6460, 0
    %v6469 = vsel %vm354, %v6462, 0
    %v6471 = vsel %vm354, %v6464, 0
    %v6473 = vsel %vm354, %v6466, 0
    %6475 = vmatprep.subr.mxu0 0.0
    %6476 = vmatpush1.xpose.msra.mxu0 %v6471
    %6477 = vmatprep.subr.mxu0 0.0
    %6478 = vmatpush1.xpose.msra.mxu0 %v6473
    %6479 = vmatprep.subr.mxu0 0.0
    %6480 = vmatpush1.xpose.msra.mxu0 0.0
    %6481 = vmatprep.subr.mxu0 0.0
    %6482 = vmatpush1.xpose.msra.mxu0 0.0
    %6483 = vmatprep.subr.mxu0 0.0
    %6484 = vmatpush1.xpose.msra.mxu0 0.0
    %6485 = vmatprep.subr.mxu0 0.0
    %6486 = vmatpush1.xpose.msra.mxu0 0.0
    %6487 = vmatprep.subr.mxu0 0.0
    %6488 = vmatpush1.xpose.msra.mxu0 0.0
    %6489 = vmatprep.subr.mxu0 0.0
    %6490 = vmatpush1.xpose.msra.mxu0 0.0
    %6491 = vmatprep.subr.mxu0 0.0
    %6492 = vmatpush1.xpose.msra.mxu0 0.0
    %6493 = vmatprep.subr.mxu0 0.0
    %6494 = vmatpush1.xpose.msra.mxu0 0.0
    %6495 = vmatprep.subr.mxu0 0.0
    %6496 = vmatpush1.xpose.msra.mxu0 0.0
    %6497 = vmatprep.subr.mxu0 0.0
    %6498 = vmatpush1.xpose.msra.mxu0 0.0
    %6499 = vmatprep.subr.mxu0 0.0
    %6500 = vmatpush1.xpose.msra.mxu0 0.0
    %6501 = vmatprep.subr.mxu0 0.0
    %6502 = vmatpush1.xpose.msra.mxu0 0.0
    %6503 = vmatprep.subr.mxu0 0.0
    %6504 = vmatpush1.xpose.msra.mxu0 0.0
    %6505 = vmatprep.subr.mxu0 0.0
    %6506 = vmatpush1.xpose.msra.mxu0 0.0
    %6507 = vmatprep.subr.mxu0 0.0
    %6508 = vmatpush1.xpose.msra.mxu0 0.0
    %6509 = vmatprep.subr.mxu0 0.0
    %6510 = vmatpush1.xpose.msra.mxu0 0.0
    %6511 = vmatprep.subr.mxu0 0.0
    %6512 = vmatpush1.xpose.msra.mxu0 0.0
    %6513 = vmatprep.subr.mxu0 0.0
    %6514 = vmatpush1.xpose.msra.mxu0 0.0
    %6515 = vmatprep.subr.mxu0 0.0
    %6516 = vmatpush1.xpose.msra.mxu0 0.0
    %6517 = vmatprep.subr.mxu0 0.0
    %6518 = vmatpush1.xpose.msra.mxu0 0.0
    %6519 = vmatprep.subr.mxu0 0.0
    %6520 = vmatpush1.xpose.msra.mxu0 0.0
    %6521 = vmatprep.subr.mxu0 0.0
    %6522 = vmatpush1.xpose.msra.mxu0 0.0
    %6523 = vmatprep.subr.mxu0 0.0
    %6524 = vmatpush1.xpose.msra.mxu0 0.0
    %6525 = vmatprep.subr.mxu0 0.0
    %6526 = vmatpush1.xpose.msra.mxu0 0.0
    %6527 = vmatprep.subr.mxu0 0.0
    %6528 = vmatpush1.xpose.msra.mxu0 0.0
    %6529 = vmatprep.subr.mxu0 0.0
    %6530 = vmatpush1.xpose.msra.mxu0 0.0
    %6531 = vmatprep.subr.mxu0 0.0
    %6532 = vmatpush1.xpose.msra.mxu0 0.0
    %6533 = vmatprep.subr.mxu0 0.0
    %6534 = vmatpush1.xpose.msra.mxu0 0.0
    %6535 = vmatprep.subr.mxu0 0.0
    %6536 = vmatpush1.xpose.msra.mxu0 0.0
    %6537 = vmatprep.subr.mxu0 0.0
    %6538 = vmatpush1.xpose.msra.mxu0 0.0
    %6539 = vmatprep.mubr.f32.mxu0 0.0
    %6540 = vmatmul.mubr.f32.gmra.mrb[0].mxu0 %v6467
    %v6541 = vpop.f32.mrb[0].mxu0
    %v6542 = vadd.f32 0.0, %v6541
    %v6543 = vpop.f32.mrb[0].mxu0
    %6544 = vmatprep.mubr.f32.mxu0 0.0
    %6545 = vmatmul.mubr.f32.gmra.mrb[0].mxu0 %v6469
    %v6546 = vpop.f32.mrb[0].mxu0
    %v6547 = vadd.f32 0.0, %v6546
    %v6548 = vpop.f32.mrb[0].mxu0
    %6549 = vdwg.mxu0
    %v6550 = vadd.f32 %v322, %v324
    %v6551 = vadd.f32 %v323, %v325
    %v6552 = vadd.f32 %v322, %v326
    %v6553 = vadd.f32 %v323, %v327
    %v6554 = vadd.f32 %v322, %v328
    %v6555 = vadd.f32 %v323, %v329
    %v6556 = vadd.f32 %v322, %v330
    %v6557 = vadd.f32 %v323, %v331
    %v6558 = vadd.f32 %v5905, %v6550
    %v6559 = vadd.f32 %v5910, %v6551
    %v6560 = vadd.f32 %v5996, %v6552
    %v6561 = vadd.f32 %v6001, %v6553
    %v6562 = vadd.f32 %v6087, %v6554
    %v6563 = vadd.f32 %v6092, %v6555
    %v6564 = vadd.f32 %v6178, %v6556
    %v6565 = vadd.f32 %v6183, %v6557
    %v6566 = vadd.f32 %v6269, %v6550
    %v6567 = vadd.f32 %v6274, %v6551
    %v6568 = vadd.f32 %v6360, %v6552
    %v6569 = vadd.f32 %v6365, %v6553
    %v6570 = vadd.f32 %v6451, %v6554
    %v6571 = vadd.f32 %v6456, %v6555
    %v6572 = vadd.f32 %v6542, %v6556
    %v6573 = vadd.f32 %v6547, %v6557
    %v6574 = vsel %vm1101, %v6558, -inf
    %6575 = vmax.xlane.f32.xlu0 %v6574
    %v6576 = vpop.xlane.xlu0 %6575
    %v6577 = vsel %vm1101, %v6559, -inf
    %6578 = vmax.xlane.f32.xlu0 %v6577
    %v6579 = vpop.xlane.xlu0 %6578
    %v6580 = vsel %vm1101, %v6560, -inf
    %6581 = vmax.xlane.f32.xlu0 %v6580
    %v6582 = vpop.xlane.xlu0 %6581
    %v6583 = vsel %vm1101, %v6561, -inf
    %6584 = vmax.xlane.f32.xlu0 %v6583
    %v6585 = vpop.xlane.xlu0 %6584
    %v6586 = vsel %vm1101, %v6562, -inf
    %6587 = vmax.xlane.f32.xlu0 %v6586
    %v6588 = vpop.xlane.xlu0 %6587
    %v6589 = vsel %vm1101, %v6563, -inf
    %6590 = vmax.xlane.f32.xlu0 %v6589
    %v6591 = vpop.xlane.xlu0 %6590
    %v6592 = vsel %vm1101, %v6564, -inf
    %6593 = vmax.xlane.f32.xlu0 %v6592
    %v6594 = vpop.xlane.xlu0 %6593
    %v6595 = vsel %vm1101, %v6565, -inf
    %6596 = vmax.xlane.f32.xlu0 %v6595
    %v6597 = vpop.xlane.xlu0 %6596
    %v6598 = vsel %vm1101, %v6566, -inf
    %6599 = vmax.xlane.f32.xlu0 %v6598
    %v6600 = vpop.xlane.xlu0 %6599
    %v6601 = vsel %vm1101, %v6567, -inf
    %6602 = vmax.xlane.f32.xlu0 %v6601
    %v6603 = vpop.xlane.xlu0 %6602
    %v6604 = vsel %vm1101, %v6568, -inf
    %6605 = vmax.xlane.f32.xlu0 %v6604
    %v6606 = vpop.xlane.xlu0 %6605
    %v6607 = vsel %vm1101, %v6569, -inf
    %6608 = vmax.xlane.f32.xlu0 %v6607
    %v6609 = vpop.xlane.xlu0 %6608
    %v6610 = vsel %vm1101, %v6570, -inf
    %6611 = vmax.xlane.f32.xlu0 %v6610
    %v6612 = vpop.xlane.xlu0 %6611
    %v6613 = vsel %vm1101, %v6571, -inf
    %6614 = vmax.xlane.f32.xlu0 %v6613
    %v6615 = vpop.xlane.xlu0 %6614
    %v6616 = vsel %vm1101, %v6572, -inf
    %6617 = vmax.xlane.f32.xlu0 %v6616
    %v6618 = vpop.xlane.xlu0 %6617
    %v6619 = vsel %vm1101, %v6573, -inf
    %6620 = vmax.xlane.f32.xlu0 %v6619
    %v6621 = vpop.xlane.xlu0 %6620
    %v6622 = vsub.f32 %v6558, %v6576
    %v6623 = vsub.f32 %v6559, %v6579
    %v6624 = vsub.f32 %v6560, %v6582
    %v6625 = vsub.f32 %v6561, %v6585
    %v6626 = vsub.f32 %v6562, %v6588
    %v6627 = vsub.f32 %v6563, %v6591
    %v6628 = vsub.f32 %v6564, %v6594
    %v6629 = vsub.f32 %v6565, %v6597
    %v6630 = vsub.f32 %v6566, %v6600
    %v6631 = vsub.f32 %v6567, %v6603
    %v6632 = vsub.f32 %v6568, %v6606
    %v6633 = vsub.f32 %v6569, %v6609
    %v6634 = vsub.f32 %v6570, %v6612
    %v6635 = vsub.f32 %v6571, %v6615
    %v6636 = vsub.f32 %v6572, %v6618
    %v6637 = vsub.f32 %v6573, %v6621
    %v6638 = vmul.f32 %v6622, 1.442695
    %v6639 = vpow.pop %v6638
    %v6640 = vmul.f32 %v6623, 1.442695
    %v6641 = vpow.pop %v6640
    %v6642 = vmul.f32 %v6624, 1.442695
    %v6643 = vpow.pop %v6642
    %v6644 = vmul.f32 %v6625, 1.442695
    %v6645 = vpow.pop %v6644
    %v6646 = vmul.f32 %v6626, 1.442695
    %v6647 = vpow.pop %v6646
    %v6648 = vmul.f32 %v6627, 1.442695
    %v6649 = vpow.pop %v6648
    %v6650 = vmul.f32 %v6628, 1.442695
    %v6651 = vpow.pop %v6650
    %v6652 = vmul.f32 %v6629, 1.442695
    %v6653 = vpow.pop %v6652
    %v6654 = vmul.f32 %v6630, 1.442695
    %v6655 = vpow.pop %v6654
    %v6656 = vmul.f32 %v6631, 1.442695
    %v6657 = vpow.pop %v6656
    %v6658 = vmul.f32 %v6632, 1.442695
    %v6659 = vpow.pop %v6658
    %v6660 = vmul.f32 %v6633, 1.442695
    %v6661 = vpow.pop %v6660
    %v6662 = vmul.f32 %v6634, 1.442695
    %v6663 = vpow.pop %v6662
    %v6664 = vmul.f32 %v6635, 1.442695
    %v6665 = vpow.pop %v6664
    %v6666 = vmul.f32 %v6636, 1.442695
    %v6667 = vpow.pop %v6666
    %v6668 = vmul.f32 %v6637, 1.442695
    %v6669 = vpow.pop %v6668
    %v6670 = vsel %vm1101, %v6639, 0.0
    %6671 = vadd.xlane.f32.xlu0 %v6670
    %v6672 = vpop.xlane.xlu0 %6671
    %v6673 = vsel %vm1101, %v6641, 0.0
    %6674 = vadd.xlane.f32.xlu0 %v6673
    %v6675 = vpop.xlane.xlu0 %6674
    %v6676 = vsel %vm1101, %v6643, 0.0
    %6677 = vadd.xlane.f32.xlu0 %v6676
    %v6678 = vpop.xlane.xlu0 %6677
    %v6679 = vsel %vm1101, %v6645, 0.0
    %6680 = vadd.xlane.f32.xlu0 %v6679
    %v6681 = vpop.xlane.xlu0 %6680
    %v6682 = vsel %vm1101, %v6647, 0.0
    %6683 = vadd.xlane.f32.xlu0 %v6682
    %v6684 = vpop.xlane.xlu0 %6683
    %v6685 = vsel %vm1101, %v6649, 0.0
    %6686 = vadd.xlane.f32.xlu0 %v6685
    %v6687 = vpop.xlane.xlu0 %6686
    %v6688 = vsel %vm1101, %v6651, 0.0
    %6689 = vadd.xlane.f32.xlu0 %v6688
    %v6690 = vpop.xlane.xlu0 %6689
    %v6691 = vsel %vm1101, %v6653, 0.0
    %6692 = vadd.xlane.f32.xlu0 %v6691
    %v6693 = vpop.xlane.xlu0 %6692
    %v6694 = vsel %vm1101, %v6655, 0.0
    %6695 = vadd.xlane.f32.xlu0 %v6694
    %v6696 = vpop.xlane.xlu0 %6695
    %v6697 = vsel %vm1101, %v6657, 0.0
    %6698 = vadd.xlane.f32.xlu0 %v6697
    %v6699 = vpop.xlane.xlu0 %6698
    %v6700 = vsel %vm1101, %v6659, 0.0
    %6701 = vadd.xlane.f32.xlu0 %v6700
    %v6702 = vpop.xlane.xlu0 %6701
    %v6703 = vsel %vm1101, %v6661, 0.0
    %6704 = vadd.xlane.f32.xlu0 %v6703
    %v6705 = vpop.xlane.xlu0 %6704
    %v6706 = vsel %vm1101, %v6663, 0.0
    %6707 = vadd.xlane.f32.xlu0 %v6706
    %v6708 = vpop.xlane.xlu0 %6707
    %v6709 = vsel %vm1101, %v6665, 0.0
    %6710 = vadd.xlane.f32.xlu0 %v6709
    %v6711 = vpop.xlane.xlu0 %6710
    %v6712 = vsel %vm1101, %v6667, 0.0
    %6713 = vadd.xlane.f32.xlu0 %v6712
    %v6714 = vpop.xlane.xlu0 %6713
    %v6715 = vsel %vm1101, %v6669, 0.0
    %6716 = vadd.xlane.f32.xlu0 %v6715
    %v6717 = vpop.xlane.xlu0 %6716
    %v6718 = vrcp.pop %v6672
    %v6719 = vrcp.pop %v6675
    %v6720 = vrcp.pop %v6678
    %v6721 = vrcp.pop %v6681
    %v6722 = vrcp.pop %v6684
    %v6723 = vrcp.pop %v6687
    %v6724 = vrcp.pop %v6690
    %v6725 = vrcp.pop %v6693
    %v6726 = vrcp.pop %v6696
    %v6727 = vrcp.pop %v6699
    %v6728 = vrcp.pop %v6702
    %v6729 = vrcp.pop %v6705
    %v6730 = vrcp.pop %v6708
    %v6731 = vrcp.pop %v6711
    %v6732 = vrcp.pop %v6714
    %v6733 = vrcp.pop %v6717
    %v6734 = vmul.f32 %v6639, %v6718
    %v6735 = vmul.f32 %v6641, %v6719
    %v6736 = vmul.f32 %v6643, %v6720
    %v6737 = vmul.f32 %v6645, %v6721
    %v6738 = vmul.f32 %v6647, %v6722
    %v6739 = vmul.f32 %v6649, %v6723
    %v6740 = vmul.f32 %v6651, %v6724
    %v6741 = vmul.f32 %v6653, %v6725
    %v6742 = vmul.f32 %v6655, %v6726
    %v6743 = vmul.f32 %v6657, %v6727
    %v6744 = vmul.f32 %v6659, %v6728
    %v6745 = vmul.f32 %v6661, %v6729
    %v6746 = vmul.f32 %v6663, %v6730
    %v6747 = vmul.f32 %v6665, %v6731
    %v6748 = vmul.f32 %v6667, %v6732
    %v6749 = vmul.f32 %v6669, %v6733
    %6750 = vrot.lane.b32.xlu0 %v238, 40
    %v6751 = vpop.permute.xlu0 %6750
    %6752 = vrot.lane.b32.xlu0 %v243, 40
    %v6753 = vpop.permute.xlu0 %6752
    %v6757 = vsel %vm1101, %v6734, 0
    %v6760 = vsel %vm1101, %v6735, 0
    %6762 = vmatprep.subr.mxu0 0.0
    %6763 = vmatpush1.msra.mxu0 %v6751
    %6764 = vmatprep.subr.mxu0 0.0
    %6765 = vmatpush1.msra.mxu0 %v6753
    %6766 = vmatprep.subr.mxu0 0.0
    %6767 = vmatpush1.msra.mxu0 0.0
    %6768 = vmatprep.subr.mxu0 0.0
    %6769 = vmatpush1.msra.mxu0 0.0
    %6770 = vmatprep.subr.mxu0 0.0
    %6771 = vmatpush1.msra.mxu0 0.0
    %6772 = vmatprep.subr.mxu0 0.0
    %6773 = vmatpush1.msra.mxu0 0.0
    %6774 = vmatprep.subr.mxu0 0.0
    %6775 = vmatpush1.msra.mxu0 0.0
    %6776 = vmatprep.subr.mxu0 0.0
    %6777 = vmatpush1.msra.mxu0 0.0
    %6778 = vmatprep.subr.mxu0 0.0
    %6779 = vmatpush1.msra.mxu0 0.0
    %6780 = vmatprep.subr.mxu0 0.0
    %6781 = vmatpush1.msra.mxu0 0.0
    %6782 = vmatprep.subr.mxu0 0.0
    %6783 = vmatpush1.msra.mxu0 0.0
    %6784 = vmatprep.subr.mxu0 0.0
    %6785 = vmatpush1.msra.mxu0 0.0
    %6786 = vmatprep.subr.mxu0 0.0
    %6787 = vmatpush1.msra.mxu0 0.0
    %6788 = vmatprep.subr.mxu0 0.0
    %6789 = vmatpush1.msra.mxu0 0.0
    %6790 = vmatprep.subr.mxu0 0.0
    %6791 = vmatpush1.msra.mxu0 0.0
    %6792 = vmatprep.subr.mxu0 0.0
    %6793 = vmatpush1.msra.mxu0 0.0
    %6794 = vmatprep.subr.mxu0 0.0
    %6795 = vmatpush1.msra.mxu0 0.0
    %6796 = vmatprep.subr.mxu0 0.0
    %6797 = vmatpush1.msra.mxu0 0.0
    %6798 = vmatprep.subr.mxu0 0.0
    %6799 = vmatpush1.msra.mxu0 0.0
    %6800 = vmatprep.subr.mxu0 0.0
    %6801 = vmatpush1.msra.mxu0 0.0
    %6802 = vmatprep.subr.mxu0 0.0
    %6803 = vmatpush1.msra.mxu0 0.0
    %6804 = vmatprep.subr.mxu0 0.0
    %6805 = vmatpush1.msra.mxu0 0.0
    %6806 = vmatprep.subr.mxu0 0.0
    %6807 = vmatpush1.msra.mxu0 0.0
    %6808 = vmatprep.subr.mxu0 0.0
    %6809 = vmatpush1.msra.mxu0 0.0
    %6810 = vmatprep.subr.mxu0 0.0
    %6811 = vmatpush1.msra.mxu0 0.0
    %6812 = vmatprep.subr.mxu0 0.0
    %6813 = vmatpush1.msra.mxu0 0.0
    %6814 = vmatprep.subr.mxu0 0.0
    %6815 = vmatpush1.msra.mxu0 0.0
    %6816 = vmatprep.subr.mxu0 0.0
    %6817 = vmatpush1.msra.mxu0 0.0
    %6818 = vmatprep.subr.mxu0 0.0
    %6819 = vmatpush1.msra.mxu0 0.0
    %6820 = vmatprep.subr.mxu0 0.0
    %6821 = vmatpush1.msra.mxu0 0.0
    %6822 = vmatprep.subr.mxu0 0.0
    %6823 = vmatpush1.msra.mxu0 0.0
    %6824 = vmatprep.subr.mxu0 0.0
    %6825 = vmatpush1.msra.mxu0 0.0
    %6826 = vmatprep.mubr.f32.mxu0 0.0
    %6827 = vmatmul.mubr.f32.gmra.mrb[0].mxu0 %v6757
    %v6828 = vpop.f32.mrb[0].mxu0
    %v6829 = vadd.f32 0.0, %v6828
    %v6830 = vpop.f32.mrb[0].mxu0
    %6831 = vmatprep.mubr.f32.mxu0 0.0
    %6832 = vmatmul.mubr.f32.gmra.mrb[0].mxu0 %v6760
    %v6833 = vpop.f32.mrb[0].mxu0
    %v6834 = vadd.f32 0.0, %v6833
    %v6835 = vpop.f32.mrb[0].mxu0
    %6836 = vdwg.mxu0
    %6837 = vrot.lane.b32.xlu0 %v248, 40
    %v6838 = vpop.permute.xlu0 %6837
    %6839 = vrot.lane.b32.xlu0 %v253, 40
    %v6840 = vpop.permute.xlu0 %6839
    %v6844 = vsel %vm1101, %v6736, 0
    %v6847 = vsel %vm1101, %v6737, 0
    %6849 = vmatprep.subr.mxu0 0.0
    %6850 = vmatpush1.msra.mxu0 %v6838
    %6851 = vmatprep.subr.mxu0 0.0
    %6852 = vmatpush1.msra.mxu0 %v6840
    %6853 = vmatprep.subr.mxu0 0.0
    %6854 = vmatpush1.msra.mxu0 0.0
    %6855 = vmatprep.subr.mxu0 0.0
    %6856 = vmatpush1.msra.mxu0 0.0
    %6857 = vmatprep.subr.mxu0 0.0
    %6858 = vmatpush1.msra.mxu0 0.0
    %6859 = vmatprep.subr.mxu0 0.0
    %6860 = vmatpush1.msra.mxu0 0.0
    %6861 = vmatprep.subr.mxu0 0.0
    %6862 = vmatpush1.msra.mxu0 0.0
    %6863 = vmatprep.subr.mxu0 0.0
    %6864 = vmatpush1.msra.mxu0 0.0
    %6865 = vmatprep.subr.mxu0 0.0
    %6866 = vmatpush1.msra.mxu0 0.0
    %6867 = vmatprep.subr.mxu0 0.0
    %6868 = vmatpush1.msra.mxu0 0.0
    %6869 = vmatprep.subr.mxu0 0.0
    %6870 = vmatpush1.msra.mxu0 0.0
    %6871 = vmatprep.subr.mxu0 0.0
    %6872 = vmatpush1.msra.mxu0 0.0
    %6873 = vmatprep.subr.mxu0 0.0
    %6874 = vmatpush1.msra.mxu0 0.0
    %6875 = vmatprep.subr.mxu0 0.0
    %6876 = vmatpush1.msra.mxu0 0.0
    %6877 = vmatprep.subr.mxu0 0.0
    %6878 = vmatpush1.msra.mxu0 0.0
    %6879 = vmatprep.subr.mxu0 0.0
    %6880 = vmatpush1.msra.mxu0 0.0
    %6881 = vmatprep.subr.mxu0 0.0
    %6882 = vmatpush1.msra.mxu0 0.0
    %6883 = vmatprep.subr.mxu0 0.0
    %6884 = vmatpush1.msra.mxu0 0.0
    %6885 = vmatprep.subr.mxu0 0.0
    %6886 = vmatpush1.msra.mxu0 0.0
    %6887 = vmatprep.subr.mxu0 0.0
    %6888 = vmatpush1.msra.mxu0 0.0
    %6889 = vmatprep.subr.mxu0 0.0
    %6890 = vmatpush1.msra.mxu0 0.0
    %6891 = vmatprep.subr.mxu0 0.0
    %6892 = vmatpush1.msra.mxu0 0.0
    %6893 = vmatprep.subr.mxu0 0.0
    %6894 = vmatpush1.msra.mxu0 0.0
    %6895 = vmatprep.subr.mxu0 0.0
    %6896 = vmatpush1.msra.mxu0 0.0
    %6897 = vmatprep.subr.mxu0 0.0
    %6898 = vmatpush1.msra.mxu0 0.0
    %6899 = vmatprep.subr.mxu0 0.0
    %6900 = vmatpush1.msra.mxu0 0.0
    %6901 = vmatprep.subr.mxu0 0.0
    %6902 = vmatpush1.msra.mxu0 0.0
    %6903 = vmatprep.subr.mxu0 0.0
    %6904 = vmatpush1.msra.mxu0 0.0
    %6905 = vmatprep.subr.mxu0 0.0
    %6906 = vmatpush1.msra.mxu0 0.0
    %6907 = vmatprep.subr.mxu0 0.0
    %6908 = vmatpush1.msra.mxu0 0.0
    %6909 = vmatprep.subr.mxu0 0.0
    %6910 = vmatpush1.msra.mxu0 0.0
    %6911 = vmatprep.subr.mxu0 0.0
    %6912 = vmatpush1.msra.mxu0 0.0
    %6913 = vmatprep.mubr.f32.mxu0 0.0
    %6914 = vmatmul.mubr.f32.gmra.mrb[0].mxu0 %v6844
    %v6915 = vpop.f32.mrb[0].mxu0
    %v6916 = vadd.f32 0.0, %v6915
    %v6917 = vpop.f32.mrb[0].mxu0
    %6918 = vmatprep.mubr.f32.mxu0 0.0
    %6919 = vmatmul.mubr.f32.gmra.mrb[0].mxu0 %v6847
    %v6920 = vpop.f32.mrb[0].mxu0
    %v6921 = vadd.f32 0.0, %v6920
    %v6922 = vpop.f32.mrb[0].mxu0
    %6923 = vdwg.mxu0
    %6924 = vrot.lane.b32.xlu0 %v258, 40
    %v6925 = vpop.permute.xlu0 %6924
    %6926 = vrot.lane.b32.xlu0 %v263, 40
    %v6927 = vpop.permute.xlu0 %6926
    %v6931 = vsel %vm1101, %v6738, 0
    %v6934 = vsel %vm1101, %v6739, 0
    %6936 = vmatprep.subr.mxu0 0.0
    %6937 = vmatpush1.msra.mxu0 %v6925
    %6938 = vmatprep.subr.mxu0 0.0
    %6939 = vmatpush1.msra.mxu0 %v6927
    %6940 = vmatprep.subr.mxu0 0.0
    %6941 = vmatpush1.msra.mxu0 0.0
    %6942 = vmatprep.subr.mxu0 0.0
    %6943 = vmatpush1.msra.mxu0 0.0
    %6944 = vmatprep.subr.mxu0 0.0
    %6945 = vmatpush1.msra.mxu0 0.0
    %6946 = vmatprep.subr.mxu0 0.0
    %6947 = vmatpush1.msra.mxu0 0.0
    %6948 = vmatprep.subr.mxu0 0.0
    %6949 = vmatpush1.msra.mxu0 0.0
    %6950 = vmatprep.subr.mxu0 0.0
    %6951 = vmatpush1.msra.mxu0 0.0
    %6952 = vmatprep.subr.mxu0 0.0
    %6953 = vmatpush1.msra.mxu0 0.0
    %6954 = vmatprep.subr.mxu0 0.0
    %6955 = vmatpush1.msra.mxu0 0.0
    %6956 = vmatprep.subr.mxu0 0.0
    %6957 = vmatpush1.msra.mxu0 0.0
    %6958 = vmatprep.subr.mxu0 0.0
    %6959 = vmatpush1.msra.mxu0 0.0
    %6960 = vmatprep.subr.mxu0 0.0
    %6961 = vmatpush1.msra.mxu0 0.0
    %6962 = vmatprep.subr.mxu0 0.0
    %6963 = vmatpush1.msra.mxu0 0.0
    %6964 = vmatprep.subr.mxu0 0.0
    %6965 = vmatpush1.msra.mxu0 0.0
    %6966 = vmatprep.subr.mxu0 0.0
    %6967 = vmatpush1.msra.mxu0 0.0
    %6968 = vmatprep.subr.mxu0 0.0
    %6969 = vmatpush1.msra.mxu0 0.0
    %6970 = vmatprep.subr.mxu0 0.0
    %6971 = vmatpush1.msra.mxu0 0.0
    %6972 = vmatprep.subr.mxu0 0.0
    %6973 = vmatpush1.msra.mxu0 0.0
    %6974 = vmatprep.subr.mxu0 0.0
    %6975 = vmatpush1.msra.mxu0 0.0
    %6976 = vmatprep.subr.mxu0 0.0
    %6977 = vmatpush1.msra.mxu0 0.0
    %6978 = vmatprep.subr.mxu0 0.0
    %6979 = vmatpush1.msra.mxu0 0.0
    %6980 = vmatprep.subr.mxu0 0.0
    %6981 = vmatpush1.msra.mxu0 0.0
    %6982 = vmatprep.subr.mxu0 0.0
    %6983 = vmatpush1.msra.mxu0 0.0
    %6984 = vmatprep.subr.mxu0 0.0
    %6985 = vmatpush1.msra.mxu0 0.0
    %6986 = vmatprep.subr.mxu0 0.0
    %6987 = vmatpush1.msra.mxu0 0.0
    %6988 = vmatprep.subr.mxu0 0.0
    %6989 = vmatpush1.msra.mxu0 0.0
    %6990 = vmatprep.subr.mxu0 0.0
    %6991 = vmatpush1.msra.mxu0 0.0
    %6992 = vmatprep.subr.mxu0 0.0
    %6993 = vmatpush1.msra.mxu0 0.0
    %6994 = vmatprep.subr.mxu0 0.0
    %6995 = vmatpush1.msra.mxu0 0.0
    %6996 = vmatprep.subr.mxu0 0.0
    %6997 = vmatpush1.msra.mxu0 0.0
    %6998 = vmatprep.subr.mxu0 0.0
    %6999 = vmatpush1.msra.mxu0 0.0
    %7000 = vmatprep.mubr.f32.mxu0 0.0
    %7001 = vmatmul.mubr.f32.gmra.mrb[0].mxu0 %v6931
    %v7002 = vpop.f32.mrb[0].mxu0
    %v7003 = vadd.f32 0.0, %v7002
    %v7004 = vpop.f32.mrb[0].mxu0
    %7005 = vmatprep.mubr.f32.mxu0 0.0
    %7006 = vmatmul.mubr.f32.gmra.mrb[0].mxu0 %v6934
    %v7007 = vpop.f32.mrb[0].mxu0
    %v7008 = vadd.f32 0.0, %v7007
    %v7009 = vpop.f32.mrb[0].mxu0
    %7010 = vdwg.mxu0
    %7011 = vrot.lane.b32.xlu0 %v268, 40
    %v7012 = vpop.permute.xlu0 %7011
    %7013 = vrot.lane.b32.xlu0 %v273, 40
    %v7014 = vpop.permute.xlu0 %7013
    %v7018 = vsel %vm1101, %v6740, 0
    %v7021 = vsel %vm1101, %v6741, 0
    %7023 = vmatprep.subr.mxu0 0.0
    %7024 = vmatpush1.msra.mxu0 %v7012
    %7025 = vmatprep.subr.mxu0 0.0
    %7026 = vmatpush1.msra.mxu0 %v7014
    %7027 = vmatprep.subr.mxu0 0.0
    %7028 = vmatpush1.msra.mxu0 0.0
    %7029 = vmatprep.subr.mxu0 0.0
    %7030 = vmatpush1.msra.mxu0 0.0
    %7031 = vmatprep.subr.mxu0 0.0
    %7032 = vmatpush1.msra.mxu0 0.0
    %7033 = vmatprep.subr.mxu0 0.0
    %7034 = vmatpush1.msra.mxu0 0.0
    %7035 = vmatprep.subr.mxu0 0.0
    %7036 = vmatpush1.msra.mxu0 0.0
    %7037 = vmatprep.subr.mxu0 0.0
    %7038 = vmatpush1.msra.mxu0 0.0
    %7039 = vmatprep.subr.mxu0 0.0
    %7040 = vmatpush1.msra.mxu0 0.0
    %7041 = vmatprep.subr.mxu0 0.0
    %7042 = vmatpush1.msra.mxu0 0.0
    %7043 = vmatprep.subr.mxu0 0.0
    %7044 = vmatpush1.msra.mxu0 0.0
    %7045 = vmatprep.subr.mxu0 0.0
    %7046 = vmatpush1.msra.mxu0 0.0
    %7047 = vmatprep.subr.mxu0 0.0
    %7048 = vmatpush1.msra.mxu0 0.0
    %7049 = vmatprep.subr.mxu0 0.0
    %7050 = vmatpush1.msra.mxu0 0.0
    %7051 = vmatprep.subr.mxu0 0.0
    %7052 = vmatpush1.msra.mxu0 0.0
    %7053 = vmatprep.subr.mxu0 0.0
    %7054 = vmatpush1.msra.mxu0 0.0
    %7055 = vmatprep.subr.mxu0 0.0
    %7056 = vmatpush1.msra.mxu0 0.0
    %7057 = vmatprep.subr.mxu0 0.0
    %7058 = vmatpush1.msra.mxu0 0.0
    %7059 = vmatprep.subr.mxu0 0.0
    %7060 = vmatpush1.msra.mxu0 0.0
    %7061 = vmatprep.subr.mxu0 0.0
    %7062 = vmatpush1.msra.mxu0 0.0
    %7063 = vmatprep.subr.mxu0 0.0
    %7064 = vmatpush1.msra.mxu0 0.0
    %7065 = vmatprep.subr.mxu0 0.0
    %7066 = vmatpush1.msra.mxu0 0.0
    %7067 = vmatprep.subr.mxu0 0.0
    %7068 = vmatpush1.msra.mxu0 0.0
    %7069 = vmatprep.subr.mxu0 0.0
    %7070 = vmatpush1.msra.mxu0 0.0
    %7071 = vmatprep.subr.mxu0 0.0
    %7072 = vmatpush1.msra.mxu0 0.0
    %7073 = vmatprep.subr.mxu0 0.0
    %7074 = vmatpush1.msra.mxu0 0.0
    %7075 = vmatprep.subr.mxu0 0.0
    %7076 = vmatpush1.msra.mxu0 0.0
    %7077 = vmatprep.subr.mxu0 0.0
    %7078 = vmatpush1.msra.mxu0 0.0
    %7079 = vmatprep.subr.mxu0 0.0
    %7080 = vmatpush1.msra.mxu0 0.0
    %7081 = vmatprep.subr.mxu0 0.0
    %7082 = vmatpush1.msra.mxu0 0.0
    %7083 = vmatprep.subr.mxu0 0.0
    %7084 = vmatpush1.msra.mxu0 0.0
    %7085 = vmatprep.subr.mxu0 0.0
    %7086 = vmatpush1.msra.mxu0 0.0
    %7087 = vmatprep.mubr.f32.mxu0 0.0
    %7088 = vmatmul.mubr.f32.gmra.mrb[0].mxu0 %v7018
    %v7089 = vpop.f32.mrb[0].mxu0
    %v7090 = vadd.f32 0.0, %v7089
    %v7091 = vpop.f32.mrb[0].mxu0
    %7092 = vmatprep.mubr.f32.mxu0 0.0
    %7093 = vmatmul.mubr.f32.gmra.mrb[0].mxu0 %v7021
    %v7094 = vpop.f32.mrb[0].mxu0
    %v7095 = vadd.f32 0.0, %v7094
    %v7096 = vpop.f32.mrb[0].mxu0
    %7097 = vdwg.mxu0
    %7098 = vrot.lane.b32.xlu0 %v278, 40
    %v7099 = vpop.permute.xlu0 %7098
    %7100 = vrot.lane.b32.xlu0 %v283, 40
    %v7101 = vpop.permute.xlu0 %7100
    %v7105 = vsel %vm1101, %v6742, 0
    %v7108 = vsel %vm1101, %v6743, 0
    %7110 = vmatprep.subr.mxu0 0.0
    %7111 = vmatpush1.msra.mxu0 %v7099
    %7112 = vmatprep.subr.mxu0 0.0
    %7113 = vmatpush1.msra.mxu0 %v7101
    %7114 = vmatprep.subr.mxu0 0.0
    %7115 = vmatpush1.msra.mxu0 0.0
    %7116 = vmatprep.subr.mxu0 0.0
    %7117 = vmatpush1.msra.mxu0 0.0
    %7118 = vmatprep.subr.mxu0 0.0
    %7119 = vmatpush1.msra.mxu0 0.0
    %7120 = vmatprep.subr.mxu0 0.0
    %7121 = vmatpush1.msra.mxu0 0.0
    %7122 = vmatprep.subr.mxu0 0.0
    %7123 = vmatpush1.msra.mxu0 0.0
    %7124 = vmatprep.subr.mxu0 0.0
    %7125 = vmatpush1.msra.mxu0 0.0
    %7126 = vmatprep.subr.mxu0 0.0
    %7127 = vmatpush1.msra.mxu0 0.0
    %7128 = vmatprep.subr.mxu0 0.0
    %7129 = vmatpush1.msra.mxu0 0.0
    %7130 = vmatprep.subr.mxu0 0.0
    %7131 = vmatpush1.msra.mxu0 0.0
    %7132 = vmatprep.subr.mxu0 0.0
    %7133 = vmatpush1.msra.mxu0 0.0
    %7134 = vmatprep.subr.mxu0 0.0
    %7135 = vmatpush1.msra.mxu0 0.0
    %7136 = vmatprep.subr.mxu0 0.0
    %7137 = vmatpush1.msra.mxu0 0.0
    %7138 = vmatprep.subr.mxu0 0.0
    %7139 = vmatpush1.msra.mxu0 0.0
    %7140 = vmatprep.subr.mxu0 0.0
    %7141 = vmatpush1.msra.mxu0 0.0
    %7142 = vmatprep.subr.mxu0 0.0
    %7143 = vmatpush1.msra.mxu0 0.0
    %7144 = vmatprep.subr.mxu0 0.0
    %7145 = vmatpush1.msra.mxu0 0.0
    %7146 = vmatprep.subr.mxu0 0.0
    %7147 = vmatpush1.msra.mxu0 0.0
    %7148 = vmatprep.subr.mxu0 0.0
    %7149 = vmatpush1.msra.mxu0 0.0
    %7150 = vmatprep.subr.mxu0 0.0
    %7151 = vmatpush1.msra.mxu0 0.0
    %7152 = vmatprep.subr.mxu0 0.0
    %7153 = vmatpush1.msra.mxu0 0.0
    %7154 = vmatprep.subr.mxu0 0.0
    %7155 = vmatpush1.msra.mxu0 0.0
    %7156 = vmatprep.subr.mxu0 0.0
    %7157 = vmatpush1.msra.mxu0 0.0
    %7158 = vmatprep.subr.mxu0 0.0
    %7159 = vmatpush1.msra.mxu0 0.0
    %7160 = vmatprep.subr.mxu0 0.0
    %7161 = vmatpush1.msra.mxu0 0.0
    %7162 = vmatprep.subr.mxu0 0.0
    %7163 = vmatpush1.msra.mxu0 0.0
    %7164 = vmatprep.subr.mxu0 0.0
    %7165 = vmatpush1.msra.mxu0 0.0
    %7166 = vmatprep.subr.mxu0 0.0
    %7167 = vmatpush1.msra.mxu0 0.0
    %7168 = vmatprep.subr.mxu0 0.0
    %7169 = vmatpush1.msra.mxu0 0.0
    %7170 = vmatprep.subr.mxu0 0.0
    %7171 = vmatpush1.msra.mxu0 0.0
    %7172 = vmatprep.subr.mxu0 0.0
    %7173 = vmatpush1.msra.mxu0 0.0
    %7174 = vmatprep.mubr.f32.mxu0 0.0
    %7175 = vmatmul.mubr.f32.gmra.mrb[0].mxu0 %v7105
    %v7176 = vpop.f32.mrb[0].mxu0
    %v7177 = vadd.f32 0.0, %v7176
    %v7178 = vpop.f32.mrb[0].mxu0
    %7179 = vmatprep.mubr.f32.mxu0 0.0
    %7180 = vmatmul.mubr.f32.gmra.mrb[0].mxu0 %v7108
    %v7181 = vpop.f32.mrb[0].mxu0
    %v7182 = vadd.f32 0.0, %v7181
    %v7183 = vpop.f32.mrb[0].mxu0
    %7184 = vdwg.mxu0
    %7185 = vrot.lane.b32.xlu0 %v288, 40
    %v7186 = vpop.permute.xlu0 %7185
    %7187 = vrot.lane.b32.xlu0 %v293, 40
    %v7188 = vpop.permute.xlu0 %7187
    %v7192 = vsel %vm1101, %v6744, 0
    %v7195 = vsel %vm1101, %v6745, 0
    %7197 = vmatprep.subr.mxu0 0.0
    %7198 = vmatpush1.msra.mxu0 %v7186
    %7199 = vmatprep.subr.mxu0 0.0
    %7200 = vmatpush1.msra.mxu0 %v7188
    %7201 = vmatprep.subr.mxu0 0.0
    %7202 = vmatpush1.msra.mxu0 0.0
    %7203 = vmatprep.subr.mxu0 0.0
    %7204 = vmatpush1.msra.mxu0 0.0
    %7205 = vmatprep.subr.mxu0 0.0
    %7206 = vmatpush1.msra.mxu0 0.0
    %7207 = vmatprep.subr.mxu0 0.0
    %7208 = vmatpush1.msra.mxu0 0.0
    %7209 = vmatprep.subr.mxu0 0.0
    %7210 = vmatpush1.msra.mxu0 0.0
    %7211 = vmatprep.subr.mxu0 0.0
    %7212 = vmatpush1.msra.mxu0 0.0
    %7213 = vmatprep.subr.mxu0 0.0
    %7214 = vmatpush1.msra.mxu0 0.0
    %7215 = vmatprep.subr.mxu0 0.0
    %7216 = vmatpush1.msra.mxu0 0.0
    %7217 = vmatprep.subr.mxu0 0.0
    %7218 = vmatpush1.msra.mxu0 0.0
    %7219 = vmatprep.subr.mxu0 0.0
    %7220 = vmatpush1.msra.mxu0 0.0
    %7221 = vmatprep.subr.mxu0 0.0
    %7222 = vmatpush1.msra.mxu0 0.0
    %7223 = vmatprep.subr.mxu0 0.0
    %7224 = vmatpush1.msra.mxu0 0.0
    %7225 = vmatprep.subr.mxu0 0.0
    %7226 = vmatpush1.msra.mxu0 0.0
    %7227 = vmatprep.subr.mxu0 0.0
    %7228 = vmatpush1.msra.mxu0 0.0
    %7229 = vmatprep.subr.mxu0 0.0
    %7230 = vmatpush1.msra.mxu0 0.0
    %7231 = vmatprep.subr.mxu0 0.0
    %7232 = vmatpush1.msra.mxu0 0.0
    %7233 = vmatprep.subr.mxu0 0.0
    %7234 = vmatpush1.msra.mxu0 0.0
    %7235 = vmatprep.subr.mxu0 0.0
    %7236 = vmatpush1.msra.mxu0 0.0
    %7237 = vmatprep.subr.mxu0 0.0
    %7238 = vmatpush1.msra.mxu0 0.0
    %7239 = vmatprep.subr.mxu0 0.0
    %7240 = vmatpush1.msra.mxu0 0.0
    %7241 = vmatprep.subr.mxu0 0.0
    %7242 = vmatpush1.msra.mxu0 0.0
    %7243 = vmatprep.subr.mxu0 0.0
    %7244 = vmatpush1.msra.mxu0 0.0
    %7245 = vmatprep.subr.mxu0 0.0
    %7246 = vmatpush1.msra.mxu0 0.0
    %7247 = vmatprep.subr.mxu0 0.0
    %7248 = vmatpush1.msra.mxu0 0.0
    %7249 = vmatprep.subr.mxu0 0.0
    %7250 = vmatpush1.msra.mxu0 0.0
    %7251 = vmatprep.subr.mxu0 0.0
    %7252 = vmatpush1.msra.mxu0 0.0
    %7253 = vmatprep.subr.mxu0 0.0
    %7254 = vmatpush1.msra.mxu0 0.0
    %7255 = vmatprep.subr.mxu0 0.0
    %7256 = vmatpush1.msra.mxu0 0.0
    %7257 = vmatprep.subr.mxu0 0.0
    %7258 = vmatpush1.msra.mxu0 0.0
    %7259 = vmatprep.subr.mxu0 0.0
    %7260 = vmatpush1.msra.mxu0 0.0
    %7261 = vmatprep.mubr.f32.mxu0 0.0
    %7262 = vmatmul.mubr.f32.gmra.mrb[0].mxu0 %v7192
    %v7263 = vpop.f32.mrb[0].mxu0
    %v7264 = vadd.f32 0.0, %v7263
    %v7265 = vpop.f32.mrb[0].mxu0
    %7266 = vmatprep.mubr.f32.mxu0 0.0
    %7267 = vmatmul.mubr.f32.gmra.mrb[0].mxu0 %v7195
    %v7268 = vpop.f32.mrb[0].mxu0
    %v7269 = vadd.f32 0.0, %v7268
    %v7270 = vpop.f32.mrb[0].mxu0
    %7271 = vdwg.mxu0
    %7272 = vrot.lane.b32.xlu0 %v298, 40
    %v7273 = vpop.permute.xlu0 %7272
    %7274 = vrot.lane.b32.xlu0 %v303, 40
    %v7275 = vpop.permute.xlu0 %7274
    %v7279 = vsel %vm1101, %v6746, 0
    %v7282 = vsel %vm1101, %v6747, 0
    %7284 = vmatprep.subr.mxu0 0.0
    %7285 = vmatpush1.msra.mxu0 %v7273
    %7286 = vmatprep.subr.mxu0 0.0
    %7287 = vmatpush1.msra.mxu0 %v7275
    %7288 = vmatprep.subr.mxu0 0.0
    %7289 = vmatpush1.msra.mxu0 0.0
    %7290 = vmatprep.subr.mxu0 0.0
    %7291 = vmatpush1.msra.mxu0 0.0
    %7292 = vmatprep.subr.mxu0 0.0
    %7293 = vmatpush1.msra.mxu0 0.0
    %7294 = vmatprep.subr.mxu0 0.0
    %7295 = vmatpush1.msra.mxu0 0.0
    %7296 = vmatprep.subr.mxu0 0.0
    %7297 = vmatpush1.msra.mxu0 0.0
    %7298 = vmatprep.subr.mxu0 0.0
    %7299 = vmatpush1.msra.mxu0 0.0
    %7300 = vmatprep.subr.mxu0 0.0
    %7301 = vmatpush1.msra.mxu0 0.0
    %7302 = vmatprep.subr.mxu0 0.0
    %7303 = vmatpush1.msra.mxu0 0.0
    %7304 = vmatprep.subr.mxu0 0.0
    %7305 = vmatpush1.msra.mxu0 0.0
    %7306 = vmatprep.subr.mxu0 0.0
    %7307 = vmatpush1.msra.mxu0 0.0
    %7308 = vmatprep.subr.mxu0 0.0
    %7309 = vmatpush1.msra.mxu0 0.0
    %7310 = vmatprep.subr.mxu0 0.0
    %7311 = vmatpush1.msra.mxu0 0.0
    %7312 = vmatprep.subr.mxu0 0.0
    %7313 = vmatpush1.msra.mxu0 0.0
    %7314 = vmatprep.subr.mxu0 0.0
    %7315 = vmatpush1.msra.mxu0 0.0
    %7316 = vmatprep.subr.mxu0 0.0
    %7317 = vmatpush1.msra.mxu0 0.0
    %7318 = vmatprep.subr.mxu0 0.0
    %7319 = vmatpush1.msra.mxu0 0.0
    %7320 = vmatprep.subr.mxu0 0.0
    %7321 = vmatpush1.msra.mxu0 0.0
    %7322 = vmatprep.subr.mxu0 0.0
    %7323 = vmatpush1.msra.mxu0 0.0
    %7324 = vmatprep.subr.mxu0 0.0
    %7325 = vmatpush1.msra.mxu0 0.0
    %7326 = vmatprep.subr.mxu0 0.0
    %7327 = vmatpush1.msra.mxu0 0.0
    %7328 = vmatprep.subr.mxu0 0.0
    %7329 = vmatpush1.msra.mxu0 0.0
    %7330 = vmatprep.subr.mxu0 0.0
    %7331 = vmatpush1.msra.mxu0 0.0
    %7332 = vmatprep.subr.mxu0 0.0
    %7333 = vmatpush1.msra.mxu0 0.0
    %7334 = vmatprep.subr.mxu0 0.0
    %7335 = vmatpush1.msra.mxu0 0.0
    %7336 = vmatprep.subr.mxu0 0.0
    %7337 = vmatpush1.msra.mxu0 0.0
    %7338 = vmatprep.subr.mxu0 0.0
    %7339 = vmatpush1.msra.mxu0 0.0
    %7340 = vmatprep.subr.mxu0 0.0
    %7341 = vmatpush1.msra.mxu0 0.0
    %7342 = vmatprep.subr.mxu0 0.0
    %7343 = vmatpush1.msra.mxu0 0.0
    %7344 = vmatprep.subr.mxu0 0.0
    %7345 = vmatpush1.msra.mxu0 0.0
    %7346 = vmatprep.subr.mxu0 0.0
    %7347 = vmatpush1.msra.mxu0 0.0
    %7348 = vmatprep.mubr.f32.mxu0 0.0
    %7349 = vmatmul.mubr.f32.gmra.mrb[0].mxu0 %v7279
    %v7350 = vpop.f32.mrb[0].mxu0
    %v7351 = vadd.f32 0.0, %v7350
    %v7352 = vpop.f32.mrb[0].mxu0
    %7353 = vmatprep.mubr.f32.mxu0 0.0
    %7354 = vmatmul.mubr.f32.gmra.mrb[0].mxu0 %v7282
    %v7355 = vpop.f32.mrb[0].mxu0
    %v7356 = vadd.f32 0.0, %v7355
    %v7357 = vpop.f32.mrb[0].mxu0
    %7358 = vdwg.mxu0
    %7359 = vrot.lane.b32.xlu0 %v308, 40
    %v7360 = vpop.permute.xlu0 %7359
    %7361 = vrot.lane.b32.xlu0 %v313, 40
    %v7362 = vpop.permute.xlu0 %7361
    %v7366 = vsel %vm1101, %v6748, 0
    %v7369 = vsel %vm1101, %v6749, 0
    %7371 = vmatprep.subr.mxu0 0.0
    %7372 = vmatpush1.msra.mxu0 %v7360
    %7373 = vmatprep.subr.mxu0 0.0
    %7374 = vmatpush1.msra.mxu0 %v7362
    %7375 = vmatprep.subr.mxu0 0.0
    %7376 = vmatpush1.msra.mxu0 0.0
    %7377 = vmatprep.subr.mxu0 0.0
    %7378 = vmatpush1.msra.mxu0 0.0
    %7379 = vmatprep.subr.mxu0 0.0
    %7380 = vmatpush1.msra.mxu0 0.0
    %7381 = vmatprep.subr.mxu0 0.0
    %7382 = vmatpush1.msra.mxu0 0.0
    %7383 = vmatprep.subr.mxu0 0.0
    %7384 = vmatpush1.msra.mxu0 0.0
    %7385 = vmatprep.subr.mxu0 0.0
    %7386 = vmatpush1.msra.mxu0 0.0
    %7387 = vmatprep.subr.mxu0 0.0
    %7388 = vmatpush1.msra.mxu0 0.0
    %7389 = vmatprep.subr.mxu0 0.0
    %7390 = vmatpush1.msra.mxu0 0.0
    %7391 = vmatprep.subr.mxu0 0.0
    %7392 = vmatpush1.msra.mxu0 0.0
    %7393 = vmatprep.subr.mxu0 0.0
    %7394 = vmatpush1.msra.mxu0 0.0
    %7395 = vmatprep.subr.mxu0 0.0
    %7396 = vmatpush1.msra.mxu0 0.0
    %7397 = vmatprep.subr.mxu0 0.0
    %7398 = vmatpush1.msra.mxu0 0.0
    %7399 = vmatprep.subr.mxu0 0.0
    %7400 = vmatpush1.msra.mxu0 0.0
    %7401 = vmatprep.subr.mxu0 0.0
    %7402 = vmatpush1.msra.mxu0 0.0
    %7403 = vmatprep.subr.mxu0 0.0
    %7404 = vmatpush1.msra.mxu0 0.0
    %7405 = vmatprep.subr.mxu0 0.0
    %7406 = vmatpush1.msra.mxu0 0.0
    %7407 = vmatprep.subr.mxu0 0.0
    %7408 = vmatpush1.msra.mxu0 0.0
    %7409 = vmatprep.subr.mxu0 0.0
    %7410 = vmatpush1.msra.mxu0 0.0
    %7411 = vmatprep.subr.mxu0 0.0
    %7412 = vmatpush1.msra.mxu0 0.0
    %7413 = vmatprep.subr.mxu0 0.0
    %7414 = vmatpush1.msra.mxu0 0.0
    %7415 = vmatprep.subr.mxu0 0.0
    %7416 = vmatpush1.msra.mxu0 0.0
    %7417 = vmatprep.subr.mxu0 0.0
    %7418 = vmatpush1.msra.mxu0 0.0
    %7419 = vmatprep.subr.mxu0 0.0
    %7420 = vmatpush1.msra.mxu0 0.0
    %7421 = vmatprep.subr.mxu0 0.0
    %7422 = vmatpush1.msra.mxu0 0.0
    %7423 = vmatprep.subr.mxu0 0.0
    %7424 = vmatpush1.msra.mxu0 0.0
    %7425 = vmatprep.subr.mxu0 0.0
    %7426 = vmatpush1.msra.mxu0 0.0
    %7427 = vmatprep.subr.mxu0 0.0
    %7428 = vmatpush1.msra.mxu0 0.0
    %7429 = vmatprep.subr.mxu0 0.0
    %7430 = vmatpush1.msra.mxu0 0.0
    %7431 = vmatprep.subr.mxu0 0.0
    %7432 = vmatpush1.msra.mxu0 0.0
    %7433 = vmatprep.subr.mxu0 0.0
    %7434 = vmatpush1.msra.mxu0 0.0
    %7435 = vmatprep.mubr.f32.mxu0 0.0
    %7436 = vmatmul.mubr.f32.gmra.mrb[0].mxu0 %v7366
    %v7437 = vpop.f32.mrb[0].mxu0
    %v7438 = vadd.f32 0.0, %v7437
    %v7439 = vpop.f32.mrb[0].mxu0
    %7440 = vmatprep.mubr.f32.mxu0 0.0
    %7441 = vmatmul.mubr.f32.gmra.mrb[0].mxu0 %v7369
    %v7442 = vpop.f32.mrb[0].mxu0
    %v7443 = vadd.f32 0.0, %v7442
    %v7444 = vpop.f32.mrb[0].mxu0
    %7445 = vdwg.mxu0
    %s7446 = scalar_lea.vmem [#allocation10], 24
    %v7447 = vld [vmem:[%s7446] sm:$0xff]
    %v7449 = vsel %vm354, %v6829, 0
    %v7452 = vsel %vm354, %v6834, 0
    %v7455 = vsel %vm354, %v6916, 0
    %v7458 = vsel %vm354, %v6921, 0
    %v7461 = vsel %vm354, %v7003, 0
    %v7464 = vsel %vm354, %v7008, 0
    %v7467 = vsel %vm354, %v7090, 0
    %v7470 = vsel %vm354, %v7095, 0
    %v7473 = vsel %vm354, %v7177, 0
    %v7476 = vsel %vm354, %v7182, 0
    %v7479 = vsel %vm354, %v7264, 0
    %v7482 = vsel %vm354, %v7269, 0
    %v7485 = vsel %vm354, %v7351, 0
    %v7488 = vsel %vm354, %v7356, 0
    %v7491 = vsel %vm354, %v7438, 0
    %v7494 = vsel %vm354, %v7443, 0
    %7496 = vmatprep.subr.mxu0 0.0
    %7497 = vmatpush1.msra.mxu0 %v7447
    %7498 = vmatprep.subr.mxu0 0.0
    %7499 = vmatpush1.msra.mxu0 0.0
    %7500 = vmatprep.subr.mxu0 0.0
    %7501 = vmatpush1.msra.mxu0 0.0
    %7502 = vmatprep.subr.mxu0 0.0
    %7503 = vmatpush1.msra.mxu0 0.0
    %7504 = vmatprep.subr.mxu0 0.0
    %7505 = vmatpush1.msra.mxu0 0.0
    %7506 = vmatprep.subr.mxu0 0.0
    %7507 = vmatpush1.msra.mxu0 0.0
    %7508 = vmatprep.subr.mxu0 0.0
    %7509 = vmatpush1.msra.mxu0 0.0
    %7510 = vmatprep.subr.mxu0 0.0
    %7511 = vmatpush1.msra.mxu0 0.0
    %7512 = vmatprep.subr.mxu0 0.0
    %7513 = vmatpush1.msra.mxu0 0.0
    %7514 = vmatprep.subr.mxu0 0.0
    %7515 = vmatpush1.msra.mxu0 0.0
    %7516 = vmatprep.subr.mxu0 0.0
    %7517 = vmatpush1.msra.mxu0 0.0
    %7518 = vmatprep.subr.mxu0 0.0
    %7519 = vmatpush1.msra.mxu0 0.0
    %7520 = vmatprep.subr.mxu0 0.0
    %7521 = vmatpush1.msra.mxu0 0.0
    %7522 = vmatprep.subr.mxu0 0.0
    %7523 = vmatpush1.msra.mxu0 0.0
    %7524 = vmatprep.subr.mxu0 0.0
    %7525 = vmatpush1.msra.mxu0 0.0
    %7526 = vmatprep.subr.mxu0 0.0
    %7527 = vmatpush1.msra.mxu0 0.0
    %7528 = vmatprep.subr.mxu0 0.0
    %7529 = vmatpush1.msra.mxu0 0.0
    %7530 = vmatprep.subr.mxu0 0.0
    %7531 = vmatpush1.msra.mxu0 0.0
    %7532 = vmatprep.subr.mxu0 0.0
    %7533 = vmatpush1.msra.mxu0 0.0
    %7534 = vmatprep.subr.mxu0 0.0
    %7535 = vmatpush1.msra.mxu0 0.0
    %7536 = vmatprep.subr.mxu0 0.0
    %7537 = vmatpush1.msra.mxu0 0.0
    %7538 = vmatprep.subr.mxu0 0.0
    %7539 = vmatpush1.msra.mxu0 0.0
    %7540 = vmatprep.subr.mxu0 0.0
    %7541 = vmatpush1.msra.mxu0 0.0
    %7542 = vmatprep.subr.mxu0 0.0
    %7543 = vmatpush1.msra.mxu0 0.0
    %7544 = vmatprep.subr.mxu0 0.0
    %7545 = vmatpush1.msra.mxu0 0.0
    %7546 = vmatprep.subr.mxu0 0.0
    %7547 = vmatpush1.msra.mxu0 0.0
    %7548 = vmatprep.subr.mxu0 0.0
    %7549 = vmatpush1.msra.mxu0 0.0
    %7550 = vmatprep.subr.mxu0 0.0
    %7551 = vmatpush1.msra.mxu0 0.0
    %7552 = vmatprep.subr.mxu0 0.0
    %7553 = vmatpush1.msra.mxu0 0.0
    %7554 = vmatprep.subr.mxu0 0.0
    %7555 = vmatpush1.msra.mxu0 0.0
    %7556 = vmatprep.subr.mxu0 0.0
    %7557 = vmatpush1.msra.mxu0 0.0
    %7558 = vmatprep.subr.mxu0 0.0
    %7559 = vmatpush1.msra.mxu0 0.0
    %7560 = vmatprep.mubr.f32.mxu0 0.0
    %7561 = vmatmul.mubr.f32.gmra.mrb[0].mxu0 %v7449
    %v7562 = vpop.f32.mrb[0].mxu0
    %v7563 = vadd.f32 0.0, %v7562
    %v7564 = vpop.f32.mrb[0].mxu0
    %7565 = vmatprep.mubr.f32.mxu0 0.0
    %7566 = vmatmul.mubr.f32.gmra.mrb[0].mxu0 %v7452
    %v7567 = vpop.f32.mrb[0].mxu0
    %v7568 = vadd.f32 0.0, %v7567
    %v7569 = vpop.f32.mrb[0].mxu0
    %7570 = vmatprep.mubr.f32.mxu0 0.0
    %7571 = vmatmul.mubr.f32.gmra.mrb[0].mxu0 %v7455
    %v7572 = vpop.f32.mrb[0].mxu0
    %v7573 = vadd.f32 0.0, %v7572
    %v7574 = vpop.f32.mrb[0].mxu0
    %7575 = vmatprep.mubr.f32.mxu0 0.0
    %7576 = vmatmul.mubr.f32.gmra.mrb[0].mxu0 %v7458
    %v7577 = vpop.f32.mrb[0].mxu0
    %v7578 = vadd.f32 0.0, %v7577
    %v7579 = vpop.f32.mrb[0].mxu0
    %7580 = vmatprep.mubr.f32.mxu0 0.0
    %7581 = vmatmul.mubr.f32.gmra.mrb[0].mxu0 %v7461
    %v7582 = vpop.f32.mrb[0].mxu0
    %v7583 = vadd.f32 0.0, %v7582
    %v7584 = vpop.f32.mrb[0].mxu0
    %7585 = vmatprep.mubr.f32.mxu0 0.0
    %7586 = vmatmul.mubr.f32.gmra.mrb[0].mxu0 %v7464
    %v7587 = vpop.f32.mrb[0].mxu0
    %v7588 = vadd.f32 0.0, %v7587
    %v7589 = vpop.f32.mrb[0].mxu0
    %7590 = vmatprep.mubr.f32.mxu0 0.0
    %7591 = vmatmul.mubr.f32.gmra.mrb[0].mxu0 %v7467
    %v7592 = vpop.f32.mrb[0].mxu0
    %v7593 = vadd.f32 0.0, %v7592
    %v7594 = vpop.f32.mrb[0].mxu0
    %7595 = vmatprep.mubr.f32.mxu0 0.0
    %7596 = vmatmul.mubr.f32.gmra.mrb[0].mxu0 %v7470
    %v7597 = vpop.f32.mrb[0].mxu0
    %v7598 = vadd.f32 0.0, %v7597
    %v7599 = vpop.f32.mrb[0].mxu0
    %7600 = vmatprep.mubr.f32.mxu0 0.0
    %7601 = vmatmul.mubr.f32.gmra.mrb[0].mxu0 %v7473
    %v7602 = vpop.f32.mrb[0].mxu0
    %v7603 = vadd.f32 0.0, %v7602
    %v7604 = vpop.f32.mrb[0].mxu0
    %7605 = vmatprep.mubr.f32.mxu0 0.0
    %7606 = vmatmul.mubr.f32.gmra.mrb[0].mxu0 %v7476
    %v7607 = vpop.f32.mrb[0].mxu0
    %v7608 = vadd.f32 0.0, %v7607
    %v7609 = vpop.f32.mrb[0].mxu0
    %7610 = vmatprep.mubr.f32.mxu0 0.0
    %7611 = vmatmul.mubr.f32.gmra.mrb[0].mxu0 %v7479
    %v7612 = vpop.f32.mrb[0].mxu0
    %v7613 = vadd.f32 0.0, %v7612
    %v7614 = vpop.f32.mrb[0].mxu0
    %7615 = vmatprep.mubr.f32.mxu0 0.0
    %7616 = vmatmul.mubr.f32.gmra.mrb[0].mxu0 %v7482
    %v7617 = vpop.f32.mrb[0].mxu0
    %v7618 = vadd.f32 0.0, %v7617
    %v7619 = vpop.f32.mrb[0].mxu0
    %7620 = vmatprep.mubr.f32.mxu0 0.0
    %7621 = vmatmul.mubr.f32.gmra.mrb[0].mxu0 %v7485
    %v7622 = vpop.f32.mrb[0].mxu0
    %v7623 = vadd.f32 0.0, %v7622
    %v7624 = vpop.f32.mrb[0].mxu0
    %7625 = vmatprep.mubr.f32.mxu0 0.0
    %7626 = vmatmul.mubr.f32.gmra.mrb[0].mxu0 %v7488
    %v7627 = vpop.f32.mrb[0].mxu0
    %v7628 = vadd.f32 0.0, %v7627
    %v7629 = vpop.f32.mrb[0].mxu0
    %7630 = vmatprep.mubr.f32.mxu0 0.0
    %7631 = vmatmul.mubr.f32.gmra.mrb[0].mxu0 %v7491
    %v7632 = vpop.f32.mrb[0].mxu0
    %v7633 = vadd.f32 0.0, %v7632
    %v7634 = vpop.f32.mrb[0].mxu0
    %7635 = vmatprep.mubr.f32.mxu0 0.0
    %7636 = vmatmul.mubr.f32.gmra.mrb[0].mxu0 %v7494
    %v7637 = vpop.f32.mrb[0].mxu0
    %v7638 = vadd.f32 0.0, %v7637
    %v7639 = vpop.f32.mrb[0].mxu0
    %7640 = vdwg.mxu0
    %v7641 = vadd.f32 %v5806, %v7563
    %v7642 = vadd.f32 %v5807, %v7568
    %v7643 = vadd.f32 %v5808, %v7573
    %v7644 = vadd.f32 %v5809, %v7578
    %v7645 = vadd.f32 %v5810, %v7583
    %v7646 = vadd.f32 %v5811, %v7588
    %v7647 = vadd.f32 %v5812, %v7593
    %v7648 = vadd.f32 %v5813, %v7598
    %v7649 = vadd.f32 %v5814, %v7603
    %v7650 = vadd.f32 %v5815, %v7608
    %v7651 = vadd.f32 %v5816, %v7613
    %v7652 = vadd.f32 %v5817, %v7618
    %v7653 = vadd.f32 %v5818, %v7623
    %v7654 = vadd.f32 %v5819, %v7628
    %v7655 = vadd.f32 %v5820, %v7633
    %v7656 = vadd.f32 %v5821, %v7638
    %v7657 = vld [vmem:[%s6] sm:$0x1]
    %v7659 = vlaneseq
    %v7660 = vshrl.u32 %v7659, 7
    %v7661 = vsub.s32 0, %v7660
    %v7662 = vrot.slane %v7657, %v7661
    %v7664 = vadd.f32 %v7641, %v7662
    %v7665 = vadd.f32 %v7642, %v7662
    %v7666 = vadd.f32 %v7643, %v7662
    %v7667 = vadd.f32 %v7644, %v7662
    %v7668 = vadd.f32 %v7645, %v7662
    %v7669 = vadd.f32 %v7646, %v7662
    %v7670 = vadd.f32 %v7647, %v7662
    %v7671 = vadd.f32 %v7648, %v7662
    %v7672 = vadd.f32 %v7649, %v7662
    %v7673 = vadd.f32 %v7650, %v7662
    %v7674 = vadd.f32 %v7651, %v7662
    %v7675 = vadd.f32 %v7652, %v7662
    %v7676 = vadd.f32 %v7653, %v7662
    %v7677 = vadd.f32 %v7654, %v7662
    %v7678 = vadd.f32 %v7655, %v7662
    %v7679 = vadd.f32 %v7656, %v7662
    %7680 = vst.msk [vmem:[#allocation11] sm:$0xff] %vm122, %v7664
    %7681 = vst.msk [vmem:[#allocation11 + $0x8] sm:$0xff] %vm122, %v7665
    %7682 = vst.msk [vmem:[#allocation11 + $0x10] sm:$0xff] %vm122, %v7666
    %7683 = vst.msk [vmem:[#allocation11 + $0x18] sm:$0xff] %vm122, %v7667
    %7684 = vst.msk [vmem:[#allocation11 + $0x20] sm:$0xff] %vm122, %v7668
    %7685 = vst.msk [vmem:[#allocation11 + $0x28] sm:$0xff] %vm122, %v7669
    %7686 = vst.msk [vmem:[#allocation11 + $0x30] sm:$0xff] %vm122, %v7670
    %7687 = vst.msk [vmem:[#allocation11 + $0x38] sm:$0xff] %vm122, %v7671
    %7688 = vst.msk [vmem:[#allocation11 + $0x40] sm:$0xff] %vm122, %v7672
    %7689 = vst.msk [vmem:[#allocation11 + $0x48] sm:$0xff] %vm122, %v7673
    %7690 = vst.msk [vmem:[#allocation11 + $0x50] sm:$0xff] %vm122, %v7674
    %7691 = vst.msk [vmem:[#allocation11 + $0x58] sm:$0xff] %vm122, %v7675
    %7692 = vst.msk [vmem:[#allocation11 + $0x60] sm:$0xff] %vm122, %v7676
    %7693 = vst.msk [vmem:[#allocation11 + $0x68] sm:$0xff] %vm122, %v7677
    %7694 = vst.msk [vmem:[#allocation11 + $0x70] sm:$0xff] %vm122, %v7678
    %7695 = vst.msk [vmem:[#allocation11 + $0x78] sm:$0xff] %vm122, %v7679
    // Predicated region
    $region50: #{tpu_custom_call.1} parent=1 // pred_check
      _
    $region51: #{tpu_custom_call.1} parent=1 // pred_check_branch
      %7697 = sbr.rel (0) target = $region53
    $region52: #{tpu_custom_call.1} parent=1 // pred_region
      %s7699 = ssub.s32 2048, 2048
      %7700 = vsyncadd [#allocation4], %s7699
      %s7701 = sshll.u32 [#allocation11], 4
      %s7702 = int_to_ptr.vmem [resolvable:$true] %s7701
      %7707 = dma.vmem_to_hbm [thread:$0]  %s7702, 2048, %s7, [#allocation4], 128, 128, 8
    $region53: #{tpu_custom_call.1} parent=1 // pred_fallthru
      _
    // Predicated region
    $region54: #{tpu_custom_call.1} parent=1 // pred_check
      _
    $region55: #{tpu_custom_call.1} parent=1 // pred_check_branch
      %7709 = sbr.rel (0) target = $region57
    $region56: #{tpu_custom_call.1} parent=1 // pred_region
      %7710 = dma.done [#allocation4], 2048
    $region57: #{tpu_custom_call.1} parent=1 // pred_fallthru
      _
    %7711 = vsyncpa [#allocation3], 1
    %7712 = vsyncpa [#allocation6], 1
    %7713 = vsyncpa [#allocation9], 1
    %7714 = vsyncpa [#allocation4], 1

</llo_original>
